<compile_context>
chip_gen: v7x
topology: tpu7x:2x2x1
jax: 0.10.0
libtpu: 0.0.40
codegen_flags: <defaults>
</compile_context>

<pallas_src>
import functools

import jax
import jax.numpy as jnp
from jax import lax
from jax.experimental import pallas as pl
from jax.experimental.pallas import tpu as pltpu

LANE = 128

_single_buffer_weights_ok = None  # resolved on the first pallas_call


# --------------------------------------------------------------------------
# Fused kernel
# --------------------------------------------------------------------------
def _basic_block_kernel(xph_ref, w1_ref, b1_ref, w2_ref, b2_ref, *rest,
                        stride, Ho, Wo, group, proj, compute_dtype):
    """Fused BasicBlock for one image.

    xph_ref : (1, s*s*Hp, Wpp, Cip)  stride-phase-split, halo/channel/width
                                     padded input (compute dtype)
    w1_ref  : (9*Cip, Cop)  conv1 weight, BN1 scale folded in
    b1_ref  : (1, Cop)      BN1 bias (f32)
    w2_ref  : (9*Cop, Cop)  conv2 weight, BN2 scale folded in
    b2_ref  : (1, Cop)      BN2 bias (f32)
    [wsc_ref (Cip, Cop), bsc_ref (1, Cop)]  projection shortcut (if proj)
    out_ref : (1, Ho, Wo, Cop)  output (out dtype)
    yp_ref  : (Ho+2, Wop, Cop)  VMEM scratch for the padded intermediate
    """
    if proj:
        wsc_ref, bsc_ref, out_ref, yp_ref = rest
    else:
        out_ref, yp_ref = rest

    s = stride
    Cip = xph_ref.shape[-1]
    Cop = out_ref.shape[-1]
    Hp = xph_ref.shape[1] // (s * s)
    Wyp = yp_ref.shape[1]

    def tap1(kh, kw):
        # One 3x3 tap of conv1: contiguous (Ho, Wo, Cip) slice of the
        # pre-split stride phase (all offsets static, no strided loads).
        row = ((kh % s) * s + (kw % s)) * Hp + kh // s
        return xph_ref[0, pl.ds(row, Ho), pl.ds(kw // s, Wo), :]

    def tap2(kh, kw):
        return yp_ref[pl.ds(kh, Ho), pl.ds(kw, Wo), :]

    def conv3x3(tap, w_ref, cin):
        # `group` kw-taps concatenated per MXU dot (1 on v5e, 3 on v6e/v7x);
        # partial products accumulate in f32.
        acc = None
        for kh in range(3):
            for kw0 in range(0, 3, group):
                taps = [tap(kh, kw0 + d) for d in range(group)]
                pat = taps[0] if group == 1 else jnp.concatenate(taps, axis=-1)
                pat = pat.reshape(Ho * Wo, group * cin)
                w = w_ref[pl.ds((kh * 3 + kw0) * cin, group * cin), :]
                part = jnp.dot(pat, w, preferred_element_type=jnp.float32)
                acc = part if acc is None else acc + part
        return acc

    # ---- stage 1: conv1 (BN1 scale folded) + bias + ReLU -------------------
    y = conv3x3(tap1, w1_ref, Cip)
    y = jnp.maximum(y + b1_ref[...], 0.0).astype(compute_dtype)

    # ---- intermediate stays on chip: scratch with a zero 1-px halo ---------
    # Only the halo strips are written; the interior is overwritten below.
    zrow = jnp.zeros((1, Wyp, Cop), compute_dtype)
    zcol = jnp.zeros((Ho, 1, Cop), compute_dtype)
    yp_ref[pl.ds(0, 1), :, :] = zrow
    yp_ref[pl.ds(Ho + 1, 1), :, :] = zrow
    yp_ref[pl.ds(1, Ho), pl.ds(0, 1), :] = zcol
    yp_ref[pl.ds(1, Ho), pl.ds(Wo + 1, 1), :] = zcol
    yp_ref[pl.ds(1, Ho), pl.ds(1, Wo), :] = y.reshape(Ho, Wo, Cop)

    # ---- stage 2: conv2 (BN2 scale folded) + bias ---------------------------
    out = conv3x3(tap2, w2_ref, Cop) + b2_ref[...]

    # ---- shortcut: the center tap of conv1 IS x[::s, ::s] -------------------
    xs = tap1(1, 1).reshape(Ho * Wo, Cip)
    if proj:
        out = out + (jnp.dot(xs, wsc_ref[...],
                             preferred_element_type=jnp.float32) + bsc_ref[...])
    else:
        out = out + xs.astype(jnp.float32)   # identity: direct add, no matmul

    out_ref[...] = jnp.maximum(out, 0.0).reshape(1, Ho, Wo, Cop).astype(out_ref.dtype)


# --------------------------------------------------------------------------
# Wrapper
# --------------------------------------------------------------------------
def _fold_bn(gamma, beta, mean, var, eps=1e-5):
    scale = gamma / jnp.sqrt(var + eps)
    return scale, beta - mean * scale


def _round_up(x, m):
    return (x + m - 1) // m * m


def _device_kind():
    try:
        return jax.devices()[0].device_kind.lower()
    except Exception:
        return ""


def _default_tap_group():
    # v5e's MXU is 128 deep: accumulating K=Cin dots matches a deep-K im2col
    # contraction in MXU passes but avoids the shifted-window copies.
    return 1 if "v5" in _device_kind() else 3


def _vmem_limit_bytes():
    kind = _device_kind()
    if "v7" in kind:
        return 48 * 1024 * 1024     # 64 MiB physical per TC: leave headroom
    if "v5" in kind or "v6" in kind:
        return 100 * 1024 * 1024    # 128 MiB physical
    return None                     # unknown chip: use the compiler default


def basic_block_forward(x_nhwc, params, *, stride=1, compute_dtype=jnp.bfloat16,
                        out_dtype=None, tap_group=None):
    global _single_buffer_weights_ok
    assert stride in (1, 2), "BasicBlock only uses stride 1 or 2"
    out_dtype = compute_dtype if out_dtype is None else out_dtype
    group = _default_tap_group() if tap_group is None else tap_group
    assert group in (1, 3)

    x_nhwc = x_nhwc.astype(jnp.float32)
    N, H, W, Ci = x_nhwc.shape
    Co = params["w1"].shape[-1]
    s = stride
    Ho = (H + 2 - 3) // s + 1
    Wo = (W + 2 - 3) // s + 1
    proj = params["wsc"] is not None
    if not proj:
        assert s == 1 and Ci == Co, "identity shortcut needs stride=1, Ci==Co"

    # Lane-dense channel padding; sublane tile for the row pitch.
    Cip = _round_up(Ci, LANE)
    Cop = _round_up(Co, LANE)
    sub = 32 // jnp.dtype(compute_dtype).itemsize      # 8 for f32, 16 for bf16

    # Fold BN scale into the conv weights; kernel epilogue is bias-only.
    s1, b1 = _fold_bn(*params["bn1"])
    s2, b2 = _fold_bn(*params["bn2"])
    w1f = params["w1"] * s1                             # (3,3,Ci,Co)
    w2f = params["w2"] * s2                             # (3,3,Co,Co)

    def pad_w3(w, ci, co, cip, cop):
        return jnp.pad(w, ((0, 0), (0, 0), (0, cip - ci), (0, cop - co)))

    w1p = pad_w3(w1f, Ci, Co, Cip, Cop).reshape(9 * Cip, Cop).astype(compute_dtype)
    w2p = pad_w3(w2f, Co, Co, Cop, Cop).reshape(9 * Cop, Cop).astype(compute_dtype)
    b1p = jnp.pad(b1, (0, Cop - Co)).reshape(1, Cop).astype(jnp.float32)
    b2p = jnp.pad(b2, (0, Cop - Co)).reshape(1, Cop).astype(jnp.float32)

    # Input prep: 1-px spatial halo, channel pad, stride-phase split, and
    # per-phase width padded to a sublane multiple.  Phase (ph,pw), row a,
    # col b holds x_pad[s*a+ph, s*b+pw]; tap (kh,kw) of conv1 is then the
    # contiguous slice [kh//s : kh//s+Ho, kw//s : kw//s+Wo] of phase
    # (kh%s, kw%s) -- no strided loads in the kernel.
    Hp = Ho + 2 // s
    Wp = Wo + 2 // s
    Wpp = _round_up(Wp, sub)
    xp = jnp.pad(x_nhwc, ((0, 0), (1, 1), (1, 1), (0, Cip - Ci)))
    xp = jnp.pad(xp, ((0, 0), (0, Hp * s - (H + 2)), (0, Wp * s - (W + 2)), (0, 0)))
    xph = xp.reshape(N, Hp, s, Wp, s, Cip).transpose(0, 2, 4, 1, 3, 5)
    xph = xph.reshape(N, s * s, Hp, Wp, Cip)
    xph = jnp.pad(xph, ((0, 0), (0, 0), (0, 0), (0, Wpp - Wp), (0, 0)))
    xph = xph.reshape(N, s * s * Hp, Wpp, Cip).astype(compute_dtype)

    Wop = _round_up(Wo + 2, sub)           # row pitch of the intermediate scratch

    inputs = [xph, w1p, b1p, w2p, b2p]
    if proj:
        ssc, bsc = _fold_bn(*params["bnsc"])
        wscp = jnp.pad(params["wsc"] * ssc,
                       ((0, Cip - Ci), (0, Cop - Co))).astype(compute_dtype)
        bscp = jnp.pad(bsc, (0, Cop - Co)).reshape(1, Cop).astype(jnp.float32)
        inputs += [wscp, bscp]

    kernel = functools.partial(_basic_block_kernel, stride=s, Ho=Ho, Wo=Wo,
                               group=group, proj=proj, compute_dtype=compute_dtype)

    def run(single_buffer_weights):
        def resident(shape):
            # Constant index_map: the block is resident across the batch grid.
            # Single-buffer it so Pallas does not duplicate weights in VMEM.
            kw = {}
            if single_buffer_weights:
                kw["pipeline_mode"] = pl.Buffered(buffer_count=1)
            return pl.BlockSpec(shape, lambda n: (0,) * len(shape), **kw)

        in_specs = [
            pl.BlockSpec((1, s * s * Hp, Wpp, Cip), lambda n: (n, 0, 0, 0)),
            resident((9 * Cip, Cop)), resident((1, Cop)),
            resident((9 * Cop, Cop)), resident((1, Cop)),
        ]
        if proj:
            in_specs += [resident((Cip, Cop)), resident((1, Cop))]

        return pl.pallas_call(
            kernel,
            grid=(N,),
            in_specs=in_specs,
            out_specs=pl.BlockSpec((1, Ho, Wo, Cop), lambda n: (n, 0, 0, 0)),
            out_shape=jax.ShapeDtypeStruct((N, Ho, Wo, Cop), out_dtype),
            scratch_shapes=[pltpu.VMEM((Ho + 2, Wop, Cop), compute_dtype)],
            compiler_params=pltpu.CompilerParams(
                dimension_semantics=("parallel",),
                vmem_limit_bytes=_vmem_limit_bytes(),
            ),
        )(*inputs)

    if _single_buffer_weights_ok is None:
        try:
            out = jax.block_until_ready(run(True))
            _single_buffer_weights_ok = True
        except Exception:   # pl.Buffered(1) not supported on this JAX build
            _single_buffer_weights_ok = False
            out = run(False)
    else:
        out = run(_single_buffer_weights_ok)

    return out[..., :Co]                    # drop the lane-padding channels


# --------------------------------------------------------------------------
# Pure-JAX reference (PyTorch padding semantics: explicit (1,1) padding)
# --------------------------------------------------------------------------
def _ref_forward(x_nhwc, params, *, stride=1):
    dn = ("NHWC", "HWIO", "NHWC")

    def bn(x, p):
        gamma, beta, mean, var = p
        return gamma * (x - mean) / jnp.sqrt(var + 1e-5) + beta

    def conv3(x, w, st):
        return lax.conv_general_dilated(x, w, (st, st), ((1, 1), (1, 1)),
                                        dimension_numbers=dn)

    out = jax.nn.relu(bn(conv3(x_nhwc, params["w1"], stride), params["bn1"]))
    out = bn(conv3(out, params["w2"], 1), params["bn2"])
    if params["wsc"] is not None:
        w = params["wsc"].reshape(1, 1, *params["wsc"].shape)
        sc = lax.conv_general_dilated(x_nhwc, w, (stride, stride),
                                      ((0, 0), (0, 0)), dimension_numbers=dn)
        sc = bn(sc, params["bnsc"])
    else:
        sc = x_nhwc
    return jax.nn.relu(out + sc)


# --------------------------------------------------------------------------
# Deterministic parameters + demo
# --------------------------------------------------------------------------
def _make_params(key, in_planes, planes, stride):
    ks = jax.random.split(key, 12)

    def bn_params(k0, k1, k2, k3, c):
        gamma = 1.0 + 0.1 * jax.random.normal(k0, (c,), jnp.float32)
        beta = 0.1 * jax.random.normal(k1, (c,), jnp.float32)
        mean = 0.1 * jax.random.normal(k2, (c,), jnp.float32)
        var = jax.random.uniform(k3, (c,), jnp.float32, 0.5, 1.5)
        return (gamma, beta, mean, var)

    w1 = 0.1 * jax.random.normal(ks[0], (3, 3, in_planes, planes), jnp.float32)
    w2 = 0.1 * jax.random.normal(ks[1], (3, 3, planes, planes), jnp.float32)
    params = {
        "w1": w1, "bn1": bn_params(ks[2], ks[3], ks[4], ks[5], planes),
        "w2": w2, "bn2": bn_params(ks[6], ks[7], ks[8], ks[9], planes),
        "wsc": None, "bnsc": None,
    }
    if stride != 1 or in_planes != planes:
        params["wsc"] = 0.1 * jax.random.normal(ks[10], (in_planes, planes),
                                                jnp.float32)
        kb = jax.random.split(ks[11], 4)
        params["bnsc"] = bn_params(kb[0], kb[1], kb[2], kb[3], planes)
    return params


if __name__ == "__main__":
    key = jax.random.PRNGKey(0)
    N = 2
    cases = [
        dict(name="identity", in_planes=8, planes=8, stride=1, hw=16),
        dict(name="projection", in_planes=4, planes=8, stride=1, hw=16),
        dict(name="proj_stride2", in_planes=4, planes=8, stride=2, hw=32),
    ]

    for ci, cfg in enumerate(cases):
        k_x, k_p = jax.random.split(jax.random.fold_in(key, ci))
        x_nchw = jax.random.normal(k_x, (N, cfg["in_planes"], cfg["hw"], cfg["hw"]),
                                   jnp.float32)
        x_nhwc = jnp.transpose(x_nchw, (0, 2, 3, 1))          # NCHW -> NHWC
        params = _make_params(k_p, cfg["in_planes"], cfg["planes"], cfg["stride"])
        ref = _ref_forward(x_nhwc, params, stride=cfg["stride"])

        # bf16 tolerance accounts for bf16 inputs/weights AND bf16 output.
        for cdt, rtol, atol in ((jnp.float32, 1e-4, 1e-4),
                                (jnp.bfloat16, 4e-2, 4e-2)):
            out = basic_block_forward(x_nhwc, params, stride=cfg["stride"],
                                      compute_dtype=cdt)
            out = jax.block_until_ready(out)
            assert out.shape == ref.shape, (cfg["name"], cdt, out.shape)
            assert jnp.allclose(out.astype(jnp.float32), ref, rtol=rtol, atol=atol), \
                f"mismatch vs reference: {cfg['name']} {cdt}"

    print("KERNEL_OK")
</pallas_src>

<mosaic_0001>
module attributes {stable_mosaic.version = 11 : i64} {
  func.func @_basic_block_kernel(%arg0: i32, %arg1: memref<1x18x24x128xf32, #tpu.memory_space<vmem>>, %arg2: memref<1152x128xf32, #tpu.memory_space<vmem>>, %arg3: memref<1x128xf32, #tpu.memory_space<vmem>>, %arg4: memref<1152x128xf32, #tpu.memory_space<vmem>>, %arg5: memref<1x128xf32, #tpu.memory_space<vmem>>, %arg6: memref<1x16x16x128xf32, #tpu.memory_space<vmem>>, %arg7: memref<18x24x128xf32, #tpu.memory_space<vmem>>) attributes {dimension_semantics = [#tpu.dimension_semantics<parallel>], iteration_bounds = array<i64: 2>, scalar_prefetch = 0 : i64, scratch_operands = 1 : i64, tpu.core_type = #tpu.core_type<tc>, window_params = [{transform_indices = @transform_0, window_bounds = array<i64: 1, 18, 24, 128>}, {pipeline_mode = #tpu.pipeline_mode<synchronous>, transform_indices = @transform_1, window_bounds = array<i64: 1152, 128>}, {pipeline_mode = #tpu.pipeline_mode<synchronous>, transform_indices = @transform_2, window_bounds = array<i64: 1, 128>}, {pipeline_mode = #tpu.pipeline_mode<synchronous>, transform_indices = @transform_3, window_bounds = array<i64: 1152, 128>}, {pipeline_mode = #tpu.pipeline_mode<synchronous>, transform_indices = @transform_4, window_bounds = array<i64: 1, 128>}, {transform_indices = @transform_5, window_bounds = array<i64: 1, 16, 16, 128>}]} {
    %c0 = arith.constant 0 : index
    %c0_0 = arith.constant 0 : index
    %c0_1 = arith.constant 0 : index
    %c0_2 = arith.constant 0 : index
    %0 = vector.load %arg1[%c0, %c0_0, %c0_1, %c0_2] : memref<1x18x24x128xf32, #tpu.memory_space<vmem>>, vector<1x16x16x128xf32>
    %1 = vector.shape_cast %0 : vector<1x16x16x128xf32> to vector<16x16x128xf32>
    %c0_3 = arith.constant 0 : index
    %c0_4 = arith.constant 0 : index
    %c1 = arith.constant 1 : index
    %c0_5 = arith.constant 0 : index
    %2 = vector.load %arg1[%c0_3, %c0_4, %c1, %c0_5] : memref<1x18x24x128xf32, #tpu.memory_space<vmem>>, vector<1x16x16x128xf32>
    %3 = vector.shape_cast %2 : vector<1x16x16x128xf32> to vector<16x16x128xf32>
    %c0_6 = arith.constant 0 : index
    %c0_7 = arith.constant 0 : index
    %c2 = arith.constant 2 : index
    %c0_8 = arith.constant 0 : index
    %4 = vector.load %arg1[%c0_6, %c0_7, %c2, %c0_8] : memref<1x18x24x128xf32, #tpu.memory_space<vmem>>, vector<1x16x16x128xf32>
    %5 = vector.shape_cast %4 : vector<1x16x16x128xf32> to vector<16x16x128xf32>
    %6 = tpu.concatenate %1, %3, %5 in 2 : vector<16x16x128xf32>, vector<16x16x128xf32>, vector<16x16x128xf32> -> vector<16x16x384xf32>
    %7 = vector.shape_cast %6 : vector<16x16x384xf32> to vector<256x384xf32>
    %c0_9 = arith.constant 0 : index
    %c0_10 = arith.constant 0 : index
    %8 = vector.load %arg2[%c0_9, %c0_10] : memref<1152x128xf32, #tpu.memory_space<vmem>>, vector<384x128xf32>
    %cst = arith.constant dense<0.000000e+00> : vector<256x128xf32>
    %9 = tpu.matmul %7, %8, %cst {dimension_numbers = #tpu.dot_dimension_numbers<[1], [0], [0], [1], [0, 0, 1, 1], [], []>} : vector<256x384xf32>, vector<384x128xf32>, vector<256x128xf32> -> vector<256x128xf32>
    %c0_11 = arith.constant 0 : index
    %c1_12 = arith.constant 1 : index
    %c0_13 = arith.constant 0 : index
    %c0_14 = arith.constant 0 : index
    %10 = vector.load %arg1[%c0_11, %c1_12, %c0_13, %c0_14] : memref<1x18x24x128xf32, #tpu.memory_space<vmem>>, vector<1x16x16x128xf32>
    %11 = vector.shape_cast %10 : vector<1x16x16x128xf32> to vector<16x16x128xf32>
    %c0_15 = arith.constant 0 : index
    %c1_16 = arith.constant 1 : index
    %c1_17 = arith.constant 1 : index
    %c0_18 = arith.constant 0 : index
    %12 = vector.load %arg1[%c0_15, %c1_16, %c1_17, %c0_18] : memref<1x18x24x128xf32, #tpu.memory_space<vmem>>, vector<1x16x16x128xf32>
    %13 = vector.shape_cast %12 : vector<1x16x16x128xf32> to vector<16x16x128xf32>
    %c0_19 = arith.constant 0 : index
    %c1_20 = arith.constant 1 : index
    %c2_21 = arith.constant 2 : index
    %c0_22 = arith.constant 0 : index
    %14 = vector.load %arg1[%c0_19, %c1_20, %c2_21, %c0_22] : memref<1x18x24x128xf32, #tpu.memory_space<vmem>>, vector<1x16x16x128xf32>
    %15 = vector.shape_cast %14 : vector<1x16x16x128xf32> to vector<16x16x128xf32>
    %16 = tpu.concatenate %11, %13, %15 in 2 : vector<16x16x128xf32>, vector<16x16x128xf32>, vector<16x16x128xf32> -> vector<16x16x384xf32>
    %17 = vector.shape_cast %16 : vector<16x16x384xf32> to vector<256x384xf32>
    %c384 = arith.constant 384 : index
    %c0_23 = arith.constant 0 : index
    %18 = vector.load %arg2[%c384, %c0_23] : memref<1152x128xf32, #tpu.memory_space<vmem>>, vector<384x128xf32>
    %cst_24 = arith.constant dense<0.000000e+00> : vector<256x128xf32>
    %19 = tpu.matmul %17, %18, %cst_24 {dimension_numbers = #tpu.dot_dimension_numbers<[1], [0], [0], [1], [0, 0, 1, 1], [], []>} : vector<256x384xf32>, vector<384x128xf32>, vector<256x128xf32> -> vector<256x128xf32>
    %20 = arith.addf %9, %19 : vector<256x128xf32>
    %c0_25 = arith.constant 0 : index
    %c2_26 = arith.constant 2 : index
    %c0_27 = arith.constant 0 : index
    %c0_28 = arith.constant 0 : index
    %21 = vector.load %arg1[%c0_25, %c2_26, %c0_27, %c0_28] : memref<1x18x24x128xf32, #tpu.memory_space<vmem>>, vector<1x16x16x128xf32>
    %22 = vector.shape_cast %21 : vector<1x16x16x128xf32> to vector<16x16x128xf32>
    %c0_29 = arith.constant 0 : index
    %c2_30 = arith.constant 2 : index
    %c1_31 = arith.constant 1 : index
    %c0_32 = arith.constant 0 : index
    %23 = vector.load %arg1[%c0_29, %c2_30, %c1_31, %c0_32] : memref<1x18x24x128xf32, #tpu.memory_space<vmem>>, vector<1x16x16x128xf32>
    %24 = vector.shape_cast %23 : vector<1x16x16x128xf32> to vector<16x16x128xf32>
    %c0_33 = arith.constant 0 : index
    %c2_34 = arith.constant 2 : index
    %c2_35 = arith.constant 2 : index
    %c0_36 = arith.constant 0 : index
    %25 = vector.load %arg1[%c0_33, %c2_34, %c2_35, %c0_36] : memref<1x18x24x128xf32, #tpu.memory_space<vmem>>, vector<1x16x16x128xf32>
    %26 = vector.shape_cast %25 : vector<1x16x16x128xf32> to vector<16x16x128xf32>
    %27 = tpu.concatenate %22, %24, %26 in 2 : vector<16x16x128xf32>, vector<16x16x128xf32>, vector<16x16x128xf32> -> vector<16x16x384xf32>
    %28 = vector.shape_cast %27 : vector<16x16x384xf32> to vector<256x384xf32>
    %c768 = arith.constant 768 : index
    %c0_37 = arith.constant 0 : index
    %29 = vector.load %arg2[%c768, %c0_37] : memref<1152x128xf32, #tpu.memory_space<vmem>>, vector<384x128xf32>
    %cst_38 = arith.constant dense<0.000000e+00> : vector<256x128xf32>
    %30 = tpu.matmul %28, %29, %cst_38 {dimension_numbers = #tpu.dot_dimension_numbers<[1], [0], [0], [1], [0, 0, 1, 1], [], []>} : vector<256x384xf32>, vector<384x128xf32>, vector<256x128xf32> -> vector<256x128xf32>
    %31 = arith.addf %20, %30 : vector<256x128xf32>
    %c0_39 = arith.constant 0 : index
    %c0_40 = arith.constant 0 : index
    %32 = vector.load %arg3[%c0_39, %c0_40] : memref<1x128xf32, #tpu.memory_space<vmem>>, vector<1x128xf32>
    %33 = vector.broadcast %32 : vector<1x128xf32> to vector<256x128xf32>
    %34 = arith.addf %31, %33 : vector<256x128xf32>
    %cst_41 = arith.constant 0.000000e+00 : f32
    %35 = vector.broadcast %cst_41 : f32 to vector<256x128xf32>
    %36 = arith.maximumf %34, %35 : vector<256x128xf32>
    %cst_42 = arith.constant 0.000000e+00 : f32
    %37 = vector.broadcast %cst_42 : f32 to vector<1x24x128xf32>
    %cst_43 = arith.constant 0.000000e+00 : f32
    %38 = vector.broadcast %cst_43 : f32 to vector<16x1x128xf32>
    %c0_44 = arith.constant 0 : index
    %c0_45 = arith.constant 0 : index
    %c0_46 = arith.constant 0 : index
    %39 = vector.load %arg7[%c0_44, %c0_45, %c0_46] : memref<18x24x128xf32, #tpu.memory_space<vmem>>, vector<1x24x128xf32>
    tpu.vector_store %arg7[%c0_44, %c0_45, %c0_46], %37 {strides = array<i32>} : memref<18x24x128xf32, #tpu.memory_space<vmem>>, vector<1x24x128xf32>,
    %c17 = arith.constant 17 : index
    %c0_47 = arith.constant 0 : index
    %c0_48 = arith.constant 0 : index
    %40 = vector.load %arg7[%c17, %c0_47, %c0_48] : memref<18x24x128xf32, #tpu.memory_space<vmem>>, vector<1x24x128xf32>
    tpu.vector_store %arg7[%c17, %c0_47, %c0_48], %37 {strides = array<i32>} : memref<18x24x128xf32, #tpu.memory_space<vmem>>, vector<1x24x128xf32>,
    %c1_49 = arith.constant 1 : index
    %c0_50 = arith.constant 0 : index
    %c0_51 = arith.constant 0 : index
    %41 = vector.load %arg7[%c1_49, %c0_50, %c0_51] : memref<18x24x128xf32, #tpu.memory_space<vmem>>, vector<16x1x128xf32>
    tpu.vector_store %arg7[%c1_49, %c0_50, %c0_51], %38 {strides = array<i32>} : memref<18x24x128xf32, #tpu.memory_space<vmem>>, vector<16x1x128xf32>,
    %c1_52 = arith.constant 1 : index
    %c17_53 = arith.constant 17 : index
    %c0_54 = arith.constant 0 : index
    %42 = vector.load %arg7[%c1_52, %c17_53, %c0_54] : memref<18x24x128xf32, #tpu.memory_space<vmem>>, vector<16x1x128xf32>
    tpu.vector_store %arg7[%c1_52, %c17_53, %c0_54], %38 {strides = array<i32>} : memref<18x24x128xf32, #tpu.memory_space<vmem>>, vector<16x1x128xf32>,
    %43 = vector.shape_cast %36 : vector<256x128xf32> to vector<16x16x128xf32>
    %c1_55 = arith.constant 1 : index
    %c1_56 = arith.constant 1 : index
    %c0_57 = arith.constant 0 : index
    %44 = vector.load %arg7[%c1_55, %c1_56, %c0_57] : memref<18x24x128xf32, #tpu.memory_space<vmem>>, vector<16x16x128xf32>
    tpu.vector_store %arg7[%c1_55, %c1_56, %c0_57], %43 {strides = array<i32>} : memref<18x24x128xf32, #tpu.memory_space<vmem>>, vector<16x16x128xf32>,
    %c0_58 = arith.constant 0 : index
    %c0_59 = arith.constant 0 : index
    %c0_60 = arith.constant 0 : index
    %45 = vector.load %arg7[%c0_58, %c0_59, %c0_60] : memref<18x24x128xf32, #tpu.memory_space<vmem>>, vector<16x16x128xf32>
    %c0_61 = arith.constant 0 : index
    %c1_62 = arith.constant 1 : index
    %c0_63 = arith.constant 0 : index
    %46 = vector.load %arg7[%c0_61, %c1_62, %c0_63] : memref<18x24x128xf32, #tpu.memory_space<vmem>>, vector<16x16x128xf32>
    %c0_64 = arith.constant 0 : index
    %c2_65 = arith.constant 2 : index
    %c0_66 = arith.constant 0 : index
    %47 = vector.load %arg7[%c0_64, %c2_65, %c0_66] : memref<18x24x128xf32, #tpu.memory_space<vmem>>, vector<16x16x128xf32>
    %48 = tpu.concatenate %45, %46, %47 in 2 : vector<16x16x128xf32>, vector<16x16x128xf32>, vector<16x16x128xf32> -> vector<16x16x384xf32>
    %49 = vector.shape_cast %48 : vector<16x16x384xf32> to vector<256x384xf32>
    %c0_67 = arith.constant 0 : index
    %c0_68 = arith.constant 0 : index
    %50 = vector.load %arg4[%c0_67, %c0_68] : memref<1152x128xf32, #tpu.memory_space<vmem>>, vector<384x128xf32>
    %cst_69 = arith.constant dense<0.000000e+00> : vector<256x128xf32>
    %51 = tpu.matmul %49, %50, %cst_69 {dimension_numbers = #tpu.dot_dimension_numbers<[1], [0], [0], [1], [0, 0, 1, 1], [], []>} : vector<256x384xf32>, vector<384x128xf32>, vector<256x128xf32> -> vector<256x128xf32>
    %c1_70 = arith.constant 1 : index
    %c0_71 = arith.constant 0 : index
    %c0_72 = arith.constant 0 : index
    %52 = vector.load %arg7[%c1_70, %c0_71, %c0_72] : memref<18x24x128xf32, #tpu.memory_space<vmem>>, vector<16x16x128xf32>
    %c1_73 = arith.constant 1 : index
    %c1_74 = arith.constant 1 : index
    %c0_75 = arith.constant 0 : index
    %53 = vector.load %arg7[%c1_73, %c1_74, %c0_75] : memref<18x24x128xf32, #tpu.memory_space<vmem>>, vector<16x16x128xf32>
    %c1_76 = arith.constant 1 : index
    %c2_77 = arith.constant 2 : index
    %c0_78 = arith.constant 0 : index
    %54 = vector.load %arg7[%c1_76, %c2_77, %c0_78] : memref<18x24x128xf32, #tpu.memory_space<vmem>>, vector<16x16x128xf32>
    %55 = tpu.concatenate %52, %53, %54 in 2 : vector<16x16x128xf32>, vector<16x16x128xf32>, vector<16x16x128xf32> -> vector<16x16x384xf32>
    %56 = vector.shape_cast %55 : vector<16x16x384xf32> to vector<256x384xf32>
    %c384_79 = arith.constant 384 : index
    %c0_80 = arith.constant 0 : index
    %57 = vector.load %arg4[%c384_79, %c0_80] : memref<1152x128xf32, #tpu.memory_space<vmem>>, vector<384x128xf32>
    %cst_81 = arith.constant dense<0.000000e+00> : vector<256x128xf32>
    %58 = tpu.matmul %56, %57, %cst_81 {dimension_numbers = #tpu.dot_dimension_numbers<[1], [0], [0], [1], [0, 0, 1, 1], [], []>} : vector<256x384xf32>, vector<384x128xf32>, vector<256x128xf32> -> vector<256x128xf32>
    %59 = arith.addf %51, %58 : vector<256x128xf32>
    %c2_82 = arith.constant 2 : index
    %c0_83 = arith.constant 0 : index
    %c0_84 = arith.constant 0 : index
    %60 = vector.load %arg7[%c2_82, %c0_83, %c0_84] : memref<18x24x128xf32, #tpu.memory_space<vmem>>, vector<16x16x128xf32>
    %c2_85 = arith.constant 2 : index
    %c1_86 = arith.constant 1 : index
    %c0_87 = arith.constant 0 : index
    %61 = vector.load %arg7[%c2_85, %c1_86, %c0_87] : memref<18x24x128xf32, #tpu.memory_space<vmem>>, vector<16x16x128xf32>
    %c2_88 = arith.constant 2 : index
    %c2_89 = arith.constant 2 : index
    %c0_90 = arith.constant 0 : index
    %62 = vector.load %arg7[%c2_88, %c2_89, %c0_90] : memref<18x24x128xf32, #tpu.memory_space<vmem>>, vector<16x16x128xf32>
    %63 = tpu.concatenate %60, %61, %62 in 2 : vector<16x16x128xf32>, vector<16x16x128xf32>, vector<16x16x128xf32> -> vector<16x16x384xf32>
    %64 = vector.shape_cast %63 : vector<16x16x384xf32> to vector<256x384xf32>
    %c768_91 = arith.constant 768 : index
    %c0_92 = arith.constant 0 : index
    %65 = vector.load %arg4[%c768_91, %c0_92] : memref<1152x128xf32, #tpu.memory_space<vmem>>, vector<384x128xf32>
    %cst_93 = arith.constant dense<0.000000e+00> : vector<256x128xf32>
    %66 = tpu.matmul %64, %65, %cst_93 {dimension_numbers = #tpu.dot_dimension_numbers<[1], [0], [0], [1], [0, 0, 1, 1], [], []>} : vector<256x384xf32>, vector<384x128xf32>, vector<256x128xf32> -> vector<256x128xf32>
    %67 = arith.addf %59, %66 : vector<256x128xf32>
    %c0_94 = arith.constant 0 : index
    %c0_95 = arith.constant 0 : index
    %68 = vector.load %arg5[%c0_94, %c0_95] : memref<1x128xf32, #tpu.memory_space<vmem>>, vector<1x128xf32>
    %69 = vector.broadcast %68 : vector<1x128xf32> to vector<256x128xf32>
    %70 = arith.addf %67, %69 : vector<256x128xf32>
    %c0_96 = arith.constant 0 : index
    %c1_97 = arith.constant 1 : index
    %c1_98 = arith.constant 1 : index
    %c0_99 = arith.constant 0 : index
    %71 = vector.load %arg1[%c0_96, %c1_97, %c1_98, %c0_99] : memref<1x18x24x128xf32, #tpu.memory_space<vmem>>, vector<1x16x16x128xf32>
    %72 = vector.shape_cast %71 : vector<1x16x16x128xf32> to vector<16x16x128xf32>
    %73 = vector.shape_cast %72 : vector<16x16x128xf32> to vector<256x128xf32>
    %74 = arith.addf %70, %73 : vector<256x128xf32>
    %cst_100 = arith.constant 0.000000e+00 : f32
    %75 = vector.broadcast %cst_100 : f32 to vector<256x128xf32>
    %76 = arith.maximumf %74, %75 : vector<256x128xf32>
    %77 = vector.shape_cast %76 : vector<256x128xf32> to vector<1x16x16x128xf32>
    %c0_101 = arith.constant 0 : index
    %c0_102 = arith.constant 0 : index
    %c0_103 = arith.constant 0 : index
    %c0_104 = arith.constant 0 : index
    %78 = vector.load %arg6[%c0_101, %c0_102, %c0_103, %c0_104] : memref<1x16x16x128xf32, #tpu.memory_space<vmem>>, vector<1x16x16x128xf32>
    tpu.vector_store %arg6[%c0_101, %c0_102, %c0_103, %c0_104], %77 {strides = array<i32>} : memref<1x16x16x128xf32, #tpu.memory_space<vmem>>, vector<1x16x16x128xf32>,
    return
  }
  func.func @transform_0(%arg0: i32) -> (i32, i32, i32, i32) {
    %c0_i32 = arith.constant 0 : i32
    %c0_i32_0 = arith.constant 0 : i32
    %c0_i32_1 = arith.constant 0 : i32
    %c0_i32_2 = arith.constant 0 : i32
    return %arg0, %c0_i32, %c0_i32_0, %c0_i32_1 : i32, i32, i32, i32
  }
  func.func @transform_1(%arg0: i32) -> (i32, i32) {
    %c0_i32 = arith.constant 0 : i32
    %c0_i32_0 = arith.constant 0 : i32
    %c0_i32_1 = arith.constant 0 : i32
    return %c0_i32, %c0_i32_0 : i32, i32
  }
  func.func @transform_2(%arg0: i32) -> (i32, i32) {
    %c0_i32 = arith.constant 0 : i32
    %c0_i32_0 = arith.constant 0 : i32
    %c0_i32_1 = arith.constant 0 : i32
    return %c0_i32, %c0_i32_0 : i32, i32
  }
  func.func @transform_3(%arg0: i32) -> (i32, i32) {
    %c0_i32 = arith.constant 0 : i32
    %c0_i32_0 = arith.constant 0 : i32
    %c0_i32_1 = arith.constant 0 : i32
    return %c0_i32, %c0_i32_0 : i32, i32
  }
  func.func @transform_4(%arg0: i32) -> (i32, i32) {
    %c0_i32 = arith.constant 0 : i32
    %c0_i32_0 = arith.constant 0 : i32
    %c0_i32_1 = arith.constant 0 : i32
    return %c0_i32, %c0_i32_0 : i32, i32
  }
  func.func @transform_5(%arg0: i32) -> (i32, i32, i32, i32) {
    %c0_i32 = arith.constant 0 : i32
    %c0_i32_0 = arith.constant 0 : i32
    %c0_i32_1 = arith.constant 0 : i32
    %c0_i32_2 = arith.constant 0 : i32
    return %arg0, %c0_i32, %c0_i32_0, %c0_i32_1 : i32, i32, i32, i32
  }
}

module attributes {stable_mosaic.version = 11 : i64} {
  func.func @_basic_block_kernel(%arg0: i32, %arg1: memref<1x18x24x128xf32, #tpu.memory_space<vmem>>, %arg2: memref<1152x128xf32, #tpu.memory_space<vmem>>, %arg3: memref<1x128xf32, #tpu.memory_space<vmem>>, %arg4: memref<1152x128xf32, #tpu.memory_space<vmem>>, %arg5: memref<1x128xf32, #tpu.memory_space<vmem>>, %arg6: memref<1x16x16x128xf32, #tpu.memory_space<vmem>>, %arg7: memref<18x24x128xf32, #tpu.memory_space<vmem>>) attributes {dimension_semantics = [#tpu.dimension_semantics<parallel>], iteration_bounds = array<i64: 2>, scalar_prefetch = 0 : i64, scratch_operands = 1 : i64, tpu.core_type = #tpu.core_type<tc>, window_params = [{transform_indices = @transform_0, window_bounds = array<i64: 1, 18, 24, 128>}, {pipeline_mode = #tpu.pipeline_mode<synchronous>, transform_indices = @transform_1, window_bounds = array<i64: 1152, 128>}, {pipeline_mode = #tpu.pipeline_mode<synchronous>, transform_indices = @transform_2, window_bounds = array<i64: 1, 128>}, {pipeline_mode = #tpu.pipeline_mode<synchronous>, transform_indices = @transform_3, window_bounds = array<i64: 1152, 128>}, {pipeline_mode = #tpu.pipeline_mode<synchronous>, transform_indices = @transform_4, window_bounds = array<i64: 1, 128>}, {transform_indices = @transform_5, window_bounds = array<i64: 1, 16, 16, 128>}]} {
    %c0 = arith.constant 0 : index
    %c0_0 = arith.constant 0 : index
    %c0_1 = arith.constant 0 : index
    %c0_2 = arith.constant 0 : index
    %0 = vector.load %arg1[%c0, %c0_0, %c0_1, %c0_2] : memref<1x18x24x128xf32, #tpu.memory_space<vmem>>, vector<1x16x16x128xf32>
    %1 = vector.shape_cast %0 : vector<1x16x16x128xf32> to vector<16x16x128xf32>
    %c0_3 = arith.constant 0 : index
    %c0_4 = arith.constant 0 : index
    %c1 = arith.constant 1 : index
    %c0_5 = arith.constant 0 : index
    %2 = vector.load %arg1[%c0_3, %c0_4, %c1, %c0_5] : memref<1x18x24x128xf32, #tpu.memory_space<vmem>>, vector<1x16x16x128xf32>
    %3 = vector.shape_cast %2 : vector<1x16x16x128xf32> to vector<16x16x128xf32>
    %c0_6 = arith.constant 0 : index
    %c0_7 = arith.constant 0 : index
    %c2 = arith.constant 2 : index
    %c0_8 = arith.constant 0 : index
    %4 = vector.load %arg1[%c0_6, %c0_7, %c2, %c0_8] : memref<1x18x24x128xf32, #tpu.memory_space<vmem>>, vector<1x16x16x128xf32>
    %5 = vector.shape_cast %4 : vector<1x16x16x128xf32> to vector<16x16x128xf32>
    %6 = tpu.concatenate %1, %3, %5 in 2 : vector<16x16x128xf32>, vector<16x16x128xf32>, vector<16x16x128xf32> -> vector<16x16x384xf32>
    %7 = vector.shape_cast %6 : vector<16x16x384xf32> to vector<256x384xf32>
    %c0_9 = arith.constant 0 : index
    %c0_10 = arith.constant 0 : index
    %8 = vector.load %arg2[%c0_9, %c0_10] : memref<1152x128xf32, #tpu.memory_space<vmem>>, vector<384x128xf32>
    %cst = arith.constant dense<0.000000e+00> : vector<256x128xf32>
    %9 = tpu.matmul %7, %8, %cst {dimension_numbers = #tpu.dot_dimension_numbers<[1], [0], [0], [1], [0, 0, 1, 1], [], []>} : vector<256x384xf32>, vector<384x128xf32>, vector<256x128xf32> -> vector<256x128xf32>
    %c0_11 = arith.constant 0 : index
    %c1_12 = arith.constant 1 : index
    %c0_13 = arith.constant 0 : index
    %c0_14 = arith.constant 0 : index
    %10 = vector.load %arg1[%c0_11, %c1_12, %c0_13, %c0_14] : memref<1x18x24x128xf32, #tpu.memory_space<vmem>>, vector<1x16x16x128xf32>
    %11 = vector.shape_cast %10 : vector<1x16x16x128xf32> to vector<16x16x128xf32>
    %c0_15 = arith.constant 0 : index
    %c1_16 = arith.constant 1 : index
    %c1_17 = arith.constant 1 : index
    %c0_18 = arith.constant 0 : index
    %12 = vector.load %arg1[%c0_15, %c1_16, %c1_17, %c0_18] : memref<1x18x24x128xf32, #tpu.memory_space<vmem>>, vector<1x16x16x128xf32>
    %13 = vector.shape_cast %12 : vector<1x16x16x128xf32> to vector<16x16x128xf32>
    %c0_19 = arith.constant 0 : index
    %c1_20 = arith.constant 1 : index
    %c2_21 = arith.constant 2 : index
    %c0_22 = arith.constant 0 : index
    %14 = vector.load %arg1[%c0_19, %c1_20, %c2_21, %c0_22] : memref<1x18x24x128xf32, #tpu.memory_space<vmem>>, vector<1x16x16x128xf32>
    %15 = vector.shape_cast %14 : vector<1x16x16x128xf32> to vector<16x16x128xf32>
    %16 = tpu.concatenate %11, %13, %15 in 2 : vector<16x16x128xf32>, vector<16x16x128xf32>, vector<16x16x128xf32> -> vector<16x16x384xf32>
    %17 = vector.shape_cast %16 : vector<16x16x384xf32> to vector<256x384xf32>
    %c384 = arith.constant 384 : index
    %c0_23 = arith.constant 0 : index
    %18 = vector.load %arg2[%c384, %c0_23] : memref<1152x128xf32, #tpu.memory_space<vmem>>, vector<384x128xf32>
    %cst_24 = arith.constant dense<0.000000e+00> : vector<256x128xf32>
    %19 = tpu.matmul %17, %18, %cst_24 {dimension_numbers = #tpu.dot_dimension_numbers<[1], [0], [0], [1], [0, 0, 1, 1], [], []>} : vector<256x384xf32>, vector<384x128xf32>, vector<256x128xf32> -> vector<256x128xf32>
    %20 = arith.addf %9, %19 : vector<256x128xf32>
    %c0_25 = arith.constant 0 : index
    %c2_26 = arith.constant 2 : index
    %c0_27 = arith.constant 0 : index
    %c0_28 = arith.constant 0 : index
    %21 = vector.load %arg1[%c0_25, %c2_26, %c0_27, %c0_28] : memref<1x18x24x128xf32, #tpu.memory_space<vmem>>, vector<1x16x16x128xf32>
    %22 = vector.shape_cast %21 : vector<1x16x16x128xf32> to vector<16x16x128xf32>
    %c0_29 = arith.constant 0 : index
    %c2_30 = arith.constant 2 : index
    %c1_31 = arith.constant 1 : index
    %c0_32 = arith.constant 0 : index
    %23 = vector.load %arg1[%c0_29, %c2_30, %c1_31, %c0_32] : memref<1x18x24x128xf32, #tpu.memory_space<vmem>>, vector<1x16x16x128xf32>
    %24 = vector.shape_cast %23 : vector<1x16x16x128xf32> to vector<16x16x128xf32>
    %c0_33 = arith.constant 0 : index
    %c2_34 = arith.constant 2 : index
    %c2_35 = arith.constant 2 : index
    %c0_36 = arith.constant 0 : index
    %25 = vector.load %arg1[%c0_33, %c2_34, %c2_35, %c0_36] : memref<1x18x24x128xf32, #tpu.memory_space<vmem>>, vector<1x16x16x128xf32>
    %26 = vector.shape_cast %25 : vector<1x16x16x128xf32> to vector<16x16x128xf32>
    %27 = tpu.concatenate %22, %24, %26 in 2 : vector<16x16x128xf32>, vector<16x16x128xf32>, vector<16x16x128xf32> -> vector<16x16x384xf32>
    %28 = vector.shape_cast %27 : vector<16x16x384xf32> to vector<256x384xf32>
    %c768 = arith.constant 768 : index
    %c0_37 = arith.constant 0 : index
    %29 = vector.load %arg2[%c768, %c0_37] : memref<1152x128xf32, #tpu.memory_space<vmem>>, vector<384x128xf32>
    %cst_38 = arith.constant dense<0.000000e+00> : vector<256x128xf32>
    %30 = tpu.matmul %28, %29, %cst_38 {dimension_numbers = #tpu.dot_dimension_numbers<[1], [0], [0], [1], [0, 0, 1, 1], [], []>} : vector<256x384xf32>, vector<384x128xf32>, vector<256x128xf32> -> vector<256x128xf32>
    %31 = arith.addf %20, %30 : vector<256x128xf32>
    %c0_39 = arith.constant 0 : index
    %c0_40 = arith.constant 0 : index
    %32 = vector.load %arg3[%c0_39, %c0_40] : memref<1x128xf32, #tpu.memory_space<vmem>>, vector<1x128xf32>
    %33 = vector.broadcast %32 : vector<1x128xf32> to vector<256x128xf32>
    %34 = arith.addf %31, %33 : vector<256x128xf32>
    %cst_41 = arith.constant 0.000000e+00 : f32
    %35 = vector.broadcast %cst_41 : f32 to vector<256x128xf32>
    %36 = arith.maximumf %34, %35 : vector<256x128xf32>
    %cst_42 = arith.constant 0.000000e+00 : f32
    %37 = vector.broadcast %cst_42 : f32 to vector<1x24x128xf32>
    %cst_43 = arith.constant 0.000000e+00 : f32
    %38 = vector.broadcast %cst_43 : f32 to vector<16x1x128xf32>
    %c0_44 = arith.constant 0 : index
    %c0_45 = arith.constant 0 : index
    %c0_46 = arith.constant 0 : index
    %39 = vector.load %arg7[%c0_44, %c0_45, %c0_46] : memref<18x24x128xf32, #tpu.memory_space<vmem>>, vector<1x24x128xf32>
    tpu.vector_store %arg7[%c0_44, %c0_45, %c0_46], %37 {strides = array<i32>} : memref<18x24x128xf32, #tpu.memory_space<vmem>>, vector<1x24x128xf32>,
    %c17 = arith.constant 17 : index
    %c0_47 = arith.constant 0 : index
    %c0_48 = arith.constant 0 : index
    %40 = vector.load %arg7[%c17, %c0_47, %c0_48] : memref<18x24x128xf32, #tpu.memory_space<vmem>>, vector<1x24x128xf32>
    tpu.vector_store %arg7[%c17, %c0_47, %c0_48], %37 {strides = array<i32>} : memref<18x24x128xf32, #tpu.memory_space<vmem>>, vector<1x24x128xf32>,
    %c1_49 = arith.constant 1 : index
    %c0_50 = arith.constant 0 : index
    %c0_51 = arith.constant 0 : index
    %41 = vector.load %arg7[%c1_49, %c0_50, %c0_51] : memref<18x24x128xf32, #tpu.memory_space<vmem>>, vector<16x1x128xf32>
    tpu.vector_store %arg7[%c1_49, %c0_50, %c0_51], %38 {strides = array<i32>} : memref<18x24x128xf32, #tpu.memory_space<vmem>>, vector<16x1x128xf32>,
    %c1_52 = arith.constant 1 : index
    %c17_53 = arith.constant 17 : index
    %c0_54 = arith.constant 0 : index
    %42 = vector.load %arg7[%c1_52, %c17_53, %c0_54] : memref<18x24x128xf32, #tpu.memory_space<vmem>>, vector<16x1x128xf32>
    tpu.vector_store %arg7[%c1_52, %c17_53, %c0_54], %38 {strides = array<i32>} : memref<18x24x128xf32, #tpu.memory_space<vmem>>, vector<16x1x128xf32>,
    %43 = vector.shape_cast %36 : vector<256x128xf32> to vector<16x16x128xf32>
    %c1_55 = arith.constant 1 : index
    %c1_56 = arith.constant 1 : index
    %c0_57 = arith.constant 0 : index
    %44 = vector.load %arg7[%c1_55, %c1_56, %c0_57] : memref<18x24x128xf32, #tpu.memory_space<vmem>>, vector<16x16x128xf32>
    tpu.vector_store %arg7[%c1_55, %c1_56, %c0_57], %43 {strides = array<i32>} : memref<18x24x128xf32, #tpu.memory_space<vmem>>, vector<16x16x128xf32>,
    %c0_58 = arith.constant 0 : index
    %c0_59 = arith.constant 0 : index
    %c0_60 = arith.constant 0 : index
    %45 = vector.load %arg7[%c0_58, %c0_59, %c0_60] : memref<18x24x128xf32, #tpu.memory_space<vmem>>, vector<16x16x128xf32>
    %c0_61 = arith.constant 0 : index
    %c1_62 = arith.constant 1 : index
    %c0_63 = arith.constant 0 : index
    %46 = vector.load %arg7[%c0_61, %c1_62, %c0_63] : memref<18x24x128xf32, #tpu.memory_space<vmem>>, vector<16x16x128xf32>
    %c0_64 = arith.constant 0 : index
    %c2_65 = arith.constant 2 : index
    %c0_66 = arith.constant 0 : index
    %47 = vector.load %arg7[%c0_64, %c2_65, %c0_66] : memref<18x24x128xf32, #tpu.memory_space<vmem>>, vector<16x16x128xf32>
    %48 = tpu.concatenate %45, %46, %47 in 2 : vector<16x16x128xf32>, vector<16x16x128xf32>, vector<16x16x128xf32> -> vector<16x16x384xf32>
    %49 = vector.shape_cast %48 : vector<16x16x384xf32> to vector<256x384xf32>
    %c0_67 = arith.constant 0 : index
    %c0_68 = arith.constant 0 : index
    %50 = vector.load %arg4[%c0_67, %c0_68] : memref<1152x128xf32, #tpu.memory_space<vmem>>, vector<384x128xf32>
    %cst_69 = arith.constant dense<0.000000e+00> : vector<256x128xf32>
    %51 = tpu.matmul %49, %50, %cst_69 {dimension_numbers = #tpu.dot_dimension_numbers<[1], [0], [0], [1], [0, 0, 1, 1], [], []>} : vector<256x384xf32>, vector<384x128xf32>, vector<256x128xf32> -> vector<256x128xf32>
    %c1_70 = arith.constant 1 : index
    %c0_71 = arith.constant 0 : index
    %c0_72 = arith.constant 0 : index
    %52 = vector.load %arg7[%c1_70, %c0_71, %c0_72] : memref<18x24x128xf32, #tpu.memory_space<vmem>>, vector<16x16x128xf32>
    %c1_73 = arith.constant 1 : index
    %c1_74 = arith.constant 1 : index
    %c0_75 = arith.constant 0 : index
    %53 = vector.load %arg7[%c1_73, %c1_74, %c0_75] : memref<18x24x128xf32, #tpu.memory_space<vmem>>, vector<16x16x128xf32>
    %c1_76 = arith.constant 1 : index
    %c2_77 = arith.constant 2 : index
    %c0_78 = arith.constant 0 : index
    %54 = vector.load %arg7[%c1_76, %c2_77, %c0_78] : memref<18x24x128xf32, #tpu.memory_space<vmem>>, vector<16x16x128xf32>
    %55 = tpu.concatenate %52, %53, %54 in 2 : vector<16x16x128xf32>, vector<16x16x128xf32>, vector<16x16x128xf32> -> vector<16x16x384xf32>
    %56 = vector.shape_cast %55 : vector<16x16x384xf32> to vector<256x384xf32>
    %c384_79 = arith.constant 384 : index
    %c0_80 = arith.constant 0 : index
    %57 = vector.load %arg4[%c384_79, %c0_80] : memref<1152x128xf32, #tpu.memory_space<vmem>>, vector<384x128xf32>
    %cst_81 = arith.constant dense<0.000000e+00> : vector<256x128xf32>
    %58 = tpu.matmul %56, %57, %cst_81 {dimension_numbers = #tpu.dot_dimension_numbers<[1], [0], [0], [1], [0, 0, 1, 1], [], []>} : vector<256x384xf32>, vector<384x128xf32>, vector<256x128xf32> -> vector<256x128xf32>
    %59 = arith.addf %51, %58 : vector<256x128xf32>
    %c2_82 = arith.constant 2 : index
    %c0_83 = arith.constant 0 : index
    %c0_84 = arith.constant 0 : index
    %60 = vector.load %arg7[%c2_82, %c0_83, %c0_84] : memref<18x24x128xf32, #tpu.memory_space<vmem>>, vector<16x16x128xf32>
    %c2_85 = arith.constant 2 : index
    %c1_86 = arith.constant 1 : index
    %c0_87 = arith.constant 0 : index
    %61 = vector.load %arg7[%c2_85, %c1_86, %c0_87] : memref<18x24x128xf32, #tpu.memory_space<vmem>>, vector<16x16x128xf32>
    %c2_88 = arith.constant 2 : index
    %c2_89 = arith.constant 2 : index
    %c0_90 = arith.constant 0 : index
    %62 = vector.load %arg7[%c2_88, %c2_89, %c0_90] : memref<18x24x128xf32, #tpu.memory_space<vmem>>, vector<16x16x128xf32>
    %63 = tpu.concatenate %60, %61, %62 in 2 : vector<16x16x128xf32>, vector<16x16x128xf32>, vector<16x16x128xf32> -> vector<16x16x384xf32>
    %64 = vector.shape_cast %63 : vector<16x16x384xf32> to vector<256x384xf32>
    %c768_91 = arith.constant 768 : index
    %c0_92 = arith.constant 0 : index
    %65 = vector.load %arg4[%c768_91, %c0_92] : memref<1152x128xf32, #tpu.memory_space<vmem>>, vector<384x128xf32>
    %cst_93 = arith.constant dense<0.000000e+00> : vector<256x128xf32>
    %66 = tpu.matmul %64, %65, %cst_93 {dimension_numbers = #tpu.dot_dimension_numbers<[1], [0], [0], [1], [0, 0, 1, 1], [], []>} : vector<256x384xf32>, vector<384x128xf32>, vector<256x128xf32> -> vector<256x128xf32>
    %67 = arith.addf %59, %66 : vector<256x128xf32>
    %c0_94 = arith.constant 0 : index
    %c0_95 = arith.constant 0 : index
    %68 = vector.load %arg5[%c0_94, %c0_95] : memref<1x128xf32, #tpu.memory_space<vmem>>, vector<1x128xf32>
    %69 = vector.broadcast %68 : vector<1x128xf32> to vector<256x128xf32>
    %70 = arith.addf %67, %69 : vector<256x128xf32>
    %c0_96 = arith.constant 0 : index
    %c1_97 = arith.constant 1 : index
    %c1_98 = arith.constant 1 : index
    %c0_99 = arith.constant 0 : index
    %71 = vector.load %arg1[%c0_96, %c1_97, %c1_98, %c0_99] : memref<1x18x24x128xf32, #tpu.memory_space<vmem>>, vector<1x16x16x128xf32>
    %72 = vector.shape_cast %71 : vector<1x16x16x128xf32> to vector<16x16x128xf32>
    %73 = vector.shape_cast %72 : vector<16x16x128xf32> to vector<256x128xf32>
    %74 = arith.addf %70, %73 : vector<256x128xf32>
    %cst_100 = arith.constant 0.000000e+00 : f32
    %75 = vector.broadcast %cst_100 : f32 to vector<256x128xf32>
    %76 = arith.maximumf %74, %75 : vector<256x128xf32>
    %77 = vector.shape_cast %76 : vector<256x128xf32> to vector<1x16x16x128xf32>
    %c0_101 = arith.constant 0 : index
    %c0_102 = arith.constant 0 : index
    %c0_103 = arith.constant 0 : index
    %c0_104 = arith.constant 0 : index
    %78 = vector.load %arg6[%c0_101, %c0_102, %c0_103, %c0_104] : memref<1x16x16x128xf32, #tpu.memory_space<vmem>>, vector<1x16x16x128xf32>
    tpu.vector_store %arg6[%c0_101, %c0_102, %c0_103, %c0_104], %77 {strides = array<i32>} : memref<1x16x16x128xf32, #tpu.memory_space<vmem>>, vector<1x16x16x128xf32>,
    return
  }
  func.func @transform_0(%arg0: i32) -> (i32, i32, i32, i32) {
    %c0_i32 = arith.constant 0 : i32
    %c0_i32_0 = arith.constant 0 : i32
    %c0_i32_1 = arith.constant 0 : i32
    %c0_i32_2 = arith.constant 0 : i32
    return %arg0, %c0_i32, %c0_i32_0, %c0_i32_1 : i32, i32, i32, i32
  }
  func.func @transform_1(%arg0: i32) -> (i32, i32) {
    %c0_i32 = arith.constant 0 : i32
    %c0_i32_0 = arith.constant 0 : i32
    %c0_i32_1 = arith.constant 0 : i32
    return %c0_i32, %c0_i32_0 : i32, i32
  }
  func.func @transform_2(%arg0: i32) -> (i32, i32) {
    %c0_i32 = arith.constant 0 : i32
    %c0_i32_0 = arith.constant 0 : i32
    %c0_i32_1 = arith.constant 0 : i32
    return %c0_i32, %c0_i32_0 : i32, i32
  }
  func.func @transform_3(%arg0: i32) -> (i32, i32) {
    %c0_i32 = arith.constant 0 : i32
    %c0_i32_0 = arith.constant 0 : i32
    %c0_i32_1 = arith.constant 0 : i32
    return %c0_i32, %c0_i32_0 : i32, i32
  }
  func.func @transform_4(%arg0: i32) -> (i32, i32) {
    %c0_i32 = arith.constant 0 : i32
    %c0_i32_0 = arith.constant 0 : i32
    %c0_i32_1 = arith.constant 0 : i32
    return %c0_i32, %c0_i32_0 : i32, i32
  }
  func.func @transform_5(%arg0: i32) -> (i32, i32, i32, i32) {
    %c0_i32 = arith.constant 0 : i32
    %c0_i32_0 = arith.constant 0 : i32
    %c0_i32_1 = arith.constant 0 : i32
    %c0_i32_2 = arith.constant 0 : i32
    return %arg0, %c0_i32, %c0_i32_0, %c0_i32_1 : i32, i32, i32, i32
  }
}

</mosaic_0001>

<llo_original>
// kernel: tpu_custom_call.1
$region0: #{tpu_custom_call.1}
  #allocation0 [shape = 'u32[]', space=smem, size = 0x4, offset = 0x4, fixed_abs, tag = 'smem constant byte address 0x4 - core index']
  #allocation1 [shape = 'u32[144,128]{1,0:T(1,128)}', space=vmem, size = 0x12000, scoped, tag = 'internal scratch']
  #allocation2 [shape = 'f32[18,24,128]{2,1,0:T(8,128)}', space=vmem, size = 0x36000, scoped, tag = 'scratch operand']
  %s0 = inlined_call_operand.hbm [shape: f32[2,18,24,128], index: 0, kind: input, shape index: {}]
  %s1 = inlined_call_operand.hbm [shape: f32[1152,128], index: 1, kind: input, shape index: {}]
  %s2 = inlined_call_operand.vmem [shape: f32[1,128], index: 2, kind: input, shape index: {}]
  %s3 = inlined_call_operand.hbm [shape: f32[1152,128], index: 3, kind: input, shape index: {}]
  %s4 = inlined_call_operand.vmem [shape: f32[1,128], index: 4, kind: input, shape index: {}]
  %s5 = inlined_call_operand.hbm [shape: f32[2,16,16,128], index: 5, kind: output, shape index: {}]
  %s6 = sld [smem:[#allocation0]]
  $region65: #{tpu_custom_call.1} parent=0
    _
  %s8 = ssub.s32 1, %s6
  %s9 = scalar_select 0, %s8, %s6
  $region1: #{tpu_custom_call.1} parent=0
    #allocation3 [shape = 'u8[442368]{0}', space=vmem, size = 0x6c000, scoped, tag = 'input window, operand 0']
    #allocation4 [shape = 's32[2]{0}', space=sflag, size = 0x8, scoped, tag = 'scoped memory for tpu_custom_call.1']
    #allocation5 [shape = 's32[2]{0}', space=sflag, size = 0x8, scoped, tag = 'scoped memory for tpu_custom_call.1']
    #allocation6 [shape = 'u8[589824]{0}', space=vmem, size = 0x90000, scoped, tag = 'input window, operand 1, single buffered']
    #allocation7 [shape = 's32[1]{0}', space=sflag, size = 0x4, scoped, tag = 'scoped memory for tpu_custom_call.1']
    #allocation8 [shape = 'u8[589824]{0}', space=vmem, size = 0x90000, scoped, tag = 'input window, operand 3, single buffered']
    #allocation9 [shape = 'u8[262144]{0}', space=vmem, size = 0x40000, scoped, tag = 'output window, operand 0']
    %10 = vsyncpa [#allocation4], 0
    %s11 = scalar_lea.sflag [#allocation4], 1
    %12 = vsyncpa %s11, 0
    %13 = vsyncpa [#allocation7], 0
    %14 = vsyncpa [#allocation5], 0
    %s15 = scalar_lea.sflag [#allocation5], 1
    %16 = vsyncpa %s15, 0
    loop: start=0, step=1, limit=4
    $region2: #{tpu_custom_call.1} parent=1 // loop_pre_header
      _
    $region3: #{tpu_custom_call.1} parent=1 // loop_header
      %s18 = sphi 0, %s22
      %p19 = scmp.ge.s32.totalorder %s18, 4
      %s28 = sphi 0, %s30
      %s31 = sphi 0, %s28
      %s32 = sphi 0, %s31
      %s48 = sphi 0, %s32
      %s52 = sphi 0, %s52
      %s54 = sphi 0, %s52
      %s55 = sphi 0, %s54
      %s69 = sphi 0, %s55
      %s73 = sphi 0, %s73
      %s75 = sphi 0, %s73
      %s76 = sphi 0, %s75
      %s90 = sphi 0, %s76
      %s94 = sphi 0, %s94
      %s96 = sphi 0, %s94
      %s97 = sphi 0, %s96
      %s111 = sphi 0, %s97
      %s115 = sphi 0, %s115
      %s117 = sphi 0, %s115
      %s118 = sphi 0, %s117
      %s132 = sphi 0, %s118
      %s138 = sphi 0, %s140
      %s141 = sphi 0, %s138
      %s142 = sphi 0, %s141
      %s158 = sphi 0, %s142
    $region4: #{tpu_custom_call.1} parent=1 // loop_header_branch
      %21 = sbr.rel (%p19) target = $region8
    $region5: #{tpu_custom_call.1} parent=1 // loop_body
      %s23 = ssub.s32 %s18, 1
      %s24 = ssub.s32 %s18, 2
      %s25 = sadd.s32 %s18, 1
      %s26 = ssub.s32 %s18, %s25
      %p27 = scmp.eq.s32.totalorder %s26, 0
      %s29 = sadd.s32 %s28, 1
      %s30 = scalar_select %p27, %s28, %s29
      %p33 = pneg %p27
      %p34 = scmp.eq.s32.totalorder %s18, 1
      %p35 = por %p33, %p34
      %p36 = scmp.ne.s32.totalorder %s28, %s31
      %p37 = scmp.eq.s32.totalorder %s18, 0
      %p38 = por %p36, %p37
      %p39 = scmp.ne.s32.totalorder %s28, %s31
      %p40 = scmp.eq.s32.totalorder %s23, 1
      %p41 = por %p39, %p40
      %p42 = scmp.ne.s32.totalorder %s31, %s32
      %p43 = scmp.eq.s32.totalorder %s23, 0
      %p44 = por %p42, %p43
      %p45 = scmp.ne.s32.totalorder %s31, %s32
      %p46 = scmp.eq.s32.totalorder %s24, 1
      %p47 = por %p45, %p46
      %p49 = scmp.ne.s32.totalorder %s32, %s48
      %p50 = scmp.eq.s32.totalorder %s24, 0
      %p51 = por %p49, %p50
      %s53 = sadd.s32 %s52, 1
      %p56 = scmp.eq.s32.totalorder %s18, 1
      %p57 = scmp.ne.s32.totalorder %s52, %s54
      %p58 = scmp.eq.s32.totalorder %s18, 0
      %p59 = por %p57, %p58
      %p60 = scmp.ne.s32.totalorder %s52, %s54
      %p61 = scmp.eq.s32.totalorder %s23, 1
      %p62 = por %p60, %p61
      %p63 = scmp.ne.s32.totalorder %s54, %s55
      %p64 = scmp.eq.s32.totalorder %s23, 0
      %p65 = por %p63, %p64
      %p66 = scmp.ne.s32.totalorder %s54, %s55
      %p67 = scmp.eq.s32.totalorder %s24, 1
      %p68 = por %p66, %p67
      %p70 = scmp.ne.s32.totalorder %s55, %s69
      %p71 = scmp.eq.s32.totalorder %s24, 0
      %p72 = por %p70, %p71
      %s74 = sadd.s32 %s73, 1
      %p77 = scmp.eq.s32.totalorder %s18, 1
      %p78 = scmp.ne.s32.totalorder %s73, %s75
      %p79 = scmp.eq.s32.totalorder %s18, 0
      %p80 = por %p78, %p79
      %p81 = scmp.ne.s32.totalorder %s73, %s75
      %p82 = scmp.eq.s32.totalorder %s23, 1
      %p83 = por %p81, %p82
      %p84 = scmp.ne.s32.totalorder %s75, %s76
      %p85 = scmp.eq.s32.totalorder %s23, 0
      %p86 = por %p84, %p85
      %p87 = scmp.ne.s32.totalorder %s75, %s76
      %p88 = scmp.eq.s32.totalorder %s24, 1
      %p89 = por %p87, %p88
      %p91 = scmp.ne.s32.totalorder %s76, %s90
      %p92 = scmp.eq.s32.totalorder %s24, 0
      %p93 = por %p91, %p92
      %s95 = sadd.s32 %s94, 1
      %p98 = scmp.eq.s32.totalorder %s18, 1
      %p99 = scmp.ne.s32.totalorder %s94, %s96
      %p100 = scmp.eq.s32.totalorder %s18, 0
      %p101 = por %p99, %p100
      %p102 = scmp.ne.s32.totalorder %s94, %s96
      %p103 = scmp.eq.s32.totalorder %s23, 1
      %p104 = por %p102, %p103
      %p105 = scmp.ne.s32.totalorder %s96, %s97
      %p106 = scmp.eq.s32.totalorder %s23, 0
      %p107 = por %p105, %p106
      %p108 = scmp.ne.s32.totalorder %s96, %s97
      %p109 = scmp.eq.s32.totalorder %s24, 1
      %p110 = por %p108, %p109
      %p112 = scmp.ne.s32.totalorder %s97, %s111
      %p113 = scmp.eq.s32.totalorder %s24, 0
      %p114 = por %p112, %p113
      %s116 = sadd.s32 %s115, 1
      %p119 = scmp.eq.s32.totalorder %s18, 1
      %p120 = scmp.ne.s32.totalorder %s115, %s117
      %p121 = scmp.eq.s32.totalorder %s18, 0
      %p122 = por %p120, %p121
      %p123 = scmp.ne.s32.totalorder %s115, %s117
      %p124 = scmp.eq.s32.totalorder %s23, 1
      %p125 = por %p123, %p124
      %p126 = scmp.ne.s32.totalorder %s117, %s118
      %p127 = scmp.eq.s32.totalorder %s23, 0
      %p128 = por %p126, %p127
      %p129 = scmp.ne.s32.totalorder %s117, %s118
      %p130 = scmp.eq.s32.totalorder %s24, 1
      %p131 = por %p129, %p130
      %p133 = scmp.ne.s32.totalorder %s118, %s132
      %p134 = scmp.eq.s32.totalorder %s24, 0
      %p135 = por %p133, %p134
      %s136 = ssub.s32 %s18, %s25
      %p137 = scmp.eq.s32.totalorder %s136, 0
      %s139 = sadd.s32 %s138, 1
      %s140 = scalar_select %p137, %s138, %s139
      %p143 = pneg %p137
      %p144 = scmp.eq.s32.totalorder %s18, 1
      %p145 = por %p143, %p144
      %p146 = scmp.ne.s32.totalorder %s138, %s141
      %p147 = scmp.eq.s32.totalorder %s18, 0
      %p148 = por %p146, %p147
      %p149 = scmp.ne.s32.totalorder %s138, %s141
      %p150 = scmp.eq.s32.totalorder %s23, 1
      %p151 = por %p149, %p150
      %p152 = scmp.ne.s32.totalorder %s141, %s142
      %p153 = scmp.eq.s32.totalorder %s23, 0
      %p154 = por %p152, %p153
      %p155 = scmp.ne.s32.totalorder %s141, %s142
      %p156 = scmp.eq.s32.totalorder %s24, 1
      %p157 = por %p155, %p156
      %p159 = scmp.ne.s32.totalorder %s142, %s158
      %p160 = scmp.eq.s32.totalorder %s24, 0
      %p161 = por %p159, %p160
      %p162 = scmp.le.s32.totalorder 1, %s18
      %p163 = scmp.lt.s32.totalorder %s18, 3
      %p164 = pnand %p162, %p163
      %p165 = pneg %p164
      // Predicated region
      $region9: #{tpu_custom_call.1} parent=5 // pred_check
        _
      $region10: #{tpu_custom_call.1} parent=5 // pred_check_branch
        %167 = sbr.rel (%p164) target = $region12
      $region11: #{tpu_custom_call.1} parent=5 // pred_region
        %s168 = ssub.s32 %s18, 1
        // Predicated region
        $region13: #{tpu_custom_call.1} parent=11 // pred_check
          %p169 = pneg %p65
        $region14: #{tpu_custom_call.1} parent=11 // pred_check_branch
          %171 = sbr.rel (%p169) target = $region16
        $region15: #{tpu_custom_call.1} parent=11 // pred_region
          %s173 = ssub.s32 18432, 18432
          %174 = vsyncadd [#allocation7], %s173
          %s175 = sshll.u32 [#allocation6], 4
          %s176 = int_to_ptr.vmem [resolvable:$true] %s175
          %181 = dma.hbm_to_vmem [thread:$0]  %s1, 18432, %s176, [#allocation7], 128, 128, 8
        $region16: #{tpu_custom_call.1} parent=11 // pred_fallthru
          _
        // Predicated region
        $region17: #{tpu_custom_call.1} parent=11 // pred_check
          %p182 = pneg %p86
        $region18: #{tpu_custom_call.1} parent=11 // pred_check_branch
          %184 = sbr.rel (%p182) target = $region20
        $region19: #{tpu_custom_call.1} parent=11 // pred_region
          _
        $region20: #{tpu_custom_call.1} parent=11 // pred_fallthru
          _
        // Predicated region
        $region21: #{tpu_custom_call.1} parent=11 // pred_check
          %p185 = pneg %p107
        $region22: #{tpu_custom_call.1} parent=11 // pred_check_branch
          %187 = sbr.rel (%p185) target = $region24
        $region23: #{tpu_custom_call.1} parent=11 // pred_region
          %s189 = ssub.s32 18432, 18432
          %190 = vsyncadd [#allocation7], %s189
          %s191 = sshll.u32 [#allocation8], 4
          %s192 = int_to_ptr.vmem [resolvable:$true] %s191
          %197 = dma.hbm_to_vmem [thread:$0]  %s3, 18432, %s192, [#allocation7], 128, 128, 8
        $region24: #{tpu_custom_call.1} parent=11 // pred_fallthru
          _
        // Predicated region
        $region25: #{tpu_custom_call.1} parent=11 // pred_check
          %p198 = pneg %p128
        $region26: #{tpu_custom_call.1} parent=11 // pred_check_branch
          %200 = sbr.rel (%p198) target = $region28
        $region27: #{tpu_custom_call.1} parent=11 // pred_region
          _
        $region28: #{tpu_custom_call.1} parent=11 // pred_fallthru
          _
      $region12: #{tpu_custom_call.1} parent=5 // pred_fallthru
        _
      %p201 = scmp.lt.s32.totalorder %s18, 2
      // Predicated region
      $region29: #{tpu_custom_call.1} parent=5 // pred_check
        %p202 = pneg %p201
      $region30: #{tpu_custom_call.1} parent=5 // pred_check_branch
        %204 = sbr.rel (%p202) target = $region32
      $region31: #{tpu_custom_call.1} parent=5 // pred_region
        // Predicated region
        $region33: #{tpu_custom_call.1} parent=31 // pred_check
          %p205 = pneg %p38
        $region34: #{tpu_custom_call.1} parent=31 // pred_check_branch
          %207 = sbr.rel (%p205) target = $region36
        $region35: #{tpu_custom_call.1} parent=31 // pred_region
          %s208 = sand.u32 %s28, 1
          %s209 = scalar_lea.sflag [#allocation4], %s208
          %s210 = sand.u32 %s28, 1
          %s211 = smul.addr %s210, 432
          %s212 = scalar_lea.vmem [#allocation3], %s211
          %s214 = ssub.s32 6912, 6912
          %215 = vsyncadd %s209, %s214
          %s216 = smul.addr %s18, 54
          %s217 = smul.addr %s216, 128
          %s218 = scalar_lea.hbm %s0, %s217
          %s219 = sshll.u32 %s212, 4
          %s220 = int_to_ptr.vmem [resolvable:$true] %s219
          %225 = dma.hbm_to_vmem [thread:$0]  %s218, 6912, %s220, %s209, 128, 128, 8
        $region36: #{tpu_custom_call.1} parent=31 // pred_fallthru
          _
      $region32: #{tpu_custom_call.1} parent=5 // pred_fallthru
        _
      %p226 = scmp.le.s32.totalorder 1, %s18
      %p227 = scmp.lt.s32.totalorder %s18, 3
      %p228 = pnand %p226, %p227
      %p229 = pneg %p228
      // Predicated region
      $region37: #{tpu_custom_call.1} parent=5 // pred_check
        _
      $region38: #{tpu_custom_call.1} parent=5 // pred_check_branch
        %231 = sbr.rel (%p228) target = $region40
      $region39: #{tpu_custom_call.1} parent=5 // pred_region
        %s232 = ssub.s32 %s18, 1
        %s233 = sand.u32 %s31, 1
        %s234 = scalar_lea.sflag [#allocation4], %s233
        %s235 = sand.u32 %s31, 1
        %s236 = smul.addr %s235, 432
        %s237 = scalar_lea.vmem [#allocation3], %s236
        // Predicated region
        $region41: #{tpu_custom_call.1} parent=39 // pred_check
          %p238 = pneg %p44
        $region42: #{tpu_custom_call.1} parent=39 // pred_check_branch
          %240 = sbr.rel (%p238) target = $region44
        $region43: #{tpu_custom_call.1} parent=39 // pred_region
          %241 = dma.done %s234, 6912
        $region44: #{tpu_custom_call.1} parent=39 // pred_fallthru
          _
        // Predicated region
        $region45: #{tpu_custom_call.1} parent=39 // pred_check
          %p242 = pneg %p65
        $region46: #{tpu_custom_call.1} parent=39 // pred_check_branch
          %244 = sbr.rel (%p242) target = $region48
        $region47: #{tpu_custom_call.1} parent=39 // pred_region
          %245 = dma.done [#allocation7], 18432
        $region48: #{tpu_custom_call.1} parent=39 // pred_fallthru
          _
        // Predicated region
        $region49: #{tpu_custom_call.1} parent=39 // pred_check
          %p246 = pneg %p107
        $region50: #{tpu_custom_call.1} parent=39 // pred_check_branch
          %248 = sbr.rel (%p246) target = $region52
        $region51: #{tpu_custom_call.1} parent=39 // pred_region
          %249 = dma.done [#allocation7], 18432
        $region52: #{tpu_custom_call.1} parent=39 // pred_fallthru
          _
        %s250 = sand.u32 %s31, 1
        %s251 = scalar_lea.sflag [#allocation4], %s250
        %s252 = sand.u32 %s31, 1
        %s253 = smul.addr %s252, 432
        %s254 = scalar_lea.vmem [#allocation3], %s253
        %p255 = pneg %p44
        %p256 = pneg %p41
        %p257 = pneg %p65
        %p258 = pneg %p62
        %p259 = pneg %p86
        %p260 = pneg %p83
        %p261 = pneg %p107
        %p262 = pneg %p104
        %p263 = pneg %p128
        %p264 = pneg %p125
        %p265 = pneg %p154
        %p266 = pneg %p151
        %s267 = sand.u32 %s141, 1
        %s268 = scalar_lea.sflag [#allocation5], %s267
        %s269 = sand.u32 %s141, 1
        %s270 = smul.addr %s269, 256
        %s271 = scalar_lea.vmem [#allocation9], %s270
        %v272 = vld [vmem:[%s237] sm:$0xff]
        %v273 = vld [vmem:[%s237 + $0x8] sm:$0xff]
        %v274 = vld [vmem:[%s237 + $0x18] sm:$0xff]
        %v275 = vld [vmem:[%s237 + $0x20] sm:$0xff]
        %v276 = vld [vmem:[%s237 + $0x30] sm:$0xff]
        %v277 = vld [vmem:[%s237 + $0x38] sm:$0xff]
        %v278 = vld [vmem:[%s237 + $0x48] sm:$0xff]
        %v279 = vld [vmem:[%s237 + $0x50] sm:$0xff]
        %v280 = vld [vmem:[%s237 + $0x60] sm:$0xff]
        %v281 = vld [vmem:[%s237 + $0x68] sm:$0xff]
        %v282 = vld [vmem:[%s237 + $0x78] sm:$0xff]
        %v283 = vld [vmem:[%s237 + $0x80] sm:$0xff]
        %v284 = vld [vmem:[%s237 + $0x90] sm:$0xff]
        %v285 = vld [vmem:[%s237 + $0x98] sm:$0xff]
        %v286 = vld [vmem:[%s237 + $0xa8] sm:$0xff]
        %v287 = vld [vmem:[%s237 + $0xb0] sm:$0xff]
        %v288 = vld [vmem:[%s237 + $0xc0] sm:$0xff]
        %v289 = vld [vmem:[%s237 + $0xc8] sm:$0xff]
        %v290 = vld [vmem:[%s237 + $0xd8] sm:$0xff]
        %v291 = vld [vmem:[%s237 + $0xe0] sm:$0xff]
        %v292 = vld [vmem:[%s237 + $0xf0] sm:$0xff]
        %v293 = vld [vmem:[%s237 + $0xf8] sm:$0xff]
        %v294 = vld [vmem:[%s237 + $0x108] sm:$0xff]
        %v295 = vld [vmem:[%s237 + $0x110] sm:$0xff]
        %v296 = vld [vmem:[%s237 + $0x120] sm:$0xff]
        %v297 = vld [vmem:[%s237 + $0x128] sm:$0xff]
        %v298 = vld [vmem:[%s237 + $0x138] sm:$0xff]
        %v299 = vld [vmem:[%s237 + $0x140] sm:$0xff]
        %v300 = vld [vmem:[%s237 + $0x150] sm:$0xff]
        %v301 = vld [vmem:[%s237 + $0x158] sm:$0xff]
        %v302 = vld [vmem:[%s237 + $0x168] sm:$0xff]
        %v303 = vld [vmem:[%s237 + $0x170] sm:$0xff]
        %v304 = vld [vmem:[%s237 + $0x1] sm:$0xff]
        %v305 = vld [vmem:[%s237 + $0x9] sm:$0xff]
        %v306 = vld [vmem:[%s237 + $0x19] sm:$0xff]
        %v307 = vld [vmem:[%s237 + $0x21] sm:$0xff]
        %v308 = vld [vmem:[%s237 + $0x31] sm:$0xff]
        %v309 = vld [vmem:[%s237 + $0x39] sm:$0xff]
        %v310 = vld [vmem:[%s237 + $0x49] sm:$0xff]
        %v311 = vld [vmem:[%s237 + $0x51] sm:$0xff]
        %v312 = vld [vmem:[%s237 + $0x61] sm:$0xff]
        %v313 = vld [vmem:[%s237 + $0x69] sm:$0xff]
        %v314 = vld [vmem:[%s237 + $0x79] sm:$0xff]
        %v315 = vld [vmem:[%s237 + $0x81] sm:$0xff]
        %v316 = vld [vmem:[%s237 + $0x91] sm:$0xff]
        %v317 = vld [vmem:[%s237 + $0x99] sm:$0xff]
        %v318 = vld [vmem:[%s237 + $0xa9] sm:$0xff]
        %v319 = vld [vmem:[%s237 + $0xb1] sm:$0xff]
        %v320 = vld [vmem:[%s237 + $0xc1] sm:$0xff]
        %v321 = vld [vmem:[%s237 + $0xc9] sm:$0xff]
        %v322 = vld [vmem:[%s237 + $0xd9] sm:$0xff]
        %v323 = vld [vmem:[%s237 + $0xe1] sm:$0xff]
        %v324 = vld [vmem:[%s237 + $0xf1] sm:$0xff]
        %v325 = vld [vmem:[%s237 + $0xf9] sm:$0xff]
        %v326 = vld [vmem:[%s237 + $0x109] sm:$0xff]
        %v327 = vld [vmem:[%s237 + $0x111] sm:$0xff]
        %v328 = vld [vmem:[%s237 + $0x121] sm:$0xff]
        %v329 = vld [vmem:[%s237 + $0x129] sm:$0xff]
        %v330 = vld [vmem:[%s237 + $0x139] sm:$0xff]
        %v331 = vld [vmem:[%s237 + $0x141] sm:$0xff]
        %v332 = vld [vmem:[%s237 + $0x151] sm:$0xff]
        %v333 = vld [vmem:[%s237 + $0x159] sm:$0xff]
        %v334 = vld [vmem:[%s237 + $0x169] sm:$0xff]
        %v335 = vld [vmem:[%s237 + $0x171] sm:$0xff]
        %v336 = vld [vmem:[%s237 + $0x2] sm:$0xff]
        %v337 = vld [vmem:[%s237 + $0xa] sm:$0xff]
        %v338 = vld [vmem:[%s237 + $0x1a] sm:$0xff]
        %v339 = vld [vmem:[%s237 + $0x22] sm:$0xff]
        %v340 = vld [vmem:[%s237 + $0x32] sm:$0xff]
        %v341 = vld [vmem:[%s237 + $0x3a] sm:$0xff]
        %v342 = vld [vmem:[%s237 + $0x4a] sm:$0xff]
        %v343 = vld [vmem:[%s237 + $0x52] sm:$0xff]
        %v344 = vld [vmem:[%s237 + $0x62] sm:$0xff]
        %v345 = vld [vmem:[%s237 + $0x6a] sm:$0xff]
        %v346 = vld [vmem:[%s237 + $0x7a] sm:$0xff]
        %v347 = vld [vmem:[%s237 + $0x82] sm:$0xff]
        %v348 = vld [vmem:[%s237 + $0x92] sm:$0xff]
        %v349 = vld [vmem:[%s237 + $0x9a] sm:$0xff]
        %v350 = vld [vmem:[%s237 + $0xaa] sm:$0xff]
        %v351 = vld [vmem:[%s237 + $0xb2] sm:$0xff]
        %v352 = vld [vmem:[%s237 + $0xc2] sm:$0xff]
        %v353 = vld [vmem:[%s237 + $0xca] sm:$0xff]
        %v354 = vld [vmem:[%s237 + $0xda] sm:$0xff]
        %v355 = vld [vmem:[%s237 + $0xe2] sm:$0xff]
        %v356 = vld [vmem:[%s237 + $0xf2] sm:$0xff]
        %v357 = vld [vmem:[%s237 + $0xfa] sm:$0xff]
        %v358 = vld [vmem:[%s237 + $0x10a] sm:$0xff]
        %v359 = vld [vmem:[%s237 + $0x112] sm:$0xff]
        %v360 = vld [vmem:[%s237 + $0x122] sm:$0xff]
        %v361 = vld [vmem:[%s237 + $0x12a] sm:$0xff]
        %v362 = vld [vmem:[%s237 + $0x13a] sm:$0xff]
        %v363 = vld [vmem:[%s237 + $0x142] sm:$0xff]
        %v364 = vld [vmem:[%s237 + $0x152] sm:$0xff]
        %v365 = vld [vmem:[%s237 + $0x15a] sm:$0xff]
        %v366 = vld [vmem:[%s237 + $0x16a] sm:$0xff]
        %v367 = vld [vmem:[%s237 + $0x172] sm:$0xff]
        %v368 = vld [vmem:[#allocation6] sm:$0xff]
        %v369 = vld [vmem:[#allocation6 + $0x8] sm:$0xff]
        %v370 = vld [vmem:[#allocation6 + $0x10] sm:$0xff]
        %v371 = vld [vmem:[#allocation6 + $0x18] sm:$0xff]
        %v372 = vld [vmem:[#allocation6 + $0x20] sm:$0xff]
        %v373 = vld [vmem:[#allocation6 + $0x28] sm:$0xff]
        %v374 = vld [vmem:[#allocation6 + $0x30] sm:$0xff]
        %v375 = vld [vmem:[#allocation6 + $0x38] sm:$0xff]
        %v376 = vld [vmem:[#allocation6 + $0x40] sm:$0xff]
        %v377 = vld [vmem:[#allocation6 + $0x48] sm:$0xff]
        %v378 = vld [vmem:[#allocation6 + $0x50] sm:$0xff]
        %v379 = vld [vmem:[#allocation6 + $0x58] sm:$0xff]
        %v380 = vld [vmem:[#allocation6 + $0x60] sm:$0xff]
        %v381 = vld [vmem:[#allocation6 + $0x68] sm:$0xff]
        %v382 = vld [vmem:[#allocation6 + $0x70] sm:$0xff]
        %v383 = vld [vmem:[#allocation6 + $0x78] sm:$0xff]
        %v384 = vld [vmem:[#allocation6 + $0x80] sm:$0xff]
        %v385 = vld [vmem:[#allocation6 + $0x88] sm:$0xff]
        %v386 = vld [vmem:[#allocation6 + $0x90] sm:$0xff]
        %v387 = vld [vmem:[#allocation6 + $0x98] sm:$0xff]
        %v388 = vld [vmem:[#allocation6 + $0xa0] sm:$0xff]
        %v389 = vld [vmem:[#allocation6 + $0xa8] sm:$0xff]
        %v390 = vld [vmem:[#allocation6 + $0xb0] sm:$0xff]
        %v391 = vld [vmem:[#allocation6 + $0xb8] sm:$0xff]
        %v392 = vld [vmem:[#allocation6 + $0xc0] sm:$0xff]
        %v393 = vld [vmem:[#allocation6 + $0xc8] sm:$0xff]
        %v394 = vld [vmem:[#allocation6 + $0xd0] sm:$0xff]
        %v395 = vld [vmem:[#allocation6 + $0xd8] sm:$0xff]
        %v396 = vld [vmem:[#allocation6 + $0xe0] sm:$0xff]
        %v397 = vld [vmem:[#allocation6 + $0xe8] sm:$0xff]
        %v398 = vld [vmem:[#allocation6 + $0xf0] sm:$0xff]
        %v399 = vld [vmem:[#allocation6 + $0xf8] sm:$0xff]
        %v400 = vld [vmem:[#allocation6 + $0x100] sm:$0xff]
        %v401 = vld [vmem:[#allocation6 + $0x108] sm:$0xff]
        %v402 = vld [vmem:[#allocation6 + $0x110] sm:$0xff]
        %v403 = vld [vmem:[#allocation6 + $0x118] sm:$0xff]
        %v404 = vld [vmem:[#allocation6 + $0x120] sm:$0xff]
        %v405 = vld [vmem:[#allocation6 + $0x128] sm:$0xff]
        %v406 = vld [vmem:[#allocation6 + $0x130] sm:$0xff]
        %v407 = vld [vmem:[#allocation6 + $0x138] sm:$0xff]
        %v408 = vld [vmem:[#allocation6 + $0x140] sm:$0xff]
        %v409 = vld [vmem:[#allocation6 + $0x148] sm:$0xff]
        %v410 = vld [vmem:[#allocation6 + $0x150] sm:$0xff]
        %v411 = vld [vmem:[#allocation6 + $0x158] sm:$0xff]
        %v412 = vld [vmem:[#allocation6 + $0x160] sm:$0xff]
        %v413 = vld [vmem:[#allocation6 + $0x168] sm:$0xff]
        %v414 = vld [vmem:[#allocation6 + $0x170] sm:$0xff]
        %v415 = vld [vmem:[#allocation6 + $0x178] sm:$0xff]
        %s416 = scalar_lea.vmem %s237, 24 [#allocation3]
        %v417 = vld [vmem:[%s416] sm:$0xff]
        %v418 = vld [vmem:[%s416 + $0x8] sm:$0xff]
        %v419 = vld [vmem:[%s416 + $0x18] sm:$0xff]
        %v420 = vld [vmem:[%s416 + $0x20] sm:$0xff]
        %v421 = vld [vmem:[%s416 + $0x30] sm:$0xff]
        %v422 = vld [vmem:[%s416 + $0x38] sm:$0xff]
        %v423 = vld [vmem:[%s416 + $0x48] sm:$0xff]
        %v424 = vld [vmem:[%s416 + $0x50] sm:$0xff]
        %v425 = vld [vmem:[%s416 + $0x60] sm:$0xff]
        %v426 = vld [vmem:[%s416 + $0x68] sm:$0xff]
        %v427 = vld [vmem:[%s416 + $0x78] sm:$0xff]
        %v428 = vld [vmem:[%s416 + $0x80] sm:$0xff]
        %v429 = vld [vmem:[%s416 + $0x90] sm:$0xff]
        %v430 = vld [vmem:[%s416 + $0x98] sm:$0xff]
        %v431 = vld [vmem:[%s416 + $0xa8] sm:$0xff]
        %v432 = vld [vmem:[%s416 + $0xb0] sm:$0xff]
        %v433 = vld [vmem:[%s416 + $0xc0] sm:$0xff]
        %v434 = vld [vmem:[%s416 + $0xc8] sm:$0xff]
        %v435 = vld [vmem:[%s416 + $0xd8] sm:$0xff]
        %v436 = vld [vmem:[%s416 + $0xe0] sm:$0xff]
        %v437 = vld [vmem:[%s416 + $0xf0] sm:$0xff]
        %v438 = vld [vmem:[%s416 + $0xf8] sm:$0xff]
        %v439 = vld [vmem:[%s416 + $0x108] sm:$0xff]
        %v440 = vld [vmem:[%s416 + $0x110] sm:$0xff]
        %v441 = vld [vmem:[%s416 + $0x120] sm:$0xff]
        %v442 = vld [vmem:[%s416 + $0x128] sm:$0xff]
        %v443 = vld [vmem:[%s416 + $0x138] sm:$0xff]
        %v444 = vld [vmem:[%s416 + $0x140] sm:$0xff]
        %v445 = vld [vmem:[%s416 + $0x150] sm:$0xff]
        %v446 = vld [vmem:[%s416 + $0x158] sm:$0xff]
        %v447 = vld [vmem:[%s416 + $0x168] sm:$0xff]
        %v448 = vld [vmem:[%s416 + $0x170] sm:$0xff]
        %v449 = vld [vmem:[%s416 + $0x1] sm:$0xff]
        %v450 = vld [vmem:[%s416 + $0x9] sm:$0xff]
        %v451 = vld [vmem:[%s416 + $0x19] sm:$0xff]
        %v452 = vld [vmem:[%s416 + $0x21] sm:$0xff]
        %v453 = vld [vmem:[%s416 + $0x31] sm:$0xff]
        %v454 = vld [vmem:[%s416 + $0x39] sm:$0xff]
        %v455 = vld [vmem:[%s416 + $0x49] sm:$0xff]
        %v456 = vld [vmem:[%s416 + $0x51] sm:$0xff]
        %v457 = vld [vmem:[%s416 + $0x61] sm:$0xff]
        %v458 = vld [vmem:[%s416 + $0x69] sm:$0xff]
        %v459 = vld [vmem:[%s416 + $0x79] sm:$0xff]
        %v460 = vld [vmem:[%s416 + $0x81] sm:$0xff]
        %v461 = vld [vmem:[%s416 + $0x91] sm:$0xff]
        %v462 = vld [vmem:[%s416 + $0x99] sm:$0xff]
        %v463 = vld [vmem:[%s416 + $0xa9] sm:$0xff]
        %v464 = vld [vmem:[%s416 + $0xb1] sm:$0xff]
        %v465 = vld [vmem:[%s416 + $0xc1] sm:$0xff]
        %v466 = vld [vmem:[%s416 + $0xc9] sm:$0xff]
        %v467 = vld [vmem:[%s416 + $0xd9] sm:$0xff]
        %v468 = vld [vmem:[%s416 + $0xe1] sm:$0xff]
        %v469 = vld [vmem:[%s416 + $0xf1] sm:$0xff]
        %v470 = vld [vmem:[%s416 + $0xf9] sm:$0xff]
        %v471 = vld [vmem:[%s416 + $0x109] sm:$0xff]
        %v472 = vld [vmem:[%s416 + $0x111] sm:$0xff]
        %v473 = vld [vmem:[%s416 + $0x121] sm:$0xff]
        %v474 = vld [vmem:[%s416 + $0x129] sm:$0xff]
        %v475 = vld [vmem:[%s416 + $0x139] sm:$0xff]
        %v476 = vld [vmem:[%s416 + $0x141] sm:$0xff]
        %v477 = vld [vmem:[%s416 + $0x151] sm:$0xff]
        %v478 = vld [vmem:[%s416 + $0x159] sm:$0xff]
        %v479 = vld [vmem:[%s416 + $0x169] sm:$0xff]
        %v480 = vld [vmem:[%s416 + $0x171] sm:$0xff]
        %v481 = vld [vmem:[%s416 + $0x2] sm:$0xff]
        %v482 = vld [vmem:[%s416 + $0xa] sm:$0xff]
        %v483 = vld [vmem:[%s416 + $0x1a] sm:$0xff]
        %v484 = vld [vmem:[%s416 + $0x22] sm:$0xff]
        %v485 = vld [vmem:[%s416 + $0x32] sm:$0xff]
        %v486 = vld [vmem:[%s416 + $0x3a] sm:$0xff]
        %v487 = vld [vmem:[%s416 + $0x4a] sm:$0xff]
        %v488 = vld [vmem:[%s416 + $0x52] sm:$0xff]
        %v489 = vld [vmem:[%s416 + $0x62] sm:$0xff]
        %v490 = vld [vmem:[%s416 + $0x6a] sm:$0xff]
        %v491 = vld [vmem:[%s416 + $0x7a] sm:$0xff]
        %v492 = vld [vmem:[%s416 + $0x82] sm:$0xff]
        %v493 = vld [vmem:[%s416 + $0x92] sm:$0xff]
        %v494 = vld [vmem:[%s416 + $0x9a] sm:$0xff]
        %v495 = vld [vmem:[%s416 + $0xaa] sm:$0xff]
        %v496 = vld [vmem:[%s416 + $0xb2] sm:$0xff]
        %v497 = vld [vmem:[%s416 + $0xc2] sm:$0xff]
        %v498 = vld [vmem:[%s416 + $0xca] sm:$0xff]
        %v499 = vld [vmem:[%s416 + $0xda] sm:$0xff]
        %v500 = vld [vmem:[%s416 + $0xe2] sm:$0xff]
        %v501 = vld [vmem:[%s416 + $0xf2] sm:$0xff]
        %v502 = vld [vmem:[%s416 + $0xfa] sm:$0xff]
        %v503 = vld [vmem:[%s416 + $0x10a] sm:$0xff]
        %v504 = vld [vmem:[%s416 + $0x112] sm:$0xff]
        %v505 = vld [vmem:[%s416 + $0x122] sm:$0xff]
        %v506 = vld [vmem:[%s416 + $0x12a] sm:$0xff]
        %v507 = vld [vmem:[%s416 + $0x13a] sm:$0xff]
        %v508 = vld [vmem:[%s416 + $0x142] sm:$0xff]
        %v509 = vld [vmem:[%s416 + $0x152] sm:$0xff]
        %v510 = vld [vmem:[%s416 + $0x15a] sm:$0xff]
        %v511 = vld [vmem:[%s416 + $0x16a] sm:$0xff]
        %v512 = vld [vmem:[%s416 + $0x172] sm:$0xff]
        %v513 = vld [vmem:[#allocation6 + $0x180] sm:$0xff]
        %v514 = vld [vmem:[#allocation6 + $0x188] sm:$0xff]
        %v515 = vld [vmem:[#allocation6 + $0x190] sm:$0xff]
        %v516 = vld [vmem:[#allocation6 + $0x198] sm:$0xff]
        %v517 = vld [vmem:[#allocation6 + $0x1a0] sm:$0xff]
        %v518 = vld [vmem:[#allocation6 + $0x1a8] sm:$0xff]
        %v519 = vld [vmem:[#allocation6 + $0x1b0] sm:$0xff]
        %v520 = vld [vmem:[#allocation6 + $0x1b8] sm:$0xff]
        %v521 = vld [vmem:[#allocation6 + $0x1c0] sm:$0xff]
        %v522 = vld [vmem:[#allocation6 + $0x1c8] sm:$0xff]
        %v523 = vld [vmem:[#allocation6 + $0x1d0] sm:$0xff]
        %v524 = vld [vmem:[#allocation6 + $0x1d8] sm:$0xff]
        %v525 = vld [vmem:[#allocation6 + $0x1e0] sm:$0xff]
        %v526 = vld [vmem:[#allocation6 + $0x1e8] sm:$0xff]
        %v527 = vld [vmem:[#allocation6 + $0x1f0] sm:$0xff]
        %v528 = vld [vmem:[#allocation6 + $0x1f8] sm:$0xff]
        %v529 = vld [vmem:[#allocation6 + $0x200] sm:$0xff]
        %v530 = vld [vmem:[#allocation6 + $0x208] sm:$0xff]
        %v531 = vld [vmem:[#allocation6 + $0x210] sm:$0xff]
        %v532 = vld [vmem:[#allocation6 + $0x218] sm:$0xff]
        %v533 = vld [vmem:[#allocation6 + $0x220] sm:$0xff]
        %v534 = vld [vmem:[#allocation6 + $0x228] sm:$0xff]
        %v535 = vld [vmem:[#allocation6 + $0x230] sm:$0xff]
        %v536 = vld [vmem:[#allocation6 + $0x238] sm:$0xff]
        %v537 = vld [vmem:[#allocation6 + $0x240] sm:$0xff]
        %v538 = vld [vmem:[#allocation6 + $0x248] sm:$0xff]
        %v539 = vld [vmem:[#allocation6 + $0x250] sm:$0xff]
        %v540 = vld [vmem:[#allocation6 + $0x258] sm:$0xff]
        %v541 = vld [vmem:[#allocation6 + $0x260] sm:$0xff]
        %v542 = vld [vmem:[#allocation6 + $0x268] sm:$0xff]
        %v543 = vld [vmem:[#allocation6 + $0x270] sm:$0xff]
        %v544 = vld [vmem:[#allocation6 + $0x278] sm:$0xff]
        %v545 = vld [vmem:[#allocation6 + $0x280] sm:$0xff]
        %v546 = vld [vmem:[#allocation6 + $0x288] sm:$0xff]
        %v547 = vld [vmem:[#allocation6 + $0x290] sm:$0xff]
        %v548 = vld [vmem:[#allocation6 + $0x298] sm:$0xff]
        %v549 = vld [vmem:[#allocation6 + $0x2a0] sm:$0xff]
        %v550 = vld [vmem:[#allocation6 + $0x2a8] sm:$0xff]
        %v551 = vld [vmem:[#allocation6 + $0x2b0] sm:$0xff]
        %v552 = vld [vmem:[#allocation6 + $0x2b8] sm:$0xff]
        %v553 = vld [vmem:[#allocation6 + $0x2c0] sm:$0xff]
        %v554 = vld [vmem:[#allocation6 + $0x2c8] sm:$0xff]
        %v555 = vld [vmem:[#allocation6 + $0x2d0] sm:$0xff]
        %v556 = vld [vmem:[#allocation6 + $0x2d8] sm:$0xff]
        %v557 = vld [vmem:[#allocation6 + $0x2e0] sm:$0xff]
        %v558 = vld [vmem:[#allocation6 + $0x2e8] sm:$0xff]
        %v559 = vld [vmem:[#allocation6 + $0x2f0] sm:$0xff]
        %v560 = vld [vmem:[#allocation6 + $0x2f8] sm:$0xff]
        %561 = vmatprep.subr.mxu0 0.0
        %562 = vmatpush1.msra.mxu0 %v513
        %563 = vmatprep.subr.mxu0 0.0
        %564 = vmatpush1.msra.mxu0 %v514
        %565 = vmatprep.subr.mxu0 0.0
        %566 = vmatpush1.msra.mxu0 %v515
        %567 = vmatprep.subr.mxu0 0.0
        %568 = vmatpush1.msra.mxu0 %v516
        %569 = vmatprep.subr.mxu0 0.0
        %570 = vmatpush1.msra.mxu0 %v517
        %571 = vmatprep.subr.mxu0 0.0
        %572 = vmatpush1.msra.mxu0 %v518
        %573 = vmatprep.subr.mxu0 0.0
        %574 = vmatpush1.msra.mxu0 %v519
        %575 = vmatprep.subr.mxu0 0.0
        %576 = vmatpush1.msra.mxu0 %v520
        %577 = vmatprep.subr.mxu0 0.0
        %578 = vmatpush1.msra.mxu0 %v521
        %579 = vmatprep.subr.mxu0 0.0
        %580 = vmatpush1.msra.mxu0 %v522
        %581 = vmatprep.subr.mxu0 0.0
        %582 = vmatpush1.msra.mxu0 %v523
        %583 = vmatprep.subr.mxu0 0.0
        %584 = vmatpush1.msra.mxu0 %v524
        %585 = vmatprep.subr.mxu0 0.0
        %586 = vmatpush1.msra.mxu0 %v525
        %587 = vmatprep.subr.mxu0 0.0
        %588 = vmatpush1.msra.mxu0 %v526
        %589 = vmatprep.subr.mxu0 0.0
        %590 = vmatpush1.msra.mxu0 %v527
        %591 = vmatprep.subr.mxu0 0.0
        %592 = vmatpush1.msra.mxu0 %v528
        %593 = vmatprep.subr.mxu0 0.0
        %594 = vmatpush1.msra.mxu0 %v529
        %595 = vmatprep.subr.mxu0 0.0
        %596 = vmatpush1.msra.mxu0 %v530
        %597 = vmatprep.subr.mxu0 0.0
        %598 = vmatpush1.msra.mxu0 %v531
        %599 = vmatprep.subr.mxu0 0.0
        %600 = vmatpush1.msra.mxu0 %v532
        %601 = vmatprep.subr.mxu0 0.0
        %602 = vmatpush1.msra.mxu0 %v533
        %603 = vmatprep.subr.mxu0 0.0
        %604 = vmatpush1.msra.mxu0 %v534
        %605 = vmatprep.subr.mxu0 0.0
        %606 = vmatpush1.msra.mxu0 %v535
        %607 = vmatprep.subr.mxu0 0.0
        %608 = vmatpush1.msra.mxu0 %v536
        %609 = vmatprep.subr.mxu0 0.0
        %610 = vmatpush1.msra.mxu0 %v537
        %611 = vmatprep.subr.mxu0 0.0
        %612 = vmatpush1.msra.mxu0 %v538
        %613 = vmatprep.subr.mxu0 0.0
        %614 = vmatpush1.msra.mxu0 %v539
        %615 = vmatprep.subr.mxu0 0.0
        %616 = vmatpush1.msra.mxu0 %v540
        %617 = vmatprep.subr.mxu0 0.0
        %618 = vmatpush1.msra.mxu0 %v541
        %619 = vmatprep.subr.mxu0 0.0
        %620 = vmatpush1.msra.mxu0 %v542
        %621 = vmatprep.subr.mxu0 0.0
        %622 = vmatpush1.msra.mxu0 %v543
        %623 = vmatprep.subr.mxu0 0.0
        %624 = vmatpush1.msra.mxu0 %v544
        %625 = vmatprep.mubr.f32.mxu0 %v449
        %626 = vmatmul.mubr.f32.gmra.mrb[0].mxu0 %v417
        %v627 = vpop.f32.mrb[0].mxu0
        %v628 = vadd.f32 0.0, %v627
        %v629 = vpop.f32.mrb[0].mxu0
        %630 = vmatprep.mubr.f32.mxu0 %v450
        %631 = vmatmul.mubr.f32.gmra.mrb[0].mxu0 %v418
        %v632 = vpop.f32.mrb[0].mxu0
        %v633 = vadd.f32 0.0, %v632
        %v634 = vpop.f32.mrb[0].mxu0
        %635 = vmatprep.mubr.f32.mxu0 %v451
        %636 = vmatmul.mubr.f32.gmra.mrb[0].mxu0 %v419
        %v637 = vpop.f32.mrb[0].mxu0
        %v638 = vadd.f32 0.0, %v637
        %v639 = vpop.f32.mrb[0].mxu0
        %640 = vmatprep.mubr.f32.mxu0 %v452
        %641 = vmatmul.mubr.f32.gmra.mrb[0].mxu0 %v420
        %v642 = vpop.f32.mrb[0].mxu0
        %v643 = vadd.f32 0.0, %v642
        %v644 = vpop.f32.mrb[0].mxu0
        %645 = vmatprep.mubr.f32.mxu0 %v453
        %646 = vmatmul.mubr.f32.gmra.mrb[0].mxu0 %v421
        %v647 = vpop.f32.mrb[0].mxu0
        %v648 = vadd.f32 0.0, %v647
        %v649 = vpop.f32.mrb[0].mxu0
        %650 = vmatprep.mubr.f32.mxu0 %v454
        %651 = vmatmul.mubr.f32.gmra.mrb[0].mxu0 %v422
        %v652 = vpop.f32.mrb[0].mxu0
        %v653 = vadd.f32 0.0, %v652
        %v654 = vpop.f32.mrb[0].mxu0
        %655 = vmatprep.mubr.f32.mxu0 %v455
        %656 = vmatmul.mubr.f32.gmra.mrb[0].mxu0 %v423
        %v657 = vpop.f32.mrb[0].mxu0
        %v658 = vadd.f32 0.0, %v657
        %v659 = vpop.f32.mrb[0].mxu0
        %660 = vmatprep.mubr.f32.mxu0 %v456
        %661 = vmatmul.mubr.f32.gmra.mrb[0].mxu0 %v424
        %v662 = vpop.f32.mrb[0].mxu0
        %v663 = vadd.f32 0.0, %v662
        %v664 = vpop.f32.mrb[0].mxu0
        %665 = vmatprep.mubr.f32.mxu0 %v457
        %666 = vmatmul.mubr.f32.gmra.mrb[0].mxu0 %v425
        %v667 = vpop.f32.mrb[0].mxu0
        %v668 = vadd.f32 0.0, %v667
        %v669 = vpop.f32.mrb[0].mxu0
        %670 = vmatprep.mubr.f32.mxu0 %v458
        %671 = vmatmul.mubr.f32.gmra.mrb[0].mxu0 %v426
        %v672 = vpop.f32.mrb[0].mxu0
        %v673 = vadd.f32 0.0, %v672
        %v674 = vpop.f32.mrb[0].mxu0
        %675 = vmatprep.mubr.f32.mxu0 %v459
        %676 = vmatmul.mubr.f32.gmra.mrb[0].mxu0 %v427
        %v677 = vpop.f32.mrb[0].mxu0
        %v678 = vadd.f32 0.0, %v677
        %v679 = vpop.f32.mrb[0].mxu0
        %680 = vmatprep.mubr.f32.mxu0 %v460
        %681 = vmatmul.mubr.f32.gmra.mrb[0].mxu0 %v428
        %v682 = vpop.f32.mrb[0].mxu0
        %v683 = vadd.f32 0.0, %v682
        %v684 = vpop.f32.mrb[0].mxu0
        %685 = vmatprep.mubr.f32.mxu0 %v461
        %686 = vmatmul.mubr.f32.gmra.mrb[0].mxu0 %v429
        %v687 = vpop.f32.mrb[0].mxu0
        %v688 = vadd.f32 0.0, %v687
        %v689 = vpop.f32.mrb[0].mxu0
        %690 = vmatprep.mubr.f32.mxu0 %v462
        %691 = vmatmul.mubr.f32.gmra.mrb[0].mxu0 %v430
        %v692 = vpop.f32.mrb[0].mxu0
        %v693 = vadd.f32 0.0, %v692
        %v694 = vpop.f32.mrb[0].mxu0
        %695 = vmatprep.mubr.f32.mxu0 %v463
        %696 = vmatmul.mubr.f32.gmra.mrb[0].mxu0 %v431
        %v697 = vpop.f32.mrb[0].mxu0
        %v698 = vadd.f32 0.0, %v697
        %v699 = vpop.f32.mrb[0].mxu0
        %700 = vmatprep.mubr.f32.mxu0 %v464
        %701 = vmatmul.mubr.f32.gmra.mrb[0].mxu0 %v432
        %v702 = vpop.f32.mrb[0].mxu0
        %v703 = vadd.f32 0.0, %v702
        %v704 = vpop.f32.mrb[0].mxu0
        %705 = vmatprep.mubr.f32.mxu0 %v465
        %706 = vmatmul.mubr.f32.gmra.mrb[0].mxu0 %v433
        %v707 = vpop.f32.mrb[0].mxu0
        %v708 = vadd.f32 0.0, %v707
        %v709 = vpop.f32.mrb[0].mxu0
        %710 = vmatprep.mubr.f32.mxu0 %v466
        %711 = vmatmul.mubr.f32.gmra.mrb[0].mxu0 %v434
        %v712 = vpop.f32.mrb[0].mxu0
        %v713 = vadd.f32 0.0, %v712
        %v714 = vpop.f32.mrb[0].mxu0
        %715 = vmatprep.mubr.f32.mxu0 %v467
        %716 = vmatmul.mubr.f32.gmra.mrb[0].mxu0 %v435
        %v717 = vpop.f32.mrb[0].mxu0
        %v718 = vadd.f32 0.0, %v717
        %v719 = vpop.f32.mrb[0].mxu0
        %720 = vmatprep.mubr.f32.mxu0 %v468
        %721 = vmatmul.mubr.f32.gmra.mrb[0].mxu0 %v436
        %v722 = vpop.f32.mrb[0].mxu0
        %v723 = vadd.f32 0.0, %v722
        %v724 = vpop.f32.mrb[0].mxu0
        %725 = vmatprep.mubr.f32.mxu0 %v469
        %726 = vmatmul.mubr.f32.gmra.mrb[0].mxu0 %v437
        %v727 = vpop.f32.mrb[0].mxu0
        %v728 = vadd.f32 0.0, %v727
        %v729 = vpop.f32.mrb[0].mxu0
        %730 = vmatprep.mubr.f32.mxu0 %v470
        %731 = vmatmul.mubr.f32.gmra.mrb[0].mxu0 %v438
        %v732 = vpop.f32.mrb[0].mxu0
        %v733 = vadd.f32 0.0, %v732
        %v734 = vpop.f32.mrb[0].mxu0
        %735 = vmatprep.mubr.f32.mxu0 %v471
        %736 = vmatmul.mubr.f32.gmra.mrb[0].mxu0 %v439
        %v737 = vpop.f32.mrb[0].mxu0
        %v738 = vadd.f32 0.0, %v737
        %v739 = vpop.f32.mrb[0].mxu0
        %740 = vmatprep.mubr.f32.mxu0 %v472
        %741 = vmatmul.mubr.f32.gmra.mrb[0].mxu0 %v440
        %v742 = vpop.f32.mrb[0].mxu0
        %v743 = vadd.f32 0.0, %v742
        %v744 = vpop.f32.mrb[0].mxu0
        %745 = vmatprep.mubr.f32.mxu0 %v473
        %746 = vmatmul.mubr.f32.gmra.mrb[0].mxu0 %v441
        %v747 = vpop.f32.mrb[0].mxu0
        %v748 = vadd.f32 0.0, %v747
        %v749 = vpop.f32.mrb[0].mxu0
        %750 = vmatprep.mubr.f32.mxu0 %v474
        %751 = vmatmul.mubr.f32.gmra.mrb[0].mxu0 %v442
        %v752 = vpop.f32.mrb[0].mxu0
        %v753 = vadd.f32 0.0, %v752
        %v754 = vpop.f32.mrb[0].mxu0
        %755 = vmatprep.mubr.f32.mxu0 %v475
        %756 = vmatmul.mubr.f32.gmra.mrb[0].mxu0 %v443
        %v757 = vpop.f32.mrb[0].mxu0
        %v758 = vadd.f32 0.0, %v757
        %v759 = vpop.f32.mrb[0].mxu0
        %760 = vmatprep.mubr.f32.mxu0 %v476
        %761 = vmatmul.mubr.f32.gmra.mrb[0].mxu0 %v444
        %v762 = vpop.f32.mrb[0].mxu0
        %v763 = vadd.f32 0.0, %v762
        %v764 = vpop.f32.mrb[0].mxu0
        %765 = vmatprep.mubr.f32.mxu0 %v477
        %766 = vmatmul.mubr.f32.gmra.mrb[0].mxu0 %v445
        %v767 = vpop.f32.mrb[0].mxu0
        %v768 = vadd.f32 0.0, %v767
        %v769 = vpop.f32.mrb[0].mxu0
        %770 = vmatprep.mubr.f32.mxu0 %v478
        %771 = vmatmul.mubr.f32.gmra.mrb[0].mxu0 %v446
        %v772 = vpop.f32.mrb[0].mxu0
        %v773 = vadd.f32 0.0, %v772
        %v774 = vpop.f32.mrb[0].mxu0
        %775 = vmatprep.mubr.f32.mxu0 %v479
        %776 = vmatmul.mubr.f32.gmra.mrb[0].mxu0 %v447
        %v777 = vpop.f32.mrb[0].mxu0
        %v778 = vadd.f32 0.0, %v777
        %v779 = vpop.f32.mrb[0].mxu0
        %780 = vmatprep.mubr.f32.mxu0 %v480
        %781 = vmatmul.mubr.f32.gmra.mrb[0].mxu0 %v448
        %v782 = vpop.f32.mrb[0].mxu0
        %v783 = vadd.f32 0.0, %v782
        %v784 = vpop.f32.mrb[0].mxu0
        %785 = vdwg.mxu0
        %786 = vmatprep.subr.mxu0 0.0
        %787 = vmatpush1.msra.mxu0 %v545
        %788 = vmatprep.subr.mxu0 0.0
        %789 = vmatpush1.msra.mxu0 %v546
        %790 = vmatprep.subr.mxu0 0.0
        %791 = vmatpush1.msra.mxu0 %v547
        %792 = vmatprep.subr.mxu0 0.0
        %793 = vmatpush1.msra.mxu0 %v548
        %794 = vmatprep.subr.mxu0 0.0
        %795 = vmatpush1.msra.mxu0 %v549
        %796 = vmatprep.subr.mxu0 0.0
        %797 = vmatpush1.msra.mxu0 %v550
        %798 = vmatprep.subr.mxu0 0.0
        %799 = vmatpush1.msra.mxu0 %v551
        %800 = vmatprep.subr.mxu0 0.0
        %801 = vmatpush1.msra.mxu0 %v552
        %802 = vmatprep.subr.mxu0 0.0
        %803 = vmatpush1.msra.mxu0 %v553
        %804 = vmatprep.subr.mxu0 0.0
        %805 = vmatpush1.msra.mxu0 %v554
        %806 = vmatprep.subr.mxu0 0.0
        %807 = vmatpush1.msra.mxu0 %v555
        %808 = vmatprep.subr.mxu0 0.0
        %809 = vmatpush1.msra.mxu0 %v556
        %810 = vmatprep.subr.mxu0 0.0
        %811 = vmatpush1.msra.mxu0 %v557
        %812 = vmatprep.subr.mxu0 0.0
        %813 = vmatpush1.msra.mxu0 %v558
        %814 = vmatprep.subr.mxu0 0.0
        %815 = vmatpush1.msra.mxu0 %v559
        %816 = vmatprep.subr.mxu0 0.0
        %817 = vmatpush1.msra.mxu0 %v560
        %818 = vmatprep.subr.mxu0 0.0
        %819 = vmatpush1.msra.mxu0 0.0
        %820 = vmatprep.subr.mxu0 0.0
        %821 = vmatpush1.msra.mxu0 0.0
        %822 = vmatprep.subr.mxu0 0.0
        %823 = vmatpush1.msra.mxu0 0.0
        %824 = vmatprep.subr.mxu0 0.0
        %825 = vmatpush1.msra.mxu0 0.0
        %826 = vmatprep.subr.mxu0 0.0
        %827 = vmatpush1.msra.mxu0 0.0
        %828 = vmatprep.subr.mxu0 0.0
        %829 = vmatpush1.msra.mxu0 0.0
        %830 = vmatprep.subr.mxu0 0.0
        %831 = vmatpush1.msra.mxu0 0.0
        %832 = vmatprep.subr.mxu0 0.0
        %833 = vmatpush1.msra.mxu0 0.0
        %834 = vmatprep.subr.mxu0 0.0
        %835 = vmatpush1.msra.mxu0 0.0
        %836 = vmatprep.subr.mxu0 0.0
        %837 = vmatpush1.msra.mxu0 0.0
        %838 = vmatprep.subr.mxu0 0.0
        %839 = vmatpush1.msra.mxu0 0.0
        %840 = vmatprep.subr.mxu0 0.0
        %841 = vmatpush1.msra.mxu0 0.0
        %842 = vmatprep.subr.mxu0 0.0
        %843 = vmatpush1.msra.mxu0 0.0
        %844 = vmatprep.subr.mxu0 0.0
        %845 = vmatpush1.msra.mxu0 0.0
        %846 = vmatprep.subr.mxu0 0.0
        %847 = vmatpush1.msra.mxu0 0.0
        %848 = vmatprep.subr.mxu0 0.0
        %849 = vmatpush1.msra.mxu0 0.0
        %850 = vmatprep.mubr.f32.mxu0 0.0
        %851 = vmatmul.mubr.f32.gmra.mrb[0].mxu0 %v481
        %v852 = vpop.f32.mrb[0].mxu0
        %v853 = vadd.f32 %v628, %v852
        %v854 = vpop.f32.mrb[0].mxu0
        %855 = vmatprep.mubr.f32.mxu0 0.0
        %856 = vmatmul.mubr.f32.gmra.mrb[0].mxu0 %v482
        %v857 = vpop.f32.mrb[0].mxu0
        %v858 = vadd.f32 %v633, %v857
        %v859 = vpop.f32.mrb[0].mxu0
        %860 = vmatprep.mubr.f32.mxu0 0.0
        %861 = vmatmul.mubr.f32.gmra.mrb[0].mxu0 %v483
        %v862 = vpop.f32.mrb[0].mxu0
        %v863 = vadd.f32 %v638, %v862
        %v864 = vpop.f32.mrb[0].mxu0
        %865 = vmatprep.mubr.f32.mxu0 0.0
        %866 = vmatmul.mubr.f32.gmra.mrb[0].mxu0 %v484
        %v867 = vpop.f32.mrb[0].mxu0
        %v868 = vadd.f32 %v643, %v867
        %v869 = vpop.f32.mrb[0].mxu0
        %870 = vmatprep.mubr.f32.mxu0 0.0
        %871 = vmatmul.mubr.f32.gmra.mrb[0].mxu0 %v485
        %v872 = vpop.f32.mrb[0].mxu0
        %v873 = vadd.f32 %v648, %v872
        %v874 = vpop.f32.mrb[0].mxu0
        %875 = vmatprep.mubr.f32.mxu0 0.0
        %876 = vmatmul.mubr.f32.gmra.mrb[0].mxu0 %v486
        %v877 = vpop.f32.mrb[0].mxu0
        %v878 = vadd.f32 %v653, %v877
        %v879 = vpop.f32.mrb[0].mxu0
        %880 = vmatprep.mubr.f32.mxu0 0.0
        %881 = vmatmul.mubr.f32.gmra.mrb[0].mxu0 %v487
        %v882 = vpop.f32.mrb[0].mxu0
        %v883 = vadd.f32 %v658, %v882
        %v884 = vpop.f32.mrb[0].mxu0
        %885 = vmatprep.mubr.f32.mxu0 0.0
        %886 = vmatmul.mubr.f32.gmra.mrb[0].mxu0 %v488
        %v887 = vpop.f32.mrb[0].mxu0
        %v888 = vadd.f32 %v663, %v887
        %v889 = vpop.f32.mrb[0].mxu0
        %890 = vmatprep.mubr.f32.mxu0 0.0
        %891 = vmatmul.mubr.f32.gmra.mrb[0].mxu0 %v489
        %v892 = vpop.f32.mrb[0].mxu0
        %v893 = vadd.f32 %v668, %v892
        %v894 = vpop.f32.mrb[0].mxu0
        %895 = vmatprep.mubr.f32.mxu0 0.0
        %896 = vmatmul.mubr.f32.gmra.mrb[0].mxu0 %v490
        %v897 = vpop.f32.mrb[0].mxu0
        %v898 = vadd.f32 %v673, %v897
        %v899 = vpop.f32.mrb[0].mxu0
        %900 = vmatprep.mubr.f32.mxu0 0.0
        %901 = vmatmul.mubr.f32.gmra.mrb[0].mxu0 %v491
        %v902 = vpop.f32.mrb[0].mxu0
        %v903 = vadd.f32 %v678, %v902
        %v904 = vpop.f32.mrb[0].mxu0
        %905 = vmatprep.mubr.f32.mxu0 0.0
        %906 = vmatmul.mubr.f32.gmra.mrb[0].mxu0 %v492
        %v907 = vpop.f32.mrb[0].mxu0
        %v908 = vadd.f32 %v683, %v907
        %v909 = vpop.f32.mrb[0].mxu0
        %910 = vmatprep.mubr.f32.mxu0 0.0
        %911 = vmatmul.mubr.f32.gmra.mrb[0].mxu0 %v493
        %v912 = vpop.f32.mrb[0].mxu0
        %v913 = vadd.f32 %v688, %v912
        %v914 = vpop.f32.mrb[0].mxu0
        %915 = vmatprep.mubr.f32.mxu0 0.0
        %916 = vmatmul.mubr.f32.gmra.mrb[0].mxu0 %v494
        %v917 = vpop.f32.mrb[0].mxu0
        %v918 = vadd.f32 %v693, %v917
        %v919 = vpop.f32.mrb[0].mxu0
        %920 = vmatprep.mubr.f32.mxu0 0.0
        %921 = vmatmul.mubr.f32.gmra.mrb[0].mxu0 %v495
        %v922 = vpop.f32.mrb[0].mxu0
        %v923 = vadd.f32 %v698, %v922
        %v924 = vpop.f32.mrb[0].mxu0
        %925 = vmatprep.mubr.f32.mxu0 0.0
        %926 = vmatmul.mubr.f32.gmra.mrb[0].mxu0 %v496
        %v927 = vpop.f32.mrb[0].mxu0
        %v928 = vadd.f32 %v703, %v927
        %v929 = vpop.f32.mrb[0].mxu0
        %930 = vmatprep.mubr.f32.mxu0 0.0
        %931 = vmatmul.mubr.f32.gmra.mrb[0].mxu0 %v497
        %v932 = vpop.f32.mrb[0].mxu0
        %v933 = vadd.f32 %v708, %v932
        %v934 = vpop.f32.mrb[0].mxu0
        %935 = vmatprep.mubr.f32.mxu0 0.0
        %936 = vmatmul.mubr.f32.gmra.mrb[0].mxu0 %v498
        %v937 = vpop.f32.mrb[0].mxu0
        %v938 = vadd.f32 %v713, %v937
        %v939 = vpop.f32.mrb[0].mxu0
        %940 = vmatprep.mubr.f32.mxu0 0.0
        %941 = vmatmul.mubr.f32.gmra.mrb[0].mxu0 %v499
        %v942 = vpop.f32.mrb[0].mxu0
        %v943 = vadd.f32 %v718, %v942
        %v944 = vpop.f32.mrb[0].mxu0
        %945 = vmatprep.mubr.f32.mxu0 0.0
        %946 = vmatmul.mubr.f32.gmra.mrb[0].mxu0 %v500
        %v947 = vpop.f32.mrb[0].mxu0
        %v948 = vadd.f32 %v723, %v947
        %v949 = vpop.f32.mrb[0].mxu0
        %950 = vmatprep.mubr.f32.mxu0 0.0
        %951 = vmatmul.mubr.f32.gmra.mrb[0].mxu0 %v501
        %v952 = vpop.f32.mrb[0].mxu0
        %v953 = vadd.f32 %v728, %v952
        %v954 = vpop.f32.mrb[0].mxu0
        %955 = vmatprep.mubr.f32.mxu0 0.0
        %956 = vmatmul.mubr.f32.gmra.mrb[0].mxu0 %v502
        %v957 = vpop.f32.mrb[0].mxu0
        %v958 = vadd.f32 %v733, %v957
        %v959 = vpop.f32.mrb[0].mxu0
        %960 = vmatprep.mubr.f32.mxu0 0.0
        %961 = vmatmul.mubr.f32.gmra.mrb[0].mxu0 %v503
        %v962 = vpop.f32.mrb[0].mxu0
        %v963 = vadd.f32 %v738, %v962
        %v964 = vpop.f32.mrb[0].mxu0
        %965 = vmatprep.mubr.f32.mxu0 0.0
        %966 = vmatmul.mubr.f32.gmra.mrb[0].mxu0 %v504
        %v967 = vpop.f32.mrb[0].mxu0
        %v968 = vadd.f32 %v743, %v967
        %v969 = vpop.f32.mrb[0].mxu0
        %970 = vmatprep.mubr.f32.mxu0 0.0
        %971 = vmatmul.mubr.f32.gmra.mrb[0].mxu0 %v505
        %v972 = vpop.f32.mrb[0].mxu0
        %v973 = vadd.f32 %v748, %v972
        %v974 = vpop.f32.mrb[0].mxu0
        %975 = vmatprep.mubr.f32.mxu0 0.0
        %976 = vmatmul.mubr.f32.gmra.mrb[0].mxu0 %v506
        %v977 = vpop.f32.mrb[0].mxu0
        %v978 = vadd.f32 %v753, %v977
        %v979 = vpop.f32.mrb[0].mxu0
        %980 = vmatprep.mubr.f32.mxu0 0.0
        %981 = vmatmul.mubr.f32.gmra.mrb[0].mxu0 %v507
        %v982 = vpop.f32.mrb[0].mxu0
        %v983 = vadd.f32 %v758, %v982
        %v984 = vpop.f32.mrb[0].mxu0
        %985 = vmatprep.mubr.f32.mxu0 0.0
        %986 = vmatmul.mubr.f32.gmra.mrb[0].mxu0 %v508
        %v987 = vpop.f32.mrb[0].mxu0
        %v988 = vadd.f32 %v763, %v987
        %v989 = vpop.f32.mrb[0].mxu0
        %990 = vmatprep.mubr.f32.mxu0 0.0
        %991 = vmatmul.mubr.f32.gmra.mrb[0].mxu0 %v509
        %v992 = vpop.f32.mrb[0].mxu0
        %v993 = vadd.f32 %v768, %v992
        %v994 = vpop.f32.mrb[0].mxu0
        %995 = vmatprep.mubr.f32.mxu0 0.0
        %996 = vmatmul.mubr.f32.gmra.mrb[0].mxu0 %v510
        %v997 = vpop.f32.mrb[0].mxu0
        %v998 = vadd.f32 %v773, %v997
        %v999 = vpop.f32.mrb[0].mxu0
        %1000 = vmatprep.mubr.f32.mxu0 0.0
        %1001 = vmatmul.mubr.f32.gmra.mrb[0].mxu0 %v511
        %v1002 = vpop.f32.mrb[0].mxu0
        %v1003 = vadd.f32 %v778, %v1002
        %v1004 = vpop.f32.mrb[0].mxu0
        %1005 = vmatprep.mubr.f32.mxu0 0.0
        %1006 = vmatmul.mubr.f32.gmra.mrb[0].mxu0 %v512
        %v1007 = vpop.f32.mrb[0].mxu0
        %v1008 = vadd.f32 %v783, %v1007
        %v1009 = vpop.f32.mrb[0].mxu0
        %1010 = vdwg.mxu0
        %1011 = vmatprep.subr.mxu0 0.0
        %1012 = vmatpush1.msra.mxu0 %v368
        %1013 = vmatprep.subr.mxu0 0.0
        %1014 = vmatpush1.msra.mxu0 %v369
        %1015 = vmatprep.subr.mxu0 0.0
        %1016 = vmatpush1.msra.mxu0 %v370
        %1017 = vmatprep.subr.mxu0 0.0
        %1018 = vmatpush1.msra.mxu0 %v371
        %1019 = vmatprep.subr.mxu0 0.0
        %1020 = vmatpush1.msra.mxu0 %v372
        %1021 = vmatprep.subr.mxu0 0.0
        %1022 = vmatpush1.msra.mxu0 %v373
        %1023 = vmatprep.subr.mxu0 0.0
        %1024 = vmatpush1.msra.mxu0 %v374
        %1025 = vmatprep.subr.mxu0 0.0
        %1026 = vmatpush1.msra.mxu0 %v375
        %1027 = vmatprep.subr.mxu0 0.0
        %1028 = vmatpush1.msra.mxu0 %v376
        %1029 = vmatprep.subr.mxu0 0.0
        %1030 = vmatpush1.msra.mxu0 %v377
        %1031 = vmatprep.subr.mxu0 0.0
        %1032 = vmatpush1.msra.mxu0 %v378
        %1033 = vmatprep.subr.mxu0 0.0
        %1034 = vmatpush1.msra.mxu0 %v379
        %1035 = vmatprep.subr.mxu0 0.0
        %1036 = vmatpush1.msra.mxu0 %v380
        %1037 = vmatprep.subr.mxu0 0.0
        %1038 = vmatpush1.msra.mxu0 %v381
        %1039 = vmatprep.subr.mxu0 0.0
        %1040 = vmatpush1.msra.mxu0 %v382
        %1041 = vmatprep.subr.mxu0 0.0
        %1042 = vmatpush1.msra.mxu0 %v383
        %1043 = vmatprep.subr.mxu0 0.0
        %1044 = vmatpush1.msra.mxu0 %v384
        %1045 = vmatprep.subr.mxu0 0.0
        %1046 = vmatpush1.msra.mxu0 %v385
        %1047 = vmatprep.subr.mxu0 0.0
        %1048 = vmatpush1.msra.mxu0 %v386
        %1049 = vmatprep.subr.mxu0 0.0
        %1050 = vmatpush1.msra.mxu0 %v387
        %1051 = vmatprep.subr.mxu0 0.0
        %1052 = vmatpush1.msra.mxu0 %v388
        %1053 = vmatprep.subr.mxu0 0.0
        %1054 = vmatpush1.msra.mxu0 %v389
        %1055 = vmatprep.subr.mxu0 0.0
        %1056 = vmatpush1.msra.mxu0 %v390
        %1057 = vmatprep.subr.mxu0 0.0
        %1058 = vmatpush1.msra.mxu0 %v391
        %1059 = vmatprep.subr.mxu0 0.0
        %1060 = vmatpush1.msra.mxu0 %v392
        %1061 = vmatprep.subr.mxu0 0.0
        %1062 = vmatpush1.msra.mxu0 %v393
        %1063 = vmatprep.subr.mxu0 0.0
        %1064 = vmatpush1.msra.mxu0 %v394
        %1065 = vmatprep.subr.mxu0 0.0
        %1066 = vmatpush1.msra.mxu0 %v395
        %1067 = vmatprep.subr.mxu0 0.0
        %1068 = vmatpush1.msra.mxu0 %v396
        %1069 = vmatprep.subr.mxu0 0.0
        %1070 = vmatpush1.msra.mxu0 %v397
        %1071 = vmatprep.subr.mxu0 0.0
        %1072 = vmatpush1.msra.mxu0 %v398
        %1073 = vmatprep.subr.mxu0 0.0
        %1074 = vmatpush1.msra.mxu0 %v399
        %1075 = vmatprep.mubr.f32.mxu0 %v304
        %1076 = vmatmul.mubr.f32.gmra.mrb[0].mxu0 %v272
        %v1077 = vpop.f32.mrb[0].mxu0
        %v1078 = vadd.f32 %v853, %v1077
        %v1079 = vpop.f32.mrb[0].mxu0
        %1080 = vmatprep.mubr.f32.mxu0 %v305
        %1081 = vmatmul.mubr.f32.gmra.mrb[0].mxu0 %v273
        %v1082 = vpop.f32.mrb[0].mxu0
        %v1083 = vadd.f32 %v858, %v1082
        %v1084 = vpop.f32.mrb[0].mxu0
        %1085 = vmatprep.mubr.f32.mxu0 %v306
        %1086 = vmatmul.mubr.f32.gmra.mrb[0].mxu0 %v274
        %v1087 = vpop.f32.mrb[0].mxu0
        %v1088 = vadd.f32 %v863, %v1087
        %v1089 = vpop.f32.mrb[0].mxu0
        %1090 = vmatprep.mubr.f32.mxu0 %v307
        %1091 = vmatmul.mubr.f32.gmra.mrb[0].mxu0 %v275
        %v1092 = vpop.f32.mrb[0].mxu0
        %v1093 = vadd.f32 %v868, %v1092
        %v1094 = vpop.f32.mrb[0].mxu0
        %1095 = vmatprep.mubr.f32.mxu0 %v308
        %1096 = vmatmul.mubr.f32.gmra.mrb[0].mxu0 %v276
        %v1097 = vpop.f32.mrb[0].mxu0
        %v1098 = vadd.f32 %v873, %v1097
        %v1099 = vpop.f32.mrb[0].mxu0
        %1100 = vmatprep.mubr.f32.mxu0 %v309
        %1101 = vmatmul.mubr.f32.gmra.mrb[0].mxu0 %v277
        %v1102 = vpop.f32.mrb[0].mxu0
        %v1103 = vadd.f32 %v878, %v1102
        %v1104 = vpop.f32.mrb[0].mxu0
        %1105 = vmatprep.mubr.f32.mxu0 %v310
        %1106 = vmatmul.mubr.f32.gmra.mrb[0].mxu0 %v278
        %v1107 = vpop.f32.mrb[0].mxu0
        %v1108 = vadd.f32 %v883, %v1107
        %v1109 = vpop.f32.mrb[0].mxu0
        %1110 = vmatprep.mubr.f32.mxu0 %v311
        %1111 = vmatmul.mubr.f32.gmra.mrb[0].mxu0 %v279
        %v1112 = vpop.f32.mrb[0].mxu0
        %v1113 = vadd.f32 %v888, %v1112
        %v1114 = vpop.f32.mrb[0].mxu0
        %1115 = vmatprep.mubr.f32.mxu0 %v312
        %1116 = vmatmul.mubr.f32.gmra.mrb[0].mxu0 %v280
        %v1117 = vpop.f32.mrb[0].mxu0
        %v1118 = vadd.f32 %v893, %v1117
        %v1119 = vpop.f32.mrb[0].mxu0
        %1120 = vmatprep.mubr.f32.mxu0 %v313
        %1121 = vmatmul.mubr.f32.gmra.mrb[0].mxu0 %v281
        %v1122 = vpop.f32.mrb[0].mxu0
        %v1123 = vadd.f32 %v898, %v1122
        %v1124 = vpop.f32.mrb[0].mxu0
        %1125 = vmatprep.mubr.f32.mxu0 %v314
        %1126 = vmatmul.mubr.f32.gmra.mrb[0].mxu0 %v282
        %v1127 = vpop.f32.mrb[0].mxu0
        %v1128 = vadd.f32 %v903, %v1127
        %v1129 = vpop.f32.mrb[0].mxu0
        %1130 = vmatprep.mubr.f32.mxu0 %v315
        %1131 = vmatmul.mubr.f32.gmra.mrb[0].mxu0 %v283
        %v1132 = vpop.f32.mrb[0].mxu0
        %v1133 = vadd.f32 %v908, %v1132
        %v1134 = vpop.f32.mrb[0].mxu0
        %1135 = vmatprep.mubr.f32.mxu0 %v316
        %1136 = vmatmul.mubr.f32.gmra.mrb[0].mxu0 %v284
        %v1137 = vpop.f32.mrb[0].mxu0
        %v1138 = vadd.f32 %v913, %v1137
        %v1139 = vpop.f32.mrb[0].mxu0
        %1140 = vmatprep.mubr.f32.mxu0 %v317
        %1141 = vmatmul.mubr.f32.gmra.mrb[0].mxu0 %v285
        %v1142 = vpop.f32.mrb[0].mxu0
        %v1143 = vadd.f32 %v918, %v1142
        %v1144 = vpop.f32.mrb[0].mxu0
        %1145 = vmatprep.mubr.f32.mxu0 %v318
        %1146 = vmatmul.mubr.f32.gmra.mrb[0].mxu0 %v286
        %v1147 = vpop.f32.mrb[0].mxu0
        %v1148 = vadd.f32 %v923, %v1147
        %v1149 = vpop.f32.mrb[0].mxu0
        %1150 = vmatprep.mubr.f32.mxu0 %v319
        %1151 = vmatmul.mubr.f32.gmra.mrb[0].mxu0 %v287
        %v1152 = vpop.f32.mrb[0].mxu0
        %v1153 = vadd.f32 %v928, %v1152
        %v1154 = vpop.f32.mrb[0].mxu0
        %1155 = vmatprep.mubr.f32.mxu0 %v320
        %1156 = vmatmul.mubr.f32.gmra.mrb[0].mxu0 %v288
        %v1157 = vpop.f32.mrb[0].mxu0
        %v1158 = vadd.f32 %v933, %v1157
        %v1159 = vpop.f32.mrb[0].mxu0
        %1160 = vmatprep.mubr.f32.mxu0 %v321
        %1161 = vmatmul.mubr.f32.gmra.mrb[0].mxu0 %v289
        %v1162 = vpop.f32.mrb[0].mxu0
        %v1163 = vadd.f32 %v938, %v1162
        %v1164 = vpop.f32.mrb[0].mxu0
        %1165 = vmatprep.mubr.f32.mxu0 %v322
        %1166 = vmatmul.mubr.f32.gmra.mrb[0].mxu0 %v290
        %v1167 = vpop.f32.mrb[0].mxu0
        %v1168 = vadd.f32 %v943, %v1167
        %v1169 = vpop.f32.mrb[0].mxu0
        %1170 = vmatprep.mubr.f32.mxu0 %v323
        %1171 = vmatmul.mubr.f32.gmra.mrb[0].mxu0 %v291
        %v1172 = vpop.f32.mrb[0].mxu0
        %v1173 = vadd.f32 %v948, %v1172
        %v1174 = vpop.f32.mrb[0].mxu0
        %1175 = vmatprep.mubr.f32.mxu0 %v324
        %1176 = vmatmul.mubr.f32.gmra.mrb[0].mxu0 %v292
        %v1177 = vpop.f32.mrb[0].mxu0
        %v1178 = vadd.f32 %v953, %v1177
        %v1179 = vpop.f32.mrb[0].mxu0
        %1180 = vmatprep.mubr.f32.mxu0 %v325
        %1181 = vmatmul.mubr.f32.gmra.mrb[0].mxu0 %v293
        %v1182 = vpop.f32.mrb[0].mxu0
        %v1183 = vadd.f32 %v958, %v1182
        %v1184 = vpop.f32.mrb[0].mxu0
        %1185 = vmatprep.mubr.f32.mxu0 %v326
        %1186 = vmatmul.mubr.f32.gmra.mrb[0].mxu0 %v294
        %v1187 = vpop.f32.mrb[0].mxu0
        %v1188 = vadd.f32 %v963, %v1187
        %v1189 = vpop.f32.mrb[0].mxu0
        %1190 = vmatprep.mubr.f32.mxu0 %v327
        %1191 = vmatmul.mubr.f32.gmra.mrb[0].mxu0 %v295
        %v1192 = vpop.f32.mrb[0].mxu0
        %v1193 = vadd.f32 %v968, %v1192
        %v1194 = vpop.f32.mrb[0].mxu0
        %1195 = vmatprep.mubr.f32.mxu0 %v328
        %1196 = vmatmul.mubr.f32.gmra.mrb[0].mxu0 %v296
        %v1197 = vpop.f32.mrb[0].mxu0
        %v1198 = vadd.f32 %v973, %v1197
        %v1199 = vpop.f32.mrb[0].mxu0
        %1200 = vmatprep.mubr.f32.mxu0 %v329
        %1201 = vmatmul.mubr.f32.gmra.mrb[0].mxu0 %v297
        %v1202 = vpop.f32.mrb[0].mxu0
        %v1203 = vadd.f32 %v978, %v1202
        %v1204 = vpop.f32.mrb[0].mxu0
        %1205 = vmatprep.mubr.f32.mxu0 %v330
        %1206 = vmatmul.mubr.f32.gmra.mrb[0].mxu0 %v298
        %v1207 = vpop.f32.mrb[0].mxu0
        %v1208 = vadd.f32 %v983, %v1207
        %v1209 = vpop.f32.mrb[0].mxu0
        %1210 = vmatprep.mubr.f32.mxu0 %v331
        %1211 = vmatmul.mubr.f32.gmra.mrb[0].mxu0 %v299
        %v1212 = vpop.f32.mrb[0].mxu0
        %v1213 = vadd.f32 %v988, %v1212
        %v1214 = vpop.f32.mrb[0].mxu0
        %1215 = vmatprep.mubr.f32.mxu0 %v332
        %1216 = vmatmul.mubr.f32.gmra.mrb[0].mxu0 %v300
        %v1217 = vpop.f32.mrb[0].mxu0
        %v1218 = vadd.f32 %v993, %v1217
        %v1219 = vpop.f32.mrb[0].mxu0
        %1220 = vmatprep.mubr.f32.mxu0 %v333
        %1221 = vmatmul.mubr.f32.gmra.mrb[0].mxu0 %v301
        %v1222 = vpop.f32.mrb[0].mxu0
        %v1223 = vadd.f32 %v998, %v1222
        %v1224 = vpop.f32.mrb[0].mxu0
        %1225 = vmatprep.mubr.f32.mxu0 %v334
        %1226 = vmatmul.mubr.f32.gmra.mrb[0].mxu0 %v302
        %v1227 = vpop.f32.mrb[0].mxu0
        %v1228 = vadd.f32 %v1003, %v1227
        %v1229 = vpop.f32.mrb[0].mxu0
        %1230 = vmatprep.mubr.f32.mxu0 %v335
        %1231 = vmatmul.mubr.f32.gmra.mrb[0].mxu0 %v303
        %v1232 = vpop.f32.mrb[0].mxu0
        %v1233 = vadd.f32 %v1008, %v1232
        %v1234 = vpop.f32.mrb[0].mxu0
        %1235 = vdwg.mxu0
        %1236 = vmatprep.subr.mxu0 0.0
        %1237 = vmatpush1.msra.mxu0 %v400
        %1238 = vmatprep.subr.mxu0 0.0
        %1239 = vmatpush1.msra.mxu0 %v401
        %1240 = vmatprep.subr.mxu0 0.0
        %1241 = vmatpush1.msra.mxu0 %v402
        %1242 = vmatprep.subr.mxu0 0.0
        %1243 = vmatpush1.msra.mxu0 %v403
        %1244 = vmatprep.subr.mxu0 0.0
        %1245 = vmatpush1.msra.mxu0 %v404
        %1246 = vmatprep.subr.mxu0 0.0
        %1247 = vmatpush1.msra.mxu0 %v405
        %1248 = vmatprep.subr.mxu0 0.0
        %1249 = vmatpush1.msra.mxu0 %v406
        %1250 = vmatprep.subr.mxu0 0.0
        %1251 = vmatpush1.msra.mxu0 %v407
        %1252 = vmatprep.subr.mxu0 0.0
        %1253 = vmatpush1.msra.mxu0 %v408
        %1254 = vmatprep.subr.mxu0 0.0
        %1255 = vmatpush1.msra.mxu0 %v409
        %1256 = vmatprep.subr.mxu0 0.0
        %1257 = vmatpush1.msra.mxu0 %v410
        %1258 = vmatprep.subr.mxu0 0.0
        %1259 = vmatpush1.msra.mxu0 %v411
        %1260 = vmatprep.subr.mxu0 0.0
        %1261 = vmatpush1.msra.mxu0 %v412
        %1262 = vmatprep.subr.mxu0 0.0
        %1263 = vmatpush1.msra.mxu0 %v413
        %1264 = vmatprep.subr.mxu0 0.0
        %1265 = vmatpush1.msra.mxu0 %v414
        %1266 = vmatprep.subr.mxu0 0.0
        %1267 = vmatpush1.msra.mxu0 %v415
        %1268 = vmatprep.subr.mxu0 0.0
        %1269 = vmatpush1.msra.mxu0 0.0
        %1270 = vmatprep.subr.mxu0 0.0
        %1271 = vmatpush1.msra.mxu0 0.0
        %1272 = vmatprep.subr.mxu0 0.0
        %1273 = vmatpush1.msra.mxu0 0.0
        %1274 = vmatprep.subr.mxu0 0.0
        %1275 = vmatpush1.msra.mxu0 0.0
        %1276 = vmatprep.subr.mxu0 0.0
        %1277 = vmatpush1.msra.mxu0 0.0
        %1278 = vmatprep.subr.mxu0 0.0
        %1279 = vmatpush1.msra.mxu0 0.0
        %1280 = vmatprep.subr.mxu0 0.0
        %1281 = vmatpush1.msra.mxu0 0.0
        %1282 = vmatprep.subr.mxu0 0.0
        %1283 = vmatpush1.msra.mxu0 0.0
        %1284 = vmatprep.subr.mxu0 0.0
        %1285 = vmatpush1.msra.mxu0 0.0
        %1286 = vmatprep.subr.mxu0 0.0
        %1287 = vmatpush1.msra.mxu0 0.0
        %1288 = vmatprep.subr.mxu0 0.0
        %1289 = vmatpush1.msra.mxu0 0.0
        %1290 = vmatprep.subr.mxu0 0.0
        %1291 = vmatpush1.msra.mxu0 0.0
        %1292 = vmatprep.subr.mxu0 0.0
        %1293 = vmatpush1.msra.mxu0 0.0
        %1294 = vmatprep.subr.mxu0 0.0
        %1295 = vmatpush1.msra.mxu0 0.0
        %1296 = vmatprep.subr.mxu0 0.0
        %1297 = vmatpush1.msra.mxu0 0.0
        %1298 = vmatprep.subr.mxu0 0.0
        %1299 = vmatpush1.msra.mxu0 0.0
        %1300 = vmatprep.mubr.f32.mxu0 0.0
        %1301 = vmatmul.mubr.f32.gmra.mrb[0].mxu0 %v336
        %v1302 = vpop.f32.mrb[0].mxu0
        %v1303 = vadd.f32 %v1078, %v1302
        %v1304 = vpop.f32.mrb[0].mxu0
        %1305 = vmatprep.mubr.f32.mxu0 0.0
        %1306 = vmatmul.mubr.f32.gmra.mrb[0].mxu0 %v337
        %v1307 = vpop.f32.mrb[0].mxu0
        %v1308 = vadd.f32 %v1083, %v1307
        %v1309 = vpop.f32.mrb[0].mxu0
        %1310 = vmatprep.mubr.f32.mxu0 0.0
        %1311 = vmatmul.mubr.f32.gmra.mrb[0].mxu0 %v338
        %v1312 = vpop.f32.mrb[0].mxu0
        %v1313 = vadd.f32 %v1088, %v1312
        %v1314 = vpop.f32.mrb[0].mxu0
        %1315 = vmatprep.mubr.f32.mxu0 0.0
        %1316 = vmatmul.mubr.f32.gmra.mrb[0].mxu0 %v339
        %v1317 = vpop.f32.mrb[0].mxu0
        %v1318 = vadd.f32 %v1093, %v1317
        %v1319 = vpop.f32.mrb[0].mxu0
        %1320 = vmatprep.mubr.f32.mxu0 0.0
        %1321 = vmatmul.mubr.f32.gmra.mrb[0].mxu0 %v340
        %v1322 = vpop.f32.mrb[0].mxu0
        %v1323 = vadd.f32 %v1098, %v1322
        %v1324 = vpop.f32.mrb[0].mxu0
        %1325 = vmatprep.mubr.f32.mxu0 0.0
        %1326 = vmatmul.mubr.f32.gmra.mrb[0].mxu0 %v341
        %v1327 = vpop.f32.mrb[0].mxu0
        %v1328 = vadd.f32 %v1103, %v1327
        %v1329 = vpop.f32.mrb[0].mxu0
        %1330 = vmatprep.mubr.f32.mxu0 0.0
        %1331 = vmatmul.mubr.f32.gmra.mrb[0].mxu0 %v342
        %v1332 = vpop.f32.mrb[0].mxu0
        %v1333 = vadd.f32 %v1108, %v1332
        %v1334 = vpop.f32.mrb[0].mxu0
        %1335 = vmatprep.mubr.f32.mxu0 0.0
        %1336 = vmatmul.mubr.f32.gmra.mrb[0].mxu0 %v343
        %v1337 = vpop.f32.mrb[0].mxu0
        %v1338 = vadd.f32 %v1113, %v1337
        %v1339 = vpop.f32.mrb[0].mxu0
        %1340 = vmatprep.mubr.f32.mxu0 0.0
        %1341 = vmatmul.mubr.f32.gmra.mrb[0].mxu0 %v344
        %v1342 = vpop.f32.mrb[0].mxu0
        %v1343 = vadd.f32 %v1118, %v1342
        %v1344 = vpop.f32.mrb[0].mxu0
        %1345 = vmatprep.mubr.f32.mxu0 0.0
        %1346 = vmatmul.mubr.f32.gmra.mrb[0].mxu0 %v345
        %v1347 = vpop.f32.mrb[0].mxu0
        %v1348 = vadd.f32 %v1123, %v1347
        %v1349 = vpop.f32.mrb[0].mxu0
        %1350 = vmatprep.mubr.f32.mxu0 0.0
        %1351 = vmatmul.mubr.f32.gmra.mrb[0].mxu0 %v346
        %v1352 = vpop.f32.mrb[0].mxu0
        %v1353 = vadd.f32 %v1128, %v1352
        %v1354 = vpop.f32.mrb[0].mxu0
        %1355 = vmatprep.mubr.f32.mxu0 0.0
        %1356 = vmatmul.mubr.f32.gmra.mrb[0].mxu0 %v347
        %v1357 = vpop.f32.mrb[0].mxu0
        %v1358 = vadd.f32 %v1133, %v1357
        %v1359 = vpop.f32.mrb[0].mxu0
        %1360 = vmatprep.mubr.f32.mxu0 0.0
        %1361 = vmatmul.mubr.f32.gmra.mrb[0].mxu0 %v348
        %v1362 = vpop.f32.mrb[0].mxu0
        %v1363 = vadd.f32 %v1138, %v1362
        %v1364 = vpop.f32.mrb[0].mxu0
        %1365 = vmatprep.mubr.f32.mxu0 0.0
        %1366 = vmatmul.mubr.f32.gmra.mrb[0].mxu0 %v349
        %v1367 = vpop.f32.mrb[0].mxu0
        %v1368 = vadd.f32 %v1143, %v1367
        %v1369 = vpop.f32.mrb[0].mxu0
        %1370 = vmatprep.mubr.f32.mxu0 0.0
        %1371 = vmatmul.mubr.f32.gmra.mrb[0].mxu0 %v350
        %v1372 = vpop.f32.mrb[0].mxu0
        %v1373 = vadd.f32 %v1148, %v1372
        %v1374 = vpop.f32.mrb[0].mxu0
        %1375 = vmatprep.mubr.f32.mxu0 0.0
        %1376 = vmatmul.mubr.f32.gmra.mrb[0].mxu0 %v351
        %v1377 = vpop.f32.mrb[0].mxu0
        %v1378 = vadd.f32 %v1153, %v1377
        %v1379 = vpop.f32.mrb[0].mxu0
        %1380 = vmatprep.mubr.f32.mxu0 0.0
        %1381 = vmatmul.mubr.f32.gmra.mrb[0].mxu0 %v352
        %v1382 = vpop.f32.mrb[0].mxu0
        %v1383 = vadd.f32 %v1158, %v1382
        %v1384 = vpop.f32.mrb[0].mxu0
        %1385 = vmatprep.mubr.f32.mxu0 0.0
        %1386 = vmatmul.mubr.f32.gmra.mrb[0].mxu0 %v353
        %v1387 = vpop.f32.mrb[0].mxu0
        %v1388 = vadd.f32 %v1163, %v1387
        %v1389 = vpop.f32.mrb[0].mxu0
        %1390 = vmatprep.mubr.f32.mxu0 0.0
        %1391 = vmatmul.mubr.f32.gmra.mrb[0].mxu0 %v354
        %v1392 = vpop.f32.mrb[0].mxu0
        %v1393 = vadd.f32 %v1168, %v1392
        %v1394 = vpop.f32.mrb[0].mxu0
        %1395 = vmatprep.mubr.f32.mxu0 0.0
        %1396 = vmatmul.mubr.f32.gmra.mrb[0].mxu0 %v355
        %v1397 = vpop.f32.mrb[0].mxu0
        %v1398 = vadd.f32 %v1173, %v1397
        %v1399 = vpop.f32.mrb[0].mxu0
        %1400 = vmatprep.mubr.f32.mxu0 0.0
        %1401 = vmatmul.mubr.f32.gmra.mrb[0].mxu0 %v356
        %v1402 = vpop.f32.mrb[0].mxu0
        %v1403 = vadd.f32 %v1178, %v1402
        %v1404 = vpop.f32.mrb[0].mxu0
        %1405 = vmatprep.mubr.f32.mxu0 0.0
        %1406 = vmatmul.mubr.f32.gmra.mrb[0].mxu0 %v357
        %v1407 = vpop.f32.mrb[0].mxu0
        %v1408 = vadd.f32 %v1183, %v1407
        %v1409 = vpop.f32.mrb[0].mxu0
        %1410 = vmatprep.mubr.f32.mxu0 0.0
        %1411 = vmatmul.mubr.f32.gmra.mrb[0].mxu0 %v358
        %v1412 = vpop.f32.mrb[0].mxu0
        %v1413 = vadd.f32 %v1188, %v1412
        %v1414 = vpop.f32.mrb[0].mxu0
        %1415 = vmatprep.mubr.f32.mxu0 0.0
        %1416 = vmatmul.mubr.f32.gmra.mrb[0].mxu0 %v359
        %v1417 = vpop.f32.mrb[0].mxu0
        %v1418 = vadd.f32 %v1193, %v1417
        %v1419 = vpop.f32.mrb[0].mxu0
        %1420 = vmatprep.mubr.f32.mxu0 0.0
        %1421 = vmatmul.mubr.f32.gmra.mrb[0].mxu0 %v360
        %v1422 = vpop.f32.mrb[0].mxu0
        %v1423 = vadd.f32 %v1198, %v1422
        %v1424 = vpop.f32.mrb[0].mxu0
        %1425 = vmatprep.mubr.f32.mxu0 0.0
        %1426 = vmatmul.mubr.f32.gmra.mrb[0].mxu0 %v361
        %v1427 = vpop.f32.mrb[0].mxu0
        %v1428 = vadd.f32 %v1203, %v1427
        %v1429 = vpop.f32.mrb[0].mxu0
        %1430 = vmatprep.mubr.f32.mxu0 0.0
        %1431 = vmatmul.mubr.f32.gmra.mrb[0].mxu0 %v362
        %v1432 = vpop.f32.mrb[0].mxu0
        %v1433 = vadd.f32 %v1208, %v1432
        %v1434 = vpop.f32.mrb[0].mxu0
        %1435 = vmatprep.mubr.f32.mxu0 0.0
        %1436 = vmatmul.mubr.f32.gmra.mrb[0].mxu0 %v363
        %v1437 = vpop.f32.mrb[0].mxu0
        %v1438 = vadd.f32 %v1213, %v1437
        %v1439 = vpop.f32.mrb[0].mxu0
        %1440 = vmatprep.mubr.f32.mxu0 0.0
        %1441 = vmatmul.mubr.f32.gmra.mrb[0].mxu0 %v364
        %v1442 = vpop.f32.mrb[0].mxu0
        %v1443 = vadd.f32 %v1218, %v1442
        %v1444 = vpop.f32.mrb[0].mxu0
        %1445 = vmatprep.mubr.f32.mxu0 0.0
        %1446 = vmatmul.mubr.f32.gmra.mrb[0].mxu0 %v365
        %v1447 = vpop.f32.mrb[0].mxu0
        %v1448 = vadd.f32 %v1223, %v1447
        %v1449 = vpop.f32.mrb[0].mxu0
        %1450 = vmatprep.mubr.f32.mxu0 0.0
        %1451 = vmatmul.mubr.f32.gmra.mrb[0].mxu0 %v366
        %v1452 = vpop.f32.mrb[0].mxu0
        %v1453 = vadd.f32 %v1228, %v1452
        %v1454 = vpop.f32.mrb[0].mxu0
        %1455 = vmatprep.mubr.f32.mxu0 0.0
        %1456 = vmatmul.mubr.f32.gmra.mrb[0].mxu0 %v367
        %v1457 = vpop.f32.mrb[0].mxu0
        %v1458 = vadd.f32 %v1233, %v1457
        %v1459 = vpop.f32.mrb[0].mxu0
        %1460 = vdwg.mxu0
        %s1461 = scalar_lea.vmem %s237, 48 [#allocation3]
        %v1462 = vld [vmem:[%s1461] sm:$0xff]
        %v1463 = vld [vmem:[%s1461 + $0x8] sm:$0xff]
        %v1464 = vld [vmem:[%s1461 + $0x18] sm:$0xff]
        %v1465 = vld [vmem:[%s1461 + $0x20] sm:$0xff]
        %v1466 = vld [vmem:[%s1461 + $0x30] sm:$0xff]
        %v1467 = vld [vmem:[%s1461 + $0x38] sm:$0xff]
        %v1468 = vld [vmem:[%s1461 + $0x48] sm:$0xff]
        %v1469 = vld [vmem:[%s1461 + $0x50] sm:$0xff]
        %v1470 = vld [vmem:[%s1461 + $0x60] sm:$0xff]
        %v1471 = vld [vmem:[%s1461 + $0x68] sm:$0xff]
        %v1472 = vld [vmem:[%s1461 + $0x78] sm:$0xff]
        %v1473 = vld [vmem:[%s1461 + $0x80] sm:$0xff]
        %v1474 = vld [vmem:[%s1461 + $0x90] sm:$0xff]
        %v1475 = vld [vmem:[%s1461 + $0x98] sm:$0xff]
        %v1476 = vld [vmem:[%s1461 + $0xa8] sm:$0xff]
        %v1477 = vld [vmem:[%s1461 + $0xb0] sm:$0xff]
        %v1478 = vld [vmem:[%s1461 + $0xc0] sm:$0xff]
        %v1479 = vld [vmem:[%s1461 + $0xc8] sm:$0xff]
        %v1480 = vld [vmem:[%s1461 + $0xd8] sm:$0xff]
        %v1481 = vld [vmem:[%s1461 + $0xe0] sm:$0xff]
        %v1482 = vld [vmem:[%s1461 + $0xf0] sm:$0xff]
        %v1483 = vld [vmem:[%s1461 + $0xf8] sm:$0xff]
        %v1484 = vld [vmem:[%s1461 + $0x108] sm:$0xff]
        %v1485 = vld [vmem:[%s1461 + $0x110] sm:$0xff]
        %v1486 = vld [vmem:[%s1461 + $0x120] sm:$0xff]
        %v1487 = vld [vmem:[%s1461 + $0x128] sm:$0xff]
        %v1488 = vld [vmem:[%s1461 + $0x138] sm:$0xff]
        %v1489 = vld [vmem:[%s1461 + $0x140] sm:$0xff]
        %v1490 = vld [vmem:[%s1461 + $0x150] sm:$0xff]
        %v1491 = vld [vmem:[%s1461 + $0x158] sm:$0xff]
        %v1492 = vld [vmem:[%s1461 + $0x168] sm:$0xff]
        %v1493 = vld [vmem:[%s1461 + $0x170] sm:$0xff]
        %v1494 = vld [vmem:[%s1461 + $0x1] sm:$0xff]
        %v1495 = vld [vmem:[%s1461 + $0x9] sm:$0xff]
        %v1496 = vld [vmem:[%s1461 + $0x19] sm:$0xff]
        %v1497 = vld [vmem:[%s1461 + $0x21] sm:$0xff]
        %v1498 = vld [vmem:[%s1461 + $0x31] sm:$0xff]
        %v1499 = vld [vmem:[%s1461 + $0x39] sm:$0xff]
        %v1500 = vld [vmem:[%s1461 + $0x49] sm:$0xff]
        %v1501 = vld [vmem:[%s1461 + $0x51] sm:$0xff]
        %v1502 = vld [vmem:[%s1461 + $0x61] sm:$0xff]
        %v1503 = vld [vmem:[%s1461 + $0x69] sm:$0xff]
        %v1504 = vld [vmem:[%s1461 + $0x79] sm:$0xff]
        %v1505 = vld [vmem:[%s1461 + $0x81] sm:$0xff]
        %v1506 = vld [vmem:[%s1461 + $0x91] sm:$0xff]
        %v1507 = vld [vmem:[%s1461 + $0x99] sm:$0xff]
        %v1508 = vld [vmem:[%s1461 + $0xa9] sm:$0xff]
        %v1509 = vld [vmem:[%s1461 + $0xb1] sm:$0xff]
        %v1510 = vld [vmem:[%s1461 + $0xc1] sm:$0xff]
        %v1511 = vld [vmem:[%s1461 + $0xc9] sm:$0xff]
        %v1512 = vld [vmem:[%s1461 + $0xd9] sm:$0xff]
        %v1513 = vld [vmem:[%s1461 + $0xe1] sm:$0xff]
        %v1514 = vld [vmem:[%s1461 + $0xf1] sm:$0xff]
        %v1515 = vld [vmem:[%s1461 + $0xf9] sm:$0xff]
        %v1516 = vld [vmem:[%s1461 + $0x109] sm:$0xff]
        %v1517 = vld [vmem:[%s1461 + $0x111] sm:$0xff]
        %v1518 = vld [vmem:[%s1461 + $0x121] sm:$0xff]
        %v1519 = vld [vmem:[%s1461 + $0x129] sm:$0xff]
        %v1520 = vld [vmem:[%s1461 + $0x139] sm:$0xff]
        %v1521 = vld [vmem:[%s1461 + $0x141] sm:$0xff]
        %v1522 = vld [vmem:[%s1461 + $0x151] sm:$0xff]
        %v1523 = vld [vmem:[%s1461 + $0x159] sm:$0xff]
        %v1524 = vld [vmem:[%s1461 + $0x169] sm:$0xff]
        %v1525 = vld [vmem:[%s1461 + $0x171] sm:$0xff]
        %v1526 = vld [vmem:[%s1461 + $0x2] sm:$0xff]
        %v1527 = vld [vmem:[%s1461 + $0xa] sm:$0xff]
        %v1528 = vld [vmem:[%s1461 + $0x1a] sm:$0xff]
        %v1529 = vld [vmem:[%s1461 + $0x22] sm:$0xff]
        %v1530 = vld [vmem:[%s1461 + $0x32] sm:$0xff]
        %v1531 = vld [vmem:[%s1461 + $0x3a] sm:$0xff]
        %v1532 = vld [vmem:[%s1461 + $0x4a] sm:$0xff]
        %v1533 = vld [vmem:[%s1461 + $0x52] sm:$0xff]
        %v1534 = vld [vmem:[%s1461 + $0x62] sm:$0xff]
        %v1535 = vld [vmem:[%s1461 + $0x6a] sm:$0xff]
        %v1536 = vld [vmem:[%s1461 + $0x7a] sm:$0xff]
        %v1537 = vld [vmem:[%s1461 + $0x82] sm:$0xff]
        %v1538 = vld [vmem:[%s1461 + $0x92] sm:$0xff]
        %v1539 = vld [vmem:[%s1461 + $0x9a] sm:$0xff]
        %v1540 = vld [vmem:[%s1461 + $0xaa] sm:$0xff]
        %v1541 = vld [vmem:[%s1461 + $0xb2] sm:$0xff]
        %v1542 = vld [vmem:[%s1461 + $0xc2] sm:$0xff]
        %v1543 = vld [vmem:[%s1461 + $0xca] sm:$0xff]
        %v1544 = vld [vmem:[%s1461 + $0xda] sm:$0xff]
        %v1545 = vld [vmem:[%s1461 + $0xe2] sm:$0xff]
        %v1546 = vld [vmem:[%s1461 + $0xf2] sm:$0xff]
        %v1547 = vld [vmem:[%s1461 + $0xfa] sm:$0xff]
        %v1548 = vld [vmem:[%s1461 + $0x10a] sm:$0xff]
        %v1549 = vld [vmem:[%s1461 + $0x112] sm:$0xff]
        %v1550 = vld [vmem:[%s1461 + $0x122] sm:$0xff]
        %v1551 = vld [vmem:[%s1461 + $0x12a] sm:$0xff]
        %v1552 = vld [vmem:[%s1461 + $0x13a] sm:$0xff]
        %v1553 = vld [vmem:[%s1461 + $0x142] sm:$0xff]
        %v1554 = vld [vmem:[%s1461 + $0x152] sm:$0xff]
        %v1555 = vld [vmem:[%s1461 + $0x15a] sm:$0xff]
        %v1556 = vld [vmem:[%s1461 + $0x16a] sm:$0xff]
        %v1557 = vld [vmem:[%s1461 + $0x172] sm:$0xff]
        %v1558 = vld [vmem:[#allocation6 + $0x300] sm:$0xff]
        %v1559 = vld [vmem:[#allocation6 + $0x308] sm:$0xff]
        %v1560 = vld [vmem:[#allocation6 + $0x310] sm:$0xff]
        %v1561 = vld [vmem:[#allocation6 + $0x318] sm:$0xff]
        %v1562 = vld [vmem:[#allocation6 + $0x320] sm:$0xff]
        %v1563 = vld [vmem:[#allocation6 + $0x328] sm:$0xff]
        %v1564 = vld [vmem:[#allocation6 + $0x330] sm:$0xff]
        %v1565 = vld [vmem:[#allocation6 + $0x338] sm:$0xff]
        %v1566 = vld [vmem:[#allocation6 + $0x340] sm:$0xff]
        %v1567 = vld [vmem:[#allocation6 + $0x348] sm:$0xff]
        %v1568 = vld [vmem:[#allocation6 + $0x350] sm:$0xff]
        %v1569 = vld [vmem:[#allocation6 + $0x358] sm:$0xff]
        %v1570 = vld [vmem:[#allocation6 + $0x360] sm:$0xff]
        %v1571 = vld [vmem:[#allocation6 + $0x368] sm:$0xff]
        %v1572 = vld [vmem:[#allocation6 + $0x370] sm:$0xff]
        %v1573 = vld [vmem:[#allocation6 + $0x378] sm:$0xff]
        %v1574 = vld [vmem:[#allocation6 + $0x380] sm:$0xff]
        %v1575 = vld [vmem:[#allocation6 + $0x388] sm:$0xff]
        %v1576 = vld [vmem:[#allocation6 + $0x390] sm:$0xff]
        %v1577 = vld [vmem:[#allocation6 + $0x398] sm:$0xff]
        %v1578 = vld [vmem:[#allocation6 + $0x3a0] sm:$0xff]
        %v1579 = vld [vmem:[#allocation6 + $0x3a8] sm:$0xff]
        %v1580 = vld [vmem:[#allocation6 + $0x3b0] sm:$0xff]
        %v1581 = vld [vmem:[#allocation6 + $0x3b8] sm:$0xff]
        %v1582 = vld [vmem:[#allocation6 + $0x3c0] sm:$0xff]
        %v1583 = vld [vmem:[#allocation6 + $0x3c8] sm:$0xff]
        %v1584 = vld [vmem:[#allocation6 + $0x3d0] sm:$0xff]
        %v1585 = vld [vmem:[#allocation6 + $0x3d8] sm:$0xff]
        %v1586 = vld [vmem:[#allocation6 + $0x3e0] sm:$0xff]
        %v1587 = vld [vmem:[#allocation6 + $0x3e8] sm:$0xff]
        %v1588 = vld [vmem:[#allocation6 + $0x3f0] sm:$0xff]
        %v1589 = vld [vmem:[#allocation6 + $0x3f8] sm:$0xff]
        %v1590 = vld [vmem:[#allocation6 + $0x400] sm:$0xff]
        %v1591 = vld [vmem:[#allocation6 + $0x408] sm:$0xff]
        %v1592 = vld [vmem:[#allocation6 + $0x410] sm:$0xff]
        %v1593 = vld [vmem:[#allocation6 + $0x418] sm:$0xff]
        %v1594 = vld [vmem:[#allocation6 + $0x420] sm:$0xff]
        %v1595 = vld [vmem:[#allocation6 + $0x428] sm:$0xff]
        %v1596 = vld [vmem:[#allocation6 + $0x430] sm:$0xff]
        %v1597 = vld [vmem:[#allocation6 + $0x438] sm:$0xff]
        %v1598 = vld [vmem:[#allocation6 + $0x440] sm:$0xff]
        %v1599 = vld [vmem:[#allocation6 + $0x448] sm:$0xff]
        %v1600 = vld [vmem:[#allocation6 + $0x450] sm:$0xff]
        %v1601 = vld [vmem:[#allocation6 + $0x458] sm:$0xff]
        %v1602 = vld [vmem:[#allocation6 + $0x460] sm:$0xff]
        %v1603 = vld [vmem:[#allocation6 + $0x468] sm:$0xff]
        %v1604 = vld [vmem:[#allocation6 + $0x470] sm:$0xff]
        %v1605 = vld [vmem:[#allocation6 + $0x478] sm:$0xff]
        %1606 = vmatprep.subr.mxu0 0.0
        %1607 = vmatpush1.msra.mxu0 %v1558
        %1608 = vmatprep.subr.mxu0 0.0
        %1609 = vmatpush1.msra.mxu0 %v1559
        %1610 = vmatprep.subr.mxu0 0.0
        %1611 = vmatpush1.msra.mxu0 %v1560
        %1612 = vmatprep.subr.mxu0 0.0
        %1613 = vmatpush1.msra.mxu0 %v1561
        %1614 = vmatprep.subr.mxu0 0.0
        %1615 = vmatpush1.msra.mxu0 %v1562
        %1616 = vmatprep.subr.mxu0 0.0
        %1617 = vmatpush1.msra.mxu0 %v1563
        %1618 = vmatprep.subr.mxu0 0.0
        %1619 = vmatpush1.msra.mxu0 %v1564
        %1620 = vmatprep.subr.mxu0 0.0
        %1621 = vmatpush1.msra.mxu0 %v1565
        %1622 = vmatprep.subr.mxu0 0.0
        %1623 = vmatpush1.msra.mxu0 %v1566
        %1624 = vmatprep.subr.mxu0 0.0
        %1625 = vmatpush1.msra.mxu0 %v1567
        %1626 = vmatprep.subr.mxu0 0.0
        %1627 = vmatpush1.msra.mxu0 %v1568
        %1628 = vmatprep.subr.mxu0 0.0
        %1629 = vmatpush1.msra.mxu0 %v1569
        %1630 = vmatprep.subr.mxu0 0.0
        %1631 = vmatpush1.msra.mxu0 %v1570
        %1632 = vmatprep.subr.mxu0 0.0
        %1633 = vmatpush1.msra.mxu0 %v1571
        %1634 = vmatprep.subr.mxu0 0.0
        %1635 = vmatpush1.msra.mxu0 %v1572
        %1636 = vmatprep.subr.mxu0 0.0
        %1637 = vmatpush1.msra.mxu0 %v1573
        %1638 = vmatprep.subr.mxu0 0.0
        %1639 = vmatpush1.msra.mxu0 %v1574
        %1640 = vmatprep.subr.mxu0 0.0
        %1641 = vmatpush1.msra.mxu0 %v1575
        %1642 = vmatprep.subr.mxu0 0.0
        %1643 = vmatpush1.msra.mxu0 %v1576
        %1644 = vmatprep.subr.mxu0 0.0
        %1645 = vmatpush1.msra.mxu0 %v1577
        %1646 = vmatprep.subr.mxu0 0.0
        %1647 = vmatpush1.msra.mxu0 %v1578
        %1648 = vmatprep.subr.mxu0 0.0
        %1649 = vmatpush1.msra.mxu0 %v1579
        %1650 = vmatprep.subr.mxu0 0.0
        %1651 = vmatpush1.msra.mxu0 %v1580
        %1652 = vmatprep.subr.mxu0 0.0
        %1653 = vmatpush1.msra.mxu0 %v1581
        %1654 = vmatprep.subr.mxu0 0.0
        %1655 = vmatpush1.msra.mxu0 %v1582
        %1656 = vmatprep.subr.mxu0 0.0
        %1657 = vmatpush1.msra.mxu0 %v1583
        %1658 = vmatprep.subr.mxu0 0.0
        %1659 = vmatpush1.msra.mxu0 %v1584
        %1660 = vmatprep.subr.mxu0 0.0
        %1661 = vmatpush1.msra.mxu0 %v1585
        %1662 = vmatprep.subr.mxu0 0.0
        %1663 = vmatpush1.msra.mxu0 %v1586
        %1664 = vmatprep.subr.mxu0 0.0
        %1665 = vmatpush1.msra.mxu0 %v1587
        %1666 = vmatprep.subr.mxu0 0.0
        %1667 = vmatpush1.msra.mxu0 %v1588
        %1668 = vmatprep.subr.mxu0 0.0
        %1669 = vmatpush1.msra.mxu0 %v1589
        %1670 = vmatprep.mubr.f32.mxu0 %v1494
        %1671 = vmatmul.mubr.f32.gmra.mrb[0].mxu0 %v1462
        %v1672 = vpop.f32.mrb[0].mxu0
        %v1673 = vadd.f32 0.0, %v1672
        %v1674 = vpop.f32.mrb[0].mxu0
        %1675 = vmatprep.mubr.f32.mxu0 %v1495
        %1676 = vmatmul.mubr.f32.gmra.mrb[0].mxu0 %v1463
        %v1677 = vpop.f32.mrb[0].mxu0
        %v1678 = vadd.f32 0.0, %v1677
        %v1679 = vpop.f32.mrb[0].mxu0
        %1680 = vmatprep.mubr.f32.mxu0 %v1496
        %1681 = vmatmul.mubr.f32.gmra.mrb[0].mxu0 %v1464
        %v1682 = vpop.f32.mrb[0].mxu0
        %v1683 = vadd.f32 0.0, %v1682
        %v1684 = vpop.f32.mrb[0].mxu0
        %1685 = vmatprep.mubr.f32.mxu0 %v1497
        %1686 = vmatmul.mubr.f32.gmra.mrb[0].mxu0 %v1465
        %v1687 = vpop.f32.mrb[0].mxu0
        %v1688 = vadd.f32 0.0, %v1687
        %v1689 = vpop.f32.mrb[0].mxu0
        %1690 = vmatprep.mubr.f32.mxu0 %v1498
        %1691 = vmatmul.mubr.f32.gmra.mrb[0].mxu0 %v1466
        %v1692 = vpop.f32.mrb[0].mxu0
        %v1693 = vadd.f32 0.0, %v1692
        %v1694 = vpop.f32.mrb[0].mxu0
        %1695 = vmatprep.mubr.f32.mxu0 %v1499
        %1696 = vmatmul.mubr.f32.gmra.mrb[0].mxu0 %v1467
        %v1697 = vpop.f32.mrb[0].mxu0
        %v1698 = vadd.f32 0.0, %v1697
        %v1699 = vpop.f32.mrb[0].mxu0
        %1700 = vmatprep.mubr.f32.mxu0 %v1500
        %1701 = vmatmul.mubr.f32.gmra.mrb[0].mxu0 %v1468
        %v1702 = vpop.f32.mrb[0].mxu0
        %v1703 = vadd.f32 0.0, %v1702
        %v1704 = vpop.f32.mrb[0].mxu0
        %1705 = vmatprep.mubr.f32.mxu0 %v1501
        %1706 = vmatmul.mubr.f32.gmra.mrb[0].mxu0 %v1469
        %v1707 = vpop.f32.mrb[0].mxu0
        %v1708 = vadd.f32 0.0, %v1707
        %v1709 = vpop.f32.mrb[0].mxu0
        %1710 = vmatprep.mubr.f32.mxu0 %v1502
        %1711 = vmatmul.mubr.f32.gmra.mrb[0].mxu0 %v1470
        %v1712 = vpop.f32.mrb[0].mxu0
        %v1713 = vadd.f32 0.0, %v1712
        %v1714 = vpop.f32.mrb[0].mxu0
        %1715 = vmatprep.mubr.f32.mxu0 %v1503
        %1716 = vmatmul.mubr.f32.gmra.mrb[0].mxu0 %v1471
        %v1717 = vpop.f32.mrb[0].mxu0
        %v1718 = vadd.f32 0.0, %v1717
        %v1719 = vpop.f32.mrb[0].mxu0
        %1720 = vmatprep.mubr.f32.mxu0 %v1504
        %1721 = vmatmul.mubr.f32.gmra.mrb[0].mxu0 %v1472
        %v1722 = vpop.f32.mrb[0].mxu0
        %v1723 = vadd.f32 0.0, %v1722
        %v1724 = vpop.f32.mrb[0].mxu0
        %1725 = vmatprep.mubr.f32.mxu0 %v1505
        %1726 = vmatmul.mubr.f32.gmra.mrb[0].mxu0 %v1473
        %v1727 = vpop.f32.mrb[0].mxu0
        %v1728 = vadd.f32 0.0, %v1727
        %v1729 = vpop.f32.mrb[0].mxu0
        %1730 = vmatprep.mubr.f32.mxu0 %v1506
        %1731 = vmatmul.mubr.f32.gmra.mrb[0].mxu0 %v1474
        %v1732 = vpop.f32.mrb[0].mxu0
        %v1733 = vadd.f32 0.0, %v1732
        %v1734 = vpop.f32.mrb[0].mxu0
        %1735 = vmatprep.mubr.f32.mxu0 %v1507
        %1736 = vmatmul.mubr.f32.gmra.mrb[0].mxu0 %v1475
        %v1737 = vpop.f32.mrb[0].mxu0
        %v1738 = vadd.f32 0.0, %v1737
        %v1739 = vpop.f32.mrb[0].mxu0
        %1740 = vmatprep.mubr.f32.mxu0 %v1508
        %1741 = vmatmul.mubr.f32.gmra.mrb[0].mxu0 %v1476
        %v1742 = vpop.f32.mrb[0].mxu0
        %v1743 = vadd.f32 0.0, %v1742
        %v1744 = vpop.f32.mrb[0].mxu0
        %1745 = vmatprep.mubr.f32.mxu0 %v1509
        %1746 = vmatmul.mubr.f32.gmra.mrb[0].mxu0 %v1477
        %v1747 = vpop.f32.mrb[0].mxu0
        %v1748 = vadd.f32 0.0, %v1747
        %v1749 = vpop.f32.mrb[0].mxu0
        %1750 = vmatprep.mubr.f32.mxu0 %v1510
        %1751 = vmatmul.mubr.f32.gmra.mrb[0].mxu0 %v1478
        %v1752 = vpop.f32.mrb[0].mxu0
        %v1753 = vadd.f32 0.0, %v1752
        %v1754 = vpop.f32.mrb[0].mxu0
        %1755 = vmatprep.mubr.f32.mxu0 %v1511
        %1756 = vmatmul.mubr.f32.gmra.mrb[0].mxu0 %v1479
        %v1757 = vpop.f32.mrb[0].mxu0
        %v1758 = vadd.f32 0.0, %v1757
        %v1759 = vpop.f32.mrb[0].mxu0
        %1760 = vmatprep.mubr.f32.mxu0 %v1512
        %1761 = vmatmul.mubr.f32.gmra.mrb[0].mxu0 %v1480
        %v1762 = vpop.f32.mrb[0].mxu0
        %v1763 = vadd.f32 0.0, %v1762
        %v1764 = vpop.f32.mrb[0].mxu0
        %1765 = vmatprep.mubr.f32.mxu0 %v1513
        %1766 = vmatmul.mubr.f32.gmra.mrb[0].mxu0 %v1481
        %v1767 = vpop.f32.mrb[0].mxu0
        %v1768 = vadd.f32 0.0, %v1767
        %v1769 = vpop.f32.mrb[0].mxu0
        %1770 = vmatprep.mubr.f32.mxu0 %v1514
        %1771 = vmatmul.mubr.f32.gmra.mrb[0].mxu0 %v1482
        %v1772 = vpop.f32.mrb[0].mxu0
        %v1773 = vadd.f32 0.0, %v1772
        %v1774 = vpop.f32.mrb[0].mxu0
        %1775 = vmatprep.mubr.f32.mxu0 %v1515
        %1776 = vmatmul.mubr.f32.gmra.mrb[0].mxu0 %v1483
        %v1777 = vpop.f32.mrb[0].mxu0
        %v1778 = vadd.f32 0.0, %v1777
        %v1779 = vpop.f32.mrb[0].mxu0
        %1780 = vmatprep.mubr.f32.mxu0 %v1516
        %1781 = vmatmul.mubr.f32.gmra.mrb[0].mxu0 %v1484
        %v1782 = vpop.f32.mrb[0].mxu0
        %v1783 = vadd.f32 0.0, %v1782
        %v1784 = vpop.f32.mrb[0].mxu0
        %1785 = vmatprep.mubr.f32.mxu0 %v1517
        %1786 = vmatmul.mubr.f32.gmra.mrb[0].mxu0 %v1485
        %v1787 = vpop.f32.mrb[0].mxu0
        %v1788 = vadd.f32 0.0, %v1787
        %v1789 = vpop.f32.mrb[0].mxu0
        %1790 = vmatprep.mubr.f32.mxu0 %v1518
        %1791 = vmatmul.mubr.f32.gmra.mrb[0].mxu0 %v1486
        %v1792 = vpop.f32.mrb[0].mxu0
        %v1793 = vadd.f32 0.0, %v1792
        %v1794 = vpop.f32.mrb[0].mxu0
        %1795 = vmatprep.mubr.f32.mxu0 %v1519
        %1796 = vmatmul.mubr.f32.gmra.mrb[0].mxu0 %v1487
        %v1797 = vpop.f32.mrb[0].mxu0
        %v1798 = vadd.f32 0.0, %v1797
        %v1799 = vpop.f32.mrb[0].mxu0
        %1800 = vmatprep.mubr.f32.mxu0 %v1520
        %1801 = vmatmul.mubr.f32.gmra.mrb[0].mxu0 %v1488
        %v1802 = vpop.f32.mrb[0].mxu0
        %v1803 = vadd.f32 0.0, %v1802
        %v1804 = vpop.f32.mrb[0].mxu0
        %1805 = vmatprep.mubr.f32.mxu0 %v1521
        %1806 = vmatmul.mubr.f32.gmra.mrb[0].mxu0 %v1489
        %v1807 = vpop.f32.mrb[0].mxu0
        %v1808 = vadd.f32 0.0, %v1807
        %v1809 = vpop.f32.mrb[0].mxu0
        %1810 = vmatprep.mubr.f32.mxu0 %v1522
        %1811 = vmatmul.mubr.f32.gmra.mrb[0].mxu0 %v1490
        %v1812 = vpop.f32.mrb[0].mxu0
        %v1813 = vadd.f32 0.0, %v1812
        %v1814 = vpop.f32.mrb[0].mxu0
        %1815 = vmatprep.mubr.f32.mxu0 %v1523
        %1816 = vmatmul.mubr.f32.gmra.mrb[0].mxu0 %v1491
        %v1817 = vpop.f32.mrb[0].mxu0
        %v1818 = vadd.f32 0.0, %v1817
        %v1819 = vpop.f32.mrb[0].mxu0
        %1820 = vmatprep.mubr.f32.mxu0 %v1524
        %1821 = vmatmul.mubr.f32.gmra.mrb[0].mxu0 %v1492
        %v1822 = vpop.f32.mrb[0].mxu0
        %v1823 = vadd.f32 0.0, %v1822
        %v1824 = vpop.f32.mrb[0].mxu0
        %1825 = vmatprep.mubr.f32.mxu0 %v1525
        %1826 = vmatmul.mubr.f32.gmra.mrb[0].mxu0 %v1493
        %v1827 = vpop.f32.mrb[0].mxu0
        %v1828 = vadd.f32 0.0, %v1827
        %v1829 = vpop.f32.mrb[0].mxu0
        %1830 = vdwg.mxu0
        %1831 = vmatprep.subr.mxu0 0.0
        %1832 = vmatpush1.msra.mxu0 %v1590
        %1833 = vmatprep.subr.mxu0 0.0
        %1834 = vmatpush1.msra.mxu0 %v1591
        %1835 = vmatprep.subr.mxu0 0.0
        %1836 = vmatpush1.msra.mxu0 %v1592
        %1837 = vmatprep.subr.mxu0 0.0
        %1838 = vmatpush1.msra.mxu0 %v1593
        %1839 = vmatprep.subr.mxu0 0.0
        %1840 = vmatpush1.msra.mxu0 %v1594
        %1841 = vmatprep.subr.mxu0 0.0
        %1842 = vmatpush1.msra.mxu0 %v1595
        %1843 = vmatprep.subr.mxu0 0.0
        %1844 = vmatpush1.msra.mxu0 %v1596
        %1845 = vmatprep.subr.mxu0 0.0
        %1846 = vmatpush1.msra.mxu0 %v1597
        %1847 = vmatprep.subr.mxu0 0.0
        %1848 = vmatpush1.msra.mxu0 %v1598
        %1849 = vmatprep.subr.mxu0 0.0
        %1850 = vmatpush1.msra.mxu0 %v1599
        %1851 = vmatprep.subr.mxu0 0.0
        %1852 = vmatpush1.msra.mxu0 %v1600
        %1853 = vmatprep.subr.mxu0 0.0
        %1854 = vmatpush1.msra.mxu0 %v1601
        %1855 = vmatprep.subr.mxu0 0.0
        %1856 = vmatpush1.msra.mxu0 %v1602
        %1857 = vmatprep.subr.mxu0 0.0
        %1858 = vmatpush1.msra.mxu0 %v1603
        %1859 = vmatprep.subr.mxu0 0.0
        %1860 = vmatpush1.msra.mxu0 %v1604
        %1861 = vmatprep.subr.mxu0 0.0
        %1862 = vmatpush1.msra.mxu0 %v1605
        %1863 = vmatprep.subr.mxu0 0.0
        %1864 = vmatpush1.msra.mxu0 0.0
        %1865 = vmatprep.subr.mxu0 0.0
        %1866 = vmatpush1.msra.mxu0 0.0
        %1867 = vmatprep.subr.mxu0 0.0
        %1868 = vmatpush1.msra.mxu0 0.0
        %1869 = vmatprep.subr.mxu0 0.0
        %1870 = vmatpush1.msra.mxu0 0.0
        %1871 = vmatprep.subr.mxu0 0.0
        %1872 = vmatpush1.msra.mxu0 0.0
        %1873 = vmatprep.subr.mxu0 0.0
        %1874 = vmatpush1.msra.mxu0 0.0
        %1875 = vmatprep.subr.mxu0 0.0
        %1876 = vmatpush1.msra.mxu0 0.0
        %1877 = vmatprep.subr.mxu0 0.0
        %1878 = vmatpush1.msra.mxu0 0.0
        %1879 = vmatprep.subr.mxu0 0.0
        %1880 = vmatpush1.msra.mxu0 0.0
        %1881 = vmatprep.subr.mxu0 0.0
        %1882 = vmatpush1.msra.mxu0 0.0
        %1883 = vmatprep.subr.mxu0 0.0
        %1884 = vmatpush1.msra.mxu0 0.0
        %1885 = vmatprep.subr.mxu0 0.0
        %1886 = vmatpush1.msra.mxu0 0.0
        %1887 = vmatprep.subr.mxu0 0.0
        %1888 = vmatpush1.msra.mxu0 0.0
        %1889 = vmatprep.subr.mxu0 0.0
        %1890 = vmatpush1.msra.mxu0 0.0
        %1891 = vmatprep.subr.mxu0 0.0
        %1892 = vmatpush1.msra.mxu0 0.0
        %1893 = vmatprep.subr.mxu0 0.0
        %1894 = vmatpush1.msra.mxu0 0.0
        %1895 = vmatprep.mubr.f32.mxu0 0.0
        %1896 = vmatmul.mubr.f32.gmra.mrb[0].mxu0 %v1526
        %v1897 = vpop.f32.mrb[0].mxu0
        %v1898 = vadd.f32 %v1673, %v1897
        %v1899 = vpop.f32.mrb[0].mxu0
        %1900 = vmatprep.mubr.f32.mxu0 0.0
        %1901 = vmatmul.mubr.f32.gmra.mrb[0].mxu0 %v1527
        %v1902 = vpop.f32.mrb[0].mxu0
        %v1903 = vadd.f32 %v1678, %v1902
        %v1904 = vpop.f32.mrb[0].mxu0
        %1905 = vmatprep.mubr.f32.mxu0 0.0
        %1906 = vmatmul.mubr.f32.gmra.mrb[0].mxu0 %v1528
        %v1907 = vpop.f32.mrb[0].mxu0
        %v1908 = vadd.f32 %v1683, %v1907
        %v1909 = vpop.f32.mrb[0].mxu0
        %1910 = vmatprep.mubr.f32.mxu0 0.0
        %1911 = vmatmul.mubr.f32.gmra.mrb[0].mxu0 %v1529
        %v1912 = vpop.f32.mrb[0].mxu0
        %v1913 = vadd.f32 %v1688, %v1912
        %v1914 = vpop.f32.mrb[0].mxu0
        %1915 = vmatprep.mubr.f32.mxu0 0.0
        %1916 = vmatmul.mubr.f32.gmra.mrb[0].mxu0 %v1530
        %v1917 = vpop.f32.mrb[0].mxu0
        %v1918 = vadd.f32 %v1693, %v1917
        %v1919 = vpop.f32.mrb[0].mxu0
        %1920 = vmatprep.mubr.f32.mxu0 0.0
        %1921 = vmatmul.mubr.f32.gmra.mrb[0].mxu0 %v1531
        %v1922 = vpop.f32.mrb[0].mxu0
        %v1923 = vadd.f32 %v1698, %v1922
        %v1924 = vpop.f32.mrb[0].mxu0
        %1925 = vmatprep.mubr.f32.mxu0 0.0
        %1926 = vmatmul.mubr.f32.gmra.mrb[0].mxu0 %v1532
        %v1927 = vpop.f32.mrb[0].mxu0
        %v1928 = vadd.f32 %v1703, %v1927
        %v1929 = vpop.f32.mrb[0].mxu0
        %1930 = vmatprep.mubr.f32.mxu0 0.0
        %1931 = vmatmul.mubr.f32.gmra.mrb[0].mxu0 %v1533
        %v1932 = vpop.f32.mrb[0].mxu0
        %v1933 = vadd.f32 %v1708, %v1932
        %v1934 = vpop.f32.mrb[0].mxu0
        %1935 = vmatprep.mubr.f32.mxu0 0.0
        %1936 = vmatmul.mubr.f32.gmra.mrb[0].mxu0 %v1534
        %v1937 = vpop.f32.mrb[0].mxu0
        %v1938 = vadd.f32 %v1713, %v1937
        %v1939 = vpop.f32.mrb[0].mxu0
        %1940 = vmatprep.mubr.f32.mxu0 0.0
        %1941 = vmatmul.mubr.f32.gmra.mrb[0].mxu0 %v1535
        %v1942 = vpop.f32.mrb[0].mxu0
        %v1943 = vadd.f32 %v1718, %v1942
        %v1944 = vpop.f32.mrb[0].mxu0
        %1945 = vmatprep.mubr.f32.mxu0 0.0
        %1946 = vmatmul.mubr.f32.gmra.mrb[0].mxu0 %v1536
        %v1947 = vpop.f32.mrb[0].mxu0
        %v1948 = vadd.f32 %v1723, %v1947
        %v1949 = vpop.f32.mrb[0].mxu0
        %1950 = vmatprep.mubr.f32.mxu0 0.0
        %1951 = vmatmul.mubr.f32.gmra.mrb[0].mxu0 %v1537
        %v1952 = vpop.f32.mrb[0].mxu0
        %v1953 = vadd.f32 %v1728, %v1952
        %v1954 = vpop.f32.mrb[0].mxu0
        %1955 = vmatprep.mubr.f32.mxu0 0.0
        %1956 = vmatmul.mubr.f32.gmra.mrb[0].mxu0 %v1538
        %v1957 = vpop.f32.mrb[0].mxu0
        %v1958 = vadd.f32 %v1733, %v1957
        %v1959 = vpop.f32.mrb[0].mxu0
        %1960 = vmatprep.mubr.f32.mxu0 0.0
        %1961 = vmatmul.mubr.f32.gmra.mrb[0].mxu0 %v1539
        %v1962 = vpop.f32.mrb[0].mxu0
        %v1963 = vadd.f32 %v1738, %v1962
        %v1964 = vpop.f32.mrb[0].mxu0
        %1965 = vmatprep.mubr.f32.mxu0 0.0
        %1966 = vmatmul.mubr.f32.gmra.mrb[0].mxu0 %v1540
        %v1967 = vpop.f32.mrb[0].mxu0
        %v1968 = vadd.f32 %v1743, %v1967
        %v1969 = vpop.f32.mrb[0].mxu0
        %1970 = vmatprep.mubr.f32.mxu0 0.0
        %1971 = vmatmul.mubr.f32.gmra.mrb[0].mxu0 %v1541
        %v1972 = vpop.f32.mrb[0].mxu0
        %v1973 = vadd.f32 %v1748, %v1972
        %v1974 = vpop.f32.mrb[0].mxu0
        %1975 = vmatprep.mubr.f32.mxu0 0.0
        %1976 = vmatmul.mubr.f32.gmra.mrb[0].mxu0 %v1542
        %v1977 = vpop.f32.mrb[0].mxu0
        %v1978 = vadd.f32 %v1753, %v1977
        %v1979 = vpop.f32.mrb[0].mxu0
        %1980 = vmatprep.mubr.f32.mxu0 0.0
        %1981 = vmatmul.mubr.f32.gmra.mrb[0].mxu0 %v1543
        %v1982 = vpop.f32.mrb[0].mxu0
        %v1983 = vadd.f32 %v1758, %v1982
        %v1984 = vpop.f32.mrb[0].mxu0
        %1985 = vmatprep.mubr.f32.mxu0 0.0
        %1986 = vmatmul.mubr.f32.gmra.mrb[0].mxu0 %v1544
        %v1987 = vpop.f32.mrb[0].mxu0
        %v1988 = vadd.f32 %v1763, %v1987
        %v1989 = vpop.f32.mrb[0].mxu0
        %1990 = vmatprep.mubr.f32.mxu0 0.0
        %1991 = vmatmul.mubr.f32.gmra.mrb[0].mxu0 %v1545
        %v1992 = vpop.f32.mrb[0].mxu0
        %v1993 = vadd.f32 %v1768, %v1992
        %v1994 = vpop.f32.mrb[0].mxu0
        %1995 = vmatprep.mubr.f32.mxu0 0.0
        %1996 = vmatmul.mubr.f32.gmra.mrb[0].mxu0 %v1546
        %v1997 = vpop.f32.mrb[0].mxu0
        %v1998 = vadd.f32 %v1773, %v1997
        %v1999 = vpop.f32.mrb[0].mxu0
        %2000 = vmatprep.mubr.f32.mxu0 0.0
        %2001 = vmatmul.mubr.f32.gmra.mrb[0].mxu0 %v1547
        %v2002 = vpop.f32.mrb[0].mxu0
        %v2003 = vadd.f32 %v1778, %v2002
        %v2004 = vpop.f32.mrb[0].mxu0
        %2005 = vmatprep.mubr.f32.mxu0 0.0
        %2006 = vmatmul.mubr.f32.gmra.mrb[0].mxu0 %v1548
        %v2007 = vpop.f32.mrb[0].mxu0
        %v2008 = vadd.f32 %v1783, %v2007
        %v2009 = vpop.f32.mrb[0].mxu0
        %2010 = vmatprep.mubr.f32.mxu0 0.0
        %2011 = vmatmul.mubr.f32.gmra.mrb[0].mxu0 %v1549
        %v2012 = vpop.f32.mrb[0].mxu0
        %v2013 = vadd.f32 %v1788, %v2012
        %v2014 = vpop.f32.mrb[0].mxu0
        %2015 = vmatprep.mubr.f32.mxu0 0.0
        %2016 = vmatmul.mubr.f32.gmra.mrb[0].mxu0 %v1550
        %v2017 = vpop.f32.mrb[0].mxu0
        %v2018 = vadd.f32 %v1793, %v2017
        %v2019 = vpop.f32.mrb[0].mxu0
        %2020 = vmatprep.mubr.f32.mxu0 0.0
        %2021 = vmatmul.mubr.f32.gmra.mrb[0].mxu0 %v1551
        %v2022 = vpop.f32.mrb[0].mxu0
        %v2023 = vadd.f32 %v1798, %v2022
        %v2024 = vpop.f32.mrb[0].mxu0
        %2025 = vmatprep.mubr.f32.mxu0 0.0
        %2026 = vmatmul.mubr.f32.gmra.mrb[0].mxu0 %v1552
        %v2027 = vpop.f32.mrb[0].mxu0
        %v2028 = vadd.f32 %v1803, %v2027
        %v2029 = vpop.f32.mrb[0].mxu0
        %2030 = vmatprep.mubr.f32.mxu0 0.0
        %2031 = vmatmul.mubr.f32.gmra.mrb[0].mxu0 %v1553
        %v2032 = vpop.f32.mrb[0].mxu0
        %v2033 = vadd.f32 %v1808, %v2032
        %v2034 = vpop.f32.mrb[0].mxu0
        %2035 = vmatprep.mubr.f32.mxu0 0.0
        %2036 = vmatmul.mubr.f32.gmra.mrb[0].mxu0 %v1554
        %v2037 = vpop.f32.mrb[0].mxu0
        %v2038 = vadd.f32 %v1813, %v2037
        %v2039 = vpop.f32.mrb[0].mxu0
        %2040 = vmatprep.mubr.f32.mxu0 0.0
        %2041 = vmatmul.mubr.f32.gmra.mrb[0].mxu0 %v1555
        %v2042 = vpop.f32.mrb[0].mxu0
        %v2043 = vadd.f32 %v1818, %v2042
        %v2044 = vpop.f32.mrb[0].mxu0
        %2045 = vmatprep.mubr.f32.mxu0 0.0
        %2046 = vmatmul.mubr.f32.gmra.mrb[0].mxu0 %v1556
        %v2047 = vpop.f32.mrb[0].mxu0
        %v2048 = vadd.f32 %v1823, %v2047
        %v2049 = vpop.f32.mrb[0].mxu0
        %2050 = vmatprep.mubr.f32.mxu0 0.0
        %2051 = vmatmul.mubr.f32.gmra.mrb[0].mxu0 %v1557
        %v2052 = vpop.f32.mrb[0].mxu0
        %v2053 = vadd.f32 %v1828, %v2052
        %v2054 = vpop.f32.mrb[0].mxu0
        %2055 = vdwg.mxu0
        %v2056 = vadd.f32 %v1303, %v1898
        %v2057 = vadd.f32 %v1308, %v1903
        %v2058 = vadd.f32 %v1313, %v1908
        %v2059 = vadd.f32 %v1318, %v1913
        %v2060 = vadd.f32 %v1323, %v1918
        %v2061 = vadd.f32 %v1328, %v1923
        %v2062 = vadd.f32 %v1333, %v1928
        %v2063 = vadd.f32 %v1338, %v1933
        %v2064 = vadd.f32 %v1343, %v1938
        %v2065 = vadd.f32 %v1348, %v1943
        %v2066 = vadd.f32 %v1353, %v1948
        %v2067 = vadd.f32 %v1358, %v1953
        %v2068 = vadd.f32 %v1363, %v1958
        %v2069 = vadd.f32 %v1368, %v1963
        %v2070 = vadd.f32 %v1373, %v1968
        %v2071 = vadd.f32 %v1378, %v1973
        %v2072 = vadd.f32 %v1383, %v1978
        %v2073 = vadd.f32 %v1388, %v1983
        %v2074 = vadd.f32 %v1393, %v1988
        %v2075 = vadd.f32 %v1398, %v1993
        %v2076 = vadd.f32 %v1403, %v1998
        %v2077 = vadd.f32 %v1408, %v2003
        %v2078 = vadd.f32 %v1413, %v2008
        %v2079 = vadd.f32 %v1418, %v2013
        %v2080 = vadd.f32 %v1423, %v2018
        %v2081 = vadd.f32 %v1428, %v2023
        %v2082 = vadd.f32 %v1433, %v2028
        %v2083 = vadd.f32 %v1438, %v2033
        %v2084 = vadd.f32 %v1443, %v2038
        %v2085 = vadd.f32 %v1448, %v2043
        %v2086 = vadd.f32 %v1453, %v2048
        %v2087 = vadd.f32 %v1458, %v2053
        %v2088 = vld [vmem:[%s2] sm:$0x1]
        %v2090 = vlaneseq
        %v2091 = vshrl.u32 %v2090, 7
        %v2092 = vsub.s32 0, %v2091
        %v2093 = vrot.slane %v2088, %v2092
        %v2095 = vadd.f32 %v2056, %v2093
        %v2096 = vadd.f32 %v2057, %v2093
        %v2097 = vadd.f32 %v2058, %v2093
        %v2098 = vadd.f32 %v2059, %v2093
        %v2099 = vadd.f32 %v2060, %v2093
        %v2100 = vadd.f32 %v2061, %v2093
        %v2101 = vadd.f32 %v2062, %v2093
        %v2102 = vadd.f32 %v2063, %v2093
        %v2103 = vadd.f32 %v2064, %v2093
        %v2104 = vadd.f32 %v2065, %v2093
        %v2105 = vadd.f32 %v2066, %v2093
        %v2106 = vadd.f32 %v2067, %v2093
        %v2107 = vadd.f32 %v2068, %v2093
        %v2108 = vadd.f32 %v2069, %v2093
        %v2109 = vadd.f32 %v2070, %v2093
        %v2110 = vadd.f32 %v2071, %v2093
        %v2111 = vadd.f32 %v2072, %v2093
        %v2112 = vadd.f32 %v2073, %v2093
        %v2113 = vadd.f32 %v2074, %v2093
        %v2114 = vadd.f32 %v2075, %v2093
        %v2115 = vadd.f32 %v2076, %v2093
        %v2116 = vadd.f32 %v2077, %v2093
        %v2117 = vadd.f32 %v2078, %v2093
        %v2118 = vadd.f32 %v2079, %v2093
        %v2119 = vadd.f32 %v2080, %v2093
        %v2120 = vadd.f32 %v2081, %v2093
        %v2121 = vadd.f32 %v2082, %v2093
        %v2122 = vadd.f32 %v2083, %v2093
        %v2123 = vadd.f32 %v2084, %v2093
        %v2124 = vadd.f32 %v2085, %v2093
        %v2125 = vadd.f32 %v2086, %v2093
        %v2126 = vadd.f32 %v2087, %v2093
        %v2127 = vmax.f32 %v2095, 0.0
        %v2128 = vmax.f32 %v2096, 0.0
        %v2129 = vmax.f32 %v2097, 0.0
        %v2130 = vmax.f32 %v2098, 0.0
        %v2131 = vmax.f32 %v2099, 0.0
        %v2132 = vmax.f32 %v2100, 0.0
        %v2133 = vmax.f32 %v2101, 0.0
        %v2134 = vmax.f32 %v2102, 0.0
        %v2135 = vmax.f32 %v2103, 0.0
        %v2136 = vmax.f32 %v2104, 0.0
        %v2137 = vmax.f32 %v2105, 0.0
        %v2138 = vmax.f32 %v2106, 0.0
        %v2139 = vmax.f32 %v2107, 0.0
        %v2140 = vmax.f32 %v2108, 0.0
        %v2141 = vmax.f32 %v2109, 0.0
        %v2142 = vmax.f32 %v2110, 0.0
        %v2143 = vmax.f32 %v2111, 0.0
        %v2144 = vmax.f32 %v2112, 0.0
        %v2145 = vmax.f32 %v2113, 0.0
        %v2146 = vmax.f32 %v2114, 0.0
        %v2147 = vmax.f32 %v2115, 0.0
        %v2148 = vmax.f32 %v2116, 0.0
        %v2149 = vmax.f32 %v2117, 0.0
        %v2150 = vmax.f32 %v2118, 0.0
        %v2151 = vmax.f32 %v2119, 0.0
        %v2152 = vmax.f32 %v2120, 0.0
        %v2153 = vmax.f32 %v2121, 0.0
        %v2154 = vmax.f32 %v2122, 0.0
        %v2155 = vmax.f32 %v2123, 0.0
        %v2156 = vmax.f32 %v2124, 0.0
        %v2157 = vmax.f32 %v2125, 0.0
        %v2158 = vmax.f32 %v2126, 0.0
        %2159 = vst [vmem:[#allocation2] sm:$0xff] 0.0
        %2160 = vst [vmem:[#allocation2 + $0x8] sm:$0xff] 0.0
        %2161 = vst [vmem:[#allocation2 + $0x10] sm:$0xff] 0.0
        %s2162 = scalar_lea.vmem [#allocation2], 408
        %2163 = vst [vmem:[%s2162] sm:$0xff] 0.0
        %2164 = vst [vmem:[%s2162 + $0x8] sm:$0xff] 0.0
        %2165 = vst [vmem:[%s2162 + $0x10] sm:$0xff] 0.0
        %s2166 = scalar_lea.vmem [#allocation2], 24
        %2167 = vst [vmem:[%s2166] sm:$0x1] 0.0
        %2168 = vst [vmem:[%s2166 + $0x18] sm:$0x1] 0.0
        %2169 = vst [vmem:[%s2166 + $0x30] sm:$0x1] 0.0
        %2170 = vst [vmem:[%s2166 + $0x48] sm:$0x1] 0.0
        %2171 = vst [vmem:[%s2166 + $0x60] sm:$0x1] 0.0
        %2172 = vst [vmem:[%s2166 + $0x78] sm:$0x1] 0.0
        %2173 = vst [vmem:[%s2166 + $0x90] sm:$0x1] 0.0
        %2174 = vst [vmem:[%s2166 + $0xa8] sm:$0x1] 0.0
        %2175 = vst [vmem:[%s2166 + $0xc0] sm:$0x1] 0.0
        %2176 = vst [vmem:[%s2166 + $0xd8] sm:$0x1] 0.0
        %2177 = vst [vmem:[%s2166 + $0xf0] sm:$0x1] 0.0
        %2178 = vst [vmem:[%s2166 + $0x108] sm:$0x1] 0.0
        %2179 = vst [vmem:[%s2166 + $0x120] sm:$0x1] 0.0
        %2180 = vst [vmem:[%s2166 + $0x138] sm:$0x1] 0.0
        %2181 = vst [vmem:[%s2166 + $0x150] sm:$0x1] 0.0
        %2182 = vst [vmem:[%s2166 + $0x168] sm:$0x1] 0.0
        %2183 = vst [vmem:[%s2166 + $0x11] sm:$0x1] 0.0
        %2184 = vst [vmem:[%s2166 + $0x29] sm:$0x1] 0.0
        %2185 = vst [vmem:[%s2166 + $0x41] sm:$0x1] 0.0
        %2186 = vst [vmem:[%s2166 + $0x59] sm:$0x1] 0.0
        %2187 = vst [vmem:[%s2166 + $0x71] sm:$0x1] 0.0
        %2188 = vst [vmem:[%s2166 + $0x89] sm:$0x1] 0.0
        %2189 = vst [vmem:[%s2166 + $0xa1] sm:$0x1] 0.0
        %2190 = vst [vmem:[%s2166 + $0xb9] sm:$0x1] 0.0
        %2191 = vst [vmem:[%s2166 + $0xd1] sm:$0x1] 0.0
        %2192 = vst [vmem:[%s2166 + $0xe9] sm:$0x1] 0.0
        %2193 = vst [vmem:[%s2166 + $0x101] sm:$0x1] 0.0
        %2194 = vst [vmem:[%s2166 + $0x119] sm:$0x1] 0.0
        %2195 = vst [vmem:[%s2166 + $0x131] sm:$0x1] 0.0
        %2196 = vst [vmem:[%s2166 + $0x149] sm:$0x1] 0.0
        %2197 = vst [vmem:[%s2166 + $0x161] sm:$0x1] 0.0
        %2198 = vst [vmem:[%s2166 + $0x179] sm:$0x1] 0.0
        %2199 = vst [vmem:[%s2166 + $0x1] sm:$0xff] %v2127
        %2200 = vst [vmem:[%s2166 + $0x9] sm:$0xff] %v2128
        %2201 = vst [vmem:[%s2166 + $0x19] sm:$0xff] %v2129
        %2202 = vst [vmem:[%s2166 + $0x21] sm:$0xff] %v2130
        %2203 = vst [vmem:[%s2166 + $0x31] sm:$0xff] %v2131
        %2204 = vst [vmem:[%s2166 + $0x39] sm:$0xff] %v2132
        %2205 = vst [vmem:[%s2166 + $0x49] sm:$0xff] %v2133
        %2206 = vst [vmem:[%s2166 + $0x51] sm:$0xff] %v2134
        %2207 = vst [vmem:[%s2166 + $0x61] sm:$0xff] %v2135
        %2208 = vst [vmem:[%s2166 + $0x69] sm:$0xff] %v2136
        %2209 = vst [vmem:[%s2166 + $0x79] sm:$0xff] %v2137
        %2210 = vst [vmem:[%s2166 + $0x81] sm:$0xff] %v2138
        %2211 = vst [vmem:[%s2166 + $0x91] sm:$0xff] %v2139
        %2212 = vst [vmem:[%s2166 + $0x99] sm:$0xff] %v2140
        %2213 = vst [vmem:[%s2166 + $0xa9] sm:$0xff] %v2141
        %2214 = vst [vmem:[%s2166 + $0xb1] sm:$0xff] %v2142
        %2215 = vst [vmem:[%s2166 + $0xc1] sm:$0xff] %v2143
        %2216 = vst [vmem:[%s2166 + $0xc9] sm:$0xff] %v2144
        %2217 = vst [vmem:[%s2166 + $0xd9] sm:$0xff] %v2145
        %2218 = vst [vmem:[%s2166 + $0xe1] sm:$0xff] %v2146
        %2219 = vst [vmem:[%s2166 + $0xf1] sm:$0xff] %v2147
        %2220 = vst [vmem:[%s2166 + $0xf9] sm:$0xff] %v2148
        %2221 = vst [vmem:[%s2166 + $0x109] sm:$0xff] %v2149
        %2222 = vst [vmem:[%s2166 + $0x111] sm:$0xff] %v2150
        %2223 = vst [vmem:[%s2166 + $0x121] sm:$0xff] %v2151
        %2224 = vst [vmem:[%s2166 + $0x129] sm:$0xff] %v2152
        %2225 = vst [vmem:[%s2166 + $0x139] sm:$0xff] %v2153
        %2226 = vst [vmem:[%s2166 + $0x141] sm:$0xff] %v2154
        %2227 = vst [vmem:[%s2166 + $0x151] sm:$0xff] %v2155
        %2228 = vst [vmem:[%s2166 + $0x159] sm:$0xff] %v2156
        %2229 = vst [vmem:[%s2166 + $0x169] sm:$0xff] %v2157
        %2230 = vst [vmem:[%s2166 + $0x171] sm:$0xff] %v2158
        %v2231 = vld [vmem:[#allocation2] sm:$0xff]
        %v2232 = vld [vmem:[#allocation2 + $0x8] sm:$0xff]
        %v2233 = vld [vmem:[#allocation2 + $0x18] sm:$0xff]
        %v2234 = vld [vmem:[#allocation2 + $0x20] sm:$0xff]
        %v2235 = vld [vmem:[#allocation2 + $0x30] sm:$0xff]
        %v2236 = vld [vmem:[#allocation2 + $0x38] sm:$0xff]
        %v2237 = vld [vmem:[#allocation2 + $0x48] sm:$0xff]
        %v2238 = vld [vmem:[#allocation2 + $0x50] sm:$0xff]
        %v2239 = vld [vmem:[#allocation2 + $0x60] sm:$0xff]
        %v2240 = vld [vmem:[#allocation2 + $0x68] sm:$0xff]
        %v2241 = vld [vmem:[#allocation2 + $0x78] sm:$0xff]
        %v2242 = vld [vmem:[#allocation2 + $0x80] sm:$0xff]
        %v2243 = vld [vmem:[#allocation2 + $0x90] sm:$0xff]
        %v2244 = vld [vmem:[#allocation2 + $0x98] sm:$0xff]
        %v2245 = vld [vmem:[#allocation2 + $0xa8] sm:$0xff]
        %v2246 = vld [vmem:[#allocation2 + $0xb0] sm:$0xff]
        %v2247 = vld [vmem:[#allocation2 + $0xc0] sm:$0xff]
        %v2248 = vld [vmem:[#allocation2 + $0xc8] sm:$0xff]
        %v2249 = vld [vmem:[#allocation2 + $0xd8] sm:$0xff]
        %v2250 = vld [vmem:[#allocation2 + $0xe0] sm:$0xff]
        %v2251 = vld [vmem:[#allocation2 + $0xf0] sm:$0xff]
        %v2252 = vld [vmem:[#allocation2 + $0xf8] sm:$0xff]
        %v2253 = vld [vmem:[#allocation2 + $0x108] sm:$0xff]
        %v2254 = vld [vmem:[#allocation2 + $0x110] sm:$0xff]
        %v2255 = vld [vmem:[#allocation2 + $0x120] sm:$0xff]
        %v2256 = vld [vmem:[#allocation2 + $0x128] sm:$0xff]
        %v2257 = vld [vmem:[#allocation2 + $0x138] sm:$0xff]
        %v2258 = vld [vmem:[#allocation2 + $0x140] sm:$0xff]
        %v2259 = vld [vmem:[#allocation2 + $0x150] sm:$0xff]
        %v2260 = vld [vmem:[#allocation2 + $0x158] sm:$0xff]
        %v2261 = vld [vmem:[#allocation2 + $0x168] sm:$0xff]
        %v2262 = vld [vmem:[#allocation2 + $0x170] sm:$0xff]
        %v2263 = vld [vmem:[#allocation2 + $0x1] sm:$0xff]
        %v2264 = vld [vmem:[#allocation2 + $0x9] sm:$0xff]
        %v2265 = vld [vmem:[#allocation2 + $0x19] sm:$0xff]
        %v2266 = vld [vmem:[#allocation2 + $0x21] sm:$0xff]
        %v2267 = vld [vmem:[#allocation2 + $0x31] sm:$0xff]
        %v2268 = vld [vmem:[#allocation2 + $0x39] sm:$0xff]
        %v2269 = vld [vmem:[#allocation2 + $0x49] sm:$0xff]
        %v2270 = vld [vmem:[#allocation2 + $0x51] sm:$0xff]
        %v2271 = vld [vmem:[#allocation2 + $0x61] sm:$0xff]
        %v2272 = vld [vmem:[#allocation2 + $0x69] sm:$0xff]
        %v2273 = vld [vmem:[#allocation2 + $0x79] sm:$0xff]
        %v2274 = vld [vmem:[#allocation2 + $0x81] sm:$0xff]
        %v2275 = vld [vmem:[#allocation2 + $0x91] sm:$0xff]
        %v2276 = vld [vmem:[#allocation2 + $0x99] sm:$0xff]
        %v2277 = vld [vmem:[#allocation2 + $0xa9] sm:$0xff]
        %v2278 = vld [vmem:[#allocation2 + $0xb1] sm:$0xff]
        %v2279 = vld [vmem:[#allocation2 + $0xc1] sm:$0xff]
        %v2280 = vld [vmem:[#allocation2 + $0xc9] sm:$0xff]
        %v2281 = vld [vmem:[#allocation2 + $0xd9] sm:$0xff]
        %v2282 = vld [vmem:[#allocation2 + $0xe1] sm:$0xff]
        %v2283 = vld [vmem:[#allocation2 + $0xf1] sm:$0xff]
        %v2284 = vld [vmem:[#allocation2 + $0xf9] sm:$0xff]
        %v2285 = vld [vmem:[#allocation2 + $0x109] sm:$0xff]
        %v2286 = vld [vmem:[#allocation2 + $0x111] sm:$0xff]
        %v2287 = vld [vmem:[#allocation2 + $0x121] sm:$0xff]
        %v2288 = vld [vmem:[#allocation2 + $0x129] sm:$0xff]
        %v2289 = vld [vmem:[#allocation2 + $0x139] sm:$0xff]
        %v2290 = vld [vmem:[#allocation2 + $0x141] sm:$0xff]
        %v2291 = vld [vmem:[#allocation2 + $0x151] sm:$0xff]
        %v2292 = vld [vmem:[#allocation2 + $0x159] sm:$0xff]
        %v2293 = vld [vmem:[#allocation2 + $0x169] sm:$0xff]
        %v2294 = vld [vmem:[#allocation2 + $0x171] sm:$0xff]
        %v2295 = vld [vmem:[#allocation2 + $0x2] sm:$0xff]
        %v2296 = vld [vmem:[#allocation2 + $0xa] sm:$0xff]
        %v2297 = vld [vmem:[#allocation2 + $0x1a] sm:$0xff]
        %v2298 = vld [vmem:[#allocation2 + $0x22] sm:$0xff]
        %v2299 = vld [vmem:[#allocation2 + $0x32] sm:$0xff]
        %v2300 = vld [vmem:[#allocation2 + $0x3a] sm:$0xff]
        %v2301 = vld [vmem:[#allocation2 + $0x4a] sm:$0xff]
        %v2302 = vld [vmem:[#allocation2 + $0x52] sm:$0xff]
        %v2303 = vld [vmem:[#allocation2 + $0x62] sm:$0xff]
        %v2304 = vld [vmem:[#allocation2 + $0x6a] sm:$0xff]
        %v2305 = vld [vmem:[#allocation2 + $0x7a] sm:$0xff]
        %v2306 = vld [vmem:[#allocation2 + $0x82] sm:$0xff]
        %v2307 = vld [vmem:[#allocation2 + $0x92] sm:$0xff]
        %v2308 = vld [vmem:[#allocation2 + $0x9a] sm:$0xff]
        %v2309 = vld [vmem:[#allocation2 + $0xaa] sm:$0xff]
        %v2310 = vld [vmem:[#allocation2 + $0xb2] sm:$0xff]
        %v2311 = vld [vmem:[#allocation2 + $0xc2] sm:$0xff]
        %v2312 = vld [vmem:[#allocation2 + $0xca] sm:$0xff]
        %v2313 = vld [vmem:[#allocation2 + $0xda] sm:$0xff]
        %v2314 = vld [vmem:[#allocation2 + $0xe2] sm:$0xff]
        %v2315 = vld [vmem:[#allocation2 + $0xf2] sm:$0xff]
        %v2316 = vld [vmem:[#allocation2 + $0xfa] sm:$0xff]
        %v2317 = vld [vmem:[#allocation2 + $0x10a] sm:$0xff]
        %v2318 = vld [vmem:[#allocation2 + $0x112] sm:$0xff]
        %v2319 = vld [vmem:[#allocation2 + $0x122] sm:$0xff]
        %v2320 = vld [vmem:[#allocation2 + $0x12a] sm:$0xff]
        %v2321 = vld [vmem:[#allocation2 + $0x13a] sm:$0xff]
        %v2322 = vld [vmem:[#allocation2 + $0x142] sm:$0xff]
        %v2323 = vld [vmem:[#allocation2 + $0x152] sm:$0xff]
        %v2324 = vld [vmem:[#allocation2 + $0x15a] sm:$0xff]
        %v2325 = vld [vmem:[#allocation2 + $0x16a] sm:$0xff]
        %v2326 = vld [vmem:[#allocation2 + $0x172] sm:$0xff]
        %v2327 = vld [vmem:[#allocation8] sm:$0xff]
        %v2328 = vld [vmem:[#allocation8 + $0x8] sm:$0xff]
        %v2329 = vld [vmem:[#allocation8 + $0x10] sm:$0xff]
        %v2330 = vld [vmem:[#allocation8 + $0x18] sm:$0xff]
        %v2331 = vld [vmem:[#allocation8 + $0x20] sm:$0xff]
        %v2332 = vld [vmem:[#allocation8 + $0x28] sm:$0xff]
        %v2333 = vld [vmem:[#allocation8 + $0x30] sm:$0xff]
        %v2334 = vld [vmem:[#allocation8 + $0x38] sm:$0xff]
        %v2335 = vld [vmem:[#allocation8 + $0x40] sm:$0xff]
        %v2336 = vld [vmem:[#allocation8 + $0x48] sm:$0xff]
        %v2337 = vld [vmem:[#allocation8 + $0x50] sm:$0xff]
        %v2338 = vld [vmem:[#allocation8 + $0x58] sm:$0xff]
        %v2339 = vld [vmem:[#allocation8 + $0x60] sm:$0xff]
        %v2340 = vld [vmem:[#allocation8 + $0x68] sm:$0xff]
        %v2341 = vld [vmem:[#allocation8 + $0x70] sm:$0xff]
        %v2342 = vld [vmem:[#allocation8 + $0x78] sm:$0xff]
        %v2343 = vld [vmem:[#allocation8 + $0x80] sm:$0xff]
        %v2344 = vld [vmem:[#allocation8 + $0x88] sm:$0xff]
        %v2345 = vld [vmem:[#allocation8 + $0x90] sm:$0xff]
        %v2346 = vld [vmem:[#allocation8 + $0x98] sm:$0xff]
        %v2347 = vld [vmem:[#allocation8 + $0xa0] sm:$0xff]
        %v2348 = vld [vmem:[#allocation8 + $0xa8] sm:$0xff]
        %v2349 = vld [vmem:[#allocation8 + $0xb0] sm:$0xff]
        %v2350 = vld [vmem:[#allocation8 + $0xb8] sm:$0xff]
        %v2351 = vld [vmem:[#allocation8 + $0xc0] sm:$0xff]
        %v2352 = vld [vmem:[#allocation8 + $0xc8] sm:$0xff]
        %v2353 = vld [vmem:[#allocation8 + $0xd0] sm:$0xff]
        %v2354 = vld [vmem:[#allocation8 + $0xd8] sm:$0xff]
        %v2355 = vld [vmem:[#allocation8 + $0xe0] sm:$0xff]
        %v2356 = vld [vmem:[#allocation8 + $0xe8] sm:$0xff]
        %v2357 = vld [vmem:[#allocation8 + $0xf0] sm:$0xff]
        %v2358 = vld [vmem:[#allocation8 + $0xf8] sm:$0xff]
        %v2359 = vld [vmem:[#allocation8 + $0x100] sm:$0xff]
        %v2360 = vld [vmem:[#allocation8 + $0x108] sm:$0xff]
        %v2361 = vld [vmem:[#allocation8 + $0x110] sm:$0xff]
        %v2362 = vld [vmem:[#allocation8 + $0x118] sm:$0xff]
        %v2363 = vld [vmem:[#allocation8 + $0x120] sm:$0xff]
        %v2364 = vld [vmem:[#allocation8 + $0x128] sm:$0xff]
        %v2365 = vld [vmem:[#allocation8 + $0x130] sm:$0xff]
        %v2366 = vld [vmem:[#allocation8 + $0x138] sm:$0xff]
        %v2367 = vld [vmem:[#allocation8 + $0x140] sm:$0xff]
        %v2368 = vld [vmem:[#allocation8 + $0x148] sm:$0xff]
        %v2369 = vld [vmem:[#allocation8 + $0x150] sm:$0xff]
        %v2370 = vld [vmem:[#allocation8 + $0x158] sm:$0xff]
        %v2371 = vld [vmem:[#allocation8 + $0x160] sm:$0xff]
        %v2372 = vld [vmem:[#allocation8 + $0x168] sm:$0xff]
        %v2373 = vld [vmem:[#allocation8 + $0x170] sm:$0xff]
        %v2374 = vld [vmem:[#allocation8 + $0x178] sm:$0xff]
        %v2375 = vld [vmem:[%s2166] sm:$0xff]
        %v2376 = vld [vmem:[%s2166 + $0x8] sm:$0xff]
        %v2377 = vld [vmem:[%s2166 + $0x18] sm:$0xff]
        %v2378 = vld [vmem:[%s2166 + $0x20] sm:$0xff]
        %v2379 = vld [vmem:[%s2166 + $0x30] sm:$0xff]
        %v2380 = vld [vmem:[%s2166 + $0x38] sm:$0xff]
        %v2381 = vld [vmem:[%s2166 + $0x48] sm:$0xff]
        %v2382 = vld [vmem:[%s2166 + $0x50] sm:$0xff]
        %v2383 = vld [vmem:[%s2166 + $0x60] sm:$0xff]
        %v2384 = vld [vmem:[%s2166 + $0x68] sm:$0xff]
        %v2385 = vld [vmem:[%s2166 + $0x78] sm:$0xff]
        %v2386 = vld [vmem:[%s2166 + $0x80] sm:$0xff]
        %v2387 = vld [vmem:[%s2166 + $0x90] sm:$0xff]
        %v2388 = vld [vmem:[%s2166 + $0x98] sm:$0xff]
        %v2389 = vld [vmem:[%s2166 + $0xa8] sm:$0xff]
        %v2390 = vld [vmem:[%s2166 + $0xb0] sm:$0xff]
        %v2391 = vld [vmem:[%s2166 + $0xc0] sm:$0xff]
        %v2392 = vld [vmem:[%s2166 + $0xc8] sm:$0xff]
        %v2393 = vld [vmem:[%s2166 + $0xd8] sm:$0xff]
        %v2394 = vld [vmem:[%s2166 + $0xe0] sm:$0xff]
        %v2395 = vld [vmem:[%s2166 + $0xf0] sm:$0xff]
        %v2396 = vld [vmem:[%s2166 + $0xf8] sm:$0xff]
        %v2397 = vld [vmem:[%s2166 + $0x108] sm:$0xff]
        %v2398 = vld [vmem:[%s2166 + $0x110] sm:$0xff]
        %v2399 = vld [vmem:[%s2166 + $0x120] sm:$0xff]
        %v2400 = vld [vmem:[%s2166 + $0x128] sm:$0xff]
        %v2401 = vld [vmem:[%s2166 + $0x138] sm:$0xff]
        %v2402 = vld [vmem:[%s2166 + $0x140] sm:$0xff]
        %v2403 = vld [vmem:[%s2166 + $0x150] sm:$0xff]
        %v2404 = vld [vmem:[%s2166 + $0x158] sm:$0xff]
        %v2405 = vld [vmem:[%s2166 + $0x168] sm:$0xff]
        %v2406 = vld [vmem:[%s2166 + $0x170] sm:$0xff]
        %v2407 = vld [vmem:[%s2166 + $0x1] sm:$0xff]
        %v2408 = vld [vmem:[%s2166 + $0x9] sm:$0xff]
        %v2409 = vld [vmem:[%s2166 + $0x19] sm:$0xff]
        %v2410 = vld [vmem:[%s2166 + $0x21] sm:$0xff]
        %v2411 = vld [vmem:[%s2166 + $0x31] sm:$0xff]
        %v2412 = vld [vmem:[%s2166 + $0x39] sm:$0xff]
        %v2413 = vld [vmem:[%s2166 + $0x49] sm:$0xff]
        %v2414 = vld [vmem:[%s2166 + $0x51] sm:$0xff]
        %v2415 = vld [vmem:[%s2166 + $0x61] sm:$0xff]
        %v2416 = vld [vmem:[%s2166 + $0x69] sm:$0xff]
        %v2417 = vld [vmem:[%s2166 + $0x79] sm:$0xff]
        %v2418 = vld [vmem:[%s2166 + $0x81] sm:$0xff]
        %v2419 = vld [vmem:[%s2166 + $0x91] sm:$0xff]
        %v2420 = vld [vmem:[%s2166 + $0x99] sm:$0xff]
        %v2421 = vld [vmem:[%s2166 + $0xa9] sm:$0xff]
        %v2422 = vld [vmem:[%s2166 + $0xb1] sm:$0xff]
        %v2423 = vld [vmem:[%s2166 + $0xc1] sm:$0xff]
        %v2424 = vld [vmem:[%s2166 + $0xc9] sm:$0xff]
        %v2425 = vld [vmem:[%s2166 + $0xd9] sm:$0xff]
        %v2426 = vld [vmem:[%s2166 + $0xe1] sm:$0xff]
        %v2427 = vld [vmem:[%s2166 + $0xf1] sm:$0xff]
        %v2428 = vld [vmem:[%s2166 + $0xf9] sm:$0xff]
        %v2429 = vld [vmem:[%s2166 + $0x109] sm:$0xff]
        %v2430 = vld [vmem:[%s2166 + $0x111] sm:$0xff]
        %v2431 = vld [vmem:[%s2166 + $0x121] sm:$0xff]
        %v2432 = vld [vmem:[%s2166 + $0x129] sm:$0xff]
        %v2433 = vld [vmem:[%s2166 + $0x139] sm:$0xff]
        %v2434 = vld [vmem:[%s2166 + $0x141] sm:$0xff]
        %v2435 = vld [vmem:[%s2166 + $0x151] sm:$0xff]
        %v2436 = vld [vmem:[%s2166 + $0x159] sm:$0xff]
        %v2437 = vld [vmem:[%s2166 + $0x169] sm:$0xff]
        %v2438 = vld [vmem:[%s2166 + $0x171] sm:$0xff]
        %v2439 = vld [vmem:[%s2166 + $0x2] sm:$0xff]
        %v2440 = vld [vmem:[%s2166 + $0xa] sm:$0xff]
        %v2441 = vld [vmem:[%s2166 + $0x1a] sm:$0xff]
        %v2442 = vld [vmem:[%s2166 + $0x22] sm:$0xff]
        %v2443 = vld [vmem:[%s2166 + $0x32] sm:$0xff]
        %v2444 = vld [vmem:[%s2166 + $0x3a] sm:$0xff]
        %v2445 = vld [vmem:[%s2166 + $0x4a] sm:$0xff]
        %v2446 = vld [vmem:[%s2166 + $0x52] sm:$0xff]
        %v2447 = vld [vmem:[%s2166 + $0x62] sm:$0xff]
        %v2448 = vld [vmem:[%s2166 + $0x6a] sm:$0xff]
        %v2449 = vld [vmem:[%s2166 + $0x7a] sm:$0xff]
        %v2450 = vld [vmem:[%s2166 + $0x82] sm:$0xff]
        %v2451 = vld [vmem:[%s2166 + $0x92] sm:$0xff]
        %v2452 = vld [vmem:[%s2166 + $0x9a] sm:$0xff]
        %v2453 = vld [vmem:[%s2166 + $0xaa] sm:$0xff]
        %v2454 = vld [vmem:[%s2166 + $0xb2] sm:$0xff]
        %v2455 = vld [vmem:[%s2166 + $0xc2] sm:$0xff]
        %v2456 = vld [vmem:[%s2166 + $0xca] sm:$0xff]
        %v2457 = vld [vmem:[%s2166 + $0xda] sm:$0xff]
        %v2458 = vld [vmem:[%s2166 + $0xe2] sm:$0xff]
        %v2459 = vld [vmem:[%s2166 + $0xf2] sm:$0xff]
        %v2460 = vld [vmem:[%s2166 + $0xfa] sm:$0xff]
        %v2461 = vld [vmem:[%s2166 + $0x10a] sm:$0xff]
        %v2462 = vld [vmem:[%s2166 + $0x112] sm:$0xff]
        %v2463 = vld [vmem:[%s2166 + $0x122] sm:$0xff]
        %v2464 = vld [vmem:[%s2166 + $0x12a] sm:$0xff]
        %v2465 = vld [vmem:[%s2166 + $0x13a] sm:$0xff]
        %v2466 = vld [vmem:[%s2166 + $0x142] sm:$0xff]
        %v2467 = vld [vmem:[%s2166 + $0x152] sm:$0xff]
        %v2468 = vld [vmem:[%s2166 + $0x15a] sm:$0xff]
        %v2469 = vld [vmem:[%s2166 + $0x16a] sm:$0xff]
        %v2470 = vld [vmem:[%s2166 + $0x172] sm:$0xff]
        %v2471 = vld [vmem:[#allocation8 + $0x180] sm:$0xff]
        %v2472 = vld [vmem:[#allocation8 + $0x188] sm:$0xff]
        %v2473 = vld [vmem:[#allocation8 + $0x190] sm:$0xff]
        %v2474 = vld [vmem:[#allocation8 + $0x198] sm:$0xff]
        %v2475 = vld [vmem:[#allocation8 + $0x1a0] sm:$0xff]
        %v2476 = vld [vmem:[#allocation8 + $0x1a8] sm:$0xff]
        %v2477 = vld [vmem:[#allocation8 + $0x1b0] sm:$0xff]
        %v2478 = vld [vmem:[#allocation8 + $0x1b8] sm:$0xff]
        %v2479 = vld [vmem:[#allocation8 + $0x1c0] sm:$0xff]
        %v2480 = vld [vmem:[#allocation8 + $0x1c8] sm:$0xff]
        %v2481 = vld [vmem:[#allocation8 + $0x1d0] sm:$0xff]
        %v2482 = vld [vmem:[#allocation8 + $0x1d8] sm:$0xff]
        %v2483 = vld [vmem:[#allocation8 + $0x1e0] sm:$0xff]
        %v2484 = vld [vmem:[#allocation8 + $0x1e8] sm:$0xff]
        %v2485 = vld [vmem:[#allocation8 + $0x1f0] sm:$0xff]
        %v2486 = vld [vmem:[#allocation8 + $0x1f8] sm:$0xff]
        %v2487 = vld [vmem:[#allocation8 + $0x200] sm:$0xff]
        %v2488 = vld [vmem:[#allocation8 + $0x208] sm:$0xff]
        %v2489 = vld [vmem:[#allocation8 + $0x210] sm:$0xff]
        %v2490 = vld [vmem:[#allocation8 + $0x218] sm:$0xff]
        %v2491 = vld [vmem:[#allocation8 + $0x220] sm:$0xff]
        %v2492 = vld [vmem:[#allocation8 + $0x228] sm:$0xff]
        %v2493 = vld [vmem:[#allocation8 + $0x230] sm:$0xff]
        %v2494 = vld [vmem:[#allocation8 + $0x238] sm:$0xff]
        %v2495 = vld [vmem:[#allocation8 + $0x240] sm:$0xff]
        %v2496 = vld [vmem:[#allocation8 + $0x248] sm:$0xff]
        %v2497 = vld [vmem:[#allocation8 + $0x250] sm:$0xff]
        %v2498 = vld [vmem:[#allocation8 + $0x258] sm:$0xff]
        %v2499 = vld [vmem:[#allocation8 + $0x260] sm:$0xff]
        %v2500 = vld [vmem:[#allocation8 + $0x268] sm:$0xff]
        %v2501 = vld [vmem:[#allocation8 + $0x270] sm:$0xff]
        %v2502 = vld [vmem:[#allocation8 + $0x278] sm:$0xff]
        %v2503 = vld [vmem:[#allocation8 + $0x280] sm:$0xff]
        %v2504 = vld [vmem:[#allocation8 + $0x288] sm:$0xff]
        %v2505 = vld [vmem:[#allocation8 + $0x290] sm:$0xff]
        %v2506 = vld [vmem:[#allocation8 + $0x298] sm:$0xff]
        %v2507 = vld [vmem:[#allocation8 + $0x2a0] sm:$0xff]
        %v2508 = vld [vmem:[#allocation8 + $0x2a8] sm:$0xff]
        %v2509 = vld [vmem:[#allocation8 + $0x2b0] sm:$0xff]
        %v2510 = vld [vmem:[#allocation8 + $0x2b8] sm:$0xff]
        %v2511 = vld [vmem:[#allocation8 + $0x2c0] sm:$0xff]
        %v2512 = vld [vmem:[#allocation8 + $0x2c8] sm:$0xff]
        %v2513 = vld [vmem:[#allocation8 + $0x2d0] sm:$0xff]
        %v2514 = vld [vmem:[#allocation8 + $0x2d8] sm:$0xff]
        %v2515 = vld [vmem:[#allocation8 + $0x2e0] sm:$0xff]
        %v2516 = vld [vmem:[#allocation8 + $0x2e8] sm:$0xff]
        %v2517 = vld [vmem:[#allocation8 + $0x2f0] sm:$0xff]
        %v2518 = vld [vmem:[#allocation8 + $0x2f8] sm:$0xff]
        %2519 = vmatprep.subr.mxu0 0.0
        %2520 = vmatpush1.msra.mxu0 %v2471
        %2521 = vmatprep.subr.mxu0 0.0
        %2522 = vmatpush1.msra.mxu0 %v2472
        %2523 = vmatprep.subr.mxu0 0.0
        %2524 = vmatpush1.msra.mxu0 %v2473
        %2525 = vmatprep.subr.mxu0 0.0
        %2526 = vmatpush1.msra.mxu0 %v2474
        %2527 = vmatprep.subr.mxu0 0.0
        %2528 = vmatpush1.msra.mxu0 %v2475
        %2529 = vmatprep.subr.mxu0 0.0
        %2530 = vmatpush1.msra.mxu0 %v2476
        %2531 = vmatprep.subr.mxu0 0.0
        %2532 = vmatpush1.msra.mxu0 %v2477
        %2533 = vmatprep.subr.mxu0 0.0
        %2534 = vmatpush1.msra.mxu0 %v2478
        %2535 = vmatprep.subr.mxu0 0.0
        %2536 = vmatpush1.msra.mxu0 %v2479
        %2537 = vmatprep.subr.mxu0 0.0
        %2538 = vmatpush1.msra.mxu0 %v2480
        %2539 = vmatprep.subr.mxu0 0.0
        %2540 = vmatpush1.msra.mxu0 %v2481
        %2541 = vmatprep.subr.mxu0 0.0
        %2542 = vmatpush1.msra.mxu0 %v2482
        %2543 = vmatprep.subr.mxu0 0.0
        %2544 = vmatpush1.msra.mxu0 %v2483
        %2545 = vmatprep.subr.mxu0 0.0
        %2546 = vmatpush1.msra.mxu0 %v2484
        %2547 = vmatprep.subr.mxu0 0.0
        %2548 = vmatpush1.msra.mxu0 %v2485
        %2549 = vmatprep.subr.mxu0 0.0
        %2550 = vmatpush1.msra.mxu0 %v2486
        %2551 = vmatprep.subr.mxu0 0.0
        %2552 = vmatpush1.msra.mxu0 %v2487
        %2553 = vmatprep.subr.mxu0 0.0
        %2554 = vmatpush1.msra.mxu0 %v2488
        %2555 = vmatprep.subr.mxu0 0.0
        %2556 = vmatpush1.msra.mxu0 %v2489
        %2557 = vmatprep.subr.mxu0 0.0
        %2558 = vmatpush1.msra.mxu0 %v2490
        %2559 = vmatprep.subr.mxu0 0.0
        %2560 = vmatpush1.msra.mxu0 %v2491
        %2561 = vmatprep.subr.mxu0 0.0
        %2562 = vmatpush1.msra.mxu0 %v2492
        %2563 = vmatprep.subr.mxu0 0.0
        %2564 = vmatpush1.msra.mxu0 %v2493
        %2565 = vmatprep.subr.mxu0 0.0
        %2566 = vmatpush1.msra.mxu0 %v2494
        %2567 = vmatprep.subr.mxu0 0.0
        %2568 = vmatpush1.msra.mxu0 %v2495
        %2569 = vmatprep.subr.mxu0 0.0
        %2570 = vmatpush1.msra.mxu0 %v2496
        %2571 = vmatprep.subr.mxu0 0.0
        %2572 = vmatpush1.msra.mxu0 %v2497
        %2573 = vmatprep.subr.mxu0 0.0
        %2574 = vmatpush1.msra.mxu0 %v2498
        %2575 = vmatprep.subr.mxu0 0.0
        %2576 = vmatpush1.msra.mxu0 %v2499
        %2577 = vmatprep.subr.mxu0 0.0
        %2578 = vmatpush1.msra.mxu0 %v2500
        %2579 = vmatprep.subr.mxu0 0.0
        %2580 = vmatpush1.msra.mxu0 %v2501
        %2581 = vmatprep.subr.mxu0 0.0
        %2582 = vmatpush1.msra.mxu0 %v2502
        %2583 = vmatprep.mubr.f32.mxu0 %v2407
        %2584 = vmatmul.mubr.f32.gmra.mrb[0].mxu0 %v2375
        %v2585 = vpop.f32.mrb[0].mxu0
        %v2586 = vadd.f32 0.0, %v2585
        %v2587 = vpop.f32.mrb[0].mxu0
        %2588 = vmatprep.mubr.f32.mxu0 %v2408
        %2589 = vmatmul.mubr.f32.gmra.mrb[0].mxu0 %v2376
        %v2590 = vpop.f32.mrb[0].mxu0
        %v2591 = vadd.f32 0.0, %v2590
        %v2592 = vpop.f32.mrb[0].mxu0
        %2593 = vmatprep.mubr.f32.mxu0 %v2409
        %2594 = vmatmul.mubr.f32.gmra.mrb[0].mxu0 %v2377
        %v2595 = vpop.f32.mrb[0].mxu0
        %v2596 = vadd.f32 0.0, %v2595
        %v2597 = vpop.f32.mrb[0].mxu0
        %2598 = vmatprep.mubr.f32.mxu0 %v2410
        %2599 = vmatmul.mubr.f32.gmra.mrb[0].mxu0 %v2378
        %v2600 = vpop.f32.mrb[0].mxu0
        %v2601 = vadd.f32 0.0, %v2600
        %v2602 = vpop.f32.mrb[0].mxu0
        %2603 = vmatprep.mubr.f32.mxu0 %v2411
        %2604 = vmatmul.mubr.f32.gmra.mrb[0].mxu0 %v2379
        %v2605 = vpop.f32.mrb[0].mxu0
        %v2606 = vadd.f32 0.0, %v2605
        %v2607 = vpop.f32.mrb[0].mxu0
        %2608 = vmatprep.mubr.f32.mxu0 %v2412
        %2609 = vmatmul.mubr.f32.gmra.mrb[0].mxu0 %v2380
        %v2610 = vpop.f32.mrb[0].mxu0
        %v2611 = vadd.f32 0.0, %v2610
        %v2612 = vpop.f32.mrb[0].mxu0
        %2613 = vmatprep.mubr.f32.mxu0 %v2413
        %2614 = vmatmul.mubr.f32.gmra.mrb[0].mxu0 %v2381
        %v2615 = vpop.f32.mrb[0].mxu0
        %v2616 = vadd.f32 0.0, %v2615
        %v2617 = vpop.f32.mrb[0].mxu0
        %2618 = vmatprep.mubr.f32.mxu0 %v2414
        %2619 = vmatmul.mubr.f32.gmra.mrb[0].mxu0 %v2382
        %v2620 = vpop.f32.mrb[0].mxu0
        %v2621 = vadd.f32 0.0, %v2620
        %v2622 = vpop.f32.mrb[0].mxu0
        %2623 = vmatprep.mubr.f32.mxu0 %v2415
        %2624 = vmatmul.mubr.f32.gmra.mrb[0].mxu0 %v2383
        %v2625 = vpop.f32.mrb[0].mxu0
        %v2626 = vadd.f32 0.0, %v2625
        %v2627 = vpop.f32.mrb[0].mxu0
        %2628 = vmatprep.mubr.f32.mxu0 %v2416
        %2629 = vmatmul.mubr.f32.gmra.mrb[0].mxu0 %v2384
        %v2630 = vpop.f32.mrb[0].mxu0
        %v2631 = vadd.f32 0.0, %v2630
        %v2632 = vpop.f32.mrb[0].mxu0
        %2633 = vmatprep.mubr.f32.mxu0 %v2417
        %2634 = vmatmul.mubr.f32.gmra.mrb[0].mxu0 %v2385
        %v2635 = vpop.f32.mrb[0].mxu0
        %v2636 = vadd.f32 0.0, %v2635
        %v2637 = vpop.f32.mrb[0].mxu0
        %2638 = vmatprep.mubr.f32.mxu0 %v2418
        %2639 = vmatmul.mubr.f32.gmra.mrb[0].mxu0 %v2386
        %v2640 = vpop.f32.mrb[0].mxu0
        %v2641 = vadd.f32 0.0, %v2640
        %v2642 = vpop.f32.mrb[0].mxu0
        %2643 = vmatprep.mubr.f32.mxu0 %v2419
        %2644 = vmatmul.mubr.f32.gmra.mrb[0].mxu0 %v2387
        %v2645 = vpop.f32.mrb[0].mxu0
        %v2646 = vadd.f32 0.0, %v2645
        %v2647 = vpop.f32.mrb[0].mxu0
        %2648 = vmatprep.mubr.f32.mxu0 %v2420
        %2649 = vmatmul.mubr.f32.gmra.mrb[0].mxu0 %v2388
        %v2650 = vpop.f32.mrb[0].mxu0
        %v2651 = vadd.f32 0.0, %v2650
        %v2652 = vpop.f32.mrb[0].mxu0
        %2653 = vmatprep.mubr.f32.mxu0 %v2421
        %2654 = vmatmul.mubr.f32.gmra.mrb[0].mxu0 %v2389
        %v2655 = vpop.f32.mrb[0].mxu0
        %v2656 = vadd.f32 0.0, %v2655
        %v2657 = vpop.f32.mrb[0].mxu0
        %2658 = vmatprep.mubr.f32.mxu0 %v2422
        %2659 = vmatmul.mubr.f32.gmra.mrb[0].mxu0 %v2390
        %v2660 = vpop.f32.mrb[0].mxu0
        %v2661 = vadd.f32 0.0, %v2660
        %v2662 = vpop.f32.mrb[0].mxu0
        %2663 = vmatprep.mubr.f32.mxu0 %v2423
        %2664 = vmatmul.mubr.f32.gmra.mrb[0].mxu0 %v2391
        %v2665 = vpop.f32.mrb[0].mxu0
        %v2666 = vadd.f32 0.0, %v2665
        %v2667 = vpop.f32.mrb[0].mxu0
        %2668 = vmatprep.mubr.f32.mxu0 %v2424
        %2669 = vmatmul.mubr.f32.gmra.mrb[0].mxu0 %v2392
        %v2670 = vpop.f32.mrb[0].mxu0
        %v2671 = vadd.f32 0.0, %v2670
        %v2672 = vpop.f32.mrb[0].mxu0
        %2673 = vmatprep.mubr.f32.mxu0 %v2425
        %2674 = vmatmul.mubr.f32.gmra.mrb[0].mxu0 %v2393
        %v2675 = vpop.f32.mrb[0].mxu0
        %v2676 = vadd.f32 0.0, %v2675
        %v2677 = vpop.f32.mrb[0].mxu0
        %2678 = vmatprep.mubr.f32.mxu0 %v2426
        %2679 = vmatmul.mubr.f32.gmra.mrb[0].mxu0 %v2394
        %v2680 = vpop.f32.mrb[0].mxu0
        %v2681 = vadd.f32 0.0, %v2680
        %v2682 = vpop.f32.mrb[0].mxu0
        %2683 = vmatprep.mubr.f32.mxu0 %v2427
        %2684 = vmatmul.mubr.f32.gmra.mrb[0].mxu0 %v2395
        %v2685 = vpop.f32.mrb[0].mxu0
        %v2686 = vadd.f32 0.0, %v2685
        %v2687 = vpop.f32.mrb[0].mxu0
        %2688 = vmatprep.mubr.f32.mxu0 %v2428
        %2689 = vmatmul.mubr.f32.gmra.mrb[0].mxu0 %v2396
        %v2690 = vpop.f32.mrb[0].mxu0
        %v2691 = vadd.f32 0.0, %v2690
        %v2692 = vpop.f32.mrb[0].mxu0
        %2693 = vmatprep.mubr.f32.mxu0 %v2429
        %2694 = vmatmul.mubr.f32.gmra.mrb[0].mxu0 %v2397
        %v2695 = vpop.f32.mrb[0].mxu0
        %v2696 = vadd.f32 0.0, %v2695
        %v2697 = vpop.f32.mrb[0].mxu0
        %2698 = vmatprep.mubr.f32.mxu0 %v2430
        %2699 = vmatmul.mubr.f32.gmra.mrb[0].mxu0 %v2398
        %v2700 = vpop.f32.mrb[0].mxu0
        %v2701 = vadd.f32 0.0, %v2700
        %v2702 = vpop.f32.mrb[0].mxu0
        %2703 = vmatprep.mubr.f32.mxu0 %v2431
        %2704 = vmatmul.mubr.f32.gmra.mrb[0].mxu0 %v2399
        %v2705 = vpop.f32.mrb[0].mxu0
        %v2706 = vadd.f32 0.0, %v2705
        %v2707 = vpop.f32.mrb[0].mxu0
        %2708 = vmatprep.mubr.f32.mxu0 %v2432
        %2709 = vmatmul.mubr.f32.gmra.mrb[0].mxu0 %v2400
        %v2710 = vpop.f32.mrb[0].mxu0
        %v2711 = vadd.f32 0.0, %v2710
        %v2712 = vpop.f32.mrb[0].mxu0
        %2713 = vmatprep.mubr.f32.mxu0 %v2433
        %2714 = vmatmul.mubr.f32.gmra.mrb[0].mxu0 %v2401
        %v2715 = vpop.f32.mrb[0].mxu0
        %v2716 = vadd.f32 0.0, %v2715
        %v2717 = vpop.f32.mrb[0].mxu0
        %2718 = vmatprep.mubr.f32.mxu0 %v2434
        %2719 = vmatmul.mubr.f32.gmra.mrb[0].mxu0 %v2402
        %v2720 = vpop.f32.mrb[0].mxu0
        %v2721 = vadd.f32 0.0, %v2720
        %v2722 = vpop.f32.mrb[0].mxu0
        %2723 = vmatprep.mubr.f32.mxu0 %v2435
        %2724 = vmatmul.mubr.f32.gmra.mrb[0].mxu0 %v2403
        %v2725 = vpop.f32.mrb[0].mxu0
        %v2726 = vadd.f32 0.0, %v2725
        %v2727 = vpop.f32.mrb[0].mxu0
        %2728 = vmatprep.mubr.f32.mxu0 %v2436
        %2729 = vmatmul.mubr.f32.gmra.mrb[0].mxu0 %v2404
        %v2730 = vpop.f32.mrb[0].mxu0
        %v2731 = vadd.f32 0.0, %v2730
        %v2732 = vpop.f32.mrb[0].mxu0
        %2733 = vmatprep.mubr.f32.mxu0 %v2437
        %2734 = vmatmul.mubr.f32.gmra.mrb[0].mxu0 %v2405
        %v2735 = vpop.f32.mrb[0].mxu0
        %v2736 = vadd.f32 0.0, %v2735
        %v2737 = vpop.f32.mrb[0].mxu0
        %2738 = vmatprep.mubr.f32.mxu0 %v2438
        %2739 = vmatmul.mubr.f32.gmra.mrb[0].mxu0 %v2406
        %v2740 = vpop.f32.mrb[0].mxu0
        %v2741 = vadd.f32 0.0, %v2740
        %v2742 = vpop.f32.mrb[0].mxu0
        %2743 = vdwg.mxu0
        %2744 = vmatprep.subr.mxu0 0.0
        %2745 = vmatpush1.msra.mxu0 %v2503
        %2746 = vmatprep.subr.mxu0 0.0
        %2747 = vmatpush1.msra.mxu0 %v2504
        %2748 = vmatprep.subr.mxu0 0.0
        %2749 = vmatpush1.msra.mxu0 %v2505
        %2750 = vmatprep.subr.mxu0 0.0
        %2751 = vmatpush1.msra.mxu0 %v2506
        %2752 = vmatprep.subr.mxu0 0.0
        %2753 = vmatpush1.msra.mxu0 %v2507
        %2754 = vmatprep.subr.mxu0 0.0
        %2755 = vmatpush1.msra.mxu0 %v2508
        %2756 = vmatprep.subr.mxu0 0.0
        %2757 = vmatpush1.msra.mxu0 %v2509
        %2758 = vmatprep.subr.mxu0 0.0
        %2759 = vmatpush1.msra.mxu0 %v2510
        %2760 = vmatprep.subr.mxu0 0.0
        %2761 = vmatpush1.msra.mxu0 %v2511
        %2762 = vmatprep.subr.mxu0 0.0
        %2763 = vmatpush1.msra.mxu0 %v2512
        %2764 = vmatprep.subr.mxu0 0.0
        %2765 = vmatpush1.msra.mxu0 %v2513
        %2766 = vmatprep.subr.mxu0 0.0
        %2767 = vmatpush1.msra.mxu0 %v2514
        %2768 = vmatprep.subr.mxu0 0.0
        %2769 = vmatpush1.msra.mxu0 %v2515
        %2770 = vmatprep.subr.mxu0 0.0
        %2771 = vmatpush1.msra.mxu0 %v2516
        %2772 = vmatprep.subr.mxu0 0.0
        %2773 = vmatpush1.msra.mxu0 %v2517
        %2774 = vmatprep.subr.mxu0 0.0
        %2775 = vmatpush1.msra.mxu0 %v2518
        %2776 = vmatprep.subr.mxu0 0.0
        %2777 = vmatpush1.msra.mxu0 0.0
        %2778 = vmatprep.subr.mxu0 0.0
        %2779 = vmatpush1.msra.mxu0 0.0
        %2780 = vmatprep.subr.mxu0 0.0
        %2781 = vmatpush1.msra.mxu0 0.0
        %2782 = vmatprep.subr.mxu0 0.0
        %2783 = vmatpush1.msra.mxu0 0.0
        %2784 = vmatprep.subr.mxu0 0.0
        %2785 = vmatpush1.msra.mxu0 0.0
        %2786 = vmatprep.subr.mxu0 0.0
        %2787 = vmatpush1.msra.mxu0 0.0
        %2788 = vmatprep.subr.mxu0 0.0
        %2789 = vmatpush1.msra.mxu0 0.0
        %2790 = vmatprep.subr.mxu0 0.0
        %2791 = vmatpush1.msra.mxu0 0.0
        %2792 = vmatprep.subr.mxu0 0.0
        %2793 = vmatpush1.msra.mxu0 0.0
        %2794 = vmatprep.subr.mxu0 0.0
        %2795 = vmatpush1.msra.mxu0 0.0
        %2796 = vmatprep.subr.mxu0 0.0
        %2797 = vmatpush1.msra.mxu0 0.0
        %2798 = vmatprep.subr.mxu0 0.0
        %2799 = vmatpush1.msra.mxu0 0.0
        %2800 = vmatprep.subr.mxu0 0.0
        %2801 = vmatpush1.msra.mxu0 0.0
        %2802 = vmatprep.subr.mxu0 0.0
        %2803 = vmatpush1.msra.mxu0 0.0
        %2804 = vmatprep.subr.mxu0 0.0
        %2805 = vmatpush1.msra.mxu0 0.0
        %2806 = vmatprep.subr.mxu0 0.0
        %2807 = vmatpush1.msra.mxu0 0.0
        %2808 = vmatprep.mubr.f32.mxu0 0.0
        %2809 = vmatmul.mubr.f32.gmra.mrb[0].mxu0 %v2439
        %v2810 = vpop.f32.mrb[0].mxu0
        %v2811 = vadd.f32 %v2586, %v2810
        %v2812 = vpop.f32.mrb[0].mxu0
        %2813 = vmatprep.mubr.f32.mxu0 0.0
        %2814 = vmatmul.mubr.f32.gmra.mrb[0].mxu0 %v2440
        %v2815 = vpop.f32.mrb[0].mxu0
        %v2816 = vadd.f32 %v2591, %v2815
        %v2817 = vpop.f32.mrb[0].mxu0
        %2818 = vmatprep.mubr.f32.mxu0 0.0
        %2819 = vmatmul.mubr.f32.gmra.mrb[0].mxu0 %v2441
        %v2820 = vpop.f32.mrb[0].mxu0
        %v2821 = vadd.f32 %v2596, %v2820
        %v2822 = vpop.f32.mrb[0].mxu0
        %2823 = vmatprep.mubr.f32.mxu0 0.0
        %2824 = vmatmul.mubr.f32.gmra.mrb[0].mxu0 %v2442
        %v2825 = vpop.f32.mrb[0].mxu0
        %v2826 = vadd.f32 %v2601, %v2825
        %v2827 = vpop.f32.mrb[0].mxu0
        %2828 = vmatprep.mubr.f32.mxu0 0.0
        %2829 = vmatmul.mubr.f32.gmra.mrb[0].mxu0 %v2443
        %v2830 = vpop.f32.mrb[0].mxu0
        %v2831 = vadd.f32 %v2606, %v2830
        %v2832 = vpop.f32.mrb[0].mxu0
        %2833 = vmatprep.mubr.f32.mxu0 0.0
        %2834 = vmatmul.mubr.f32.gmra.mrb[0].mxu0 %v2444
        %v2835 = vpop.f32.mrb[0].mxu0
        %v2836 = vadd.f32 %v2611, %v2835
        %v2837 = vpop.f32.mrb[0].mxu0
        %2838 = vmatprep.mubr.f32.mxu0 0.0
        %2839 = vmatmul.mubr.f32.gmra.mrb[0].mxu0 %v2445
        %v2840 = vpop.f32.mrb[0].mxu0
        %v2841 = vadd.f32 %v2616, %v2840
        %v2842 = vpop.f32.mrb[0].mxu0
        %2843 = vmatprep.mubr.f32.mxu0 0.0
        %2844 = vmatmul.mubr.f32.gmra.mrb[0].mxu0 %v2446
        %v2845 = vpop.f32.mrb[0].mxu0
        %v2846 = vadd.f32 %v2621, %v2845
        %v2847 = vpop.f32.mrb[0].mxu0
        %2848 = vmatprep.mubr.f32.mxu0 0.0
        %2849 = vmatmul.mubr.f32.gmra.mrb[0].mxu0 %v2447
        %v2850 = vpop.f32.mrb[0].mxu0
        %v2851 = vadd.f32 %v2626, %v2850
        %v2852 = vpop.f32.mrb[0].mxu0
        %2853 = vmatprep.mubr.f32.mxu0 0.0
        %2854 = vmatmul.mubr.f32.gmra.mrb[0].mxu0 %v2448
        %v2855 = vpop.f32.mrb[0].mxu0
        %v2856 = vadd.f32 %v2631, %v2855
        %v2857 = vpop.f32.mrb[0].mxu0
        %2858 = vmatprep.mubr.f32.mxu0 0.0
        %2859 = vmatmul.mubr.f32.gmra.mrb[0].mxu0 %v2449
        %v2860 = vpop.f32.mrb[0].mxu0
        %v2861 = vadd.f32 %v2636, %v2860
        %v2862 = vpop.f32.mrb[0].mxu0
        %2863 = vmatprep.mubr.f32.mxu0 0.0
        %2864 = vmatmul.mubr.f32.gmra.mrb[0].mxu0 %v2450
        %v2865 = vpop.f32.mrb[0].mxu0
        %v2866 = vadd.f32 %v2641, %v2865
        %v2867 = vpop.f32.mrb[0].mxu0
        %2868 = vmatprep.mubr.f32.mxu0 0.0
        %2869 = vmatmul.mubr.f32.gmra.mrb[0].mxu0 %v2451
        %v2870 = vpop.f32.mrb[0].mxu0
        %v2871 = vadd.f32 %v2646, %v2870
        %v2872 = vpop.f32.mrb[0].mxu0
        %2873 = vmatprep.mubr.f32.mxu0 0.0
        %2874 = vmatmul.mubr.f32.gmra.mrb[0].mxu0 %v2452
        %v2875 = vpop.f32.mrb[0].mxu0
        %v2876 = vadd.f32 %v2651, %v2875
        %v2877 = vpop.f32.mrb[0].mxu0
        %2878 = vmatprep.mubr.f32.mxu0 0.0
        %2879 = vmatmul.mubr.f32.gmra.mrb[0].mxu0 %v2453
        %v2880 = vpop.f32.mrb[0].mxu0
        %v2881 = vadd.f32 %v2656, %v2880
        %v2882 = vpop.f32.mrb[0].mxu0
        %2883 = vmatprep.mubr.f32.mxu0 0.0
        %2884 = vmatmul.mubr.f32.gmra.mrb[0].mxu0 %v2454
        %v2885 = vpop.f32.mrb[0].mxu0
        %v2886 = vadd.f32 %v2661, %v2885
        %v2887 = vpop.f32.mrb[0].mxu0
        %2888 = vmatprep.mubr.f32.mxu0 0.0
        %2889 = vmatmul.mubr.f32.gmra.mrb[0].mxu0 %v2455
        %v2890 = vpop.f32.mrb[0].mxu0
        %v2891 = vadd.f32 %v2666, %v2890
        %v2892 = vpop.f32.mrb[0].mxu0
        %2893 = vmatprep.mubr.f32.mxu0 0.0
        %2894 = vmatmul.mubr.f32.gmra.mrb[0].mxu0 %v2456
        %v2895 = vpop.f32.mrb[0].mxu0
        %v2896 = vadd.f32 %v2671, %v2895
        %v2897 = vpop.f32.mrb[0].mxu0
        %2898 = vmatprep.mubr.f32.mxu0 0.0
        %2899 = vmatmul.mubr.f32.gmra.mrb[0].mxu0 %v2457
        %v2900 = vpop.f32.mrb[0].mxu0
        %v2901 = vadd.f32 %v2676, %v2900
        %v2902 = vpop.f32.mrb[0].mxu0
        %2903 = vmatprep.mubr.f32.mxu0 0.0
        %2904 = vmatmul.mubr.f32.gmra.mrb[0].mxu0 %v2458
        %v2905 = vpop.f32.mrb[0].mxu0
        %v2906 = vadd.f32 %v2681, %v2905
        %v2907 = vpop.f32.mrb[0].mxu0
        %2908 = vmatprep.mubr.f32.mxu0 0.0
        %2909 = vmatmul.mubr.f32.gmra.mrb[0].mxu0 %v2459
        %v2910 = vpop.f32.mrb[0].mxu0
        %v2911 = vadd.f32 %v2686, %v2910
        %v2912 = vpop.f32.mrb[0].mxu0
        %2913 = vmatprep.mubr.f32.mxu0 0.0
        %2914 = vmatmul.mubr.f32.gmra.mrb[0].mxu0 %v2460
        %v2915 = vpop.f32.mrb[0].mxu0
        %v2916 = vadd.f32 %v2691, %v2915
        %v2917 = vpop.f32.mrb[0].mxu0
        %2918 = vmatprep.mubr.f32.mxu0 0.0
        %2919 = vmatmul.mubr.f32.gmra.mrb[0].mxu0 %v2461
        %v2920 = vpop.f32.mrb[0].mxu0
        %v2921 = vadd.f32 %v2696, %v2920
        %v2922 = vpop.f32.mrb[0].mxu0
        %2923 = vmatprep.mubr.f32.mxu0 0.0
        %2924 = vmatmul.mubr.f32.gmra.mrb[0].mxu0 %v2462
        %v2925 = vpop.f32.mrb[0].mxu0
        %v2926 = vadd.f32 %v2701, %v2925
        %v2927 = vpop.f32.mrb[0].mxu0
        %2928 = vmatprep.mubr.f32.mxu0 0.0
        %2929 = vmatmul.mubr.f32.gmra.mrb[0].mxu0 %v2463
        %v2930 = vpop.f32.mrb[0].mxu0
        %v2931 = vadd.f32 %v2706, %v2930
        %v2932 = vpop.f32.mrb[0].mxu0
        %2933 = vmatprep.mubr.f32.mxu0 0.0
        %2934 = vmatmul.mubr.f32.gmra.mrb[0].mxu0 %v2464
        %v2935 = vpop.f32.mrb[0].mxu0
        %v2936 = vadd.f32 %v2711, %v2935
        %v2937 = vpop.f32.mrb[0].mxu0
        %2938 = vmatprep.mubr.f32.mxu0 0.0
        %2939 = vmatmul.mubr.f32.gmra.mrb[0].mxu0 %v2465
        %v2940 = vpop.f32.mrb[0].mxu0
        %v2941 = vadd.f32 %v2716, %v2940
        %v2942 = vpop.f32.mrb[0].mxu0
        %2943 = vmatprep.mubr.f32.mxu0 0.0
        %2944 = vmatmul.mubr.f32.gmra.mrb[0].mxu0 %v2466
        %v2945 = vpop.f32.mrb[0].mxu0
        %v2946 = vadd.f32 %v2721, %v2945
        %v2947 = vpop.f32.mrb[0].mxu0
        %2948 = vmatprep.mubr.f32.mxu0 0.0
        %2949 = vmatmul.mubr.f32.gmra.mrb[0].mxu0 %v2467
        %v2950 = vpop.f32.mrb[0].mxu0
        %v2951 = vadd.f32 %v2726, %v2950
        %v2952 = vpop.f32.mrb[0].mxu0
        %2953 = vmatprep.mubr.f32.mxu0 0.0
        %2954 = vmatmul.mubr.f32.gmra.mrb[0].mxu0 %v2468
        %v2955 = vpop.f32.mrb[0].mxu0
        %v2956 = vadd.f32 %v2731, %v2955
        %v2957 = vpop.f32.mrb[0].mxu0
        %2958 = vmatprep.mubr.f32.mxu0 0.0
        %2959 = vmatmul.mubr.f32.gmra.mrb[0].mxu0 %v2469
        %v2960 = vpop.f32.mrb[0].mxu0
        %v2961 = vadd.f32 %v2736, %v2960
        %v2962 = vpop.f32.mrb[0].mxu0
        %2963 = vmatprep.mubr.f32.mxu0 0.0
        %2964 = vmatmul.mubr.f32.gmra.mrb[0].mxu0 %v2470
        %v2965 = vpop.f32.mrb[0].mxu0
        %v2966 = vadd.f32 %v2741, %v2965
        %v2967 = vpop.f32.mrb[0].mxu0
        %2968 = vdwg.mxu0
        %2969 = vmatprep.subr.mxu0 0.0
        %2970 = vmatpush1.msra.mxu0 %v2327
        %2971 = vmatprep.subr.mxu0 0.0
        %2972 = vmatpush1.msra.mxu0 %v2328
        %2973 = vmatprep.subr.mxu0 0.0
        %2974 = vmatpush1.msra.mxu0 %v2329
        %2975 = vmatprep.subr.mxu0 0.0
        %2976 = vmatpush1.msra.mxu0 %v2330
        %2977 = vmatprep.subr.mxu0 0.0
        %2978 = vmatpush1.msra.mxu0 %v2331
        %2979 = vmatprep.subr.mxu0 0.0
        %2980 = vmatpush1.msra.mxu0 %v2332
        %2981 = vmatprep.subr.mxu0 0.0
        %2982 = vmatpush1.msra.mxu0 %v2333
        %2983 = vmatprep.subr.mxu0 0.0
        %2984 = vmatpush1.msra.mxu0 %v2334
        %2985 = vmatprep.subr.mxu0 0.0
        %2986 = vmatpush1.msra.mxu0 %v2335
        %2987 = vmatprep.subr.mxu0 0.0
        %2988 = vmatpush1.msra.mxu0 %v2336
        %2989 = vmatprep.subr.mxu0 0.0
        %2990 = vmatpush1.msra.mxu0 %v2337
        %2991 = vmatprep.subr.mxu0 0.0
        %2992 = vmatpush1.msra.mxu0 %v2338
        %2993 = vmatprep.subr.mxu0 0.0
        %2994 = vmatpush1.msra.mxu0 %v2339
        %2995 = vmatprep.subr.mxu0 0.0
        %2996 = vmatpush1.msra.mxu0 %v2340
        %2997 = vmatprep.subr.mxu0 0.0
        %2998 = vmatpush1.msra.mxu0 %v2341
        %2999 = vmatprep.subr.mxu0 0.0
        %3000 = vmatpush1.msra.mxu0 %v2342
        %3001 = vmatprep.subr.mxu0 0.0
        %3002 = vmatpush1.msra.mxu0 %v2343
        %3003 = vmatprep.subr.mxu0 0.0
        %3004 = vmatpush1.msra.mxu0 %v2344
        %3005 = vmatprep.subr.mxu0 0.0
        %3006 = vmatpush1.msra.mxu0 %v2345
        %3007 = vmatprep.subr.mxu0 0.0
        %3008 = vmatpush1.msra.mxu0 %v2346
        %3009 = vmatprep.subr.mxu0 0.0
        %3010 = vmatpush1.msra.mxu0 %v2347
        %3011 = vmatprep.subr.mxu0 0.0
        %3012 = vmatpush1.msra.mxu0 %v2348
        %3013 = vmatprep.subr.mxu0 0.0
        %3014 = vmatpush1.msra.mxu0 %v2349
        %3015 = vmatprep.subr.mxu0 0.0
        %3016 = vmatpush1.msra.mxu0 %v2350
        %3017 = vmatprep.subr.mxu0 0.0
        %3018 = vmatpush1.msra.mxu0 %v2351
        %3019 = vmatprep.subr.mxu0 0.0
        %3020 = vmatpush1.msra.mxu0 %v2352
        %3021 = vmatprep.subr.mxu0 0.0
        %3022 = vmatpush1.msra.mxu0 %v2353
        %3023 = vmatprep.subr.mxu0 0.0
        %3024 = vmatpush1.msra.mxu0 %v2354
        %3025 = vmatprep.subr.mxu0 0.0
        %3026 = vmatpush1.msra.mxu0 %v2355
        %3027 = vmatprep.subr.mxu0 0.0
        %3028 = vmatpush1.msra.mxu0 %v2356
        %3029 = vmatprep.subr.mxu0 0.0
        %3030 = vmatpush1.msra.mxu0 %v2357
        %3031 = vmatprep.subr.mxu0 0.0
        %3032 = vmatpush1.msra.mxu0 %v2358
        %3033 = vmatprep.mubr.f32.mxu0 %v2263
        %3034 = vmatmul.mubr.f32.gmra.mrb[0].mxu0 %v2231
        %v3035 = vpop.f32.mrb[0].mxu0
        %v3036 = vadd.f32 %v2811, %v3035
        %v3037 = vpop.f32.mrb[0].mxu0
        %3038 = vmatprep.mubr.f32.mxu0 %v2264
        %3039 = vmatmul.mubr.f32.gmra.mrb[0].mxu0 %v2232
        %v3040 = vpop.f32.mrb[0].mxu0
        %v3041 = vadd.f32 %v2816, %v3040
        %v3042 = vpop.f32.mrb[0].mxu0
        %3043 = vmatprep.mubr.f32.mxu0 %v2265
        %3044 = vmatmul.mubr.f32.gmra.mrb[0].mxu0 %v2233
        %v3045 = vpop.f32.mrb[0].mxu0
        %v3046 = vadd.f32 %v2821, %v3045
        %v3047 = vpop.f32.mrb[0].mxu0
        %3048 = vmatprep.mubr.f32.mxu0 %v2266
        %3049 = vmatmul.mubr.f32.gmra.mrb[0].mxu0 %v2234
        %v3050 = vpop.f32.mrb[0].mxu0
        %v3051 = vadd.f32 %v2826, %v3050
        %v3052 = vpop.f32.mrb[0].mxu0
        %3053 = vmatprep.mubr.f32.mxu0 %v2267
        %3054 = vmatmul.mubr.f32.gmra.mrb[0].mxu0 %v2235
        %v3055 = vpop.f32.mrb[0].mxu0
        %v3056 = vadd.f32 %v2831, %v3055
        %v3057 = vpop.f32.mrb[0].mxu0
        %3058 = vmatprep.mubr.f32.mxu0 %v2268
        %3059 = vmatmul.mubr.f32.gmra.mrb[0].mxu0 %v2236
        %v3060 = vpop.f32.mrb[0].mxu0
        %v3061 = vadd.f32 %v2836, %v3060
        %v3062 = vpop.f32.mrb[0].mxu0
        %3063 = vmatprep.mubr.f32.mxu0 %v2269
        %3064 = vmatmul.mubr.f32.gmra.mrb[0].mxu0 %v2237
        %v3065 = vpop.f32.mrb[0].mxu0
        %v3066 = vadd.f32 %v2841, %v3065
        %v3067 = vpop.f32.mrb[0].mxu0
        %3068 = vmatprep.mubr.f32.mxu0 %v2270
        %3069 = vmatmul.mubr.f32.gmra.mrb[0].mxu0 %v2238
        %v3070 = vpop.f32.mrb[0].mxu0
        %v3071 = vadd.f32 %v2846, %v3070
        %v3072 = vpop.f32.mrb[0].mxu0
        %3073 = vmatprep.mubr.f32.mxu0 %v2271
        %3074 = vmatmul.mubr.f32.gmra.mrb[0].mxu0 %v2239
        %v3075 = vpop.f32.mrb[0].mxu0
        %v3076 = vadd.f32 %v2851, %v3075
        %v3077 = vpop.f32.mrb[0].mxu0
        %3078 = vmatprep.mubr.f32.mxu0 %v2272
        %3079 = vmatmul.mubr.f32.gmra.mrb[0].mxu0 %v2240
        %v3080 = vpop.f32.mrb[0].mxu0
        %v3081 = vadd.f32 %v2856, %v3080
        %v3082 = vpop.f32.mrb[0].mxu0
        %3083 = vmatprep.mubr.f32.mxu0 %v2273
        %3084 = vmatmul.mubr.f32.gmra.mrb[0].mxu0 %v2241
        %v3085 = vpop.f32.mrb[0].mxu0
        %v3086 = vadd.f32 %v2861, %v3085
        %v3087 = vpop.f32.mrb[0].mxu0
        %3088 = vmatprep.mubr.f32.mxu0 %v2274
        %3089 = vmatmul.mubr.f32.gmra.mrb[0].mxu0 %v2242
        %v3090 = vpop.f32.mrb[0].mxu0
        %v3091 = vadd.f32 %v2866, %v3090
        %v3092 = vpop.f32.mrb[0].mxu0
        %3093 = vmatprep.mubr.f32.mxu0 %v2275
        %3094 = vmatmul.mubr.f32.gmra.mrb[0].mxu0 %v2243
        %v3095 = vpop.f32.mrb[0].mxu0
        %v3096 = vadd.f32 %v2871, %v3095
        %v3097 = vpop.f32.mrb[0].mxu0
        %3098 = vmatprep.mubr.f32.mxu0 %v2276
        %3099 = vmatmul.mubr.f32.gmra.mrb[0].mxu0 %v2244
        %v3100 = vpop.f32.mrb[0].mxu0
        %v3101 = vadd.f32 %v2876, %v3100
        %v3102 = vpop.f32.mrb[0].mxu0
        %3103 = vmatprep.mubr.f32.mxu0 %v2277
        %3104 = vmatmul.mubr.f32.gmra.mrb[0].mxu0 %v2245
        %v3105 = vpop.f32.mrb[0].mxu0
        %v3106 = vadd.f32 %v2881, %v3105
        %v3107 = vpop.f32.mrb[0].mxu0
        %3108 = vmatprep.mubr.f32.mxu0 %v2278
        %3109 = vmatmul.mubr.f32.gmra.mrb[0].mxu0 %v2246
        %v3110 = vpop.f32.mrb[0].mxu0
        %v3111 = vadd.f32 %v2886, %v3110
        %v3112 = vpop.f32.mrb[0].mxu0
        %3113 = vmatprep.mubr.f32.mxu0 %v2279
        %3114 = vmatmul.mubr.f32.gmra.mrb[0].mxu0 %v2247
        %v3115 = vpop.f32.mrb[0].mxu0
        %v3116 = vadd.f32 %v2891, %v3115
        %v3117 = vpop.f32.mrb[0].mxu0
        %3118 = vmatprep.mubr.f32.mxu0 %v2280
        %3119 = vmatmul.mubr.f32.gmra.mrb[0].mxu0 %v2248
        %v3120 = vpop.f32.mrb[0].mxu0
        %v3121 = vadd.f32 %v2896, %v3120
        %v3122 = vpop.f32.mrb[0].mxu0
        %3123 = vmatprep.mubr.f32.mxu0 %v2281
        %3124 = vmatmul.mubr.f32.gmra.mrb[0].mxu0 %v2249
        %v3125 = vpop.f32.mrb[0].mxu0
        %v3126 = vadd.f32 %v2901, %v3125
        %v3127 = vpop.f32.mrb[0].mxu0
        %3128 = vmatprep.mubr.f32.mxu0 %v2282
        %3129 = vmatmul.mubr.f32.gmra.mrb[0].mxu0 %v2250
        %v3130 = vpop.f32.mrb[0].mxu0
        %v3131 = vadd.f32 %v2906, %v3130
        %v3132 = vpop.f32.mrb[0].mxu0
        %3133 = vmatprep.mubr.f32.mxu0 %v2283
        %3134 = vmatmul.mubr.f32.gmra.mrb[0].mxu0 %v2251
        %v3135 = vpop.f32.mrb[0].mxu0
        %v3136 = vadd.f32 %v2911, %v3135
        %v3137 = vpop.f32.mrb[0].mxu0
        %3138 = vmatprep.mubr.f32.mxu0 %v2284
        %3139 = vmatmul.mubr.f32.gmra.mrb[0].mxu0 %v2252
        %v3140 = vpop.f32.mrb[0].mxu0
        %v3141 = vadd.f32 %v2916, %v3140
        %v3142 = vpop.f32.mrb[0].mxu0
        %3143 = vmatprep.mubr.f32.mxu0 %v2285
        %3144 = vmatmul.mubr.f32.gmra.mrb[0].mxu0 %v2253
        %v3145 = vpop.f32.mrb[0].mxu0
        %v3146 = vadd.f32 %v2921, %v3145
        %v3147 = vpop.f32.mrb[0].mxu0
        %3148 = vmatprep.mubr.f32.mxu0 %v2286
        %3149 = vmatmul.mubr.f32.gmra.mrb[0].mxu0 %v2254
        %v3150 = vpop.f32.mrb[0].mxu0
        %v3151 = vadd.f32 %v2926, %v3150
        %v3152 = vpop.f32.mrb[0].mxu0
        %3153 = vmatprep.mubr.f32.mxu0 %v2287
        %3154 = vmatmul.mubr.f32.gmra.mrb[0].mxu0 %v2255
        %v3155 = vpop.f32.mrb[0].mxu0
        %v3156 = vadd.f32 %v2931, %v3155
        %v3157 = vpop.f32.mrb[0].mxu0
        %3158 = vmatprep.mubr.f32.mxu0 %v2288
        %3159 = vmatmul.mubr.f32.gmra.mrb[0].mxu0 %v2256
        %v3160 = vpop.f32.mrb[0].mxu0
        %v3161 = vadd.f32 %v2936, %v3160
        %v3162 = vpop.f32.mrb[0].mxu0
        %3163 = vmatprep.mubr.f32.mxu0 %v2289
        %3164 = vmatmul.mubr.f32.gmra.mrb[0].mxu0 %v2257
        %v3165 = vpop.f32.mrb[0].mxu0
        %v3166 = vadd.f32 %v2941, %v3165
        %v3167 = vpop.f32.mrb[0].mxu0
        %3168 = vmatprep.mubr.f32.mxu0 %v2290
        %3169 = vmatmul.mubr.f32.gmra.mrb[0].mxu0 %v2258
        %v3170 = vpop.f32.mrb[0].mxu0
        %v3171 = vadd.f32 %v2946, %v3170
        %v3172 = vpop.f32.mrb[0].mxu0
        %3173 = vmatprep.mubr.f32.mxu0 %v2291
        %3174 = vmatmul.mubr.f32.gmra.mrb[0].mxu0 %v2259
        %v3175 = vpop.f32.mrb[0].mxu0
        %v3176 = vadd.f32 %v2951, %v3175
        %v3177 = vpop.f32.mrb[0].mxu0
        %3178 = vmatprep.mubr.f32.mxu0 %v2292
        %3179 = vmatmul.mubr.f32.gmra.mrb[0].mxu0 %v2260
        %v3180 = vpop.f32.mrb[0].mxu0
        %v3181 = vadd.f32 %v2956, %v3180
        %v3182 = vpop.f32.mrb[0].mxu0
        %3183 = vmatprep.mubr.f32.mxu0 %v2293
        %3184 = vmatmul.mubr.f32.gmra.mrb[0].mxu0 %v2261
        %v3185 = vpop.f32.mrb[0].mxu0
        %v3186 = vadd.f32 %v2961, %v3185
        %v3187 = vpop.f32.mrb[0].mxu0
        %3188 = vmatprep.mubr.f32.mxu0 %v2294
        %3189 = vmatmul.mubr.f32.gmra.mrb[0].mxu0 %v2262
        %v3190 = vpop.f32.mrb[0].mxu0
        %v3191 = vadd.f32 %v2966, %v3190
        %v3192 = vpop.f32.mrb[0].mxu0
        %3193 = vdwg.mxu0
        %3194 = vmatprep.subr.mxu0 0.0
        %3195 = vmatpush1.msra.mxu0 %v2359
        %3196 = vmatprep.subr.mxu0 0.0
        %3197 = vmatpush1.msra.mxu0 %v2360
        %3198 = vmatprep.subr.mxu0 0.0
        %3199 = vmatpush1.msra.mxu0 %v2361
        %3200 = vmatprep.subr.mxu0 0.0
        %3201 = vmatpush1.msra.mxu0 %v2362
        %3202 = vmatprep.subr.mxu0 0.0
        %3203 = vmatpush1.msra.mxu0 %v2363
        %3204 = vmatprep.subr.mxu0 0.0
        %3205 = vmatpush1.msra.mxu0 %v2364
        %3206 = vmatprep.subr.mxu0 0.0
        %3207 = vmatpush1.msra.mxu0 %v2365
        %3208 = vmatprep.subr.mxu0 0.0
        %3209 = vmatpush1.msra.mxu0 %v2366
        %3210 = vmatprep.subr.mxu0 0.0
        %3211 = vmatpush1.msra.mxu0 %v2367
        %3212 = vmatprep.subr.mxu0 0.0
        %3213 = vmatpush1.msra.mxu0 %v2368
        %3214 = vmatprep.subr.mxu0 0.0
        %3215 = vmatpush1.msra.mxu0 %v2369
        %3216 = vmatprep.subr.mxu0 0.0
        %3217 = vmatpush1.msra.mxu0 %v2370
        %3218 = vmatprep.subr.mxu0 0.0
        %3219 = vmatpush1.msra.mxu0 %v2371
        %3220 = vmatprep.subr.mxu0 0.0
        %3221 = vmatpush1.msra.mxu0 %v2372
        %3222 = vmatprep.subr.mxu0 0.0
        %3223 = vmatpush1.msra.mxu0 %v2373
        %3224 = vmatprep.subr.mxu0 0.0
        %3225 = vmatpush1.msra.mxu0 %v2374
        %3226 = vmatprep.subr.mxu0 0.0
        %3227 = vmatpush1.msra.mxu0 0.0
        %3228 = vmatprep.subr.mxu0 0.0
        %3229 = vmatpush1.msra.mxu0 0.0
        %3230 = vmatprep.subr.mxu0 0.0
        %3231 = vmatpush1.msra.mxu0 0.0
        %3232 = vmatprep.subr.mxu0 0.0
        %3233 = vmatpush1.msra.mxu0 0.0
        %3234 = vmatprep.subr.mxu0 0.0
        %3235 = vmatpush1.msra.mxu0 0.0
        %3236 = vmatprep.subr.mxu0 0.0
        %3237 = vmatpush1.msra.mxu0 0.0
        %3238 = vmatprep.subr.mxu0 0.0
        %3239 = vmatpush1.msra.mxu0 0.0
        %3240 = vmatprep.subr.mxu0 0.0
        %3241 = vmatpush1.msra.mxu0 0.0
        %3242 = vmatprep.subr.mxu0 0.0
        %3243 = vmatpush1.msra.mxu0 0.0
        %3244 = vmatprep.subr.mxu0 0.0
        %3245 = vmatpush1.msra.mxu0 0.0
        %3246 = vmatprep.subr.mxu0 0.0
        %3247 = vmatpush1.msra.mxu0 0.0
        %3248 = vmatprep.subr.mxu0 0.0
        %3249 = vmatpush1.msra.mxu0 0.0
        %3250 = vmatprep.subr.mxu0 0.0
        %3251 = vmatpush1.msra.mxu0 0.0
        %3252 = vmatprep.subr.mxu0 0.0
        %3253 = vmatpush1.msra.mxu0 0.0
        %3254 = vmatprep.subr.mxu0 0.0
        %3255 = vmatpush1.msra.mxu0 0.0
        %3256 = vmatprep.subr.mxu0 0.0
        %3257 = vmatpush1.msra.mxu0 0.0
        %3258 = vmatprep.mubr.f32.mxu0 0.0
        %3259 = vmatmul.mubr.f32.gmra.mrb[0].mxu0 %v2295
        %v3260 = vpop.f32.mrb[0].mxu0
        %v3261 = vadd.f32 %v3036, %v3260
        %v3262 = vpop.f32.mrb[0].mxu0
        %3263 = vmatprep.mubr.f32.mxu0 0.0
        %3264 = vmatmul.mubr.f32.gmra.mrb[0].mxu0 %v2296
        %v3265 = vpop.f32.mrb[0].mxu0
        %v3266 = vadd.f32 %v3041, %v3265
        %v3267 = vpop.f32.mrb[0].mxu0
        %3268 = vmatprep.mubr.f32.mxu0 0.0
        %3269 = vmatmul.mubr.f32.gmra.mrb[0].mxu0 %v2297
        %v3270 = vpop.f32.mrb[0].mxu0
        %v3271 = vadd.f32 %v3046, %v3270
        %v3272 = vpop.f32.mrb[0].mxu0
        %3273 = vmatprep.mubr.f32.mxu0 0.0
        %3274 = vmatmul.mubr.f32.gmra.mrb[0].mxu0 %v2298
        %v3275 = vpop.f32.mrb[0].mxu0
        %v3276 = vadd.f32 %v3051, %v3275
        %v3277 = vpop.f32.mrb[0].mxu0
        %3278 = vmatprep.mubr.f32.mxu0 0.0
        %3279 = vmatmul.mubr.f32.gmra.mrb[0].mxu0 %v2299
        %v3280 = vpop.f32.mrb[0].mxu0
        %v3281 = vadd.f32 %v3056, %v3280
        %v3282 = vpop.f32.mrb[0].mxu0
        %3283 = vmatprep.mubr.f32.mxu0 0.0
        %3284 = vmatmul.mubr.f32.gmra.mrb[0].mxu0 %v2300
        %v3285 = vpop.f32.mrb[0].mxu0
        %v3286 = vadd.f32 %v3061, %v3285
        %v3287 = vpop.f32.mrb[0].mxu0
        %3288 = vmatprep.mubr.f32.mxu0 0.0
        %3289 = vmatmul.mubr.f32.gmra.mrb[0].mxu0 %v2301
        %v3290 = vpop.f32.mrb[0].mxu0
        %v3291 = vadd.f32 %v3066, %v3290
        %v3292 = vpop.f32.mrb[0].mxu0
        %3293 = vmatprep.mubr.f32.mxu0 0.0
        %3294 = vmatmul.mubr.f32.gmra.mrb[0].mxu0 %v2302
        %v3295 = vpop.f32.mrb[0].mxu0
        %v3296 = vadd.f32 %v3071, %v3295
        %v3297 = vpop.f32.mrb[0].mxu0
        %3298 = vmatprep.mubr.f32.mxu0 0.0
        %3299 = vmatmul.mubr.f32.gmra.mrb[0].mxu0 %v2303
        %v3300 = vpop.f32.mrb[0].mxu0
        %v3301 = vadd.f32 %v3076, %v3300
        %v3302 = vpop.f32.mrb[0].mxu0
        %3303 = vmatprep.mubr.f32.mxu0 0.0
        %3304 = vmatmul.mubr.f32.gmra.mrb[0].mxu0 %v2304
        %v3305 = vpop.f32.mrb[0].mxu0
        %v3306 = vadd.f32 %v3081, %v3305
        %v3307 = vpop.f32.mrb[0].mxu0
        %3308 = vmatprep.mubr.f32.mxu0 0.0
        %3309 = vmatmul.mubr.f32.gmra.mrb[0].mxu0 %v2305
        %v3310 = vpop.f32.mrb[0].mxu0
        %v3311 = vadd.f32 %v3086, %v3310
        %v3312 = vpop.f32.mrb[0].mxu0
        %3313 = vmatprep.mubr.f32.mxu0 0.0
        %3314 = vmatmul.mubr.f32.gmra.mrb[0].mxu0 %v2306
        %v3315 = vpop.f32.mrb[0].mxu0
        %v3316 = vadd.f32 %v3091, %v3315
        %v3317 = vpop.f32.mrb[0].mxu0
        %3318 = vmatprep.mubr.f32.mxu0 0.0
        %3319 = vmatmul.mubr.f32.gmra.mrb[0].mxu0 %v2307
        %v3320 = vpop.f32.mrb[0].mxu0
        %v3321 = vadd.f32 %v3096, %v3320
        %v3322 = vpop.f32.mrb[0].mxu0
        %3323 = vmatprep.mubr.f32.mxu0 0.0
        %3324 = vmatmul.mubr.f32.gmra.mrb[0].mxu0 %v2308
        %v3325 = vpop.f32.mrb[0].mxu0
        %v3326 = vadd.f32 %v3101, %v3325
        %v3327 = vpop.f32.mrb[0].mxu0
        %3328 = vmatprep.mubr.f32.mxu0 0.0
        %3329 = vmatmul.mubr.f32.gmra.mrb[0].mxu0 %v2309
        %v3330 = vpop.f32.mrb[0].mxu0
        %v3331 = vadd.f32 %v3106, %v3330
        %v3332 = vpop.f32.mrb[0].mxu0
        %3333 = vmatprep.mubr.f32.mxu0 0.0
        %3334 = vmatmul.mubr.f32.gmra.mrb[0].mxu0 %v2310
        %v3335 = vpop.f32.mrb[0].mxu0
        %v3336 = vadd.f32 %v3111, %v3335
        %v3337 = vpop.f32.mrb[0].mxu0
        %3338 = vmatprep.mubr.f32.mxu0 0.0
        %3339 = vmatmul.mubr.f32.gmra.mrb[0].mxu0 %v2311
        %v3340 = vpop.f32.mrb[0].mxu0
        %v3341 = vadd.f32 %v3116, %v3340
        %v3342 = vpop.f32.mrb[0].mxu0
        %3343 = vmatprep.mubr.f32.mxu0 0.0
        %3344 = vmatmul.mubr.f32.gmra.mrb[0].mxu0 %v2312
        %v3345 = vpop.f32.mrb[0].mxu0
        %v3346 = vadd.f32 %v3121, %v3345
        %v3347 = vpop.f32.mrb[0].mxu0
        %3348 = vmatprep.mubr.f32.mxu0 0.0
        %3349 = vmatmul.mubr.f32.gmra.mrb[0].mxu0 %v2313
        %v3350 = vpop.f32.mrb[0].mxu0
        %v3351 = vadd.f32 %v3126, %v3350
        %v3352 = vpop.f32.mrb[0].mxu0
        %3353 = vmatprep.mubr.f32.mxu0 0.0
        %3354 = vmatmul.mubr.f32.gmra.mrb[0].mxu0 %v2314
        %v3355 = vpop.f32.mrb[0].mxu0
        %v3356 = vadd.f32 %v3131, %v3355
        %v3357 = vpop.f32.mrb[0].mxu0
        %3358 = vmatprep.mubr.f32.mxu0 0.0
        %3359 = vmatmul.mubr.f32.gmra.mrb[0].mxu0 %v2315
        %v3360 = vpop.f32.mrb[0].mxu0
        %v3361 = vadd.f32 %v3136, %v3360
        %v3362 = vpop.f32.mrb[0].mxu0
        %3363 = vmatprep.mubr.f32.mxu0 0.0
        %3364 = vmatmul.mubr.f32.gmra.mrb[0].mxu0 %v2316
        %v3365 = vpop.f32.mrb[0].mxu0
        %v3366 = vadd.f32 %v3141, %v3365
        %v3367 = vpop.f32.mrb[0].mxu0
        %3368 = vmatprep.mubr.f32.mxu0 0.0
        %3369 = vmatmul.mubr.f32.gmra.mrb[0].mxu0 %v2317
        %v3370 = vpop.f32.mrb[0].mxu0
        %v3371 = vadd.f32 %v3146, %v3370
        %v3372 = vpop.f32.mrb[0].mxu0
        %3373 = vmatprep.mubr.f32.mxu0 0.0
        %3374 = vmatmul.mubr.f32.gmra.mrb[0].mxu0 %v2318
        %v3375 = vpop.f32.mrb[0].mxu0
        %v3376 = vadd.f32 %v3151, %v3375
        %v3377 = vpop.f32.mrb[0].mxu0
        %3378 = vmatprep.mubr.f32.mxu0 0.0
        %3379 = vmatmul.mubr.f32.gmra.mrb[0].mxu0 %v2319
        %v3380 = vpop.f32.mrb[0].mxu0
        %v3381 = vadd.f32 %v3156, %v3380
        %v3382 = vpop.f32.mrb[0].mxu0
        %3383 = vmatprep.mubr.f32.mxu0 0.0
        %3384 = vmatmul.mubr.f32.gmra.mrb[0].mxu0 %v2320
        %v3385 = vpop.f32.mrb[0].mxu0
        %v3386 = vadd.f32 %v3161, %v3385
        %v3387 = vpop.f32.mrb[0].mxu0
        %3388 = vmatprep.mubr.f32.mxu0 0.0
        %3389 = vmatmul.mubr.f32.gmra.mrb[0].mxu0 %v2321
        %v3390 = vpop.f32.mrb[0].mxu0
        %v3391 = vadd.f32 %v3166, %v3390
        %v3392 = vpop.f32.mrb[0].mxu0
        %3393 = vmatprep.mubr.f32.mxu0 0.0
        %3394 = vmatmul.mubr.f32.gmra.mrb[0].mxu0 %v2322
        %v3395 = vpop.f32.mrb[0].mxu0
        %v3396 = vadd.f32 %v3171, %v3395
        %v3397 = vpop.f32.mrb[0].mxu0
        %3398 = vmatprep.mubr.f32.mxu0 0.0
        %3399 = vmatmul.mubr.f32.gmra.mrb[0].mxu0 %v2323
        %v3400 = vpop.f32.mrb[0].mxu0
        %v3401 = vadd.f32 %v3176, %v3400
        %v3402 = vpop.f32.mrb[0].mxu0
        %3403 = vmatprep.mubr.f32.mxu0 0.0
        %3404 = vmatmul.mubr.f32.gmra.mrb[0].mxu0 %v2324
        %v3405 = vpop.f32.mrb[0].mxu0
        %v3406 = vadd.f32 %v3181, %v3405
        %v3407 = vpop.f32.mrb[0].mxu0
        %3408 = vmatprep.mubr.f32.mxu0 0.0
        %3409 = vmatmul.mubr.f32.gmra.mrb[0].mxu0 %v2325
        %v3410 = vpop.f32.mrb[0].mxu0
        %v3411 = vadd.f32 %v3186, %v3410
        %v3412 = vpop.f32.mrb[0].mxu0
        %3413 = vmatprep.mubr.f32.mxu0 0.0
        %3414 = vmatmul.mubr.f32.gmra.mrb[0].mxu0 %v2326
        %v3415 = vpop.f32.mrb[0].mxu0
        %v3416 = vadd.f32 %v3191, %v3415
        %v3417 = vpop.f32.mrb[0].mxu0
        %3418 = vdwg.mxu0
        %s3419 = scalar_lea.vmem [#allocation2], 48
        %v3420 = vld [vmem:[%s3419] sm:$0xff]
        %v3421 = vld [vmem:[%s3419 + $0x8] sm:$0xff]
        %v3422 = vld [vmem:[%s3419 + $0x18] sm:$0xff]
        %v3423 = vld [vmem:[%s3419 + $0x20] sm:$0xff]
        %v3424 = vld [vmem:[%s3419 + $0x30] sm:$0xff]
        %v3425 = vld [vmem:[%s3419 + $0x38] sm:$0xff]
        %v3426 = vld [vmem:[%s3419 + $0x48] sm:$0xff]
        %v3427 = vld [vmem:[%s3419 + $0x50] sm:$0xff]
        %v3428 = vld [vmem:[%s3419 + $0x60] sm:$0xff]
        %v3429 = vld [vmem:[%s3419 + $0x68] sm:$0xff]
        %v3430 = vld [vmem:[%s3419 + $0x78] sm:$0xff]
        %v3431 = vld [vmem:[%s3419 + $0x80] sm:$0xff]
        %v3432 = vld [vmem:[%s3419 + $0x90] sm:$0xff]
        %v3433 = vld [vmem:[%s3419 + $0x98] sm:$0xff]
        %v3434 = vld [vmem:[%s3419 + $0xa8] sm:$0xff]
        %v3435 = vld [vmem:[%s3419 + $0xb0] sm:$0xff]
        %v3436 = vld [vmem:[%s3419 + $0xc0] sm:$0xff]
        %v3437 = vld [vmem:[%s3419 + $0xc8] sm:$0xff]
        %v3438 = vld [vmem:[%s3419 + $0xd8] sm:$0xff]
        %v3439 = vld [vmem:[%s3419 + $0xe0] sm:$0xff]
        %v3440 = vld [vmem:[%s3419 + $0xf0] sm:$0xff]
        %v3441 = vld [vmem:[%s3419 + $0xf8] sm:$0xff]
        %v3442 = vld [vmem:[%s3419 + $0x108] sm:$0xff]
        %v3443 = vld [vmem:[%s3419 + $0x110] sm:$0xff]
        %v3444 = vld [vmem:[%s3419 + $0x120] sm:$0xff]
        %v3445 = vld [vmem:[%s3419 + $0x128] sm:$0xff]
        %v3446 = vld [vmem:[%s3419 + $0x138] sm:$0xff]
        %v3447 = vld [vmem:[%s3419 + $0x140] sm:$0xff]
        %v3448 = vld [vmem:[%s3419 + $0x150] sm:$0xff]
        %v3449 = vld [vmem:[%s3419 + $0x158] sm:$0xff]
        %v3450 = vld [vmem:[%s3419 + $0x168] sm:$0xff]
        %v3451 = vld [vmem:[%s3419 + $0x170] sm:$0xff]
        %v3452 = vld [vmem:[%s3419 + $0x1] sm:$0xff]
        %v3453 = vld [vmem:[%s3419 + $0x9] sm:$0xff]
        %v3454 = vld [vmem:[%s3419 + $0x19] sm:$0xff]
        %v3455 = vld [vmem:[%s3419 + $0x21] sm:$0xff]
        %v3456 = vld [vmem:[%s3419 + $0x31] sm:$0xff]
        %v3457 = vld [vmem:[%s3419 + $0x39] sm:$0xff]
        %v3458 = vld [vmem:[%s3419 + $0x49] sm:$0xff]
        %v3459 = vld [vmem:[%s3419 + $0x51] sm:$0xff]
        %v3460 = vld [vmem:[%s3419 + $0x61] sm:$0xff]
        %v3461 = vld [vmem:[%s3419 + $0x69] sm:$0xff]
        %v3462 = vld [vmem:[%s3419 + $0x79] sm:$0xff]
        %v3463 = vld [vmem:[%s3419 + $0x81] sm:$0xff]
        %v3464 = vld [vmem:[%s3419 + $0x91] sm:$0xff]
        %v3465 = vld [vmem:[%s3419 + $0x99] sm:$0xff]
        %v3466 = vld [vmem:[%s3419 + $0xa9] sm:$0xff]
        %v3467 = vld [vmem:[%s3419 + $0xb1] sm:$0xff]
        %v3468 = vld [vmem:[%s3419 + $0xc1] sm:$0xff]
        %v3469 = vld [vmem:[%s3419 + $0xc9] sm:$0xff]
        %v3470 = vld [vmem:[%s3419 + $0xd9] sm:$0xff]
        %v3471 = vld [vmem:[%s3419 + $0xe1] sm:$0xff]
        %v3472 = vld [vmem:[%s3419 + $0xf1] sm:$0xff]
        %v3473 = vld [vmem:[%s3419 + $0xf9] sm:$0xff]
        %v3474 = vld [vmem:[%s3419 + $0x109] sm:$0xff]
        %v3475 = vld [vmem:[%s3419 + $0x111] sm:$0xff]
        %v3476 = vld [vmem:[%s3419 + $0x121] sm:$0xff]
        %v3477 = vld [vmem:[%s3419 + $0x129] sm:$0xff]
        %v3478 = vld [vmem:[%s3419 + $0x139] sm:$0xff]
        %v3479 = vld [vmem:[%s3419 + $0x141] sm:$0xff]
        %v3480 = vld [vmem:[%s3419 + $0x151] sm:$0xff]
        %v3481 = vld [vmem:[%s3419 + $0x159] sm:$0xff]
        %v3482 = vld [vmem:[%s3419 + $0x169] sm:$0xff]
        %v3483 = vld [vmem:[%s3419 + $0x171] sm:$0xff]
        %v3484 = vld [vmem:[%s3419 + $0x2] sm:$0xff]
        %v3485 = vld [vmem:[%s3419 + $0xa] sm:$0xff]
        %v3486 = vld [vmem:[%s3419 + $0x1a] sm:$0xff]
        %v3487 = vld [vmem:[%s3419 + $0x22] sm:$0xff]
        %v3488 = vld [vmem:[%s3419 + $0x32] sm:$0xff]
        %v3489 = vld [vmem:[%s3419 + $0x3a] sm:$0xff]
        %v3490 = vld [vmem:[%s3419 + $0x4a] sm:$0xff]
        %v3491 = vld [vmem:[%s3419 + $0x52] sm:$0xff]
        %v3492 = vld [vmem:[%s3419 + $0x62] sm:$0xff]
        %v3493 = vld [vmem:[%s3419 + $0x6a] sm:$0xff]
        %v3494 = vld [vmem:[%s3419 + $0x7a] sm:$0xff]
        %v3495 = vld [vmem:[%s3419 + $0x82] sm:$0xff]
        %v3496 = vld [vmem:[%s3419 + $0x92] sm:$0xff]
        %v3497 = vld [vmem:[%s3419 + $0x9a] sm:$0xff]
        %v3498 = vld [vmem:[%s3419 + $0xaa] sm:$0xff]
        %v3499 = vld [vmem:[%s3419 + $0xb2] sm:$0xff]
        %v3500 = vld [vmem:[%s3419 + $0xc2] sm:$0xff]
        %v3501 = vld [vmem:[%s3419 + $0xca] sm:$0xff]
        %v3502 = vld [vmem:[%s3419 + $0xda] sm:$0xff]
        %v3503 = vld [vmem:[%s3419 + $0xe2] sm:$0xff]
        %v3504 = vld [vmem:[%s3419 + $0xf2] sm:$0xff]
        %v3505 = vld [vmem:[%s3419 + $0xfa] sm:$0xff]
        %v3506 = vld [vmem:[%s3419 + $0x10a] sm:$0xff]
        %v3507 = vld [vmem:[%s3419 + $0x112] sm:$0xff]
        %v3508 = vld [vmem:[%s3419 + $0x122] sm:$0xff]
        %v3509 = vld [vmem:[%s3419 + $0x12a] sm:$0xff]
        %v3510 = vld [vmem:[%s3419 + $0x13a] sm:$0xff]
        %v3511 = vld [vmem:[%s3419 + $0x142] sm:$0xff]
        %v3512 = vld [vmem:[%s3419 + $0x152] sm:$0xff]
        %v3513 = vld [vmem:[%s3419 + $0x15a] sm:$0xff]
        %v3514 = vld [vmem:[%s3419 + $0x16a] sm:$0xff]
        %v3515 = vld [vmem:[%s3419 + $0x172] sm:$0xff]
        %v3516 = vld [vmem:[#allocation8 + $0x300] sm:$0xff]
        %v3517 = vld [vmem:[#allocation8 + $0x308] sm:$0xff]
        %v3518 = vld [vmem:[#allocation8 + $0x310] sm:$0xff]
        %v3519 = vld [vmem:[#allocation8 + $0x318] sm:$0xff]
        %v3520 = vld [vmem:[#allocation8 + $0x320] sm:$0xff]
        %v3521 = vld [vmem:[#allocation8 + $0x328] sm:$0xff]
        %v3522 = vld [vmem:[#allocation8 + $0x330] sm:$0xff]
        %v3523 = vld [vmem:[#allocation8 + $0x338] sm:$0xff]
        %v3524 = vld [vmem:[#allocation8 + $0x340] sm:$0xff]
        %v3525 = vld [vmem:[#allocation8 + $0x348] sm:$0xff]
        %v3526 = vld [vmem:[#allocation8 + $0x350] sm:$0xff]
        %v3527 = vld [vmem:[#allocation8 + $0x358] sm:$0xff]
        %v3528 = vld [vmem:[#allocation8 + $0x360] sm:$0xff]
        %v3529 = vld [vmem:[#allocation8 + $0x368] sm:$0xff]
        %v3530 = vld [vmem:[#allocation8 + $0x370] sm:$0xff]
        %v3531 = vld [vmem:[#allocation8 + $0x378] sm:$0xff]
        %v3532 = vld [vmem:[#allocation8 + $0x380] sm:$0xff]
        %v3533 = vld [vmem:[#allocation8 + $0x388] sm:$0xff]
        %v3534 = vld [vmem:[#allocation8 + $0x390] sm:$0xff]
        %v3535 = vld [vmem:[#allocation8 + $0x398] sm:$0xff]
        %v3536 = vld [vmem:[#allocation8 + $0x3a0] sm:$0xff]
        %v3537 = vld [vmem:[#allocation8 + $0x3a8] sm:$0xff]
        %v3538 = vld [vmem:[#allocation8 + $0x3b0] sm:$0xff]
        %v3539 = vld [vmem:[#allocation8 + $0x3b8] sm:$0xff]
        %v3540 = vld [vmem:[#allocation8 + $0x3c0] sm:$0xff]
        %v3541 = vld [vmem:[#allocation8 + $0x3c8] sm:$0xff]
        %v3542 = vld [vmem:[#allocation8 + $0x3d0] sm:$0xff]
        %v3543 = vld [vmem:[#allocation8 + $0x3d8] sm:$0xff]
        %v3544 = vld [vmem:[#allocation8 + $0x3e0] sm:$0xff]
        %v3545 = vld [vmem:[#allocation8 + $0x3e8] sm:$0xff]
        %v3546 = vld [vmem:[#allocation8 + $0x3f0] sm:$0xff]
        %v3547 = vld [vmem:[#allocation8 + $0x3f8] sm:$0xff]
        %v3548 = vld [vmem:[#allocation8 + $0x400] sm:$0xff]
        %v3549 = vld [vmem:[#allocation8 + $0x408] sm:$0xff]
        %v3550 = vld [vmem:[#allocation8 + $0x410] sm:$0xff]
        %v3551 = vld [vmem:[#allocation8 + $0x418] sm:$0xff]
        %v3552 = vld [vmem:[#allocation8 + $0x420] sm:$0xff]
        %v3553 = vld [vmem:[#allocation8 + $0x428] sm:$0xff]
        %v3554 = vld [vmem:[#allocation8 + $0x430] sm:$0xff]
        %v3555 = vld [vmem:[#allocation8 + $0x438] sm:$0xff]
        %v3556 = vld [vmem:[#allocation8 + $0x440] sm:$0xff]
        %v3557 = vld [vmem:[#allocation8 + $0x448] sm:$0xff]
        %v3558 = vld [vmem:[#allocation8 + $0x450] sm:$0xff]
        %v3559 = vld [vmem:[#allocation8 + $0x458] sm:$0xff]
        %v3560 = vld [vmem:[#allocation8 + $0x460] sm:$0xff]
        %v3561 = vld [vmem:[#allocation8 + $0x468] sm:$0xff]
        %v3562 = vld [vmem:[#allocation8 + $0x470] sm:$0xff]
        %v3563 = vld [vmem:[#allocation8 + $0x478] sm:$0xff]
        %3564 = vmatprep.subr.mxu0 0.0
        %3565 = vmatpush1.msra.mxu0 %v3516
        %3566 = vmatprep.subr.mxu0 0.0
        %3567 = vmatpush1.msra.mxu0 %v3517
        %3568 = vmatprep.subr.mxu0 0.0
        %3569 = vmatpush1.msra.mxu0 %v3518
        %3570 = vmatprep.subr.mxu0 0.0
        %3571 = vmatpush1.msra.mxu0 %v3519
        %3572 = vmatprep.subr.mxu0 0.0
        %3573 = vmatpush1.msra.mxu0 %v3520
        %3574 = vmatprep.subr.mxu0 0.0
        %3575 = vmatpush1.msra.mxu0 %v3521
        %3576 = vmatprep.subr.mxu0 0.0
        %3577 = vmatpush1.msra.mxu0 %v3522
        %3578 = vmatprep.subr.mxu0 0.0
        %3579 = vmatpush1.msra.mxu0 %v3523
        %3580 = vmatprep.subr.mxu0 0.0
        %3581 = vmatpush1.msra.mxu0 %v3524
        %3582 = vmatprep.subr.mxu0 0.0
        %3583 = vmatpush1.msra.mxu0 %v3525
        %3584 = vmatprep.subr.mxu0 0.0
        %3585 = vmatpush1.msra.mxu0 %v3526
        %3586 = vmatprep.subr.mxu0 0.0
        %3587 = vmatpush1.msra.mxu0 %v3527
        %3588 = vmatprep.subr.mxu0 0.0
        %3589 = vmatpush1.msra.mxu0 %v3528
        %3590 = vmatprep.subr.mxu0 0.0
        %3591 = vmatpush1.msra.mxu0 %v3529
        %3592 = vmatprep.subr.mxu0 0.0
        %3593 = vmatpush1.msra.mxu0 %v3530
        %3594 = vmatprep.subr.mxu0 0.0
        %3595 = vmatpush1.msra.mxu0 %v3531
        %3596 = vmatprep.subr.mxu0 0.0
        %3597 = vmatpush1.msra.mxu0 %v3532
        %3598 = vmatprep.subr.mxu0 0.0
        %3599 = vmatpush1.msra.mxu0 %v3533
        %3600 = vmatprep.subr.mxu0 0.0
        %3601 = vmatpush1.msra.mxu0 %v3534
        %3602 = vmatprep.subr.mxu0 0.0
        %3603 = vmatpush1.msra.mxu0 %v3535
        %3604 = vmatprep.subr.mxu0 0.0
        %3605 = vmatpush1.msra.mxu0 %v3536
        %3606 = vmatprep.subr.mxu0 0.0
        %3607 = vmatpush1.msra.mxu0 %v3537
        %3608 = vmatprep.subr.mxu0 0.0
        %3609 = vmatpush1.msra.mxu0 %v3538
        %3610 = vmatprep.subr.mxu0 0.0
        %3611 = vmatpush1.msra.mxu0 %v3539
        %3612 = vmatprep.subr.mxu0 0.0
        %3613 = vmatpush1.msra.mxu0 %v3540
        %3614 = vmatprep.subr.mxu0 0.0
        %3615 = vmatpush1.msra.mxu0 %v3541
        %3616 = vmatprep.subr.mxu0 0.0
        %3617 = vmatpush1.msra.mxu0 %v3542
        %3618 = vmatprep.subr.mxu0 0.0
        %3619 = vmatpush1.msra.mxu0 %v3543
        %3620 = vmatprep.subr.mxu0 0.0
        %3621 = vmatpush1.msra.mxu0 %v3544
        %3622 = vmatprep.subr.mxu0 0.0
        %3623 = vmatpush1.msra.mxu0 %v3545
        %3624 = vmatprep.subr.mxu0 0.0
        %3625 = vmatpush1.msra.mxu0 %v3546
        %3626 = vmatprep.subr.mxu0 0.0
        %3627 = vmatpush1.msra.mxu0 %v3547
        %3628 = vmatprep.mubr.f32.mxu0 %v3452
        %3629 = vmatmul.mubr.f32.gmra.mrb[0].mxu0 %v3420
        %v3630 = vpop.f32.mrb[0].mxu0
        %v3631 = vadd.f32 0.0, %v3630
        %v3632 = vpop.f32.mrb[0].mxu0
        %3633 = vmatprep.mubr.f32.mxu0 %v3453
        %3634 = vmatmul.mubr.f32.gmra.mrb[0].mxu0 %v3421
        %v3635 = vpop.f32.mrb[0].mxu0
        %v3636 = vadd.f32 0.0, %v3635
        %v3637 = vpop.f32.mrb[0].mxu0
        %3638 = vmatprep.mubr.f32.mxu0 %v3454
        %3639 = vmatmul.mubr.f32.gmra.mrb[0].mxu0 %v3422
        %v3640 = vpop.f32.mrb[0].mxu0
        %v3641 = vadd.f32 0.0, %v3640
        %v3642 = vpop.f32.mrb[0].mxu0
        %3643 = vmatprep.mubr.f32.mxu0 %v3455
        %3644 = vmatmul.mubr.f32.gmra.mrb[0].mxu0 %v3423
        %v3645 = vpop.f32.mrb[0].mxu0
        %v3646 = vadd.f32 0.0, %v3645
        %v3647 = vpop.f32.mrb[0].mxu0
        %3648 = vmatprep.mubr.f32.mxu0 %v3456
        %3649 = vmatmul.mubr.f32.gmra.mrb[0].mxu0 %v3424
        %v3650 = vpop.f32.mrb[0].mxu0
        %v3651 = vadd.f32 0.0, %v3650
        %v3652 = vpop.f32.mrb[0].mxu0
        %3653 = vmatprep.mubr.f32.mxu0 %v3457
        %3654 = vmatmul.mubr.f32.gmra.mrb[0].mxu0 %v3425
        %v3655 = vpop.f32.mrb[0].mxu0
        %v3656 = vadd.f32 0.0, %v3655
        %v3657 = vpop.f32.mrb[0].mxu0
        %3658 = vmatprep.mubr.f32.mxu0 %v3458
        %3659 = vmatmul.mubr.f32.gmra.mrb[0].mxu0 %v3426
        %v3660 = vpop.f32.mrb[0].mxu0
        %v3661 = vadd.f32 0.0, %v3660
        %v3662 = vpop.f32.mrb[0].mxu0
        %3663 = vmatprep.mubr.f32.mxu0 %v3459
        %3664 = vmatmul.mubr.f32.gmra.mrb[0].mxu0 %v3427
        %v3665 = vpop.f32.mrb[0].mxu0
        %v3666 = vadd.f32 0.0, %v3665
        %v3667 = vpop.f32.mrb[0].mxu0
        %3668 = vmatprep.mubr.f32.mxu0 %v3460
        %3669 = vmatmul.mubr.f32.gmra.mrb[0].mxu0 %v3428
        %v3670 = vpop.f32.mrb[0].mxu0
        %v3671 = vadd.f32 0.0, %v3670
        %v3672 = vpop.f32.mrb[0].mxu0
        %3673 = vmatprep.mubr.f32.mxu0 %v3461
        %3674 = vmatmul.mubr.f32.gmra.mrb[0].mxu0 %v3429
        %v3675 = vpop.f32.mrb[0].mxu0
        %v3676 = vadd.f32 0.0, %v3675
        %v3677 = vpop.f32.mrb[0].mxu0
        %3678 = vmatprep.mubr.f32.mxu0 %v3462
        %3679 = vmatmul.mubr.f32.gmra.mrb[0].mxu0 %v3430
        %v3680 = vpop.f32.mrb[0].mxu0
        %v3681 = vadd.f32 0.0, %v3680
        %v3682 = vpop.f32.mrb[0].mxu0
        %3683 = vmatprep.mubr.f32.mxu0 %v3463
        %3684 = vmatmul.mubr.f32.gmra.mrb[0].mxu0 %v3431
        %v3685 = vpop.f32.mrb[0].mxu0
        %v3686 = vadd.f32 0.0, %v3685
        %v3687 = vpop.f32.mrb[0].mxu0
        %3688 = vmatprep.mubr.f32.mxu0 %v3464
        %3689 = vmatmul.mubr.f32.gmra.mrb[0].mxu0 %v3432
        %v3690 = vpop.f32.mrb[0].mxu0
        %v3691 = vadd.f32 0.0, %v3690
        %v3692 = vpop.f32.mrb[0].mxu0
        %3693 = vmatprep.mubr.f32.mxu0 %v3465
        %3694 = vmatmul.mubr.f32.gmra.mrb[0].mxu0 %v3433
        %v3695 = vpop.f32.mrb[0].mxu0
        %v3696 = vadd.f32 0.0, %v3695
        %v3697 = vpop.f32.mrb[0].mxu0
        %3698 = vmatprep.mubr.f32.mxu0 %v3466
        %3699 = vmatmul.mubr.f32.gmra.mrb[0].mxu0 %v3434
        %v3700 = vpop.f32.mrb[0].mxu0
        %v3701 = vadd.f32 0.0, %v3700
        %v3702 = vpop.f32.mrb[0].mxu0
        %3703 = vmatprep.mubr.f32.mxu0 %v3467
        %3704 = vmatmul.mubr.f32.gmra.mrb[0].mxu0 %v3435
        %v3705 = vpop.f32.mrb[0].mxu0
        %v3706 = vadd.f32 0.0, %v3705
        %v3707 = vpop.f32.mrb[0].mxu0
        %3708 = vmatprep.mubr.f32.mxu0 %v3468
        %3709 = vmatmul.mubr.f32.gmra.mrb[0].mxu0 %v3436
        %v3710 = vpop.f32.mrb[0].mxu0
        %v3711 = vadd.f32 0.0, %v3710
        %v3712 = vpop.f32.mrb[0].mxu0
        %3713 = vmatprep.mubr.f32.mxu0 %v3469
        %3714 = vmatmul.mubr.f32.gmra.mrb[0].mxu0 %v3437
        %v3715 = vpop.f32.mrb[0].mxu0
        %v3716 = vadd.f32 0.0, %v3715
        %v3717 = vpop.f32.mrb[0].mxu0
        %3718 = vmatprep.mubr.f32.mxu0 %v3470
        %3719 = vmatmul.mubr.f32.gmra.mrb[0].mxu0 %v3438
        %v3720 = vpop.f32.mrb[0].mxu0
        %v3721 = vadd.f32 0.0, %v3720
        %v3722 = vpop.f32.mrb[0].mxu0
        %3723 = vmatprep.mubr.f32.mxu0 %v3471
        %3724 = vmatmul.mubr.f32.gmra.mrb[0].mxu0 %v3439
        %v3725 = vpop.f32.mrb[0].mxu0
        %v3726 = vadd.f32 0.0, %v3725
        %v3727 = vpop.f32.mrb[0].mxu0
        %3728 = vmatprep.mubr.f32.mxu0 %v3472
        %3729 = vmatmul.mubr.f32.gmra.mrb[0].mxu0 %v3440
        %v3730 = vpop.f32.mrb[0].mxu0
        %v3731 = vadd.f32 0.0, %v3730
        %v3732 = vpop.f32.mrb[0].mxu0
        %3733 = vmatprep.mubr.f32.mxu0 %v3473
        %3734 = vmatmul.mubr.f32.gmra.mrb[0].mxu0 %v3441
        %v3735 = vpop.f32.mrb[0].mxu0
        %v3736 = vadd.f32 0.0, %v3735
        %v3737 = vpop.f32.mrb[0].mxu0
        %3738 = vmatprep.mubr.f32.mxu0 %v3474
        %3739 = vmatmul.mubr.f32.gmra.mrb[0].mxu0 %v3442
        %v3740 = vpop.f32.mrb[0].mxu0
        %v3741 = vadd.f32 0.0, %v3740
        %v3742 = vpop.f32.mrb[0].mxu0
        %3743 = vmatprep.mubr.f32.mxu0 %v3475
        %3744 = vmatmul.mubr.f32.gmra.mrb[0].mxu0 %v3443
        %v3745 = vpop.f32.mrb[0].mxu0
        %v3746 = vadd.f32 0.0, %v3745
        %v3747 = vpop.f32.mrb[0].mxu0
        %3748 = vmatprep.mubr.f32.mxu0 %v3476
        %3749 = vmatmul.mubr.f32.gmra.mrb[0].mxu0 %v3444
        %v3750 = vpop.f32.mrb[0].mxu0
        %v3751 = vadd.f32 0.0, %v3750
        %v3752 = vpop.f32.mrb[0].mxu0
        %3753 = vmatprep.mubr.f32.mxu0 %v3477
        %3754 = vmatmul.mubr.f32.gmra.mrb[0].mxu0 %v3445
        %v3755 = vpop.f32.mrb[0].mxu0
        %v3756 = vadd.f32 0.0, %v3755
        %v3757 = vpop.f32.mrb[0].mxu0
        %3758 = vmatprep.mubr.f32.mxu0 %v3478
        %3759 = vmatmul.mubr.f32.gmra.mrb[0].mxu0 %v3446
        %v3760 = vpop.f32.mrb[0].mxu0
        %v3761 = vadd.f32 0.0, %v3760
        %v3762 = vpop.f32.mrb[0].mxu0
        %3763 = vmatprep.mubr.f32.mxu0 %v3479
        %3764 = vmatmul.mubr.f32.gmra.mrb[0].mxu0 %v3447
        %v3765 = vpop.f32.mrb[0].mxu0
        %v3766 = vadd.f32 0.0, %v3765
        %v3767 = vpop.f32.mrb[0].mxu0
        %3768 = vmatprep.mubr.f32.mxu0 %v3480
        %3769 = vmatmul.mubr.f32.gmra.mrb[0].mxu0 %v3448
        %v3770 = vpop.f32.mrb[0].mxu0
        %v3771 = vadd.f32 0.0, %v3770
        %v3772 = vpop.f32.mrb[0].mxu0
        %3773 = vmatprep.mubr.f32.mxu0 %v3481
        %3774 = vmatmul.mubr.f32.gmra.mrb[0].mxu0 %v3449
        %v3775 = vpop.f32.mrb[0].mxu0
        %v3776 = vadd.f32 0.0, %v3775
        %v3777 = vpop.f32.mrb[0].mxu0
        %3778 = vmatprep.mubr.f32.mxu0 %v3482
        %3779 = vmatmul.mubr.f32.gmra.mrb[0].mxu0 %v3450
        %v3780 = vpop.f32.mrb[0].mxu0
        %v3781 = vadd.f32 0.0, %v3780
        %v3782 = vpop.f32.mrb[0].mxu0
        %3783 = vmatprep.mubr.f32.mxu0 %v3483
        %3784 = vmatmul.mubr.f32.gmra.mrb[0].mxu0 %v3451
        %v3785 = vpop.f32.mrb[0].mxu0
        %v3786 = vadd.f32 0.0, %v3785
        %v3787 = vpop.f32.mrb[0].mxu0
        %3788 = vdwg.mxu0
        %3789 = vmatprep.subr.mxu0 0.0
        %3790 = vmatpush1.msra.mxu0 %v3548
        %3791 = vmatprep.subr.mxu0 0.0
        %3792 = vmatpush1.msra.mxu0 %v3549
        %3793 = vmatprep.subr.mxu0 0.0
        %3794 = vmatpush1.msra.mxu0 %v3550
        %3795 = vmatprep.subr.mxu0 0.0
        %3796 = vmatpush1.msra.mxu0 %v3551
        %3797 = vmatprep.subr.mxu0 0.0
        %3798 = vmatpush1.msra.mxu0 %v3552
        %3799 = vmatprep.subr.mxu0 0.0
        %3800 = vmatpush1.msra.mxu0 %v3553
        %3801 = vmatprep.subr.mxu0 0.0
        %3802 = vmatpush1.msra.mxu0 %v3554
        %3803 = vmatprep.subr.mxu0 0.0
        %3804 = vmatpush1.msra.mxu0 %v3555
        %3805 = vmatprep.subr.mxu0 0.0
        %3806 = vmatpush1.msra.mxu0 %v3556
        %3807 = vmatprep.subr.mxu0 0.0
        %3808 = vmatpush1.msra.mxu0 %v3557
        %3809 = vmatprep.subr.mxu0 0.0
        %3810 = vmatpush1.msra.mxu0 %v3558
        %3811 = vmatprep.subr.mxu0 0.0
        %3812 = vmatpush1.msra.mxu0 %v3559
        %3813 = vmatprep.subr.mxu0 0.0
        %3814 = vmatpush1.msra.mxu0 %v3560
        %3815 = vmatprep.subr.mxu0 0.0
        %3816 = vmatpush1.msra.mxu0 %v3561
        %3817 = vmatprep.subr.mxu0 0.0
        %3818 = vmatpush1.msra.mxu0 %v3562
        %3819 = vmatprep.subr.mxu0 0.0
        %3820 = vmatpush1.msra.mxu0 %v3563
        %3821 = vmatprep.subr.mxu0 0.0
        %3822 = vmatpush1.msra.mxu0 0.0
        %3823 = vmatprep.subr.mxu0 0.0
        %3824 = vmatpush1.msra.mxu0 0.0
        %3825 = vmatprep.subr.mxu0 0.0
        %3826 = vmatpush1.msra.mxu0 0.0
        %3827 = vmatprep.subr.mxu0 0.0
        %3828 = vmatpush1.msra.mxu0 0.0
        %3829 = vmatprep.subr.mxu0 0.0
        %3830 = vmatpush1.msra.mxu0 0.0
        %3831 = vmatprep.subr.mxu0 0.0
        %3832 = vmatpush1.msra.mxu0 0.0
        %3833 = vmatprep.subr.mxu0 0.0
        %3834 = vmatpush1.msra.mxu0 0.0
        %3835 = vmatprep.subr.mxu0 0.0
        %3836 = vmatpush1.msra.mxu0 0.0
        %3837 = vmatprep.subr.mxu0 0.0
        %3838 = vmatpush1.msra.mxu0 0.0
        %3839 = vmatprep.subr.mxu0 0.0
        %3840 = vmatpush1.msra.mxu0 0.0
        %3841 = vmatprep.subr.mxu0 0.0
        %3842 = vmatpush1.msra.mxu0 0.0
        %3843 = vmatprep.subr.mxu0 0.0
        %3844 = vmatpush1.msra.mxu0 0.0
        %3845 = vmatprep.subr.mxu0 0.0
        %3846 = vmatpush1.msra.mxu0 0.0
        %3847 = vmatprep.subr.mxu0 0.0
        %3848 = vmatpush1.msra.mxu0 0.0
        %3849 = vmatprep.subr.mxu0 0.0
        %3850 = vmatpush1.msra.mxu0 0.0
        %3851 = vmatprep.subr.mxu0 0.0
        %3852 = vmatpush1.msra.mxu0 0.0
        %3853 = vmatprep.mubr.f32.mxu0 0.0
        %3854 = vmatmul.mubr.f32.gmra.mrb[0].mxu0 %v3484
        %v3855 = vpop.f32.mrb[0].mxu0
        %v3856 = vadd.f32 %v3631, %v3855
        %v3857 = vpop.f32.mrb[0].mxu0
        %3858 = vmatprep.mubr.f32.mxu0 0.0
        %3859 = vmatmul.mubr.f32.gmra.mrb[0].mxu0 %v3485
        %v3860 = vpop.f32.mrb[0].mxu0
        %v3861 = vadd.f32 %v3636, %v3860
        %v3862 = vpop.f32.mrb[0].mxu0
        %3863 = vmatprep.mubr.f32.mxu0 0.0
        %3864 = vmatmul.mubr.f32.gmra.mrb[0].mxu0 %v3486
        %v3865 = vpop.f32.mrb[0].mxu0
        %v3866 = vadd.f32 %v3641, %v3865
        %v3867 = vpop.f32.mrb[0].mxu0
        %3868 = vmatprep.mubr.f32.mxu0 0.0
        %3869 = vmatmul.mubr.f32.gmra.mrb[0].mxu0 %v3487
        %v3870 = vpop.f32.mrb[0].mxu0
        %v3871 = vadd.f32 %v3646, %v3870
        %v3872 = vpop.f32.mrb[0].mxu0
        %3873 = vmatprep.mubr.f32.mxu0 0.0
        %3874 = vmatmul.mubr.f32.gmra.mrb[0].mxu0 %v3488
        %v3875 = vpop.f32.mrb[0].mxu0
        %v3876 = vadd.f32 %v3651, %v3875
        %v3877 = vpop.f32.mrb[0].mxu0
        %3878 = vmatprep.mubr.f32.mxu0 0.0
        %3879 = vmatmul.mubr.f32.gmra.mrb[0].mxu0 %v3489
        %v3880 = vpop.f32.mrb[0].mxu0
        %v3881 = vadd.f32 %v3656, %v3880
        %v3882 = vpop.f32.mrb[0].mxu0
        %3883 = vmatprep.mubr.f32.mxu0 0.0
        %3884 = vmatmul.mubr.f32.gmra.mrb[0].mxu0 %v3490
        %v3885 = vpop.f32.mrb[0].mxu0
        %v3886 = vadd.f32 %v3661, %v3885
        %v3887 = vpop.f32.mrb[0].mxu0
        %3888 = vmatprep.mubr.f32.mxu0 0.0
        %3889 = vmatmul.mubr.f32.gmra.mrb[0].mxu0 %v3491
        %v3890 = vpop.f32.mrb[0].mxu0
        %v3891 = vadd.f32 %v3666, %v3890
        %v3892 = vpop.f32.mrb[0].mxu0
        %3893 = vmatprep.mubr.f32.mxu0 0.0
        %3894 = vmatmul.mubr.f32.gmra.mrb[0].mxu0 %v3492
        %v3895 = vpop.f32.mrb[0].mxu0
        %v3896 = vadd.f32 %v3671, %v3895
        %v3897 = vpop.f32.mrb[0].mxu0
        %3898 = vmatprep.mubr.f32.mxu0 0.0
        %3899 = vmatmul.mubr.f32.gmra.mrb[0].mxu0 %v3493
        %v3900 = vpop.f32.mrb[0].mxu0
        %v3901 = vadd.f32 %v3676, %v3900
        %v3902 = vpop.f32.mrb[0].mxu0
        %3903 = vmatprep.mubr.f32.mxu0 0.0
        %3904 = vmatmul.mubr.f32.gmra.mrb[0].mxu0 %v3494
        %v3905 = vpop.f32.mrb[0].mxu0
        %v3906 = vadd.f32 %v3681, %v3905
        %v3907 = vpop.f32.mrb[0].mxu0
        %3908 = vmatprep.mubr.f32.mxu0 0.0
        %3909 = vmatmul.mubr.f32.gmra.mrb[0].mxu0 %v3495
        %v3910 = vpop.f32.mrb[0].mxu0
        %v3911 = vadd.f32 %v3686, %v3910
        %v3912 = vpop.f32.mrb[0].mxu0
        %3913 = vmatprep.mubr.f32.mxu0 0.0
        %3914 = vmatmul.mubr.f32.gmra.mrb[0].mxu0 %v3496
        %v3915 = vpop.f32.mrb[0].mxu0
        %v3916 = vadd.f32 %v3691, %v3915
        %v3917 = vpop.f32.mrb[0].mxu0
        %3918 = vmatprep.mubr.f32.mxu0 0.0
        %3919 = vmatmul.mubr.f32.gmra.mrb[0].mxu0 %v3497
        %v3920 = vpop.f32.mrb[0].mxu0
        %v3921 = vadd.f32 %v3696, %v3920
        %v3922 = vpop.f32.mrb[0].mxu0
        %3923 = vmatprep.mubr.f32.mxu0 0.0
        %3924 = vmatmul.mubr.f32.gmra.mrb[0].mxu0 %v3498
        %v3925 = vpop.f32.mrb[0].mxu0
        %v3926 = vadd.f32 %v3701, %v3925
        %v3927 = vpop.f32.mrb[0].mxu0
        %3928 = vmatprep.mubr.f32.mxu0 0.0
        %3929 = vmatmul.mubr.f32.gmra.mrb[0].mxu0 %v3499
        %v3930 = vpop.f32.mrb[0].mxu0
        %v3931 = vadd.f32 %v3706, %v3930
        %v3932 = vpop.f32.mrb[0].mxu0
        %3933 = vmatprep.mubr.f32.mxu0 0.0
        %3934 = vmatmul.mubr.f32.gmra.mrb[0].mxu0 %v3500
        %v3935 = vpop.f32.mrb[0].mxu0
        %v3936 = vadd.f32 %v3711, %v3935
        %v3937 = vpop.f32.mrb[0].mxu0
        %3938 = vmatprep.mubr.f32.mxu0 0.0
        %3939 = vmatmul.mubr.f32.gmra.mrb[0].mxu0 %v3501
        %v3940 = vpop.f32.mrb[0].mxu0
        %v3941 = vadd.f32 %v3716, %v3940
        %v3942 = vpop.f32.mrb[0].mxu0
        %3943 = vmatprep.mubr.f32.mxu0 0.0
        %3944 = vmatmul.mubr.f32.gmra.mrb[0].mxu0 %v3502
        %v3945 = vpop.f32.mrb[0].mxu0
        %v3946 = vadd.f32 %v3721, %v3945
        %v3947 = vpop.f32.mrb[0].mxu0
        %3948 = vmatprep.mubr.f32.mxu0 0.0
        %3949 = vmatmul.mubr.f32.gmra.mrb[0].mxu0 %v3503
        %v3950 = vpop.f32.mrb[0].mxu0
        %v3951 = vadd.f32 %v3726, %v3950
        %v3952 = vpop.f32.mrb[0].mxu0
        %3953 = vmatprep.mubr.f32.mxu0 0.0
        %3954 = vmatmul.mubr.f32.gmra.mrb[0].mxu0 %v3504
        %v3955 = vpop.f32.mrb[0].mxu0
        %v3956 = vadd.f32 %v3731, %v3955
        %v3957 = vpop.f32.mrb[0].mxu0
        %3958 = vmatprep.mubr.f32.mxu0 0.0
        %3959 = vmatmul.mubr.f32.gmra.mrb[0].mxu0 %v3505
        %v3960 = vpop.f32.mrb[0].mxu0
        %v3961 = vadd.f32 %v3736, %v3960
        %v3962 = vpop.f32.mrb[0].mxu0
        %3963 = vmatprep.mubr.f32.mxu0 0.0
        %3964 = vmatmul.mubr.f32.gmra.mrb[0].mxu0 %v3506
        %v3965 = vpop.f32.mrb[0].mxu0
        %v3966 = vadd.f32 %v3741, %v3965
        %v3967 = vpop.f32.mrb[0].mxu0
        %3968 = vmatprep.mubr.f32.mxu0 0.0
        %3969 = vmatmul.mubr.f32.gmra.mrb[0].mxu0 %v3507
        %v3970 = vpop.f32.mrb[0].mxu0
        %v3971 = vadd.f32 %v3746, %v3970
        %v3972 = vpop.f32.mrb[0].mxu0
        %3973 = vmatprep.mubr.f32.mxu0 0.0
        %3974 = vmatmul.mubr.f32.gmra.mrb[0].mxu0 %v3508
        %v3975 = vpop.f32.mrb[0].mxu0
        %v3976 = vadd.f32 %v3751, %v3975
        %v3977 = vpop.f32.mrb[0].mxu0
        %3978 = vmatprep.mubr.f32.mxu0 0.0
        %3979 = vmatmul.mubr.f32.gmra.mrb[0].mxu0 %v3509
        %v3980 = vpop.f32.mrb[0].mxu0
        %v3981 = vadd.f32 %v3756, %v3980
        %v3982 = vpop.f32.mrb[0].mxu0
        %3983 = vmatprep.mubr.f32.mxu0 0.0
        %3984 = vmatmul.mubr.f32.gmra.mrb[0].mxu0 %v3510
        %v3985 = vpop.f32.mrb[0].mxu0
        %v3986 = vadd.f32 %v3761, %v3985
        %v3987 = vpop.f32.mrb[0].mxu0
        %3988 = vmatprep.mubr.f32.mxu0 0.0
        %3989 = vmatmul.mubr.f32.gmra.mrb[0].mxu0 %v3511
        %v3990 = vpop.f32.mrb[0].mxu0
        %v3991 = vadd.f32 %v3766, %v3990
        %v3992 = vpop.f32.mrb[0].mxu0
        %3993 = vmatprep.mubr.f32.mxu0 0.0
        %3994 = vmatmul.mubr.f32.gmra.mrb[0].mxu0 %v3512
        %v3995 = vpop.f32.mrb[0].mxu0
        %v3996 = vadd.f32 %v3771, %v3995
        %v3997 = vpop.f32.mrb[0].mxu0
        %3998 = vmatprep.mubr.f32.mxu0 0.0
        %3999 = vmatmul.mubr.f32.gmra.mrb[0].mxu0 %v3513
        %v4000 = vpop.f32.mrb[0].mxu0
        %v4001 = vadd.f32 %v3776, %v4000
        %v4002 = vpop.f32.mrb[0].mxu0
        %4003 = vmatprep.mubr.f32.mxu0 0.0
        %4004 = vmatmul.mubr.f32.gmra.mrb[0].mxu0 %v3514
        %v4005 = vpop.f32.mrb[0].mxu0
        %v4006 = vadd.f32 %v3781, %v4005
        %v4007 = vpop.f32.mrb[0].mxu0
        %4008 = vmatprep.mubr.f32.mxu0 0.0
        %4009 = vmatmul.mubr.f32.gmra.mrb[0].mxu0 %v3515
        %v4010 = vpop.f32.mrb[0].mxu0
        %v4011 = vadd.f32 %v3786, %v4010
        %v4012 = vpop.f32.mrb[0].mxu0
        %4013 = vdwg.mxu0
        %v4014 = vadd.f32 %v3261, %v3856
        %v4015 = vadd.f32 %v3266, %v3861
        %v4016 = vadd.f32 %v3271, %v3866
        %v4017 = vadd.f32 %v3276, %v3871
        %v4018 = vadd.f32 %v3281, %v3876
        %v4019 = vadd.f32 %v3286, %v3881
        %v4020 = vadd.f32 %v3291, %v3886
        %v4021 = vadd.f32 %v3296, %v3891
        %v4022 = vadd.f32 %v3301, %v3896
        %v4023 = vadd.f32 %v3306, %v3901
        %v4024 = vadd.f32 %v3311, %v3906
        %v4025 = vadd.f32 %v3316, %v3911
        %v4026 = vadd.f32 %v3321, %v3916
        %v4027 = vadd.f32 %v3326, %v3921
        %v4028 = vadd.f32 %v3331, %v3926
        %v4029 = vadd.f32 %v3336, %v3931
        %v4030 = vadd.f32 %v3341, %v3936
        %v4031 = vadd.f32 %v3346, %v3941
        %v4032 = vadd.f32 %v3351, %v3946
        %v4033 = vadd.f32 %v3356, %v3951
        %v4034 = vadd.f32 %v3361, %v3956
        %v4035 = vadd.f32 %v3366, %v3961
        %v4036 = vadd.f32 %v3371, %v3966
        %v4037 = vadd.f32 %v3376, %v3971
        %v4038 = vadd.f32 %v3381, %v3976
        %v4039 = vadd.f32 %v3386, %v3981
        %v4040 = vadd.f32 %v3391, %v3986
        %v4041 = vadd.f32 %v3396, %v3991
        %v4042 = vadd.f32 %v3401, %v3996
        %v4043 = vadd.f32 %v3406, %v4001
        %v4044 = vadd.f32 %v3411, %v4006
        %v4045 = vadd.f32 %v3416, %v4011
        %v4046 = vld [vmem:[%s4] sm:$0x1]
        %v4048 = vlaneseq
        %v4049 = vshrl.u32 %v4048, 7
        %v4050 = vsub.s32 0, %v4049
        %v4051 = vrot.slane %v4046, %v4050
        %v4053 = vadd.f32 %v4014, %v4051
        %v4054 = vadd.f32 %v4015, %v4051
        %v4055 = vadd.f32 %v4016, %v4051
        %v4056 = vadd.f32 %v4017, %v4051
        %v4057 = vadd.f32 %v4018, %v4051
        %v4058 = vadd.f32 %v4019, %v4051
        %v4059 = vadd.f32 %v4020, %v4051
        %v4060 = vadd.f32 %v4021, %v4051
        %v4061 = vadd.f32 %v4022, %v4051
        %v4062 = vadd.f32 %v4023, %v4051
        %v4063 = vadd.f32 %v4024, %v4051
        %v4064 = vadd.f32 %v4025, %v4051
        %v4065 = vadd.f32 %v4026, %v4051
        %v4066 = vadd.f32 %v4027, %v4051
        %v4067 = vadd.f32 %v4028, %v4051
        %v4068 = vadd.f32 %v4029, %v4051
        %v4069 = vadd.f32 %v4030, %v4051
        %v4070 = vadd.f32 %v4031, %v4051
        %v4071 = vadd.f32 %v4032, %v4051
        %v4072 = vadd.f32 %v4033, %v4051
        %v4073 = vadd.f32 %v4034, %v4051
        %v4074 = vadd.f32 %v4035, %v4051
        %v4075 = vadd.f32 %v4036, %v4051
        %v4076 = vadd.f32 %v4037, %v4051
        %v4077 = vadd.f32 %v4038, %v4051
        %v4078 = vadd.f32 %v4039, %v4051
        %v4079 = vadd.f32 %v4040, %v4051
        %v4080 = vadd.f32 %v4041, %v4051
        %v4081 = vadd.f32 %v4042, %v4051
        %v4082 = vadd.f32 %v4043, %v4051
        %v4083 = vadd.f32 %v4044, %v4051
        %v4084 = vadd.f32 %v4045, %v4051
        %v4085 = vld [vmem:[%s416 + $0x1] sm:$0xff]
        %v4086 = vld [vmem:[%s416 + $0x9] sm:$0xff]
        %v4087 = vld [vmem:[%s416 + $0x19] sm:$0xff]
        %v4088 = vld [vmem:[%s416 + $0x21] sm:$0xff]
        %v4089 = vld [vmem:[%s416 + $0x31] sm:$0xff]
        %v4090 = vld [vmem:[%s416 + $0x39] sm:$0xff]
        %v4091 = vld [vmem:[%s416 + $0x49] sm:$0xff]
        %v4092 = vld [vmem:[%s416 + $0x51] sm:$0xff]
        %v4093 = vld [vmem:[%s416 + $0x61] sm:$0xff]
        %v4094 = vld [vmem:[%s416 + $0x69] sm:$0xff]
        %v4095 = vld [vmem:[%s416 + $0x79] sm:$0xff]
        %v4096 = vld [vmem:[%s416 + $0x81] sm:$0xff]
        %v4097 = vld [vmem:[%s416 + $0x91] sm:$0xff]
        %v4098 = vld [vmem:[%s416 + $0x99] sm:$0xff]
        %v4099 = vld [vmem:[%s416 + $0xa9] sm:$0xff]
        %v4100 = vld [vmem:[%s416 + $0xb1] sm:$0xff]
        %v4101 = vld [vmem:[%s416 + $0xc1] sm:$0xff]
        %v4102 = vld [vmem:[%s416 + $0xc9] sm:$0xff]
        %v4103 = vld [vmem:[%s416 + $0xd9] sm:$0xff]
        %v4104 = vld [vmem:[%s416 + $0xe1] sm:$0xff]
        %v4105 = vld [vmem:[%s416 + $0xf1] sm:$0xff]
        %v4106 = vld [vmem:[%s416 + $0xf9] sm:$0xff]
        %v4107 = vld [vmem:[%s416 + $0x109] sm:$0xff]
        %v4108 = vld [vmem:[%s416 + $0x111] sm:$0xff]
        %v4109 = vld [vmem:[%s416 + $0x121] sm:$0xff]
        %v4110 = vld [vmem:[%s416 + $0x129] sm:$0xff]
        %v4111 = vld [vmem:[%s416 + $0x139] sm:$0xff]
        %v4112 = vld [vmem:[%s416 + $0x141] sm:$0xff]
        %v4113 = vld [vmem:[%s416 + $0x151] sm:$0xff]
        %v4114 = vld [vmem:[%s416 + $0x159] sm:$0xff]
        %v4115 = vld [vmem:[%s416 + $0x169] sm:$0xff]
        %v4116 = vld [vmem:[%s416 + $0x171] sm:$0xff]
        %v4117 = vadd.f32 %v4053, %v4085
        %v4118 = vadd.f32 %v4054, %v4086
        %v4119 = vadd.f32 %v4055, %v4087
        %v4120 = vadd.f32 %v4056, %v4088
        %v4121 = vadd.f32 %v4057, %v4089
        %v4122 = vadd.f32 %v4058, %v4090
        %v4123 = vadd.f32 %v4059, %v4091
        %v4124 = vadd.f32 %v4060, %v4092
        %v4125 = vadd.f32 %v4061, %v4093
        %v4126 = vadd.f32 %v4062, %v4094
        %v4127 = vadd.f32 %v4063, %v4095
        %v4128 = vadd.f32 %v4064, %v4096
        %v4129 = vadd.f32 %v4065, %v4097
        %v4130 = vadd.f32 %v4066, %v4098
        %v4131 = vadd.f32 %v4067, %v4099
        %v4132 = vadd.f32 %v4068, %v4100
        %v4133 = vadd.f32 %v4069, %v4101
        %v4134 = vadd.f32 %v4070, %v4102
        %v4135 = vadd.f32 %v4071, %v4103
        %v4136 = vadd.f32 %v4072, %v4104
        %v4137 = vadd.f32 %v4073, %v4105
        %v4138 = vadd.f32 %v4074, %v4106
        %v4139 = vadd.f32 %v4075, %v4107
        %v4140 = vadd.f32 %v4076, %v4108
        %v4141 = vadd.f32 %v4077, %v4109
        %v4142 = vadd.f32 %v4078, %v4110
        %v4143 = vadd.f32 %v4079, %v4111
        %v4144 = vadd.f32 %v4080, %v4112
        %v4145 = vadd.f32 %v4081, %v4113
        %v4146 = vadd.f32 %v4082, %v4114
        %v4147 = vadd.f32 %v4083, %v4115
        %v4148 = vadd.f32 %v4084, %v4116
        %v4149 = vmax.f32 %v4117, 0.0
        %v4150 = vmax.f32 %v4118, 0.0
        %v4151 = vmax.f32 %v4119, 0.0
        %v4152 = vmax.f32 %v4120, 0.0
        %v4153 = vmax.f32 %v4121, 0.0
        %v4154 = vmax.f32 %v4122, 0.0
        %v4155 = vmax.f32 %v4123, 0.0
        %v4156 = vmax.f32 %v4124, 0.0
        %v4157 = vmax.f32 %v4125, 0.0
        %v4158 = vmax.f32 %v4126, 0.0
        %v4159 = vmax.f32 %v4127, 0.0
        %v4160 = vmax.f32 %v4128, 0.0
        %v4161 = vmax.f32 %v4129, 0.0
        %v4162 = vmax.f32 %v4130, 0.0
        %v4163 = vmax.f32 %v4131, 0.0
        %v4164 = vmax.f32 %v4132, 0.0
        %v4165 = vmax.f32 %v4133, 0.0
        %v4166 = vmax.f32 %v4134, 0.0
        %v4167 = vmax.f32 %v4135, 0.0
        %v4168 = vmax.f32 %v4136, 0.0
        %v4169 = vmax.f32 %v4137, 0.0
        %v4170 = vmax.f32 %v4138, 0.0
        %v4171 = vmax.f32 %v4139, 0.0
        %v4172 = vmax.f32 %v4140, 0.0
        %v4173 = vmax.f32 %v4141, 0.0
        %v4174 = vmax.f32 %v4142, 0.0
        %v4175 = vmax.f32 %v4143, 0.0
        %v4176 = vmax.f32 %v4144, 0.0
        %v4177 = vmax.f32 %v4145, 0.0
        %v4178 = vmax.f32 %v4146, 0.0
        %v4179 = vmax.f32 %v4147, 0.0
        %v4180 = vmax.f32 %v4148, 0.0
        %4181 = vst [vmem:[%s271] sm:$0xff] %v4149
        %4182 = vst [vmem:[%s271 + $0x8] sm:$0xff] %v4150
        %4183 = vst [vmem:[%s271 + $0x10] sm:$0xff] %v4151
        %4184 = vst [vmem:[%s271 + $0x18] sm:$0xff] %v4152
        %4185 = vst [vmem:[%s271 + $0x20] sm:$0xff] %v4153
        %4186 = vst [vmem:[%s271 + $0x28] sm:$0xff] %v4154
        %4187 = vst [vmem:[%s271 + $0x30] sm:$0xff] %v4155
        %4188 = vst [vmem:[%s271 + $0x38] sm:$0xff] %v4156
        %4189 = vst [vmem:[%s271 + $0x40] sm:$0xff] %v4157
        %4190 = vst [vmem:[%s271 + $0x48] sm:$0xff] %v4158
        %4191 = vst [vmem:[%s271 + $0x50] sm:$0xff] %v4159
        %4192 = vst [vmem:[%s271 + $0x58] sm:$0xff] %v4160
        %4193 = vst [vmem:[%s271 + $0x60] sm:$0xff] %v4161
        %4194 = vst [vmem:[%s271 + $0x68] sm:$0xff] %v4162
        %4195 = vst [vmem:[%s271 + $0x70] sm:$0xff] %v4163
        %4196 = vst [vmem:[%s271 + $0x78] sm:$0xff] %v4164
        %4197 = vst [vmem:[%s271 + $0x80] sm:$0xff] %v4165
        %4198 = vst [vmem:[%s271 + $0x88] sm:$0xff] %v4166
        %4199 = vst [vmem:[%s271 + $0x90] sm:$0xff] %v4167
        %4200 = vst [vmem:[%s271 + $0x98] sm:$0xff] %v4168
        %4201 = vst [vmem:[%s271 + $0xa0] sm:$0xff] %v4169
        %4202 = vst [vmem:[%s271 + $0xa8] sm:$0xff] %v4170
        %4203 = vst [vmem:[%s271 + $0xb0] sm:$0xff] %v4171
        %4204 = vst [vmem:[%s271 + $0xb8] sm:$0xff] %v4172
        %4205 = vst [vmem:[%s271 + $0xc0] sm:$0xff] %v4173
        %4206 = vst [vmem:[%s271 + $0xc8] sm:$0xff] %v4174
        %4207 = vst [vmem:[%s271 + $0xd0] sm:$0xff] %v4175
        %4208 = vst [vmem:[%s271 + $0xd8] sm:$0xff] %v4176
        %4209 = vst [vmem:[%s271 + $0xe0] sm:$0xff] %v4177
        %4210 = vst [vmem:[%s271 + $0xe8] sm:$0xff] %v4178
        %4211 = vst [vmem:[%s271 + $0xf0] sm:$0xff] %v4179
        %4212 = vst [vmem:[%s271 + $0xf8] sm:$0xff] %v4180
        %s4213 = sand.u32 %s141, 1
        %s4214 = scalar_lea.sflag [#allocation5], %s4213
        %s4215 = sand.u32 %s141, 1
        %s4216 = smul.addr %s4215, 256
        %s4217 = scalar_lea.vmem [#allocation9], %s4216
        // Predicated region
        $region53: #{tpu_custom_call.1} parent=39 // pred_check
          %p4218 = pneg %p151
        $region54: #{tpu_custom_call.1} parent=39 // pred_check_branch
          %4220 = sbr.rel (%p4218) target = $region56
        $region55: #{tpu_custom_call.1} parent=39 // pred_region
          %s4222 = ssub.s32 4096, 4096
          %4223 = vsyncadd %s4214, %s4222
          %s4224 = smul.addr %s23, 32
          %s4225 = smul.addr %s4224, 128
          %s4226 = scalar_lea.hbm %s5, %s4225
          %s4227 = sshll.u32 %s4217, 4
          %s4228 = int_to_ptr.vmem [resolvable:$true] %s4227
          %4233 = dma.vmem_to_hbm [thread:$0]  %s4228, 4096, %s4226, %s4214, 128, 128, 8
        $region56: #{tpu_custom_call.1} parent=39 // pred_fallthru
          _
      $region40: #{tpu_custom_call.1} parent=5 // pred_fallthru
        _
      %p4234 = scmp.le.s32.totalorder 2, %s18
      // Predicated region
      $region57: #{tpu_custom_call.1} parent=5 // pred_check
        %p4235 = pneg %p4234
      $region58: #{tpu_custom_call.1} parent=5 // pred_check_branch
        %4237 = sbr.rel (%p4235) target = $region60
      $region59: #{tpu_custom_call.1} parent=5 // pred_region
        %s4238 = ssub.s32 %s18, 2
        // Predicated region
        $region61: #{tpu_custom_call.1} parent=59 // pred_check
          %p4239 = pneg %p157
        $region62: #{tpu_custom_call.1} parent=59 // pred_check_branch
          %4241 = sbr.rel (%p4239) target = $region64
        $region63: #{tpu_custom_call.1} parent=59 // pred_region
          %s4242 = sand.u32 %s142, 1
          %s4243 = scalar_lea.sflag [#allocation5], %s4242
          %s4244 = sand.u32 %s142, 1
          %s4245 = smul.addr %s4244, 256
          %s4246 = scalar_lea.vmem [#allocation9], %s4245
          %4247 = dma.done %s4243, 4096
        $region64: #{tpu_custom_call.1} parent=59 // pred_fallthru
          _
      $region60: #{tpu_custom_call.1} parent=5 // pred_fallthru
        _
    $region6: #{tpu_custom_call.1} parent=1 // loop_footer
      %s22 = sadd.s32 1, %s18
    $region7: #{tpu_custom_call.1} parent=1 // loop_footer_branch
      %17 = sbr.rel target = $region3
    $region8: #{tpu_custom_call.1} parent=1 // loop_exit
      _
    %4248 = vsyncpa [#allocation4], 1
    %s4249 = scalar_lea.sflag [#allocation4], 1
    %4250 = vsyncpa %s4249, 1
    %4251 = vsyncpa [#allocation7], 1
    %4252 = vsyncpa [#allocation5], 1
    %s4253 = scalar_lea.sflag [#allocation5], 1
    %4254 = vsyncpa %s4253, 1

// kernel: tpu_custom_call.1
$region0: #{tpu_custom_call.1}
  #allocation0 [shape = 'u32[]', space=smem, size = 0x4, offset = 0x4, fixed_abs, tag = 'smem constant byte address 0x4 - core index']
  #allocation1 [shape = 'u32[144,128]{1,0:T(1,128)}', space=vmem, size = 0x12000, scoped, tag = 'internal scratch']
  #allocation2 [shape = 'f32[18,24,128]{2,1,0:T(8,128)}', space=vmem, size = 0x36000, scoped, tag = 'scratch operand']
  %s0 = inlined_call_operand.hbm [shape: f32[2,18,24,128], index: 0, kind: input, shape index: {}]
  %s1 = inlined_call_operand.hbm [shape: f32[1152,128], index: 1, kind: input, shape index: {}]
  %s2 = inlined_call_operand.vmem [shape: f32[1,128], index: 2, kind: input, shape index: {}]
  %s3 = inlined_call_operand.hbm [shape: f32[1152,128], index: 3, kind: input, shape index: {}]
  %s4 = inlined_call_operand.vmem [shape: f32[1,128], index: 4, kind: input, shape index: {}]
  %s5 = inlined_call_operand.hbm [shape: f32[2,16,16,128], index: 5, kind: output, shape index: {}]
  %s6 = sld [smem:[#allocation0]]
  $region65: #{tpu_custom_call.1} parent=0
    _
  %s8 = ssub.s32 1, %s6
  %s9 = scalar_select 0, %s8, %s6
  $region1: #{tpu_custom_call.1} parent=0
    #allocation3 [shape = 'u8[442368]{0}', space=vmem, size = 0x6c000, scoped, tag = 'input window, operand 0']
    #allocation4 [shape = 's32[2]{0}', space=sflag, size = 0x8, scoped, tag = 'scoped memory for tpu_custom_call.1']
    #allocation5 [shape = 's32[2]{0}', space=sflag, size = 0x8, scoped, tag = 'scoped memory for tpu_custom_call.1']
    #allocation6 [shape = 'u8[589824]{0}', space=vmem, size = 0x90000, scoped, tag = 'input window, operand 1, single buffered']
    #allocation7 [shape = 's32[1]{0}', space=sflag, size = 0x4, scoped, tag = 'scoped memory for tpu_custom_call.1']
    #allocation8 [shape = 'u8[589824]{0}', space=vmem, size = 0x90000, scoped, tag = 'input window, operand 3, single buffered']
    #allocation9 [shape = 'u8[262144]{0}', space=vmem, size = 0x40000, scoped, tag = 'output window, operand 0']
    %10 = vsyncpa [#allocation4], 0
    %s11 = scalar_lea.sflag [#allocation4], 1
    %12 = vsyncpa %s11, 0
    %13 = vsyncpa [#allocation7], 0
    %14 = vsyncpa [#allocation5], 0
    %s15 = scalar_lea.sflag [#allocation5], 1
    %16 = vsyncpa %s15, 0
    loop: start=0, step=1, limit=4
    $region2: #{tpu_custom_call.1} parent=1 // loop_pre_header
      _
    $region3: #{tpu_custom_call.1} parent=1 // loop_header
      %s18 = sphi 0, %s22
      %p19 = scmp.ge.s32.totalorder %s18, 4
      %s28 = sphi 0, %s30
      %s31 = sphi 0, %s28
      %s32 = sphi 0, %s31
      %s48 = sphi 0, %s32
      %s52 = sphi 0, %s52
      %s54 = sphi 0, %s52
      %s55 = sphi 0, %s54
      %s69 = sphi 0, %s55
      %s73 = sphi 0, %s73
      %s75 = sphi 0, %s73
      %s76 = sphi 0, %s75
      %s90 = sphi 0, %s76
      %s94 = sphi 0, %s94
      %s96 = sphi 0, %s94
      %s97 = sphi 0, %s96
      %s111 = sphi 0, %s97
      %s115 = sphi 0, %s115
      %s117 = sphi 0, %s115
      %s118 = sphi 0, %s117
      %s132 = sphi 0, %s118
      %s138 = sphi 0, %s140
      %s141 = sphi 0, %s138
      %s142 = sphi 0, %s141
      %s158 = sphi 0, %s142
    $region4: #{tpu_custom_call.1} parent=1 // loop_header_branch
      %21 = sbr.rel (%p19) target = $region8
    $region5: #{tpu_custom_call.1} parent=1 // loop_body
      %s23 = ssub.s32 %s18, 1
      %s24 = ssub.s32 %s18, 2
      %s25 = sadd.s32 %s18, 1
      %s26 = ssub.s32 %s18, %s25
      %p27 = scmp.eq.s32.totalorder %s26, 0
      %s29 = sadd.s32 %s28, 1
      %s30 = scalar_select %p27, %s28, %s29
      %p33 = pneg %p27
      %p34 = scmp.eq.s32.totalorder %s18, 1
      %p35 = por %p33, %p34
      %p36 = scmp.ne.s32.totalorder %s28, %s31
      %p37 = scmp.eq.s32.totalorder %s18, 0
      %p38 = por %p36, %p37
      %p39 = scmp.ne.s32.totalorder %s28, %s31
      %p40 = scmp.eq.s32.totalorder %s23, 1
      %p41 = por %p39, %p40
      %p42 = scmp.ne.s32.totalorder %s31, %s32
      %p43 = scmp.eq.s32.totalorder %s23, 0
      %p44 = por %p42, %p43
      %p45 = scmp.ne.s32.totalorder %s31, %s32
      %p46 = scmp.eq.s32.totalorder %s24, 1
      %p47 = por %p45, %p46
      %p49 = scmp.ne.s32.totalorder %s32, %s48
      %p50 = scmp.eq.s32.totalorder %s24, 0
      %p51 = por %p49, %p50
      %s53 = sadd.s32 %s52, 1
      %p56 = scmp.eq.s32.totalorder %s18, 1
      %p57 = scmp.ne.s32.totalorder %s52, %s54
      %p58 = scmp.eq.s32.totalorder %s18, 0
      %p59 = por %p57, %p58
      %p60 = scmp.ne.s32.totalorder %s52, %s54
      %p61 = scmp.eq.s32.totalorder %s23, 1
      %p62 = por %p60, %p61
      %p63 = scmp.ne.s32.totalorder %s54, %s55
      %p64 = scmp.eq.s32.totalorder %s23, 0
      %p65 = por %p63, %p64
      %p66 = scmp.ne.s32.totalorder %s54, %s55
      %p67 = scmp.eq.s32.totalorder %s24, 1
      %p68 = por %p66, %p67
      %p70 = scmp.ne.s32.totalorder %s55, %s69
      %p71 = scmp.eq.s32.totalorder %s24, 0
      %p72 = por %p70, %p71
      %s74 = sadd.s32 %s73, 1
      %p77 = scmp.eq.s32.totalorder %s18, 1
      %p78 = scmp.ne.s32.totalorder %s73, %s75
      %p79 = scmp.eq.s32.totalorder %s18, 0
      %p80 = por %p78, %p79
      %p81 = scmp.ne.s32.totalorder %s73, %s75
      %p82 = scmp.eq.s32.totalorder %s23, 1
      %p83 = por %p81, %p82
      %p84 = scmp.ne.s32.totalorder %s75, %s76
      %p85 = scmp.eq.s32.totalorder %s23, 0
      %p86 = por %p84, %p85
      %p87 = scmp.ne.s32.totalorder %s75, %s76
      %p88 = scmp.eq.s32.totalorder %s24, 1
      %p89 = por %p87, %p88
      %p91 = scmp.ne.s32.totalorder %s76, %s90
      %p92 = scmp.eq.s32.totalorder %s24, 0
      %p93 = por %p91, %p92
      %s95 = sadd.s32 %s94, 1
      %p98 = scmp.eq.s32.totalorder %s18, 1
      %p99 = scmp.ne.s32.totalorder %s94, %s96
      %p100 = scmp.eq.s32.totalorder %s18, 0
      %p101 = por %p99, %p100
      %p102 = scmp.ne.s32.totalorder %s94, %s96
      %p103 = scmp.eq.s32.totalorder %s23, 1
      %p104 = por %p102, %p103
      %p105 = scmp.ne.s32.totalorder %s96, %s97
      %p106 = scmp.eq.s32.totalorder %s23, 0
      %p107 = por %p105, %p106
      %p108 = scmp.ne.s32.totalorder %s96, %s97
      %p109 = scmp.eq.s32.totalorder %s24, 1
      %p110 = por %p108, %p109
      %p112 = scmp.ne.s32.totalorder %s97, %s111
      %p113 = scmp.eq.s32.totalorder %s24, 0
      %p114 = por %p112, %p113
      %s116 = sadd.s32 %s115, 1
      %p119 = scmp.eq.s32.totalorder %s18, 1
      %p120 = scmp.ne.s32.totalorder %s115, %s117
      %p121 = scmp.eq.s32.totalorder %s18, 0
      %p122 = por %p120, %p121
      %p123 = scmp.ne.s32.totalorder %s115, %s117
      %p124 = scmp.eq.s32.totalorder %s23, 1
      %p125 = por %p123, %p124
      %p126 = scmp.ne.s32.totalorder %s117, %s118
      %p127 = scmp.eq.s32.totalorder %s23, 0
      %p128 = por %p126, %p127
      %p129 = scmp.ne.s32.totalorder %s117, %s118
      %p130 = scmp.eq.s32.totalorder %s24, 1
      %p131 = por %p129, %p130
      %p133 = scmp.ne.s32.totalorder %s118, %s132
      %p134 = scmp.eq.s32.totalorder %s24, 0
      %p135 = por %p133, %p134
      %s136 = ssub.s32 %s18, %s25
      %p137 = scmp.eq.s32.totalorder %s136, 0
      %s139 = sadd.s32 %s138, 1
      %s140 = scalar_select %p137, %s138, %s139
      %p143 = pneg %p137
      %p144 = scmp.eq.s32.totalorder %s18, 1
      %p145 = por %p143, %p144
      %p146 = scmp.ne.s32.totalorder %s138, %s141
      %p147 = scmp.eq.s32.totalorder %s18, 0
      %p148 = por %p146, %p147
      %p149 = scmp.ne.s32.totalorder %s138, %s141
      %p150 = scmp.eq.s32.totalorder %s23, 1
      %p151 = por %p149, %p150
      %p152 = scmp.ne.s32.totalorder %s141, %s142
      %p153 = scmp.eq.s32.totalorder %s23, 0
      %p154 = por %p152, %p153
      %p155 = scmp.ne.s32.totalorder %s141, %s142
      %p156 = scmp.eq.s32.totalorder %s24, 1
      %p157 = por %p155, %p156
      %p159 = scmp.ne.s32.totalorder %s142, %s158
      %p160 = scmp.eq.s32.totalorder %s24, 0
      %p161 = por %p159, %p160
      %p162 = scmp.le.s32.totalorder 1, %s18
      %p163 = scmp.lt.s32.totalorder %s18, 3
      %p164 = pnand %p162, %p163
      %p165 = pneg %p164
      // Predicated region
      $region9: #{tpu_custom_call.1} parent=5 // pred_check
        _
      $region10: #{tpu_custom_call.1} parent=5 // pred_check_branch
        %167 = sbr.rel (%p164) target = $region12
      $region11: #{tpu_custom_call.1} parent=5 // pred_region
        %s168 = ssub.s32 %s18, 1
        // Predicated region
        $region13: #{tpu_custom_call.1} parent=11 // pred_check
          %p169 = pneg %p65
        $region14: #{tpu_custom_call.1} parent=11 // pred_check_branch
          %171 = sbr.rel (%p169) target = $region16
        $region15: #{tpu_custom_call.1} parent=11 // pred_region
          %s173 = ssub.s32 18432, 18432
          %174 = vsyncadd [#allocation7], %s173
          %s175 = sshll.u32 [#allocation6], 4
          %s176 = int_to_ptr.vmem [resolvable:$true] %s175
          %181 = dma.hbm_to_vmem [thread:$0]  %s1, 18432, %s176, [#allocation7], 128, 128, 8
        $region16: #{tpu_custom_call.1} parent=11 // pred_fallthru
          _
        // Predicated region
        $region17: #{tpu_custom_call.1} parent=11 // pred_check
          %p182 = pneg %p86
        $region18: #{tpu_custom_call.1} parent=11 // pred_check_branch
          %184 = sbr.rel (%p182) target = $region20
        $region19: #{tpu_custom_call.1} parent=11 // pred_region
          _
        $region20: #{tpu_custom_call.1} parent=11 // pred_fallthru
          _
        // Predicated region
        $region21: #{tpu_custom_call.1} parent=11 // pred_check
          %p185 = pneg %p107
        $region22: #{tpu_custom_call.1} parent=11 // pred_check_branch
          %187 = sbr.rel (%p185) target = $region24
        $region23: #{tpu_custom_call.1} parent=11 // pred_region
          %s189 = ssub.s32 18432, 18432
          %190 = vsyncadd [#allocation7], %s189
          %s191 = sshll.u32 [#allocation8], 4
          %s192 = int_to_ptr.vmem [resolvable:$true] %s191
          %197 = dma.hbm_to_vmem [thread:$0]  %s3, 18432, %s192, [#allocation7], 128, 128, 8
        $region24: #{tpu_custom_call.1} parent=11 // pred_fallthru
          _
        // Predicated region
        $region25: #{tpu_custom_call.1} parent=11 // pred_check
          %p198 = pneg %p128
        $region26: #{tpu_custom_call.1} parent=11 // pred_check_branch
          %200 = sbr.rel (%p198) target = $region28
        $region27: #{tpu_custom_call.1} parent=11 // pred_region
          _
        $region28: #{tpu_custom_call.1} parent=11 // pred_fallthru
          _
      $region12: #{tpu_custom_call.1} parent=5 // pred_fallthru
        _
      %p201 = scmp.lt.s32.totalorder %s18, 2
      // Predicated region
      $region29: #{tpu_custom_call.1} parent=5 // pred_check
        %p202 = pneg %p201
      $region30: #{tpu_custom_call.1} parent=5 // pred_check_branch
        %204 = sbr.rel (%p202) target = $region32
      $region31: #{tpu_custom_call.1} parent=5 // pred_region
        // Predicated region
        $region33: #{tpu_custom_call.1} parent=31 // pred_check
          %p205 = pneg %p38
        $region34: #{tpu_custom_call.1} parent=31 // pred_check_branch
          %207 = sbr.rel (%p205) target = $region36
        $region35: #{tpu_custom_call.1} parent=31 // pred_region
          %s208 = sand.u32 %s28, 1
          %s209 = scalar_lea.sflag [#allocation4], %s208
          %s210 = sand.u32 %s28, 1
          %s211 = smul.addr %s210, 432
          %s212 = scalar_lea.vmem [#allocation3], %s211
          %s214 = ssub.s32 6912, 6912
          %215 = vsyncadd %s209, %s214
          %s216 = smul.addr %s18, 54
          %s217 = smul.addr %s216, 128
          %s218 = scalar_lea.hbm %s0, %s217
          %s219 = sshll.u32 %s212, 4
          %s220 = int_to_ptr.vmem [resolvable:$true] %s219
          %225 = dma.hbm_to_vmem [thread:$0]  %s218, 6912, %s220, %s209, 128, 128, 8
        $region36: #{tpu_custom_call.1} parent=31 // pred_fallthru
          _
      $region32: #{tpu_custom_call.1} parent=5 // pred_fallthru
        _
      %p226 = scmp.le.s32.totalorder 1, %s18
      %p227 = scmp.lt.s32.totalorder %s18, 3
      %p228 = pnand %p226, %p227
      %p229 = pneg %p228
      // Predicated region
      $region37: #{tpu_custom_call.1} parent=5 // pred_check
        _
      $region38: #{tpu_custom_call.1} parent=5 // pred_check_branch
        %231 = sbr.rel (%p228) target = $region40
      $region39: #{tpu_custom_call.1} parent=5 // pred_region
        %s232 = ssub.s32 %s18, 1
        %s233 = sand.u32 %s31, 1
        %s234 = scalar_lea.sflag [#allocation4], %s233
        %s235 = sand.u32 %s31, 1
        %s236 = smul.addr %s235, 432
        %s237 = scalar_lea.vmem [#allocation3], %s236
        // Predicated region
        $region41: #{tpu_custom_call.1} parent=39 // pred_check
          %p238 = pneg %p44
        $region42: #{tpu_custom_call.1} parent=39 // pred_check_branch
          %240 = sbr.rel (%p238) target = $region44
        $region43: #{tpu_custom_call.1} parent=39 // pred_region
          %241 = dma.done %s234, 6912
        $region44: #{tpu_custom_call.1} parent=39 // pred_fallthru
          _
        // Predicated region
        $region45: #{tpu_custom_call.1} parent=39 // pred_check
          %p242 = pneg %p65
        $region46: #{tpu_custom_call.1} parent=39 // pred_check_branch
          %244 = sbr.rel (%p242) target = $region48
        $region47: #{tpu_custom_call.1} parent=39 // pred_region
          %245 = dma.done [#allocation7], 18432
        $region48: #{tpu_custom_call.1} parent=39 // pred_fallthru
          _
        // Predicated region
        $region49: #{tpu_custom_call.1} parent=39 // pred_check
          %p246 = pneg %p107
        $region50: #{tpu_custom_call.1} parent=39 // pred_check_branch
          %248 = sbr.rel (%p246) target = $region52
        $region51: #{tpu_custom_call.1} parent=39 // pred_region
          %249 = dma.done [#allocation7], 18432
        $region52: #{tpu_custom_call.1} parent=39 // pred_fallthru
          _
        %s250 = sand.u32 %s31, 1
        %s251 = scalar_lea.sflag [#allocation4], %s250
        %s252 = sand.u32 %s31, 1
        %s253 = smul.addr %s252, 432
        %s254 = scalar_lea.vmem [#allocation3], %s253
        %p255 = pneg %p44
        %p256 = pneg %p41
        %p257 = pneg %p65
        %p258 = pneg %p62
        %p259 = pneg %p86
        %p260 = pneg %p83
        %p261 = pneg %p107
        %p262 = pneg %p104
        %p263 = pneg %p128
        %p264 = pneg %p125
        %p265 = pneg %p154
        %p266 = pneg %p151
        %s267 = sand.u32 %s141, 1
        %s268 = scalar_lea.sflag [#allocation5], %s267
        %s269 = sand.u32 %s141, 1
        %s270 = smul.addr %s269, 256
        %s271 = scalar_lea.vmem [#allocation9], %s270
        %v272 = vld [vmem:[%s237] sm:$0xff]
        %v273 = vld [vmem:[%s237 + $0x8] sm:$0xff]
        %v274 = vld [vmem:[%s237 + $0x18] sm:$0xff]
        %v275 = vld [vmem:[%s237 + $0x20] sm:$0xff]
        %v276 = vld [vmem:[%s237 + $0x30] sm:$0xff]
        %v277 = vld [vmem:[%s237 + $0x38] sm:$0xff]
        %v278 = vld [vmem:[%s237 + $0x48] sm:$0xff]
        %v279 = vld [vmem:[%s237 + $0x50] sm:$0xff]
        %v280 = vld [vmem:[%s237 + $0x60] sm:$0xff]
        %v281 = vld [vmem:[%s237 + $0x68] sm:$0xff]
        %v282 = vld [vmem:[%s237 + $0x78] sm:$0xff]
        %v283 = vld [vmem:[%s237 + $0x80] sm:$0xff]
        %v284 = vld [vmem:[%s237 + $0x90] sm:$0xff]
        %v285 = vld [vmem:[%s237 + $0x98] sm:$0xff]
        %v286 = vld [vmem:[%s237 + $0xa8] sm:$0xff]
        %v287 = vld [vmem:[%s237 + $0xb0] sm:$0xff]
        %v288 = vld [vmem:[%s237 + $0xc0] sm:$0xff]
        %v289 = vld [vmem:[%s237 + $0xc8] sm:$0xff]
        %v290 = vld [vmem:[%s237 + $0xd8] sm:$0xff]
        %v291 = vld [vmem:[%s237 + $0xe0] sm:$0xff]
        %v292 = vld [vmem:[%s237 + $0xf0] sm:$0xff]
        %v293 = vld [vmem:[%s237 + $0xf8] sm:$0xff]
        %v294 = vld [vmem:[%s237 + $0x108] sm:$0xff]
        %v295 = vld [vmem:[%s237 + $0x110] sm:$0xff]
        %v296 = vld [vmem:[%s237 + $0x120] sm:$0xff]
        %v297 = vld [vmem:[%s237 + $0x128] sm:$0xff]
        %v298 = vld [vmem:[%s237 + $0x138] sm:$0xff]
        %v299 = vld [vmem:[%s237 + $0x140] sm:$0xff]
        %v300 = vld [vmem:[%s237 + $0x150] sm:$0xff]
        %v301 = vld [vmem:[%s237 + $0x158] sm:$0xff]
        %v302 = vld [vmem:[%s237 + $0x168] sm:$0xff]
        %v303 = vld [vmem:[%s237 + $0x170] sm:$0xff]
        %v304 = vld [vmem:[%s237 + $0x1] sm:$0xff]
        %v305 = vld [vmem:[%s237 + $0x9] sm:$0xff]
        %v306 = vld [vmem:[%s237 + $0x19] sm:$0xff]
        %v307 = vld [vmem:[%s237 + $0x21] sm:$0xff]
        %v308 = vld [vmem:[%s237 + $0x31] sm:$0xff]
        %v309 = vld [vmem:[%s237 + $0x39] sm:$0xff]
        %v310 = vld [vmem:[%s237 + $0x49] sm:$0xff]
        %v311 = vld [vmem:[%s237 + $0x51] sm:$0xff]
        %v312 = vld [vmem:[%s237 + $0x61] sm:$0xff]
        %v313 = vld [vmem:[%s237 + $0x69] sm:$0xff]
        %v314 = vld [vmem:[%s237 + $0x79] sm:$0xff]
        %v315 = vld [vmem:[%s237 + $0x81] sm:$0xff]
        %v316 = vld [vmem:[%s237 + $0x91] sm:$0xff]
        %v317 = vld [vmem:[%s237 + $0x99] sm:$0xff]
        %v318 = vld [vmem:[%s237 + $0xa9] sm:$0xff]
        %v319 = vld [vmem:[%s237 + $0xb1] sm:$0xff]
        %v320 = vld [vmem:[%s237 + $0xc1] sm:$0xff]
        %v321 = vld [vmem:[%s237 + $0xc9] sm:$0xff]
        %v322 = vld [vmem:[%s237 + $0xd9] sm:$0xff]
        %v323 = vld [vmem:[%s237 + $0xe1] sm:$0xff]
        %v324 = vld [vmem:[%s237 + $0xf1] sm:$0xff]
        %v325 = vld [vmem:[%s237 + $0xf9] sm:$0xff]
        %v326 = vld [vmem:[%s237 + $0x109] sm:$0xff]
        %v327 = vld [vmem:[%s237 + $0x111] sm:$0xff]
        %v328 = vld [vmem:[%s237 + $0x121] sm:$0xff]
        %v329 = vld [vmem:[%s237 + $0x129] sm:$0xff]
        %v330 = vld [vmem:[%s237 + $0x139] sm:$0xff]
        %v331 = vld [vmem:[%s237 + $0x141] sm:$0xff]
        %v332 = vld [vmem:[%s237 + $0x151] sm:$0xff]
        %v333 = vld [vmem:[%s237 + $0x159] sm:$0xff]
        %v334 = vld [vmem:[%s237 + $0x169] sm:$0xff]
        %v335 = vld [vmem:[%s237 + $0x171] sm:$0xff]
        %v336 = vld [vmem:[%s237 + $0x2] sm:$0xff]
        %v337 = vld [vmem:[%s237 + $0xa] sm:$0xff]
        %v338 = vld [vmem:[%s237 + $0x1a] sm:$0xff]
        %v339 = vld [vmem:[%s237 + $0x22] sm:$0xff]
        %v340 = vld [vmem:[%s237 + $0x32] sm:$0xff]
        %v341 = vld [vmem:[%s237 + $0x3a] sm:$0xff]
        %v342 = vld [vmem:[%s237 + $0x4a] sm:$0xff]
        %v343 = vld [vmem:[%s237 + $0x52] sm:$0xff]
        %v344 = vld [vmem:[%s237 + $0x62] sm:$0xff]
        %v345 = vld [vmem:[%s237 + $0x6a] sm:$0xff]
        %v346 = vld [vmem:[%s237 + $0x7a] sm:$0xff]
        %v347 = vld [vmem:[%s237 + $0x82] sm:$0xff]
        %v348 = vld [vmem:[%s237 + $0x92] sm:$0xff]
        %v349 = vld [vmem:[%s237 + $0x9a] sm:$0xff]
        %v350 = vld [vmem:[%s237 + $0xaa] sm:$0xff]
        %v351 = vld [vmem:[%s237 + $0xb2] sm:$0xff]
        %v352 = vld [vmem:[%s237 + $0xc2] sm:$0xff]
        %v353 = vld [vmem:[%s237 + $0xca] sm:$0xff]
        %v354 = vld [vmem:[%s237 + $0xda] sm:$0xff]
        %v355 = vld [vmem:[%s237 + $0xe2] sm:$0xff]
        %v356 = vld [vmem:[%s237 + $0xf2] sm:$0xff]
        %v357 = vld [vmem:[%s237 + $0xfa] sm:$0xff]
        %v358 = vld [vmem:[%s237 + $0x10a] sm:$0xff]
        %v359 = vld [vmem:[%s237 + $0x112] sm:$0xff]
        %v360 = vld [vmem:[%s237 + $0x122] sm:$0xff]
        %v361 = vld [vmem:[%s237 + $0x12a] sm:$0xff]
        %v362 = vld [vmem:[%s237 + $0x13a] sm:$0xff]
        %v363 = vld [vmem:[%s237 + $0x142] sm:$0xff]
        %v364 = vld [vmem:[%s237 + $0x152] sm:$0xff]
        %v365 = vld [vmem:[%s237 + $0x15a] sm:$0xff]
        %v366 = vld [vmem:[%s237 + $0x16a] sm:$0xff]
        %v367 = vld [vmem:[%s237 + $0x172] sm:$0xff]
        %v368 = vld [vmem:[#allocation6] sm:$0xff]
        %v369 = vld [vmem:[#allocation6 + $0x8] sm:$0xff]
        %v370 = vld [vmem:[#allocation6 + $0x10] sm:$0xff]
        %v371 = vld [vmem:[#allocation6 + $0x18] sm:$0xff]
        %v372 = vld [vmem:[#allocation6 + $0x20] sm:$0xff]
        %v373 = vld [vmem:[#allocation6 + $0x28] sm:$0xff]
        %v374 = vld [vmem:[#allocation6 + $0x30] sm:$0xff]
        %v375 = vld [vmem:[#allocation6 + $0x38] sm:$0xff]
        %v376 = vld [vmem:[#allocation6 + $0x40] sm:$0xff]
        %v377 = vld [vmem:[#allocation6 + $0x48] sm:$0xff]
        %v378 = vld [vmem:[#allocation6 + $0x50] sm:$0xff]
        %v379 = vld [vmem:[#allocation6 + $0x58] sm:$0xff]
        %v380 = vld [vmem:[#allocation6 + $0x60] sm:$0xff]
        %v381 = vld [vmem:[#allocation6 + $0x68] sm:$0xff]
        %v382 = vld [vmem:[#allocation6 + $0x70] sm:$0xff]
        %v383 = vld [vmem:[#allocation6 + $0x78] sm:$0xff]
        %v384 = vld [vmem:[#allocation6 + $0x80] sm:$0xff]
        %v385 = vld [vmem:[#allocation6 + $0x88] sm:$0xff]
        %v386 = vld [vmem:[#allocation6 + $0x90] sm:$0xff]
        %v387 = vld [vmem:[#allocation6 + $0x98] sm:$0xff]
        %v388 = vld [vmem:[#allocation6 + $0xa0] sm:$0xff]
        %v389 = vld [vmem:[#allocation6 + $0xa8] sm:$0xff]
        %v390 = vld [vmem:[#allocation6 + $0xb0] sm:$0xff]
        %v391 = vld [vmem:[#allocation6 + $0xb8] sm:$0xff]
        %v392 = vld [vmem:[#allocation6 + $0xc0] sm:$0xff]
        %v393 = vld [vmem:[#allocation6 + $0xc8] sm:$0xff]
        %v394 = vld [vmem:[#allocation6 + $0xd0] sm:$0xff]
        %v395 = vld [vmem:[#allocation6 + $0xd8] sm:$0xff]
        %v396 = vld [vmem:[#allocation6 + $0xe0] sm:$0xff]
        %v397 = vld [vmem:[#allocation6 + $0xe8] sm:$0xff]
        %v398 = vld [vmem:[#allocation6 + $0xf0] sm:$0xff]
        %v399 = vld [vmem:[#allocation6 + $0xf8] sm:$0xff]
        %v400 = vld [vmem:[#allocation6 + $0x100] sm:$0xff]
        %v401 = vld [vmem:[#allocation6 + $0x108] sm:$0xff]
        %v402 = vld [vmem:[#allocation6 + $0x110] sm:$0xff]
        %v403 = vld [vmem:[#allocation6 + $0x118] sm:$0xff]
        %v404 = vld [vmem:[#allocation6 + $0x120] sm:$0xff]
        %v405 = vld [vmem:[#allocation6 + $0x128] sm:$0xff]
        %v406 = vld [vmem:[#allocation6 + $0x130] sm:$0xff]
        %v407 = vld [vmem:[#allocation6 + $0x138] sm:$0xff]
        %v408 = vld [vmem:[#allocation6 + $0x140] sm:$0xff]
        %v409 = vld [vmem:[#allocation6 + $0x148] sm:$0xff]
        %v410 = vld [vmem:[#allocation6 + $0x150] sm:$0xff]
        %v411 = vld [vmem:[#allocation6 + $0x158] sm:$0xff]
        %v412 = vld [vmem:[#allocation6 + $0x160] sm:$0xff]
        %v413 = vld [vmem:[#allocation6 + $0x168] sm:$0xff]
        %v414 = vld [vmem:[#allocation6 + $0x170] sm:$0xff]
        %v415 = vld [vmem:[#allocation6 + $0x178] sm:$0xff]
        %s416 = scalar_lea.vmem %s237, 24 [#allocation3]
        %v417 = vld [vmem:[%s416] sm:$0xff]
        %v418 = vld [vmem:[%s416 + $0x8] sm:$0xff]
        %v419 = vld [vmem:[%s416 + $0x18] sm:$0xff]
        %v420 = vld [vmem:[%s416 + $0x20] sm:$0xff]
        %v421 = vld [vmem:[%s416 + $0x30] sm:$0xff]
        %v422 = vld [vmem:[%s416 + $0x38] sm:$0xff]
        %v423 = vld [vmem:[%s416 + $0x48] sm:$0xff]
        %v424 = vld [vmem:[%s416 + $0x50] sm:$0xff]
        %v425 = vld [vmem:[%s416 + $0x60] sm:$0xff]
        %v426 = vld [vmem:[%s416 + $0x68] sm:$0xff]
        %v427 = vld [vmem:[%s416 + $0x78] sm:$0xff]
        %v428 = vld [vmem:[%s416 + $0x80] sm:$0xff]
        %v429 = vld [vmem:[%s416 + $0x90] sm:$0xff]
        %v430 = vld [vmem:[%s416 + $0x98] sm:$0xff]
        %v431 = vld [vmem:[%s416 + $0xa8] sm:$0xff]
        %v432 = vld [vmem:[%s416 + $0xb0] sm:$0xff]
        %v433 = vld [vmem:[%s416 + $0xc0] sm:$0xff]
        %v434 = vld [vmem:[%s416 + $0xc8] sm:$0xff]
        %v435 = vld [vmem:[%s416 + $0xd8] sm:$0xff]
        %v436 = vld [vmem:[%s416 + $0xe0] sm:$0xff]
        %v437 = vld [vmem:[%s416 + $0xf0] sm:$0xff]
        %v438 = vld [vmem:[%s416 + $0xf8] sm:$0xff]
        %v439 = vld [vmem:[%s416 + $0x108] sm:$0xff]
        %v440 = vld [vmem:[%s416 + $0x110] sm:$0xff]
        %v441 = vld [vmem:[%s416 + $0x120] sm:$0xff]
        %v442 = vld [vmem:[%s416 + $0x128] sm:$0xff]
        %v443 = vld [vmem:[%s416 + $0x138] sm:$0xff]
        %v444 = vld [vmem:[%s416 + $0x140] sm:$0xff]
        %v445 = vld [vmem:[%s416 + $0x150] sm:$0xff]
        %v446 = vld [vmem:[%s416 + $0x158] sm:$0xff]
        %v447 = vld [vmem:[%s416 + $0x168] sm:$0xff]
        %v448 = vld [vmem:[%s416 + $0x170] sm:$0xff]
        %v449 = vld [vmem:[%s416 + $0x1] sm:$0xff]
        %v450 = vld [vmem:[%s416 + $0x9] sm:$0xff]
        %v451 = vld [vmem:[%s416 + $0x19] sm:$0xff]
        %v452 = vld [vmem:[%s416 + $0x21] sm:$0xff]
        %v453 = vld [vmem:[%s416 + $0x31] sm:$0xff]
        %v454 = vld [vmem:[%s416 + $0x39] sm:$0xff]
        %v455 = vld [vmem:[%s416 + $0x49] sm:$0xff]
        %v456 = vld [vmem:[%s416 + $0x51] sm:$0xff]
        %v457 = vld [vmem:[%s416 + $0x61] sm:$0xff]
        %v458 = vld [vmem:[%s416 + $0x69] sm:$0xff]
        %v459 = vld [vmem:[%s416 + $0x79] sm:$0xff]
        %v460 = vld [vmem:[%s416 + $0x81] sm:$0xff]
        %v461 = vld [vmem:[%s416 + $0x91] sm:$0xff]
        %v462 = vld [vmem:[%s416 + $0x99] sm:$0xff]
        %v463 = vld [vmem:[%s416 + $0xa9] sm:$0xff]
        %v464 = vld [vmem:[%s416 + $0xb1] sm:$0xff]
        %v465 = vld [vmem:[%s416 + $0xc1] sm:$0xff]
        %v466 = vld [vmem:[%s416 + $0xc9] sm:$0xff]
        %v467 = vld [vmem:[%s416 + $0xd9] sm:$0xff]
        %v468 = vld [vmem:[%s416 + $0xe1] sm:$0xff]
        %v469 = vld [vmem:[%s416 + $0xf1] sm:$0xff]
        %v470 = vld [vmem:[%s416 + $0xf9] sm:$0xff]
        %v471 = vld [vmem:[%s416 + $0x109] sm:$0xff]
        %v472 = vld [vmem:[%s416 + $0x111] sm:$0xff]
        %v473 = vld [vmem:[%s416 + $0x121] sm:$0xff]
        %v474 = vld [vmem:[%s416 + $0x129] sm:$0xff]
        %v475 = vld [vmem:[%s416 + $0x139] sm:$0xff]
        %v476 = vld [vmem:[%s416 + $0x141] sm:$0xff]
        %v477 = vld [vmem:[%s416 + $0x151] sm:$0xff]
        %v478 = vld [vmem:[%s416 + $0x159] sm:$0xff]
        %v479 = vld [vmem:[%s416 + $0x169] sm:$0xff]
        %v480 = vld [vmem:[%s416 + $0x171] sm:$0xff]
        %v481 = vld [vmem:[%s416 + $0x2] sm:$0xff]
        %v482 = vld [vmem:[%s416 + $0xa] sm:$0xff]
        %v483 = vld [vmem:[%s416 + $0x1a] sm:$0xff]
        %v484 = vld [vmem:[%s416 + $0x22] sm:$0xff]
        %v485 = vld [vmem:[%s416 + $0x32] sm:$0xff]
        %v486 = vld [vmem:[%s416 + $0x3a] sm:$0xff]
        %v487 = vld [vmem:[%s416 + $0x4a] sm:$0xff]
        %v488 = vld [vmem:[%s416 + $0x52] sm:$0xff]
        %v489 = vld [vmem:[%s416 + $0x62] sm:$0xff]
        %v490 = vld [vmem:[%s416 + $0x6a] sm:$0xff]
        %v491 = vld [vmem:[%s416 + $0x7a] sm:$0xff]
        %v492 = vld [vmem:[%s416 + $0x82] sm:$0xff]
        %v493 = vld [vmem:[%s416 + $0x92] sm:$0xff]
        %v494 = vld [vmem:[%s416 + $0x9a] sm:$0xff]
        %v495 = vld [vmem:[%s416 + $0xaa] sm:$0xff]
        %v496 = vld [vmem:[%s416 + $0xb2] sm:$0xff]
        %v497 = vld [vmem:[%s416 + $0xc2] sm:$0xff]
        %v498 = vld [vmem:[%s416 + $0xca] sm:$0xff]
        %v499 = vld [vmem:[%s416 + $0xda] sm:$0xff]
        %v500 = vld [vmem:[%s416 + $0xe2] sm:$0xff]
        %v501 = vld [vmem:[%s416 + $0xf2] sm:$0xff]
        %v502 = vld [vmem:[%s416 + $0xfa] sm:$0xff]
        %v503 = vld [vmem:[%s416 + $0x10a] sm:$0xff]
        %v504 = vld [vmem:[%s416 + $0x112] sm:$0xff]
        %v505 = vld [vmem:[%s416 + $0x122] sm:$0xff]
        %v506 = vld [vmem:[%s416 + $0x12a] sm:$0xff]
        %v507 = vld [vmem:[%s416 + $0x13a] sm:$0xff]
        %v508 = vld [vmem:[%s416 + $0x142] sm:$0xff]
        %v509 = vld [vmem:[%s416 + $0x152] sm:$0xff]
        %v510 = vld [vmem:[%s416 + $0x15a] sm:$0xff]
        %v511 = vld [vmem:[%s416 + $0x16a] sm:$0xff]
        %v512 = vld [vmem:[%s416 + $0x172] sm:$0xff]
        %v513 = vld [vmem:[#allocation6 + $0x180] sm:$0xff]
        %v514 = vld [vmem:[#allocation6 + $0x188] sm:$0xff]
        %v515 = vld [vmem:[#allocation6 + $0x190] sm:$0xff]
        %v516 = vld [vmem:[#allocation6 + $0x198] sm:$0xff]
        %v517 = vld [vmem:[#allocation6 + $0x1a0] sm:$0xff]
        %v518 = vld [vmem:[#allocation6 + $0x1a8] sm:$0xff]
        %v519 = vld [vmem:[#allocation6 + $0x1b0] sm:$0xff]
        %v520 = vld [vmem:[#allocation6 + $0x1b8] sm:$0xff]
        %v521 = vld [vmem:[#allocation6 + $0x1c0] sm:$0xff]
        %v522 = vld [vmem:[#allocation6 + $0x1c8] sm:$0xff]
        %v523 = vld [vmem:[#allocation6 + $0x1d0] sm:$0xff]
        %v524 = vld [vmem:[#allocation6 + $0x1d8] sm:$0xff]
        %v525 = vld [vmem:[#allocation6 + $0x1e0] sm:$0xff]
        %v526 = vld [vmem:[#allocation6 + $0x1e8] sm:$0xff]
        %v527 = vld [vmem:[#allocation6 + $0x1f0] sm:$0xff]
        %v528 = vld [vmem:[#allocation6 + $0x1f8] sm:$0xff]
        %v529 = vld [vmem:[#allocation6 + $0x200] sm:$0xff]
        %v530 = vld [vmem:[#allocation6 + $0x208] sm:$0xff]
        %v531 = vld [vmem:[#allocation6 + $0x210] sm:$0xff]
        %v532 = vld [vmem:[#allocation6 + $0x218] sm:$0xff]
        %v533 = vld [vmem:[#allocation6 + $0x220] sm:$0xff]
        %v534 = vld [vmem:[#allocation6 + $0x228] sm:$0xff]
        %v535 = vld [vmem:[#allocation6 + $0x230] sm:$0xff]
        %v536 = vld [vmem:[#allocation6 + $0x238] sm:$0xff]
        %v537 = vld [vmem:[#allocation6 + $0x240] sm:$0xff]
        %v538 = vld [vmem:[#allocation6 + $0x248] sm:$0xff]
        %v539 = vld [vmem:[#allocation6 + $0x250] sm:$0xff]
        %v540 = vld [vmem:[#allocation6 + $0x258] sm:$0xff]
        %v541 = vld [vmem:[#allocation6 + $0x260] sm:$0xff]
        %v542 = vld [vmem:[#allocation6 + $0x268] sm:$0xff]
        %v543 = vld [vmem:[#allocation6 + $0x270] sm:$0xff]
        %v544 = vld [vmem:[#allocation6 + $0x278] sm:$0xff]
        %v545 = vld [vmem:[#allocation6 + $0x280] sm:$0xff]
        %v546 = vld [vmem:[#allocation6 + $0x288] sm:$0xff]
        %v547 = vld [vmem:[#allocation6 + $0x290] sm:$0xff]
        %v548 = vld [vmem:[#allocation6 + $0x298] sm:$0xff]
        %v549 = vld [vmem:[#allocation6 + $0x2a0] sm:$0xff]
        %v550 = vld [vmem:[#allocation6 + $0x2a8] sm:$0xff]
        %v551 = vld [vmem:[#allocation6 + $0x2b0] sm:$0xff]
        %v552 = vld [vmem:[#allocation6 + $0x2b8] sm:$0xff]
        %v553 = vld [vmem:[#allocation6 + $0x2c0] sm:$0xff]
        %v554 = vld [vmem:[#allocation6 + $0x2c8] sm:$0xff]
        %v555 = vld [vmem:[#allocation6 + $0x2d0] sm:$0xff]
        %v556 = vld [vmem:[#allocation6 + $0x2d8] sm:$0xff]
        %v557 = vld [vmem:[#allocation6 + $0x2e0] sm:$0xff]
        %v558 = vld [vmem:[#allocation6 + $0x2e8] sm:$0xff]
        %v559 = vld [vmem:[#allocation6 + $0x2f0] sm:$0xff]
        %v560 = vld [vmem:[#allocation6 + $0x2f8] sm:$0xff]
        %561 = vmatprep.subr.mxu0 0.0
        %562 = vmatpush1.msra.mxu0 %v513
        %563 = vmatprep.subr.mxu0 0.0
        %564 = vmatpush1.msra.mxu0 %v514
        %565 = vmatprep.subr.mxu0 0.0
        %566 = vmatpush1.msra.mxu0 %v515
        %567 = vmatprep.subr.mxu0 0.0
        %568 = vmatpush1.msra.mxu0 %v516
        %569 = vmatprep.subr.mxu0 0.0
        %570 = vmatpush1.msra.mxu0 %v517
        %571 = vmatprep.subr.mxu0 0.0
        %572 = vmatpush1.msra.mxu0 %v518
        %573 = vmatprep.subr.mxu0 0.0
        %574 = vmatpush1.msra.mxu0 %v519
        %575 = vmatprep.subr.mxu0 0.0
        %576 = vmatpush1.msra.mxu0 %v520
        %577 = vmatprep.subr.mxu0 0.0
        %578 = vmatpush1.msra.mxu0 %v521
        %579 = vmatprep.subr.mxu0 0.0
        %580 = vmatpush1.msra.mxu0 %v522
        %581 = vmatprep.subr.mxu0 0.0
        %582 = vmatpush1.msra.mxu0 %v523
        %583 = vmatprep.subr.mxu0 0.0
        %584 = vmatpush1.msra.mxu0 %v524
        %585 = vmatprep.subr.mxu0 0.0
        %586 = vmatpush1.msra.mxu0 %v525
        %587 = vmatprep.subr.mxu0 0.0
        %588 = vmatpush1.msra.mxu0 %v526
        %589 = vmatprep.subr.mxu0 0.0
        %590 = vmatpush1.msra.mxu0 %v527
        %591 = vmatprep.subr.mxu0 0.0
        %592 = vmatpush1.msra.mxu0 %v528
        %593 = vmatprep.subr.mxu0 0.0
        %594 = vmatpush1.msra.mxu0 %v529
        %595 = vmatprep.subr.mxu0 0.0
        %596 = vmatpush1.msra.mxu0 %v530
        %597 = vmatprep.subr.mxu0 0.0
        %598 = vmatpush1.msra.mxu0 %v531
        %599 = vmatprep.subr.mxu0 0.0
        %600 = vmatpush1.msra.mxu0 %v532
        %601 = vmatprep.subr.mxu0 0.0
        %602 = vmatpush1.msra.mxu0 %v533
        %603 = vmatprep.subr.mxu0 0.0
        %604 = vmatpush1.msra.mxu0 %v534
        %605 = vmatprep.subr.mxu0 0.0
        %606 = vmatpush1.msra.mxu0 %v535
        %607 = vmatprep.subr.mxu0 0.0
        %608 = vmatpush1.msra.mxu0 %v536
        %609 = vmatprep.subr.mxu0 0.0
        %610 = vmatpush1.msra.mxu0 %v537
        %611 = vmatprep.subr.mxu0 0.0
        %612 = vmatpush1.msra.mxu0 %v538
        %613 = vmatprep.subr.mxu0 0.0
        %614 = vmatpush1.msra.mxu0 %v539
        %615 = vmatprep.subr.mxu0 0.0
        %616 = vmatpush1.msra.mxu0 %v540
        %617 = vmatprep.subr.mxu0 0.0
        %618 = vmatpush1.msra.mxu0 %v541
        %619 = vmatprep.subr.mxu0 0.0
        %620 = vmatpush1.msra.mxu0 %v542
        %621 = vmatprep.subr.mxu0 0.0
        %622 = vmatpush1.msra.mxu0 %v543
        %623 = vmatprep.subr.mxu0 0.0
        %624 = vmatpush1.msra.mxu0 %v544
        %625 = vmatprep.mubr.f32.mxu0 %v449
        %626 = vmatmul.mubr.f32.gmra.mrb[0].mxu0 %v417
        %v627 = vpop.f32.mrb[0].mxu0
        %v628 = vadd.f32 0.0, %v627
        %v629 = vpop.f32.mrb[0].mxu0
        %630 = vmatprep.mubr.f32.mxu0 %v450
        %631 = vmatmul.mubr.f32.gmra.mrb[0].mxu0 %v418
        %v632 = vpop.f32.mrb[0].mxu0
        %v633 = vadd.f32 0.0, %v632
        %v634 = vpop.f32.mrb[0].mxu0
        %635 = vmatprep.mubr.f32.mxu0 %v451
        %636 = vmatmul.mubr.f32.gmra.mrb[0].mxu0 %v419
        %v637 = vpop.f32.mrb[0].mxu0
        %v638 = vadd.f32 0.0, %v637
        %v639 = vpop.f32.mrb[0].mxu0
        %640 = vmatprep.mubr.f32.mxu0 %v452
        %641 = vmatmul.mubr.f32.gmra.mrb[0].mxu0 %v420
        %v642 = vpop.f32.mrb[0].mxu0
        %v643 = vadd.f32 0.0, %v642
        %v644 = vpop.f32.mrb[0].mxu0
        %645 = vmatprep.mubr.f32.mxu0 %v453
        %646 = vmatmul.mubr.f32.gmra.mrb[0].mxu0 %v421
        %v647 = vpop.f32.mrb[0].mxu0
        %v648 = vadd.f32 0.0, %v647
        %v649 = vpop.f32.mrb[0].mxu0
        %650 = vmatprep.mubr.f32.mxu0 %v454
        %651 = vmatmul.mubr.f32.gmra.mrb[0].mxu0 %v422
        %v652 = vpop.f32.mrb[0].mxu0
        %v653 = vadd.f32 0.0, %v652
        %v654 = vpop.f32.mrb[0].mxu0
        %655 = vmatprep.mubr.f32.mxu0 %v455
        %656 = vmatmul.mubr.f32.gmra.mrb[0].mxu0 %v423
        %v657 = vpop.f32.mrb[0].mxu0
        %v658 = vadd.f32 0.0, %v657
        %v659 = vpop.f32.mrb[0].mxu0
        %660 = vmatprep.mubr.f32.mxu0 %v456
        %661 = vmatmul.mubr.f32.gmra.mrb[0].mxu0 %v424
        %v662 = vpop.f32.mrb[0].mxu0
        %v663 = vadd.f32 0.0, %v662
        %v664 = vpop.f32.mrb[0].mxu0
        %665 = vmatprep.mubr.f32.mxu0 %v457
        %666 = vmatmul.mubr.f32.gmra.mrb[0].mxu0 %v425
        %v667 = vpop.f32.mrb[0].mxu0
        %v668 = vadd.f32 0.0, %v667
        %v669 = vpop.f32.mrb[0].mxu0
        %670 = vmatprep.mubr.f32.mxu0 %v458
        %671 = vmatmul.mubr.f32.gmra.mrb[0].mxu0 %v426
        %v672 = vpop.f32.mrb[0].mxu0
        %v673 = vadd.f32 0.0, %v672
        %v674 = vpop.f32.mrb[0].mxu0
        %675 = vmatprep.mubr.f32.mxu0 %v459
        %676 = vmatmul.mubr.f32.gmra.mrb[0].mxu0 %v427
        %v677 = vpop.f32.mrb[0].mxu0
        %v678 = vadd.f32 0.0, %v677
        %v679 = vpop.f32.mrb[0].mxu0
        %680 = vmatprep.mubr.f32.mxu0 %v460
        %681 = vmatmul.mubr.f32.gmra.mrb[0].mxu0 %v428
        %v682 = vpop.f32.mrb[0].mxu0
        %v683 = vadd.f32 0.0, %v682
        %v684 = vpop.f32.mrb[0].mxu0
        %685 = vmatprep.mubr.f32.mxu0 %v461
        %686 = vmatmul.mubr.f32.gmra.mrb[0].mxu0 %v429
        %v687 = vpop.f32.mrb[0].mxu0
        %v688 = vadd.f32 0.0, %v687
        %v689 = vpop.f32.mrb[0].mxu0
        %690 = vmatprep.mubr.f32.mxu0 %v462
        %691 = vmatmul.mubr.f32.gmra.mrb[0].mxu0 %v430
        %v692 = vpop.f32.mrb[0].mxu0
        %v693 = vadd.f32 0.0, %v692
        %v694 = vpop.f32.mrb[0].mxu0
        %695 = vmatprep.mubr.f32.mxu0 %v463
        %696 = vmatmul.mubr.f32.gmra.mrb[0].mxu0 %v431
        %v697 = vpop.f32.mrb[0].mxu0
        %v698 = vadd.f32 0.0, %v697
        %v699 = vpop.f32.mrb[0].mxu0
        %700 = vmatprep.mubr.f32.mxu0 %v464
        %701 = vmatmul.mubr.f32.gmra.mrb[0].mxu0 %v432
        %v702 = vpop.f32.mrb[0].mxu0
        %v703 = vadd.f32 0.0, %v702
        %v704 = vpop.f32.mrb[0].mxu0
        %705 = vmatprep.mubr.f32.mxu0 %v465
        %706 = vmatmul.mubr.f32.gmra.mrb[0].mxu0 %v433
        %v707 = vpop.f32.mrb[0].mxu0
        %v708 = vadd.f32 0.0, %v707
        %v709 = vpop.f32.mrb[0].mxu0
        %710 = vmatprep.mubr.f32.mxu0 %v466
        %711 = vmatmul.mubr.f32.gmra.mrb[0].mxu0 %v434
        %v712 = vpop.f32.mrb[0].mxu0
        %v713 = vadd.f32 0.0, %v712
        %v714 = vpop.f32.mrb[0].mxu0
        %715 = vmatprep.mubr.f32.mxu0 %v467
        %716 = vmatmul.mubr.f32.gmra.mrb[0].mxu0 %v435
        %v717 = vpop.f32.mrb[0].mxu0
        %v718 = vadd.f32 0.0, %v717
        %v719 = vpop.f32.mrb[0].mxu0
        %720 = vmatprep.mubr.f32.mxu0 %v468
        %721 = vmatmul.mubr.f32.gmra.mrb[0].mxu0 %v436
        %v722 = vpop.f32.mrb[0].mxu0
        %v723 = vadd.f32 0.0, %v722
        %v724 = vpop.f32.mrb[0].mxu0
        %725 = vmatprep.mubr.f32.mxu0 %v469
        %726 = vmatmul.mubr.f32.gmra.mrb[0].mxu0 %v437
        %v727 = vpop.f32.mrb[0].mxu0
        %v728 = vadd.f32 0.0, %v727
        %v729 = vpop.f32.mrb[0].mxu0
        %730 = vmatprep.mubr.f32.mxu0 %v470
        %731 = vmatmul.mubr.f32.gmra.mrb[0].mxu0 %v438
        %v732 = vpop.f32.mrb[0].mxu0
        %v733 = vadd.f32 0.0, %v732
        %v734 = vpop.f32.mrb[0].mxu0
        %735 = vmatprep.mubr.f32.mxu0 %v471
        %736 = vmatmul.mubr.f32.gmra.mrb[0].mxu0 %v439
        %v737 = vpop.f32.mrb[0].mxu0
        %v738 = vadd.f32 0.0, %v737
        %v739 = vpop.f32.mrb[0].mxu0
        %740 = vmatprep.mubr.f32.mxu0 %v472
        %741 = vmatmul.mubr.f32.gmra.mrb[0].mxu0 %v440
        %v742 = vpop.f32.mrb[0].mxu0
        %v743 = vadd.f32 0.0, %v742
        %v744 = vpop.f32.mrb[0].mxu0
        %745 = vmatprep.mubr.f32.mxu0 %v473
        %746 = vmatmul.mubr.f32.gmra.mrb[0].mxu0 %v441
        %v747 = vpop.f32.mrb[0].mxu0
        %v748 = vadd.f32 0.0, %v747
        %v749 = vpop.f32.mrb[0].mxu0
        %750 = vmatprep.mubr.f32.mxu0 %v474
        %751 = vmatmul.mubr.f32.gmra.mrb[0].mxu0 %v442
        %v752 = vpop.f32.mrb[0].mxu0
        %v753 = vadd.f32 0.0, %v752
        %v754 = vpop.f32.mrb[0].mxu0
        %755 = vmatprep.mubr.f32.mxu0 %v475
        %756 = vmatmul.mubr.f32.gmra.mrb[0].mxu0 %v443
        %v757 = vpop.f32.mrb[0].mxu0
        %v758 = vadd.f32 0.0, %v757
        %v759 = vpop.f32.mrb[0].mxu0
        %760 = vmatprep.mubr.f32.mxu0 %v476
        %761 = vmatmul.mubr.f32.gmra.mrb[0].mxu0 %v444
        %v762 = vpop.f32.mrb[0].mxu0
        %v763 = vadd.f32 0.0, %v762
        %v764 = vpop.f32.mrb[0].mxu0
        %765 = vmatprep.mubr.f32.mxu0 %v477
        %766 = vmatmul.mubr.f32.gmra.mrb[0].mxu0 %v445
        %v767 = vpop.f32.mrb[0].mxu0
        %v768 = vadd.f32 0.0, %v767
        %v769 = vpop.f32.mrb[0].mxu0
        %770 = vmatprep.mubr.f32.mxu0 %v478
        %771 = vmatmul.mubr.f32.gmra.mrb[0].mxu0 %v446
        %v772 = vpop.f32.mrb[0].mxu0
        %v773 = vadd.f32 0.0, %v772
        %v774 = vpop.f32.mrb[0].mxu0
        %775 = vmatprep.mubr.f32.mxu0 %v479
        %776 = vmatmul.mubr.f32.gmra.mrb[0].mxu0 %v447
        %v777 = vpop.f32.mrb[0].mxu0
        %v778 = vadd.f32 0.0, %v777
        %v779 = vpop.f32.mrb[0].mxu0
        %780 = vmatprep.mubr.f32.mxu0 %v480
        %781 = vmatmul.mubr.f32.gmra.mrb[0].mxu0 %v448
        %v782 = vpop.f32.mrb[0].mxu0
        %v783 = vadd.f32 0.0, %v782
        %v784 = vpop.f32.mrb[0].mxu0
        %785 = vdwg.mxu0
        %786 = vmatprep.subr.mxu0 0.0
        %787 = vmatpush1.msra.mxu0 %v545
        %788 = vmatprep.subr.mxu0 0.0
        %789 = vmatpush1.msra.mxu0 %v546
        %790 = vmatprep.subr.mxu0 0.0
        %791 = vmatpush1.msra.mxu0 %v547
        %792 = vmatprep.subr.mxu0 0.0
        %793 = vmatpush1.msra.mxu0 %v548
        %794 = vmatprep.subr.mxu0 0.0
        %795 = vmatpush1.msra.mxu0 %v549
        %796 = vmatprep.subr.mxu0 0.0
        %797 = vmatpush1.msra.mxu0 %v550
        %798 = vmatprep.subr.mxu0 0.0
        %799 = vmatpush1.msra.mxu0 %v551
        %800 = vmatprep.subr.mxu0 0.0
        %801 = vmatpush1.msra.mxu0 %v552
        %802 = vmatprep.subr.mxu0 0.0
        %803 = vmatpush1.msra.mxu0 %v553
        %804 = vmatprep.subr.mxu0 0.0
        %805 = vmatpush1.msra.mxu0 %v554
        %806 = vmatprep.subr.mxu0 0.0
        %807 = vmatpush1.msra.mxu0 %v555
        %808 = vmatprep.subr.mxu0 0.0
        %809 = vmatpush1.msra.mxu0 %v556
        %810 = vmatprep.subr.mxu0 0.0
        %811 = vmatpush1.msra.mxu0 %v557
        %812 = vmatprep.subr.mxu0 0.0
        %813 = vmatpush1.msra.mxu0 %v558
        %814 = vmatprep.subr.mxu0 0.0
        %815 = vmatpush1.msra.mxu0 %v559
        %816 = vmatprep.subr.mxu0 0.0
        %817 = vmatpush1.msra.mxu0 %v560
        %818 = vmatprep.subr.mxu0 0.0
        %819 = vmatpush1.msra.mxu0 0.0
        %820 = vmatprep.subr.mxu0 0.0
        %821 = vmatpush1.msra.mxu0 0.0
        %822 = vmatprep.subr.mxu0 0.0
        %823 = vmatpush1.msra.mxu0 0.0
        %824 = vmatprep.subr.mxu0 0.0
        %825 = vmatpush1.msra.mxu0 0.0
        %826 = vmatprep.subr.mxu0 0.0
        %827 = vmatpush1.msra.mxu0 0.0
        %828 = vmatprep.subr.mxu0 0.0
        %829 = vmatpush1.msra.mxu0 0.0
        %830 = vmatprep.subr.mxu0 0.0
        %831 = vmatpush1.msra.mxu0 0.0
        %832 = vmatprep.subr.mxu0 0.0
        %833 = vmatpush1.msra.mxu0 0.0
        %834 = vmatprep.subr.mxu0 0.0
        %835 = vmatpush1.msra.mxu0 0.0
        %836 = vmatprep.subr.mxu0 0.0
        %837 = vmatpush1.msra.mxu0 0.0
        %838 = vmatprep.subr.mxu0 0.0
        %839 = vmatpush1.msra.mxu0 0.0
        %840 = vmatprep.subr.mxu0 0.0
        %841 = vmatpush1.msra.mxu0 0.0
        %842 = vmatprep.subr.mxu0 0.0
        %843 = vmatpush1.msra.mxu0 0.0
        %844 = vmatprep.subr.mxu0 0.0
        %845 = vmatpush1.msra.mxu0 0.0
        %846 = vmatprep.subr.mxu0 0.0
        %847 = vmatpush1.msra.mxu0 0.0
        %848 = vmatprep.subr.mxu0 0.0
        %849 = vmatpush1.msra.mxu0 0.0
        %850 = vmatprep.mubr.f32.mxu0 0.0
        %851 = vmatmul.mubr.f32.gmra.mrb[0].mxu0 %v481
        %v852 = vpop.f32.mrb[0].mxu0
        %v853 = vadd.f32 %v628, %v852
        %v854 = vpop.f32.mrb[0].mxu0
        %855 = vmatprep.mubr.f32.mxu0 0.0
        %856 = vmatmul.mubr.f32.gmra.mrb[0].mxu0 %v482
        %v857 = vpop.f32.mrb[0].mxu0
        %v858 = vadd.f32 %v633, %v857
        %v859 = vpop.f32.mrb[0].mxu0
        %860 = vmatprep.mubr.f32.mxu0 0.0
        %861 = vmatmul.mubr.f32.gmra.mrb[0].mxu0 %v483
        %v862 = vpop.f32.mrb[0].mxu0
        %v863 = vadd.f32 %v638, %v862
        %v864 = vpop.f32.mrb[0].mxu0
        %865 = vmatprep.mubr.f32.mxu0 0.0
        %866 = vmatmul.mubr.f32.gmra.mrb[0].mxu0 %v484
        %v867 = vpop.f32.mrb[0].mxu0
        %v868 = vadd.f32 %v643, %v867
        %v869 = vpop.f32.mrb[0].mxu0
        %870 = vmatprep.mubr.f32.mxu0 0.0
        %871 = vmatmul.mubr.f32.gmra.mrb[0].mxu0 %v485
        %v872 = vpop.f32.mrb[0].mxu0
        %v873 = vadd.f32 %v648, %v872
        %v874 = vpop.f32.mrb[0].mxu0
        %875 = vmatprep.mubr.f32.mxu0 0.0
        %876 = vmatmul.mubr.f32.gmra.mrb[0].mxu0 %v486
        %v877 = vpop.f32.mrb[0].mxu0
        %v878 = vadd.f32 %v653, %v877
        %v879 = vpop.f32.mrb[0].mxu0
        %880 = vmatprep.mubr.f32.mxu0 0.0
        %881 = vmatmul.mubr.f32.gmra.mrb[0].mxu0 %v487
        %v882 = vpop.f32.mrb[0].mxu0
        %v883 = vadd.f32 %v658, %v882
        %v884 = vpop.f32.mrb[0].mxu0
        %885 = vmatprep.mubr.f32.mxu0 0.0
        %886 = vmatmul.mubr.f32.gmra.mrb[0].mxu0 %v488
        %v887 = vpop.f32.mrb[0].mxu0
        %v888 = vadd.f32 %v663, %v887
        %v889 = vpop.f32.mrb[0].mxu0
        %890 = vmatprep.mubr.f32.mxu0 0.0
        %891 = vmatmul.mubr.f32.gmra.mrb[0].mxu0 %v489
        %v892 = vpop.f32.mrb[0].mxu0
        %v893 = vadd.f32 %v668, %v892
        %v894 = vpop.f32.mrb[0].mxu0
        %895 = vmatprep.mubr.f32.mxu0 0.0
        %896 = vmatmul.mubr.f32.gmra.mrb[0].mxu0 %v490
        %v897 = vpop.f32.mrb[0].mxu0
        %v898 = vadd.f32 %v673, %v897
        %v899 = vpop.f32.mrb[0].mxu0
        %900 = vmatprep.mubr.f32.mxu0 0.0
        %901 = vmatmul.mubr.f32.gmra.mrb[0].mxu0 %v491
        %v902 = vpop.f32.mrb[0].mxu0
        %v903 = vadd.f32 %v678, %v902
        %v904 = vpop.f32.mrb[0].mxu0
        %905 = vmatprep.mubr.f32.mxu0 0.0
        %906 = vmatmul.mubr.f32.gmra.mrb[0].mxu0 %v492
        %v907 = vpop.f32.mrb[0].mxu0
        %v908 = vadd.f32 %v683, %v907
        %v909 = vpop.f32.mrb[0].mxu0
        %910 = vmatprep.mubr.f32.mxu0 0.0
        %911 = vmatmul.mubr.f32.gmra.mrb[0].mxu0 %v493
        %v912 = vpop.f32.mrb[0].mxu0
        %v913 = vadd.f32 %v688, %v912
        %v914 = vpop.f32.mrb[0].mxu0
        %915 = vmatprep.mubr.f32.mxu0 0.0
        %916 = vmatmul.mubr.f32.gmra.mrb[0].mxu0 %v494
        %v917 = vpop.f32.mrb[0].mxu0
        %v918 = vadd.f32 %v693, %v917
        %v919 = vpop.f32.mrb[0].mxu0
        %920 = vmatprep.mubr.f32.mxu0 0.0
        %921 = vmatmul.mubr.f32.gmra.mrb[0].mxu0 %v495
        %v922 = vpop.f32.mrb[0].mxu0
        %v923 = vadd.f32 %v698, %v922
        %v924 = vpop.f32.mrb[0].mxu0
        %925 = vmatprep.mubr.f32.mxu0 0.0
        %926 = vmatmul.mubr.f32.gmra.mrb[0].mxu0 %v496
        %v927 = vpop.f32.mrb[0].mxu0
        %v928 = vadd.f32 %v703, %v927
        %v929 = vpop.f32.mrb[0].mxu0
        %930 = vmatprep.mubr.f32.mxu0 0.0
        %931 = vmatmul.mubr.f32.gmra.mrb[0].mxu0 %v497
        %v932 = vpop.f32.mrb[0].mxu0
        %v933 = vadd.f32 %v708, %v932
        %v934 = vpop.f32.mrb[0].mxu0
        %935 = vmatprep.mubr.f32.mxu0 0.0
        %936 = vmatmul.mubr.f32.gmra.mrb[0].mxu0 %v498
        %v937 = vpop.f32.mrb[0].mxu0
        %v938 = vadd.f32 %v713, %v937
        %v939 = vpop.f32.mrb[0].mxu0
        %940 = vmatprep.mubr.f32.mxu0 0.0
        %941 = vmatmul.mubr.f32.gmra.mrb[0].mxu0 %v499
        %v942 = vpop.f32.mrb[0].mxu0
        %v943 = vadd.f32 %v718, %v942
        %v944 = vpop.f32.mrb[0].mxu0
        %945 = vmatprep.mubr.f32.mxu0 0.0
        %946 = vmatmul.mubr.f32.gmra.mrb[0].mxu0 %v500
        %v947 = vpop.f32.mrb[0].mxu0
        %v948 = vadd.f32 %v723, %v947
        %v949 = vpop.f32.mrb[0].mxu0
        %950 = vmatprep.mubr.f32.mxu0 0.0
        %951 = vmatmul.mubr.f32.gmra.mrb[0].mxu0 %v501
        %v952 = vpop.f32.mrb[0].mxu0
        %v953 = vadd.f32 %v728, %v952
        %v954 = vpop.f32.mrb[0].mxu0
        %955 = vmatprep.mubr.f32.mxu0 0.0
        %956 = vmatmul.mubr.f32.gmra.mrb[0].mxu0 %v502
        %v957 = vpop.f32.mrb[0].mxu0
        %v958 = vadd.f32 %v733, %v957
        %v959 = vpop.f32.mrb[0].mxu0
        %960 = vmatprep.mubr.f32.mxu0 0.0
        %961 = vmatmul.mubr.f32.gmra.mrb[0].mxu0 %v503
        %v962 = vpop.f32.mrb[0].mxu0
        %v963 = vadd.f32 %v738, %v962
        %v964 = vpop.f32.mrb[0].mxu0
        %965 = vmatprep.mubr.f32.mxu0 0.0
        %966 = vmatmul.mubr.f32.gmra.mrb[0].mxu0 %v504
        %v967 = vpop.f32.mrb[0].mxu0
        %v968 = vadd.f32 %v743, %v967
        %v969 = vpop.f32.mrb[0].mxu0
        %970 = vmatprep.mubr.f32.mxu0 0.0
        %971 = vmatmul.mubr.f32.gmra.mrb[0].mxu0 %v505
        %v972 = vpop.f32.mrb[0].mxu0
        %v973 = vadd.f32 %v748, %v972
        %v974 = vpop.f32.mrb[0].mxu0
        %975 = vmatprep.mubr.f32.mxu0 0.0
        %976 = vmatmul.mubr.f32.gmra.mrb[0].mxu0 %v506
        %v977 = vpop.f32.mrb[0].mxu0
        %v978 = vadd.f32 %v753, %v977
        %v979 = vpop.f32.mrb[0].mxu0
        %980 = vmatprep.mubr.f32.mxu0 0.0
        %981 = vmatmul.mubr.f32.gmra.mrb[0].mxu0 %v507
        %v982 = vpop.f32.mrb[0].mxu0
        %v983 = vadd.f32 %v758, %v982
        %v984 = vpop.f32.mrb[0].mxu0
        %985 = vmatprep.mubr.f32.mxu0 0.0
        %986 = vmatmul.mubr.f32.gmra.mrb[0].mxu0 %v508
        %v987 = vpop.f32.mrb[0].mxu0
        %v988 = vadd.f32 %v763, %v987
        %v989 = vpop.f32.mrb[0].mxu0
        %990 = vmatprep.mubr.f32.mxu0 0.0
        %991 = vmatmul.mubr.f32.gmra.mrb[0].mxu0 %v509
        %v992 = vpop.f32.mrb[0].mxu0
        %v993 = vadd.f32 %v768, %v992
        %v994 = vpop.f32.mrb[0].mxu0
        %995 = vmatprep.mubr.f32.mxu0 0.0
        %996 = vmatmul.mubr.f32.gmra.mrb[0].mxu0 %v510
        %v997 = vpop.f32.mrb[0].mxu0
        %v998 = vadd.f32 %v773, %v997
        %v999 = vpop.f32.mrb[0].mxu0
        %1000 = vmatprep.mubr.f32.mxu0 0.0
        %1001 = vmatmul.mubr.f32.gmra.mrb[0].mxu0 %v511
        %v1002 = vpop.f32.mrb[0].mxu0
        %v1003 = vadd.f32 %v778, %v1002
        %v1004 = vpop.f32.mrb[0].mxu0
        %1005 = vmatprep.mubr.f32.mxu0 0.0
        %1006 = vmatmul.mubr.f32.gmra.mrb[0].mxu0 %v512
        %v1007 = vpop.f32.mrb[0].mxu0
        %v1008 = vadd.f32 %v783, %v1007
        %v1009 = vpop.f32.mrb[0].mxu0
        %1010 = vdwg.mxu0
        %1011 = vmatprep.subr.mxu0 0.0
        %1012 = vmatpush1.msra.mxu0 %v368
        %1013 = vmatprep.subr.mxu0 0.0
        %1014 = vmatpush1.msra.mxu0 %v369
        %1015 = vmatprep.subr.mxu0 0.0
        %1016 = vmatpush1.msra.mxu0 %v370
        %1017 = vmatprep.subr.mxu0 0.0
        %1018 = vmatpush1.msra.mxu0 %v371
        %1019 = vmatprep.subr.mxu0 0.0
        %1020 = vmatpush1.msra.mxu0 %v372
        %1021 = vmatprep.subr.mxu0 0.0
        %1022 = vmatpush1.msra.mxu0 %v373
        %1023 = vmatprep.subr.mxu0 0.0
        %1024 = vmatpush1.msra.mxu0 %v374
        %1025 = vmatprep.subr.mxu0 0.0
        %1026 = vmatpush1.msra.mxu0 %v375
        %1027 = vmatprep.subr.mxu0 0.0
        %1028 = vmatpush1.msra.mxu0 %v376
        %1029 = vmatprep.subr.mxu0 0.0
        %1030 = vmatpush1.msra.mxu0 %v377
        %1031 = vmatprep.subr.mxu0 0.0
        %1032 = vmatpush1.msra.mxu0 %v378
        %1033 = vmatprep.subr.mxu0 0.0
        %1034 = vmatpush1.msra.mxu0 %v379
        %1035 = vmatprep.subr.mxu0 0.0
        %1036 = vmatpush1.msra.mxu0 %v380
        %1037 = vmatprep.subr.mxu0 0.0
        %1038 = vmatpush1.msra.mxu0 %v381
        %1039 = vmatprep.subr.mxu0 0.0
        %1040 = vmatpush1.msra.mxu0 %v382
        %1041 = vmatprep.subr.mxu0 0.0
        %1042 = vmatpush1.msra.mxu0 %v383
        %1043 = vmatprep.subr.mxu0 0.0
        %1044 = vmatpush1.msra.mxu0 %v384
        %1045 = vmatprep.subr.mxu0 0.0
        %1046 = vmatpush1.msra.mxu0 %v385
        %1047 = vmatprep.subr.mxu0 0.0
        %1048 = vmatpush1.msra.mxu0 %v386
        %1049 = vmatprep.subr.mxu0 0.0
        %1050 = vmatpush1.msra.mxu0 %v387
        %1051 = vmatprep.subr.mxu0 0.0
        %1052 = vmatpush1.msra.mxu0 %v388
        %1053 = vmatprep.subr.mxu0 0.0
        %1054 = vmatpush1.msra.mxu0 %v389
        %1055 = vmatprep.subr.mxu0 0.0
        %1056 = vmatpush1.msra.mxu0 %v390
        %1057 = vmatprep.subr.mxu0 0.0
        %1058 = vmatpush1.msra.mxu0 %v391
        %1059 = vmatprep.subr.mxu0 0.0
        %1060 = vmatpush1.msra.mxu0 %v392
        %1061 = vmatprep.subr.mxu0 0.0
        %1062 = vmatpush1.msra.mxu0 %v393
        %1063 = vmatprep.subr.mxu0 0.0
        %1064 = vmatpush1.msra.mxu0 %v394
        %1065 = vmatprep.subr.mxu0 0.0
        %1066 = vmatpush1.msra.mxu0 %v395
        %1067 = vmatprep.subr.mxu0 0.0
        %1068 = vmatpush1.msra.mxu0 %v396
        %1069 = vmatprep.subr.mxu0 0.0
        %1070 = vmatpush1.msra.mxu0 %v397
        %1071 = vmatprep.subr.mxu0 0.0
        %1072 = vmatpush1.msra.mxu0 %v398
        %1073 = vmatprep.subr.mxu0 0.0
        %1074 = vmatpush1.msra.mxu0 %v399
        %1075 = vmatprep.mubr.f32.mxu0 %v304
        %1076 = vmatmul.mubr.f32.gmra.mrb[0].mxu0 %v272
        %v1077 = vpop.f32.mrb[0].mxu0
        %v1078 = vadd.f32 %v853, %v1077
        %v1079 = vpop.f32.mrb[0].mxu0
        %1080 = vmatprep.mubr.f32.mxu0 %v305
        %1081 = vmatmul.mubr.f32.gmra.mrb[0].mxu0 %v273
        %v1082 = vpop.f32.mrb[0].mxu0
        %v1083 = vadd.f32 %v858, %v1082
        %v1084 = vpop.f32.mrb[0].mxu0
        %1085 = vmatprep.mubr.f32.mxu0 %v306
        %1086 = vmatmul.mubr.f32.gmra.mrb[0].mxu0 %v274
        %v1087 = vpop.f32.mrb[0].mxu0
        %v1088 = vadd.f32 %v863, %v1087
        %v1089 = vpop.f32.mrb[0].mxu0
        %1090 = vmatprep.mubr.f32.mxu0 %v307
        %1091 = vmatmul.mubr.f32.gmra.mrb[0].mxu0 %v275
        %v1092 = vpop.f32.mrb[0].mxu0
        %v1093 = vadd.f32 %v868, %v1092
        %v1094 = vpop.f32.mrb[0].mxu0
        %1095 = vmatprep.mubr.f32.mxu0 %v308
        %1096 = vmatmul.mubr.f32.gmra.mrb[0].mxu0 %v276
        %v1097 = vpop.f32.mrb[0].mxu0
        %v1098 = vadd.f32 %v873, %v1097
        %v1099 = vpop.f32.mrb[0].mxu0
        %1100 = vmatprep.mubr.f32.mxu0 %v309
        %1101 = vmatmul.mubr.f32.gmra.mrb[0].mxu0 %v277
        %v1102 = vpop.f32.mrb[0].mxu0
        %v1103 = vadd.f32 %v878, %v1102
        %v1104 = vpop.f32.mrb[0].mxu0
        %1105 = vmatprep.mubr.f32.mxu0 %v310
        %1106 = vmatmul.mubr.f32.gmra.mrb[0].mxu0 %v278
        %v1107 = vpop.f32.mrb[0].mxu0
        %v1108 = vadd.f32 %v883, %v1107
        %v1109 = vpop.f32.mrb[0].mxu0
        %1110 = vmatprep.mubr.f32.mxu0 %v311
        %1111 = vmatmul.mubr.f32.gmra.mrb[0].mxu0 %v279
        %v1112 = vpop.f32.mrb[0].mxu0
        %v1113 = vadd.f32 %v888, %v1112
        %v1114 = vpop.f32.mrb[0].mxu0
        %1115 = vmatprep.mubr.f32.mxu0 %v312
        %1116 = vmatmul.mubr.f32.gmra.mrb[0].mxu0 %v280
        %v1117 = vpop.f32.mrb[0].mxu0
        %v1118 = vadd.f32 %v893, %v1117
        %v1119 = vpop.f32.mrb[0].mxu0
        %1120 = vmatprep.mubr.f32.mxu0 %v313
        %1121 = vmatmul.mubr.f32.gmra.mrb[0].mxu0 %v281
        %v1122 = vpop.f32.mrb[0].mxu0
        %v1123 = vadd.f32 %v898, %v1122
        %v1124 = vpop.f32.mrb[0].mxu0
        %1125 = vmatprep.mubr.f32.mxu0 %v314
        %1126 = vmatmul.mubr.f32.gmra.mrb[0].mxu0 %v282
        %v1127 = vpop.f32.mrb[0].mxu0
        %v1128 = vadd.f32 %v903, %v1127
        %v1129 = vpop.f32.mrb[0].mxu0
        %1130 = vmatprep.mubr.f32.mxu0 %v315
        %1131 = vmatmul.mubr.f32.gmra.mrb[0].mxu0 %v283
        %v1132 = vpop.f32.mrb[0].mxu0
        %v1133 = vadd.f32 %v908, %v1132
        %v1134 = vpop.f32.mrb[0].mxu0
        %1135 = vmatprep.mubr.f32.mxu0 %v316
        %1136 = vmatmul.mubr.f32.gmra.mrb[0].mxu0 %v284
        %v1137 = vpop.f32.mrb[0].mxu0
        %v1138 = vadd.f32 %v913, %v1137
        %v1139 = vpop.f32.mrb[0].mxu0
        %1140 = vmatprep.mubr.f32.mxu0 %v317
        %1141 = vmatmul.mubr.f32.gmra.mrb[0].mxu0 %v285
        %v1142 = vpop.f32.mrb[0].mxu0
        %v1143 = vadd.f32 %v918, %v1142
        %v1144 = vpop.f32.mrb[0].mxu0
        %1145 = vmatprep.mubr.f32.mxu0 %v318
        %1146 = vmatmul.mubr.f32.gmra.mrb[0].mxu0 %v286
        %v1147 = vpop.f32.mrb[0].mxu0
        %v1148 = vadd.f32 %v923, %v1147
        %v1149 = vpop.f32.mrb[0].mxu0
        %1150 = vmatprep.mubr.f32.mxu0 %v319
        %1151 = vmatmul.mubr.f32.gmra.mrb[0].mxu0 %v287
        %v1152 = vpop.f32.mrb[0].mxu0
        %v1153 = vadd.f32 %v928, %v1152
        %v1154 = vpop.f32.mrb[0].mxu0
        %1155 = vmatprep.mubr.f32.mxu0 %v320
        %1156 = vmatmul.mubr.f32.gmra.mrb[0].mxu0 %v288
        %v1157 = vpop.f32.mrb[0].mxu0
        %v1158 = vadd.f32 %v933, %v1157
        %v1159 = vpop.f32.mrb[0].mxu0
        %1160 = vmatprep.mubr.f32.mxu0 %v321
        %1161 = vmatmul.mubr.f32.gmra.mrb[0].mxu0 %v289
        %v1162 = vpop.f32.mrb[0].mxu0
        %v1163 = vadd.f32 %v938, %v1162
        %v1164 = vpop.f32.mrb[0].mxu0
        %1165 = vmatprep.mubr.f32.mxu0 %v322
        %1166 = vmatmul.mubr.f32.gmra.mrb[0].mxu0 %v290
        %v1167 = vpop.f32.mrb[0].mxu0
        %v1168 = vadd.f32 %v943, %v1167
        %v1169 = vpop.f32.mrb[0].mxu0
        %1170 = vmatprep.mubr.f32.mxu0 %v323
        %1171 = vmatmul.mubr.f32.gmra.mrb[0].mxu0 %v291
        %v1172 = vpop.f32.mrb[0].mxu0
        %v1173 = vadd.f32 %v948, %v1172
        %v1174 = vpop.f32.mrb[0].mxu0
        %1175 = vmatprep.mubr.f32.mxu0 %v324
        %1176 = vmatmul.mubr.f32.gmra.mrb[0].mxu0 %v292
        %v1177 = vpop.f32.mrb[0].mxu0
        %v1178 = vadd.f32 %v953, %v1177
        %v1179 = vpop.f32.mrb[0].mxu0
        %1180 = vmatprep.mubr.f32.mxu0 %v325
        %1181 = vmatmul.mubr.f32.gmra.mrb[0].mxu0 %v293
        %v1182 = vpop.f32.mrb[0].mxu0
        %v1183 = vadd.f32 %v958, %v1182
        %v1184 = vpop.f32.mrb[0].mxu0
        %1185 = vmatprep.mubr.f32.mxu0 %v326
        %1186 = vmatmul.mubr.f32.gmra.mrb[0].mxu0 %v294
        %v1187 = vpop.f32.mrb[0].mxu0
        %v1188 = vadd.f32 %v963, %v1187
        %v1189 = vpop.f32.mrb[0].mxu0
        %1190 = vmatprep.mubr.f32.mxu0 %v327
        %1191 = vmatmul.mubr.f32.gmra.mrb[0].mxu0 %v295
        %v1192 = vpop.f32.mrb[0].mxu0
        %v1193 = vadd.f32 %v968, %v1192
        %v1194 = vpop.f32.mrb[0].mxu0
        %1195 = vmatprep.mubr.f32.mxu0 %v328
        %1196 = vmatmul.mubr.f32.gmra.mrb[0].mxu0 %v296
        %v1197 = vpop.f32.mrb[0].mxu0
        %v1198 = vadd.f32 %v973, %v1197
        %v1199 = vpop.f32.mrb[0].mxu0
        %1200 = vmatprep.mubr.f32.mxu0 %v329
        %1201 = vmatmul.mubr.f32.gmra.mrb[0].mxu0 %v297
        %v1202 = vpop.f32.mrb[0].mxu0
        %v1203 = vadd.f32 %v978, %v1202
        %v1204 = vpop.f32.mrb[0].mxu0
        %1205 = vmatprep.mubr.f32.mxu0 %v330
        %1206 = vmatmul.mubr.f32.gmra.mrb[0].mxu0 %v298
        %v1207 = vpop.f32.mrb[0].mxu0
        %v1208 = vadd.f32 %v983, %v1207
        %v1209 = vpop.f32.mrb[0].mxu0
        %1210 = vmatprep.mubr.f32.mxu0 %v331
        %1211 = vmatmul.mubr.f32.gmra.mrb[0].mxu0 %v299
        %v1212 = vpop.f32.mrb[0].mxu0
        %v1213 = vadd.f32 %v988, %v1212
        %v1214 = vpop.f32.mrb[0].mxu0
        %1215 = vmatprep.mubr.f32.mxu0 %v332
        %1216 = vmatmul.mubr.f32.gmra.mrb[0].mxu0 %v300
        %v1217 = vpop.f32.mrb[0].mxu0
        %v1218 = vadd.f32 %v993, %v1217
        %v1219 = vpop.f32.mrb[0].mxu0
        %1220 = vmatprep.mubr.f32.mxu0 %v333
        %1221 = vmatmul.mubr.f32.gmra.mrb[0].mxu0 %v301
        %v1222 = vpop.f32.mrb[0].mxu0
        %v1223 = vadd.f32 %v998, %v1222
        %v1224 = vpop.f32.mrb[0].mxu0
        %1225 = vmatprep.mubr.f32.mxu0 %v334
        %1226 = vmatmul.mubr.f32.gmra.mrb[0].mxu0 %v302
        %v1227 = vpop.f32.mrb[0].mxu0
        %v1228 = vadd.f32 %v1003, %v1227
        %v1229 = vpop.f32.mrb[0].mxu0
        %1230 = vmatprep.mubr.f32.mxu0 %v335
        %1231 = vmatmul.mubr.f32.gmra.mrb[0].mxu0 %v303
        %v1232 = vpop.f32.mrb[0].mxu0
        %v1233 = vadd.f32 %v1008, %v1232
        %v1234 = vpop.f32.mrb[0].mxu0
        %1235 = vdwg.mxu0
        %1236 = vmatprep.subr.mxu0 0.0
        %1237 = vmatpush1.msra.mxu0 %v400
        %1238 = vmatprep.subr.mxu0 0.0
        %1239 = vmatpush1.msra.mxu0 %v401
        %1240 = vmatprep.subr.mxu0 0.0
        %1241 = vmatpush1.msra.mxu0 %v402
        %1242 = vmatprep.subr.mxu0 0.0
        %1243 = vmatpush1.msra.mxu0 %v403
        %1244 = vmatprep.subr.mxu0 0.0
        %1245 = vmatpush1.msra.mxu0 %v404
        %1246 = vmatprep.subr.mxu0 0.0
        %1247 = vmatpush1.msra.mxu0 %v405
        %1248 = vmatprep.subr.mxu0 0.0
        %1249 = vmatpush1.msra.mxu0 %v406
        %1250 = vmatprep.subr.mxu0 0.0
        %1251 = vmatpush1.msra.mxu0 %v407
        %1252 = vmatprep.subr.mxu0 0.0
        %1253 = vmatpush1.msra.mxu0 %v408
        %1254 = vmatprep.subr.mxu0 0.0
        %1255 = vmatpush1.msra.mxu0 %v409
        %1256 = vmatprep.subr.mxu0 0.0
        %1257 = vmatpush1.msra.mxu0 %v410
        %1258 = vmatprep.subr.mxu0 0.0
        %1259 = vmatpush1.msra.mxu0 %v411
        %1260 = vmatprep.subr.mxu0 0.0
        %1261 = vmatpush1.msra.mxu0 %v412
        %1262 = vmatprep.subr.mxu0 0.0
        %1263 = vmatpush1.msra.mxu0 %v413
        %1264 = vmatprep.subr.mxu0 0.0
        %1265 = vmatpush1.msra.mxu0 %v414
        %1266 = vmatprep.subr.mxu0 0.0
        %1267 = vmatpush1.msra.mxu0 %v415
        %1268 = vmatprep.subr.mxu0 0.0
        %1269 = vmatpush1.msra.mxu0 0.0
        %1270 = vmatprep.subr.mxu0 0.0
        %1271 = vmatpush1.msra.mxu0 0.0
        %1272 = vmatprep.subr.mxu0 0.0
        %1273 = vmatpush1.msra.mxu0 0.0
        %1274 = vmatprep.subr.mxu0 0.0
        %1275 = vmatpush1.msra.mxu0 0.0
        %1276 = vmatprep.subr.mxu0 0.0
        %1277 = vmatpush1.msra.mxu0 0.0
        %1278 = vmatprep.subr.mxu0 0.0
        %1279 = vmatpush1.msra.mxu0 0.0
        %1280 = vmatprep.subr.mxu0 0.0
        %1281 = vmatpush1.msra.mxu0 0.0
        %1282 = vmatprep.subr.mxu0 0.0
        %1283 = vmatpush1.msra.mxu0 0.0
        %1284 = vmatprep.subr.mxu0 0.0
        %1285 = vmatpush1.msra.mxu0 0.0
        %1286 = vmatprep.subr.mxu0 0.0
        %1287 = vmatpush1.msra.mxu0 0.0
        %1288 = vmatprep.subr.mxu0 0.0
        %1289 = vmatpush1.msra.mxu0 0.0
        %1290 = vmatprep.subr.mxu0 0.0
        %1291 = vmatpush1.msra.mxu0 0.0
        %1292 = vmatprep.subr.mxu0 0.0
        %1293 = vmatpush1.msra.mxu0 0.0
        %1294 = vmatprep.subr.mxu0 0.0
        %1295 = vmatpush1.msra.mxu0 0.0
        %1296 = vmatprep.subr.mxu0 0.0
        %1297 = vmatpush1.msra.mxu0 0.0
        %1298 = vmatprep.subr.mxu0 0.0
        %1299 = vmatpush1.msra.mxu0 0.0
        %1300 = vmatprep.mubr.f32.mxu0 0.0
        %1301 = vmatmul.mubr.f32.gmra.mrb[0].mxu0 %v336
        %v1302 = vpop.f32.mrb[0].mxu0
        %v1303 = vadd.f32 %v1078, %v1302
        %v1304 = vpop.f32.mrb[0].mxu0
        %1305 = vmatprep.mubr.f32.mxu0 0.0
        %1306 = vmatmul.mubr.f32.gmra.mrb[0].mxu0 %v337
        %v1307 = vpop.f32.mrb[0].mxu0
        %v1308 = vadd.f32 %v1083, %v1307
        %v1309 = vpop.f32.mrb[0].mxu0
        %1310 = vmatprep.mubr.f32.mxu0 0.0
        %1311 = vmatmul.mubr.f32.gmra.mrb[0].mxu0 %v338
        %v1312 = vpop.f32.mrb[0].mxu0
        %v1313 = vadd.f32 %v1088, %v1312
        %v1314 = vpop.f32.mrb[0].mxu0
        %1315 = vmatprep.mubr.f32.mxu0 0.0
        %1316 = vmatmul.mubr.f32.gmra.mrb[0].mxu0 %v339
        %v1317 = vpop.f32.mrb[0].mxu0
        %v1318 = vadd.f32 %v1093, %v1317
        %v1319 = vpop.f32.mrb[0].mxu0
        %1320 = vmatprep.mubr.f32.mxu0 0.0
        %1321 = vmatmul.mubr.f32.gmra.mrb[0].mxu0 %v340
        %v1322 = vpop.f32.mrb[0].mxu0
        %v1323 = vadd.f32 %v1098, %v1322
        %v1324 = vpop.f32.mrb[0].mxu0
        %1325 = vmatprep.mubr.f32.mxu0 0.0
        %1326 = vmatmul.mubr.f32.gmra.mrb[0].mxu0 %v341
        %v1327 = vpop.f32.mrb[0].mxu0
        %v1328 = vadd.f32 %v1103, %v1327
        %v1329 = vpop.f32.mrb[0].mxu0
        %1330 = vmatprep.mubr.f32.mxu0 0.0
        %1331 = vmatmul.mubr.f32.gmra.mrb[0].mxu0 %v342
        %v1332 = vpop.f32.mrb[0].mxu0
        %v1333 = vadd.f32 %v1108, %v1332
        %v1334 = vpop.f32.mrb[0].mxu0
        %1335 = vmatprep.mubr.f32.mxu0 0.0
        %1336 = vmatmul.mubr.f32.gmra.mrb[0].mxu0 %v343
        %v1337 = vpop.f32.mrb[0].mxu0
        %v1338 = vadd.f32 %v1113, %v1337
        %v1339 = vpop.f32.mrb[0].mxu0
        %1340 = vmatprep.mubr.f32.mxu0 0.0
        %1341 = vmatmul.mubr.f32.gmra.mrb[0].mxu0 %v344
        %v1342 = vpop.f32.mrb[0].mxu0
        %v1343 = vadd.f32 %v1118, %v1342
        %v1344 = vpop.f32.mrb[0].mxu0
        %1345 = vmatprep.mubr.f32.mxu0 0.0
        %1346 = vmatmul.mubr.f32.gmra.mrb[0].mxu0 %v345
        %v1347 = vpop.f32.mrb[0].mxu0
        %v1348 = vadd.f32 %v1123, %v1347
        %v1349 = vpop.f32.mrb[0].mxu0
        %1350 = vmatprep.mubr.f32.mxu0 0.0
        %1351 = vmatmul.mubr.f32.gmra.mrb[0].mxu0 %v346
        %v1352 = vpop.f32.mrb[0].mxu0
        %v1353 = vadd.f32 %v1128, %v1352
        %v1354 = vpop.f32.mrb[0].mxu0
        %1355 = vmatprep.mubr.f32.mxu0 0.0
        %1356 = vmatmul.mubr.f32.gmra.mrb[0].mxu0 %v347
        %v1357 = vpop.f32.mrb[0].mxu0
        %v1358 = vadd.f32 %v1133, %v1357
        %v1359 = vpop.f32.mrb[0].mxu0
        %1360 = vmatprep.mubr.f32.mxu0 0.0
        %1361 = vmatmul.mubr.f32.gmra.mrb[0].mxu0 %v348
        %v1362 = vpop.f32.mrb[0].mxu0
        %v1363 = vadd.f32 %v1138, %v1362
        %v1364 = vpop.f32.mrb[0].mxu0
        %1365 = vmatprep.mubr.f32.mxu0 0.0
        %1366 = vmatmul.mubr.f32.gmra.mrb[0].mxu0 %v349
        %v1367 = vpop.f32.mrb[0].mxu0
        %v1368 = vadd.f32 %v1143, %v1367
        %v1369 = vpop.f32.mrb[0].mxu0
        %1370 = vmatprep.mubr.f32.mxu0 0.0
        %1371 = vmatmul.mubr.f32.gmra.mrb[0].mxu0 %v350
        %v1372 = vpop.f32.mrb[0].mxu0
        %v1373 = vadd.f32 %v1148, %v1372
        %v1374 = vpop.f32.mrb[0].mxu0
        %1375 = vmatprep.mubr.f32.mxu0 0.0
        %1376 = vmatmul.mubr.f32.gmra.mrb[0].mxu0 %v351
        %v1377 = vpop.f32.mrb[0].mxu0
        %v1378 = vadd.f32 %v1153, %v1377
        %v1379 = vpop.f32.mrb[0].mxu0
        %1380 = vmatprep.mubr.f32.mxu0 0.0
        %1381 = vmatmul.mubr.f32.gmra.mrb[0].mxu0 %v352
        %v1382 = vpop.f32.mrb[0].mxu0
        %v1383 = vadd.f32 %v1158, %v1382
        %v1384 = vpop.f32.mrb[0].mxu0
        %1385 = vmatprep.mubr.f32.mxu0 0.0
        %1386 = vmatmul.mubr.f32.gmra.mrb[0].mxu0 %v353
        %v1387 = vpop.f32.mrb[0].mxu0
        %v1388 = vadd.f32 %v1163, %v1387
        %v1389 = vpop.f32.mrb[0].mxu0
        %1390 = vmatprep.mubr.f32.mxu0 0.0
        %1391 = vmatmul.mubr.f32.gmra.mrb[0].mxu0 %v354
        %v1392 = vpop.f32.mrb[0].mxu0
        %v1393 = vadd.f32 %v1168, %v1392
        %v1394 = vpop.f32.mrb[0].mxu0
        %1395 = vmatprep.mubr.f32.mxu0 0.0
        %1396 = vmatmul.mubr.f32.gmra.mrb[0].mxu0 %v355
        %v1397 = vpop.f32.mrb[0].mxu0
        %v1398 = vadd.f32 %v1173, %v1397
        %v1399 = vpop.f32.mrb[0].mxu0
        %1400 = vmatprep.mubr.f32.mxu0 0.0
        %1401 = vmatmul.mubr.f32.gmra.mrb[0].mxu0 %v356
        %v1402 = vpop.f32.mrb[0].mxu0
        %v1403 = vadd.f32 %v1178, %v1402
        %v1404 = vpop.f32.mrb[0].mxu0
        %1405 = vmatprep.mubr.f32.mxu0 0.0
        %1406 = vmatmul.mubr.f32.gmra.mrb[0].mxu0 %v357
        %v1407 = vpop.f32.mrb[0].mxu0
        %v1408 = vadd.f32 %v1183, %v1407
        %v1409 = vpop.f32.mrb[0].mxu0
        %1410 = vmatprep.mubr.f32.mxu0 0.0
        %1411 = vmatmul.mubr.f32.gmra.mrb[0].mxu0 %v358
        %v1412 = vpop.f32.mrb[0].mxu0
        %v1413 = vadd.f32 %v1188, %v1412
        %v1414 = vpop.f32.mrb[0].mxu0
        %1415 = vmatprep.mubr.f32.mxu0 0.0
        %1416 = vmatmul.mubr.f32.gmra.mrb[0].mxu0 %v359
        %v1417 = vpop.f32.mrb[0].mxu0
        %v1418 = vadd.f32 %v1193, %v1417
        %v1419 = vpop.f32.mrb[0].mxu0
        %1420 = vmatprep.mubr.f32.mxu0 0.0
        %1421 = vmatmul.mubr.f32.gmra.mrb[0].mxu0 %v360
        %v1422 = vpop.f32.mrb[0].mxu0
        %v1423 = vadd.f32 %v1198, %v1422
        %v1424 = vpop.f32.mrb[0].mxu0
        %1425 = vmatprep.mubr.f32.mxu0 0.0
        %1426 = vmatmul.mubr.f32.gmra.mrb[0].mxu0 %v361
        %v1427 = vpop.f32.mrb[0].mxu0
        %v1428 = vadd.f32 %v1203, %v1427
        %v1429 = vpop.f32.mrb[0].mxu0
        %1430 = vmatprep.mubr.f32.mxu0 0.0
        %1431 = vmatmul.mubr.f32.gmra.mrb[0].mxu0 %v362
        %v1432 = vpop.f32.mrb[0].mxu0
        %v1433 = vadd.f32 %v1208, %v1432
        %v1434 = vpop.f32.mrb[0].mxu0
        %1435 = vmatprep.mubr.f32.mxu0 0.0
        %1436 = vmatmul.mubr.f32.gmra.mrb[0].mxu0 %v363
        %v1437 = vpop.f32.mrb[0].mxu0
        %v1438 = vadd.f32 %v1213, %v1437
        %v1439 = vpop.f32.mrb[0].mxu0
        %1440 = vmatprep.mubr.f32.mxu0 0.0
        %1441 = vmatmul.mubr.f32.gmra.mrb[0].mxu0 %v364
        %v1442 = vpop.f32.mrb[0].mxu0
        %v1443 = vadd.f32 %v1218, %v1442
        %v1444 = vpop.f32.mrb[0].mxu0
        %1445 = vmatprep.mubr.f32.mxu0 0.0
        %1446 = vmatmul.mubr.f32.gmra.mrb[0].mxu0 %v365
        %v1447 = vpop.f32.mrb[0].mxu0
        %v1448 = vadd.f32 %v1223, %v1447
        %v1449 = vpop.f32.mrb[0].mxu0
        %1450 = vmatprep.mubr.f32.mxu0 0.0
        %1451 = vmatmul.mubr.f32.gmra.mrb[0].mxu0 %v366
        %v1452 = vpop.f32.mrb[0].mxu0
        %v1453 = vadd.f32 %v1228, %v1452
        %v1454 = vpop.f32.mrb[0].mxu0
        %1455 = vmatprep.mubr.f32.mxu0 0.0
        %1456 = vmatmul.mubr.f32.gmra.mrb[0].mxu0 %v367
        %v1457 = vpop.f32.mrb[0].mxu0
        %v1458 = vadd.f32 %v1233, %v1457
        %v1459 = vpop.f32.mrb[0].mxu0
        %1460 = vdwg.mxu0
        %s1461 = scalar_lea.vmem %s237, 48 [#allocation3]
        %v1462 = vld [vmem:[%s1461] sm:$0xff]
        %v1463 = vld [vmem:[%s1461 + $0x8] sm:$0xff]
        %v1464 = vld [vmem:[%s1461 + $0x18] sm:$0xff]
        %v1465 = vld [vmem:[%s1461 + $0x20] sm:$0xff]
        %v1466 = vld [vmem:[%s1461 + $0x30] sm:$0xff]
        %v1467 = vld [vmem:[%s1461 + $0x38] sm:$0xff]
        %v1468 = vld [vmem:[%s1461 + $0x48] sm:$0xff]
        %v1469 = vld [vmem:[%s1461 + $0x50] sm:$0xff]
        %v1470 = vld [vmem:[%s1461 + $0x60] sm:$0xff]
        %v1471 = vld [vmem:[%s1461 + $0x68] sm:$0xff]
        %v1472 = vld [vmem:[%s1461 + $0x78] sm:$0xff]
        %v1473 = vld [vmem:[%s1461 + $0x80] sm:$0xff]
        %v1474 = vld [vmem:[%s1461 + $0x90] sm:$0xff]
        %v1475 = vld [vmem:[%s1461 + $0x98] sm:$0xff]
        %v1476 = vld [vmem:[%s1461 + $0xa8] sm:$0xff]
        %v1477 = vld [vmem:[%s1461 + $0xb0] sm:$0xff]
        %v1478 = vld [vmem:[%s1461 + $0xc0] sm:$0xff]
        %v1479 = vld [vmem:[%s1461 + $0xc8] sm:$0xff]
        %v1480 = vld [vmem:[%s1461 + $0xd8] sm:$0xff]
        %v1481 = vld [vmem:[%s1461 + $0xe0] sm:$0xff]
        %v1482 = vld [vmem:[%s1461 + $0xf0] sm:$0xff]
        %v1483 = vld [vmem:[%s1461 + $0xf8] sm:$0xff]
        %v1484 = vld [vmem:[%s1461 + $0x108] sm:$0xff]
        %v1485 = vld [vmem:[%s1461 + $0x110] sm:$0xff]
        %v1486 = vld [vmem:[%s1461 + $0x120] sm:$0xff]
        %v1487 = vld [vmem:[%s1461 + $0x128] sm:$0xff]
        %v1488 = vld [vmem:[%s1461 + $0x138] sm:$0xff]
        %v1489 = vld [vmem:[%s1461 + $0x140] sm:$0xff]
        %v1490 = vld [vmem:[%s1461 + $0x150] sm:$0xff]
        %v1491 = vld [vmem:[%s1461 + $0x158] sm:$0xff]
        %v1492 = vld [vmem:[%s1461 + $0x168] sm:$0xff]
        %v1493 = vld [vmem:[%s1461 + $0x170] sm:$0xff]
        %v1494 = vld [vmem:[%s1461 + $0x1] sm:$0xff]
        %v1495 = vld [vmem:[%s1461 + $0x9] sm:$0xff]
        %v1496 = vld [vmem:[%s1461 + $0x19] sm:$0xff]
        %v1497 = vld [vmem:[%s1461 + $0x21] sm:$0xff]
        %v1498 = vld [vmem:[%s1461 + $0x31] sm:$0xff]
        %v1499 = vld [vmem:[%s1461 + $0x39] sm:$0xff]
        %v1500 = vld [vmem:[%s1461 + $0x49] sm:$0xff]
        %v1501 = vld [vmem:[%s1461 + $0x51] sm:$0xff]
        %v1502 = vld [vmem:[%s1461 + $0x61] sm:$0xff]
        %v1503 = vld [vmem:[%s1461 + $0x69] sm:$0xff]
        %v1504 = vld [vmem:[%s1461 + $0x79] sm:$0xff]
        %v1505 = vld [vmem:[%s1461 + $0x81] sm:$0xff]
        %v1506 = vld [vmem:[%s1461 + $0x91] sm:$0xff]
        %v1507 = vld [vmem:[%s1461 + $0x99] sm:$0xff]
        %v1508 = vld [vmem:[%s1461 + $0xa9] sm:$0xff]
        %v1509 = vld [vmem:[%s1461 + $0xb1] sm:$0xff]
        %v1510 = vld [vmem:[%s1461 + $0xc1] sm:$0xff]
        %v1511 = vld [vmem:[%s1461 + $0xc9] sm:$0xff]
        %v1512 = vld [vmem:[%s1461 + $0xd9] sm:$0xff]
        %v1513 = vld [vmem:[%s1461 + $0xe1] sm:$0xff]
        %v1514 = vld [vmem:[%s1461 + $0xf1] sm:$0xff]
        %v1515 = vld [vmem:[%s1461 + $0xf9] sm:$0xff]
        %v1516 = vld [vmem:[%s1461 + $0x109] sm:$0xff]
        %v1517 = vld [vmem:[%s1461 + $0x111] sm:$0xff]
        %v1518 = vld [vmem:[%s1461 + $0x121] sm:$0xff]
        %v1519 = vld [vmem:[%s1461 + $0x129] sm:$0xff]
        %v1520 = vld [vmem:[%s1461 + $0x139] sm:$0xff]
        %v1521 = vld [vmem:[%s1461 + $0x141] sm:$0xff]
        %v1522 = vld [vmem:[%s1461 + $0x151] sm:$0xff]
        %v1523 = vld [vmem:[%s1461 + $0x159] sm:$0xff]
        %v1524 = vld [vmem:[%s1461 + $0x169] sm:$0xff]
        %v1525 = vld [vmem:[%s1461 + $0x171] sm:$0xff]
        %v1526 = vld [vmem:[%s1461 + $0x2] sm:$0xff]
        %v1527 = vld [vmem:[%s1461 + $0xa] sm:$0xff]
        %v1528 = vld [vmem:[%s1461 + $0x1a] sm:$0xff]
        %v1529 = vld [vmem:[%s1461 + $0x22] sm:$0xff]
        %v1530 = vld [vmem:[%s1461 + $0x32] sm:$0xff]
        %v1531 = vld [vmem:[%s1461 + $0x3a] sm:$0xff]
        %v1532 = vld [vmem:[%s1461 + $0x4a] sm:$0xff]
        %v1533 = vld [vmem:[%s1461 + $0x52] sm:$0xff]
        %v1534 = vld [vmem:[%s1461 + $0x62] sm:$0xff]
        %v1535 = vld [vmem:[%s1461 + $0x6a] sm:$0xff]
        %v1536 = vld [vmem:[%s1461 + $0x7a] sm:$0xff]
        %v1537 = vld [vmem:[%s1461 + $0x82] sm:$0xff]
        %v1538 = vld [vmem:[%s1461 + $0x92] sm:$0xff]
        %v1539 = vld [vmem:[%s1461 + $0x9a] sm:$0xff]
        %v1540 = vld [vmem:[%s1461 + $0xaa] sm:$0xff]
        %v1541 = vld [vmem:[%s1461 + $0xb2] sm:$0xff]
        %v1542 = vld [vmem:[%s1461 + $0xc2] sm:$0xff]
        %v1543 = vld [vmem:[%s1461 + $0xca] sm:$0xff]
        %v1544 = vld [vmem:[%s1461 + $0xda] sm:$0xff]
        %v1545 = vld [vmem:[%s1461 + $0xe2] sm:$0xff]
        %v1546 = vld [vmem:[%s1461 + $0xf2] sm:$0xff]
        %v1547 = vld [vmem:[%s1461 + $0xfa] sm:$0xff]
        %v1548 = vld [vmem:[%s1461 + $0x10a] sm:$0xff]
        %v1549 = vld [vmem:[%s1461 + $0x112] sm:$0xff]
        %v1550 = vld [vmem:[%s1461 + $0x122] sm:$0xff]
        %v1551 = vld [vmem:[%s1461 + $0x12a] sm:$0xff]
        %v1552 = vld [vmem:[%s1461 + $0x13a] sm:$0xff]
        %v1553 = vld [vmem:[%s1461 + $0x142] sm:$0xff]
        %v1554 = vld [vmem:[%s1461 + $0x152] sm:$0xff]
        %v1555 = vld [vmem:[%s1461 + $0x15a] sm:$0xff]
        %v1556 = vld [vmem:[%s1461 + $0x16a] sm:$0xff]
        %v1557 = vld [vmem:[%s1461 + $0x172] sm:$0xff]
        %v1558 = vld [vmem:[#allocation6 + $0x300] sm:$0xff]
        %v1559 = vld [vmem:[#allocation6 + $0x308] sm:$0xff]
        %v1560 = vld [vmem:[#allocation6 + $0x310] sm:$0xff]
        %v1561 = vld [vmem:[#allocation6 + $0x318] sm:$0xff]
        %v1562 = vld [vmem:[#allocation6 + $0x320] sm:$0xff]
        %v1563 = vld [vmem:[#allocation6 + $0x328] sm:$0xff]
        %v1564 = vld [vmem:[#allocation6 + $0x330] sm:$0xff]
        %v1565 = vld [vmem:[#allocation6 + $0x338] sm:$0xff]
        %v1566 = vld [vmem:[#allocation6 + $0x340] sm:$0xff]
        %v1567 = vld [vmem:[#allocation6 + $0x348] sm:$0xff]
        %v1568 = vld [vmem:[#allocation6 + $0x350] sm:$0xff]
        %v1569 = vld [vmem:[#allocation6 + $0x358] sm:$0xff]
        %v1570 = vld [vmem:[#allocation6 + $0x360] sm:$0xff]
        %v1571 = vld [vmem:[#allocation6 + $0x368] sm:$0xff]
        %v1572 = vld [vmem:[#allocation6 + $0x370] sm:$0xff]
        %v1573 = vld [vmem:[#allocation6 + $0x378] sm:$0xff]
        %v1574 = vld [vmem:[#allocation6 + $0x380] sm:$0xff]
        %v1575 = vld [vmem:[#allocation6 + $0x388] sm:$0xff]
        %v1576 = vld [vmem:[#allocation6 + $0x390] sm:$0xff]
        %v1577 = vld [vmem:[#allocation6 + $0x398] sm:$0xff]
        %v1578 = vld [vmem:[#allocation6 + $0x3a0] sm:$0xff]
        %v1579 = vld [vmem:[#allocation6 + $0x3a8] sm:$0xff]
        %v1580 = vld [vmem:[#allocation6 + $0x3b0] sm:$0xff]
        %v1581 = vld [vmem:[#allocation6 + $0x3b8] sm:$0xff]
        %v1582 = vld [vmem:[#allocation6 + $0x3c0] sm:$0xff]
        %v1583 = vld [vmem:[#allocation6 + $0x3c8] sm:$0xff]
        %v1584 = vld [vmem:[#allocation6 + $0x3d0] sm:$0xff]
        %v1585 = vld [vmem:[#allocation6 + $0x3d8] sm:$0xff]
        %v1586 = vld [vmem:[#allocation6 + $0x3e0] sm:$0xff]
        %v1587 = vld [vmem:[#allocation6 + $0x3e8] sm:$0xff]
        %v1588 = vld [vmem:[#allocation6 + $0x3f0] sm:$0xff]
        %v1589 = vld [vmem:[#allocation6 + $0x3f8] sm:$0xff]
        %v1590 = vld [vmem:[#allocation6 + $0x400] sm:$0xff]
        %v1591 = vld [vmem:[#allocation6 + $0x408] sm:$0xff]
        %v1592 = vld [vmem:[#allocation6 + $0x410] sm:$0xff]
        %v1593 = vld [vmem:[#allocation6 + $0x418] sm:$0xff]
        %v1594 = vld [vmem:[#allocation6 + $0x420] sm:$0xff]
        %v1595 = vld [vmem:[#allocation6 + $0x428] sm:$0xff]
        %v1596 = vld [vmem:[#allocation6 + $0x430] sm:$0xff]
        %v1597 = vld [vmem:[#allocation6 + $0x438] sm:$0xff]
        %v1598 = vld [vmem:[#allocation6 + $0x440] sm:$0xff]
        %v1599 = vld [vmem:[#allocation6 + $0x448] sm:$0xff]
        %v1600 = vld [vmem:[#allocation6 + $0x450] sm:$0xff]
        %v1601 = vld [vmem:[#allocation6 + $0x458] sm:$0xff]
        %v1602 = vld [vmem:[#allocation6 + $0x460] sm:$0xff]
        %v1603 = vld [vmem:[#allocation6 + $0x468] sm:$0xff]
        %v1604 = vld [vmem:[#allocation6 + $0x470] sm:$0xff]
        %v1605 = vld [vmem:[#allocation6 + $0x478] sm:$0xff]
        %1606 = vmatprep.subr.mxu0 0.0
        %1607 = vmatpush1.msra.mxu0 %v1558
        %1608 = vmatprep.subr.mxu0 0.0
        %1609 = vmatpush1.msra.mxu0 %v1559
        %1610 = vmatprep.subr.mxu0 0.0
        %1611 = vmatpush1.msra.mxu0 %v1560
        %1612 = vmatprep.subr.mxu0 0.0
        %1613 = vmatpush1.msra.mxu0 %v1561
        %1614 = vmatprep.subr.mxu0 0.0
        %1615 = vmatpush1.msra.mxu0 %v1562
        %1616 = vmatprep.subr.mxu0 0.0
        %1617 = vmatpush1.msra.mxu0 %v1563
        %1618 = vmatprep.subr.mxu0 0.0
        %1619 = vmatpush1.msra.mxu0 %v1564
        %1620 = vmatprep.subr.mxu0 0.0
        %1621 = vmatpush1.msra.mxu0 %v1565
        %1622 = vmatprep.subr.mxu0 0.0
        %1623 = vmatpush1.msra.mxu0 %v1566
        %1624 = vmatprep.subr.mxu0 0.0
        %1625 = vmatpush1.msra.mxu0 %v1567
        %1626 = vmatprep.subr.mxu0 0.0
        %1627 = vmatpush1.msra.mxu0 %v1568
        %1628 = vmatprep.subr.mxu0 0.0
        %1629 = vmatpush1.msra.mxu0 %v1569
        %1630 = vmatprep.subr.mxu0 0.0
        %1631 = vmatpush1.msra.mxu0 %v1570
        %1632 = vmatprep.subr.mxu0 0.0
        %1633 = vmatpush1.msra.mxu0 %v1571
        %1634 = vmatprep.subr.mxu0 0.0
        %1635 = vmatpush1.msra.mxu0 %v1572
        %1636 = vmatprep.subr.mxu0 0.0
        %1637 = vmatpush1.msra.mxu0 %v1573
        %1638 = vmatprep.subr.mxu0 0.0
        %1639 = vmatpush1.msra.mxu0 %v1574
        %1640 = vmatprep.subr.mxu0 0.0
        %1641 = vmatpush1.msra.mxu0 %v1575
        %1642 = vmatprep.subr.mxu0 0.0
        %1643 = vmatpush1.msra.mxu0 %v1576
        %1644 = vmatprep.subr.mxu0 0.0
        %1645 = vmatpush1.msra.mxu0 %v1577
        %1646 = vmatprep.subr.mxu0 0.0
        %1647 = vmatpush1.msra.mxu0 %v1578
        %1648 = vmatprep.subr.mxu0 0.0
        %1649 = vmatpush1.msra.mxu0 %v1579
        %1650 = vmatprep.subr.mxu0 0.0
        %1651 = vmatpush1.msra.mxu0 %v1580
        %1652 = vmatprep.subr.mxu0 0.0
        %1653 = vmatpush1.msra.mxu0 %v1581
        %1654 = vmatprep.subr.mxu0 0.0
        %1655 = vmatpush1.msra.mxu0 %v1582
        %1656 = vmatprep.subr.mxu0 0.0
        %1657 = vmatpush1.msra.mxu0 %v1583
        %1658 = vmatprep.subr.mxu0 0.0
        %1659 = vmatpush1.msra.mxu0 %v1584
        %1660 = vmatprep.subr.mxu0 0.0
        %1661 = vmatpush1.msra.mxu0 %v1585
        %1662 = vmatprep.subr.mxu0 0.0
        %1663 = vmatpush1.msra.mxu0 %v1586
        %1664 = vmatprep.subr.mxu0 0.0
        %1665 = vmatpush1.msra.mxu0 %v1587
        %1666 = vmatprep.subr.mxu0 0.0
        %1667 = vmatpush1.msra.mxu0 %v1588
        %1668 = vmatprep.subr.mxu0 0.0
        %1669 = vmatpush1.msra.mxu0 %v1589
        %1670 = vmatprep.mubr.f32.mxu0 %v1494
        %1671 = vmatmul.mubr.f32.gmra.mrb[0].mxu0 %v1462
        %v1672 = vpop.f32.mrb[0].mxu0
        %v1673 = vadd.f32 0.0, %v1672
        %v1674 = vpop.f32.mrb[0].mxu0
        %1675 = vmatprep.mubr.f32.mxu0 %v1495
        %1676 = vmatmul.mubr.f32.gmra.mrb[0].mxu0 %v1463
        %v1677 = vpop.f32.mrb[0].mxu0
        %v1678 = vadd.f32 0.0, %v1677
        %v1679 = vpop.f32.mrb[0].mxu0
        %1680 = vmatprep.mubr.f32.mxu0 %v1496
        %1681 = vmatmul.mubr.f32.gmra.mrb[0].mxu0 %v1464
        %v1682 = vpop.f32.mrb[0].mxu0
        %v1683 = vadd.f32 0.0, %v1682
        %v1684 = vpop.f32.mrb[0].mxu0
        %1685 = vmatprep.mubr.f32.mxu0 %v1497
        %1686 = vmatmul.mubr.f32.gmra.mrb[0].mxu0 %v1465
        %v1687 = vpop.f32.mrb[0].mxu0
        %v1688 = vadd.f32 0.0, %v1687
        %v1689 = vpop.f32.mrb[0].mxu0
        %1690 = vmatprep.mubr.f32.mxu0 %v1498
        %1691 = vmatmul.mubr.f32.gmra.mrb[0].mxu0 %v1466
        %v1692 = vpop.f32.mrb[0].mxu0
        %v1693 = vadd.f32 0.0, %v1692
        %v1694 = vpop.f32.mrb[0].mxu0
        %1695 = vmatprep.mubr.f32.mxu0 %v1499
        %1696 = vmatmul.mubr.f32.gmra.mrb[0].mxu0 %v1467
        %v1697 = vpop.f32.mrb[0].mxu0
        %v1698 = vadd.f32 0.0, %v1697
        %v1699 = vpop.f32.mrb[0].mxu0
        %1700 = vmatprep.mubr.f32.mxu0 %v1500
        %1701 = vmatmul.mubr.f32.gmra.mrb[0].mxu0 %v1468
        %v1702 = vpop.f32.mrb[0].mxu0
        %v1703 = vadd.f32 0.0, %v1702
        %v1704 = vpop.f32.mrb[0].mxu0
        %1705 = vmatprep.mubr.f32.mxu0 %v1501
        %1706 = vmatmul.mubr.f32.gmra.mrb[0].mxu0 %v1469
        %v1707 = vpop.f32.mrb[0].mxu0
        %v1708 = vadd.f32 0.0, %v1707
        %v1709 = vpop.f32.mrb[0].mxu0
        %1710 = vmatprep.mubr.f32.mxu0 %v1502
        %1711 = vmatmul.mubr.f32.gmra.mrb[0].mxu0 %v1470
        %v1712 = vpop.f32.mrb[0].mxu0
        %v1713 = vadd.f32 0.0, %v1712
        %v1714 = vpop.f32.mrb[0].mxu0
        %1715 = vmatprep.mubr.f32.mxu0 %v1503
        %1716 = vmatmul.mubr.f32.gmra.mrb[0].mxu0 %v1471
        %v1717 = vpop.f32.mrb[0].mxu0
        %v1718 = vadd.f32 0.0, %v1717
        %v1719 = vpop.f32.mrb[0].mxu0
        %1720 = vmatprep.mubr.f32.mxu0 %v1504
        %1721 = vmatmul.mubr.f32.gmra.mrb[0].mxu0 %v1472
        %v1722 = vpop.f32.mrb[0].mxu0
        %v1723 = vadd.f32 0.0, %v1722
        %v1724 = vpop.f32.mrb[0].mxu0
        %1725 = vmatprep.mubr.f32.mxu0 %v1505
        %1726 = vmatmul.mubr.f32.gmra.mrb[0].mxu0 %v1473
        %v1727 = vpop.f32.mrb[0].mxu0
        %v1728 = vadd.f32 0.0, %v1727
        %v1729 = vpop.f32.mrb[0].mxu0
        %1730 = vmatprep.mubr.f32.mxu0 %v1506
        %1731 = vmatmul.mubr.f32.gmra.mrb[0].mxu0 %v1474
        %v1732 = vpop.f32.mrb[0].mxu0
        %v1733 = vadd.f32 0.0, %v1732
        %v1734 = vpop.f32.mrb[0].mxu0
        %1735 = vmatprep.mubr.f32.mxu0 %v1507
        %1736 = vmatmul.mubr.f32.gmra.mrb[0].mxu0 %v1475
        %v1737 = vpop.f32.mrb[0].mxu0
        %v1738 = vadd.f32 0.0, %v1737
        %v1739 = vpop.f32.mrb[0].mxu0
        %1740 = vmatprep.mubr.f32.mxu0 %v1508
        %1741 = vmatmul.mubr.f32.gmra.mrb[0].mxu0 %v1476
        %v1742 = vpop.f32.mrb[0].mxu0
        %v1743 = vadd.f32 0.0, %v1742
        %v1744 = vpop.f32.mrb[0].mxu0
        %1745 = vmatprep.mubr.f32.mxu0 %v1509
        %1746 = vmatmul.mubr.f32.gmra.mrb[0].mxu0 %v1477
        %v1747 = vpop.f32.mrb[0].mxu0
        %v1748 = vadd.f32 0.0, %v1747
        %v1749 = vpop.f32.mrb[0].mxu0
        %1750 = vmatprep.mubr.f32.mxu0 %v1510
        %1751 = vmatmul.mubr.f32.gmra.mrb[0].mxu0 %v1478
        %v1752 = vpop.f32.mrb[0].mxu0
        %v1753 = vadd.f32 0.0, %v1752
        %v1754 = vpop.f32.mrb[0].mxu0
        %1755 = vmatprep.mubr.f32.mxu0 %v1511
        %1756 = vmatmul.mubr.f32.gmra.mrb[0].mxu0 %v1479
        %v1757 = vpop.f32.mrb[0].mxu0
        %v1758 = vadd.f32 0.0, %v1757
        %v1759 = vpop.f32.mrb[0].mxu0
        %1760 = vmatprep.mubr.f32.mxu0 %v1512
        %1761 = vmatmul.mubr.f32.gmra.mrb[0].mxu0 %v1480
        %v1762 = vpop.f32.mrb[0].mxu0
        %v1763 = vadd.f32 0.0, %v1762
        %v1764 = vpop.f32.mrb[0].mxu0
        %1765 = vmatprep.mubr.f32.mxu0 %v1513
        %1766 = vmatmul.mubr.f32.gmra.mrb[0].mxu0 %v1481
        %v1767 = vpop.f32.mrb[0].mxu0
        %v1768 = vadd.f32 0.0, %v1767
        %v1769 = vpop.f32.mrb[0].mxu0
        %1770 = vmatprep.mubr.f32.mxu0 %v1514
        %1771 = vmatmul.mubr.f32.gmra.mrb[0].mxu0 %v1482
        %v1772 = vpop.f32.mrb[0].mxu0
        %v1773 = vadd.f32 0.0, %v1772
        %v1774 = vpop.f32.mrb[0].mxu0
        %1775 = vmatprep.mubr.f32.mxu0 %v1515
        %1776 = vmatmul.mubr.f32.gmra.mrb[0].mxu0 %v1483
        %v1777 = vpop.f32.mrb[0].mxu0
        %v1778 = vadd.f32 0.0, %v1777
        %v1779 = vpop.f32.mrb[0].mxu0
        %1780 = vmatprep.mubr.f32.mxu0 %v1516
        %1781 = vmatmul.mubr.f32.gmra.mrb[0].mxu0 %v1484
        %v1782 = vpop.f32.mrb[0].mxu0
        %v1783 = vadd.f32 0.0, %v1782
        %v1784 = vpop.f32.mrb[0].mxu0
        %1785 = vmatprep.mubr.f32.mxu0 %v1517
        %1786 = vmatmul.mubr.f32.gmra.mrb[0].mxu0 %v1485
        %v1787 = vpop.f32.mrb[0].mxu0
        %v1788 = vadd.f32 0.0, %v1787
        %v1789 = vpop.f32.mrb[0].mxu0
        %1790 = vmatprep.mubr.f32.mxu0 %v1518
        %1791 = vmatmul.mubr.f32.gmra.mrb[0].mxu0 %v1486
        %v1792 = vpop.f32.mrb[0].mxu0
        %v1793 = vadd.f32 0.0, %v1792
        %v1794 = vpop.f32.mrb[0].mxu0
        %1795 = vmatprep.mubr.f32.mxu0 %v1519
        %1796 = vmatmul.mubr.f32.gmra.mrb[0].mxu0 %v1487
        %v1797 = vpop.f32.mrb[0].mxu0
        %v1798 = vadd.f32 0.0, %v1797
        %v1799 = vpop.f32.mrb[0].mxu0
        %1800 = vmatprep.mubr.f32.mxu0 %v1520
        %1801 = vmatmul.mubr.f32.gmra.mrb[0].mxu0 %v1488
        %v1802 = vpop.f32.mrb[0].mxu0
        %v1803 = vadd.f32 0.0, %v1802
        %v1804 = vpop.f32.mrb[0].mxu0
        %1805 = vmatprep.mubr.f32.mxu0 %v1521
        %1806 = vmatmul.mubr.f32.gmra.mrb[0].mxu0 %v1489
        %v1807 = vpop.f32.mrb[0].mxu0
        %v1808 = vadd.f32 0.0, %v1807
        %v1809 = vpop.f32.mrb[0].mxu0
        %1810 = vmatprep.mubr.f32.mxu0 %v1522
        %1811 = vmatmul.mubr.f32.gmra.mrb[0].mxu0 %v1490
        %v1812 = vpop.f32.mrb[0].mxu0
        %v1813 = vadd.f32 0.0, %v1812
        %v1814 = vpop.f32.mrb[0].mxu0
        %1815 = vmatprep.mubr.f32.mxu0 %v1523
        %1816 = vmatmul.mubr.f32.gmra.mrb[0].mxu0 %v1491
        %v1817 = vpop.f32.mrb[0].mxu0
        %v1818 = vadd.f32 0.0, %v1817
        %v1819 = vpop.f32.mrb[0].mxu0
        %1820 = vmatprep.mubr.f32.mxu0 %v1524
        %1821 = vmatmul.mubr.f32.gmra.mrb[0].mxu0 %v1492
        %v1822 = vpop.f32.mrb[0].mxu0
        %v1823 = vadd.f32 0.0, %v1822
        %v1824 = vpop.f32.mrb[0].mxu0
        %1825 = vmatprep.mubr.f32.mxu0 %v1525
        %1826 = vmatmul.mubr.f32.gmra.mrb[0].mxu0 %v1493
        %v1827 = vpop.f32.mrb[0].mxu0
        %v1828 = vadd.f32 0.0, %v1827
        %v1829 = vpop.f32.mrb[0].mxu0
        %1830 = vdwg.mxu0
        %1831 = vmatprep.subr.mxu0 0.0
        %1832 = vmatpush1.msra.mxu0 %v1590
        %1833 = vmatprep.subr.mxu0 0.0
        %1834 = vmatpush1.msra.mxu0 %v1591
        %1835 = vmatprep.subr.mxu0 0.0
        %1836 = vmatpush1.msra.mxu0 %v1592
        %1837 = vmatprep.subr.mxu0 0.0
        %1838 = vmatpush1.msra.mxu0 %v1593
        %1839 = vmatprep.subr.mxu0 0.0
        %1840 = vmatpush1.msra.mxu0 %v1594
        %1841 = vmatprep.subr.mxu0 0.0
        %1842 = vmatpush1.msra.mxu0 %v1595
        %1843 = vmatprep.subr.mxu0 0.0
        %1844 = vmatpush1.msra.mxu0 %v1596
        %1845 = vmatprep.subr.mxu0 0.0
        %1846 = vmatpush1.msra.mxu0 %v1597
        %1847 = vmatprep.subr.mxu0 0.0
        %1848 = vmatpush1.msra.mxu0 %v1598
        %1849 = vmatprep.subr.mxu0 0.0
        %1850 = vmatpush1.msra.mxu0 %v1599
        %1851 = vmatprep.subr.mxu0 0.0
        %1852 = vmatpush1.msra.mxu0 %v1600
        %1853 = vmatprep.subr.mxu0 0.0
        %1854 = vmatpush1.msra.mxu0 %v1601
        %1855 = vmatprep.subr.mxu0 0.0
        %1856 = vmatpush1.msra.mxu0 %v1602
        %1857 = vmatprep.subr.mxu0 0.0
        %1858 = vmatpush1.msra.mxu0 %v1603
        %1859 = vmatprep.subr.mxu0 0.0
        %1860 = vmatpush1.msra.mxu0 %v1604
        %1861 = vmatprep.subr.mxu0 0.0
        %1862 = vmatpush1.msra.mxu0 %v1605
        %1863 = vmatprep.subr.mxu0 0.0
        %1864 = vmatpush1.msra.mxu0 0.0
        %1865 = vmatprep.subr.mxu0 0.0
        %1866 = vmatpush1.msra.mxu0 0.0
        %1867 = vmatprep.subr.mxu0 0.0
        %1868 = vmatpush1.msra.mxu0 0.0
        %1869 = vmatprep.subr.mxu0 0.0
        %1870 = vmatpush1.msra.mxu0 0.0
        %1871 = vmatprep.subr.mxu0 0.0
        %1872 = vmatpush1.msra.mxu0 0.0
        %1873 = vmatprep.subr.mxu0 0.0
        %1874 = vmatpush1.msra.mxu0 0.0
        %1875 = vmatprep.subr.mxu0 0.0
        %1876 = vmatpush1.msra.mxu0 0.0
        %1877 = vmatprep.subr.mxu0 0.0
        %1878 = vmatpush1.msra.mxu0 0.0
        %1879 = vmatprep.subr.mxu0 0.0
        %1880 = vmatpush1.msra.mxu0 0.0
        %1881 = vmatprep.subr.mxu0 0.0
        %1882 = vmatpush1.msra.mxu0 0.0
        %1883 = vmatprep.subr.mxu0 0.0
        %1884 = vmatpush1.msra.mxu0 0.0
        %1885 = vmatprep.subr.mxu0 0.0
        %1886 = vmatpush1.msra.mxu0 0.0
        %1887 = vmatprep.subr.mxu0 0.0
        %1888 = vmatpush1.msra.mxu0 0.0
        %1889 = vmatprep.subr.mxu0 0.0
        %1890 = vmatpush1.msra.mxu0 0.0
        %1891 = vmatprep.subr.mxu0 0.0
        %1892 = vmatpush1.msra.mxu0 0.0
        %1893 = vmatprep.subr.mxu0 0.0
        %1894 = vmatpush1.msra.mxu0 0.0
        %1895 = vmatprep.mubr.f32.mxu0 0.0
        %1896 = vmatmul.mubr.f32.gmra.mrb[0].mxu0 %v1526
        %v1897 = vpop.f32.mrb[0].mxu0
        %v1898 = vadd.f32 %v1673, %v1897
        %v1899 = vpop.f32.mrb[0].mxu0
        %1900 = vmatprep.mubr.f32.mxu0 0.0
        %1901 = vmatmul.mubr.f32.gmra.mrb[0].mxu0 %v1527
        %v1902 = vpop.f32.mrb[0].mxu0
        %v1903 = vadd.f32 %v1678, %v1902
        %v1904 = vpop.f32.mrb[0].mxu0
        %1905 = vmatprep.mubr.f32.mxu0 0.0
        %1906 = vmatmul.mubr.f32.gmra.mrb[0].mxu0 %v1528
        %v1907 = vpop.f32.mrb[0].mxu0
        %v1908 = vadd.f32 %v1683, %v1907
        %v1909 = vpop.f32.mrb[0].mxu0
        %1910 = vmatprep.mubr.f32.mxu0 0.0
        %1911 = vmatmul.mubr.f32.gmra.mrb[0].mxu0 %v1529
        %v1912 = vpop.f32.mrb[0].mxu0
        %v1913 = vadd.f32 %v1688, %v1912
        %v1914 = vpop.f32.mrb[0].mxu0
        %1915 = vmatprep.mubr.f32.mxu0 0.0
        %1916 = vmatmul.mubr.f32.gmra.mrb[0].mxu0 %v1530
        %v1917 = vpop.f32.mrb[0].mxu0
        %v1918 = vadd.f32 %v1693, %v1917
        %v1919 = vpop.f32.mrb[0].mxu0
        %1920 = vmatprep.mubr.f32.mxu0 0.0
        %1921 = vmatmul.mubr.f32.gmra.mrb[0].mxu0 %v1531
        %v1922 = vpop.f32.mrb[0].mxu0
        %v1923 = vadd.f32 %v1698, %v1922
        %v1924 = vpop.f32.mrb[0].mxu0
        %1925 = vmatprep.mubr.f32.mxu0 0.0
        %1926 = vmatmul.mubr.f32.gmra.mrb[0].mxu0 %v1532
        %v1927 = vpop.f32.mrb[0].mxu0
        %v1928 = vadd.f32 %v1703, %v1927
        %v1929 = vpop.f32.mrb[0].mxu0
        %1930 = vmatprep.mubr.f32.mxu0 0.0
        %1931 = vmatmul.mubr.f32.gmra.mrb[0].mxu0 %v1533
        %v1932 = vpop.f32.mrb[0].mxu0
        %v1933 = vadd.f32 %v1708, %v1932
        %v1934 = vpop.f32.mrb[0].mxu0
        %1935 = vmatprep.mubr.f32.mxu0 0.0
        %1936 = vmatmul.mubr.f32.gmra.mrb[0].mxu0 %v1534
        %v1937 = vpop.f32.mrb[0].mxu0
        %v1938 = vadd.f32 %v1713, %v1937
        %v1939 = vpop.f32.mrb[0].mxu0
        %1940 = vmatprep.mubr.f32.mxu0 0.0
        %1941 = vmatmul.mubr.f32.gmra.mrb[0].mxu0 %v1535
        %v1942 = vpop.f32.mrb[0].mxu0
        %v1943 = vadd.f32 %v1718, %v1942
        %v1944 = vpop.f32.mrb[0].mxu0
        %1945 = vmatprep.mubr.f32.mxu0 0.0
        %1946 = vmatmul.mubr.f32.gmra.mrb[0].mxu0 %v1536
        %v1947 = vpop.f32.mrb[0].mxu0
        %v1948 = vadd.f32 %v1723, %v1947
        %v1949 = vpop.f32.mrb[0].mxu0
        %1950 = vmatprep.mubr.f32.mxu0 0.0
        %1951 = vmatmul.mubr.f32.gmra.mrb[0].mxu0 %v1537
        %v1952 = vpop.f32.mrb[0].mxu0
        %v1953 = vadd.f32 %v1728, %v1952
        %v1954 = vpop.f32.mrb[0].mxu0
        %1955 = vmatprep.mubr.f32.mxu0 0.0
        %1956 = vmatmul.mubr.f32.gmra.mrb[0].mxu0 %v1538
        %v1957 = vpop.f32.mrb[0].mxu0
        %v1958 = vadd.f32 %v1733, %v1957
        %v1959 = vpop.f32.mrb[0].mxu0
        %1960 = vmatprep.mubr.f32.mxu0 0.0
        %1961 = vmatmul.mubr.f32.gmra.mrb[0].mxu0 %v1539
        %v1962 = vpop.f32.mrb[0].mxu0
        %v1963 = vadd.f32 %v1738, %v1962
        %v1964 = vpop.f32.mrb[0].mxu0
        %1965 = vmatprep.mubr.f32.mxu0 0.0
        %1966 = vmatmul.mubr.f32.gmra.mrb[0].mxu0 %v1540
        %v1967 = vpop.f32.mrb[0].mxu0
        %v1968 = vadd.f32 %v1743, %v1967
        %v1969 = vpop.f32.mrb[0].mxu0
        %1970 = vmatprep.mubr.f32.mxu0 0.0
        %1971 = vmatmul.mubr.f32.gmra.mrb[0].mxu0 %v1541
        %v1972 = vpop.f32.mrb[0].mxu0
        %v1973 = vadd.f32 %v1748, %v1972
        %v1974 = vpop.f32.mrb[0].mxu0
        %1975 = vmatprep.mubr.f32.mxu0 0.0
        %1976 = vmatmul.mubr.f32.gmra.mrb[0].mxu0 %v1542
        %v1977 = vpop.f32.mrb[0].mxu0
        %v1978 = vadd.f32 %v1753, %v1977
        %v1979 = vpop.f32.mrb[0].mxu0
        %1980 = vmatprep.mubr.f32.mxu0 0.0
        %1981 = vmatmul.mubr.f32.gmra.mrb[0].mxu0 %v1543
        %v1982 = vpop.f32.mrb[0].mxu0
        %v1983 = vadd.f32 %v1758, %v1982
        %v1984 = vpop.f32.mrb[0].mxu0
        %1985 = vmatprep.mubr.f32.mxu0 0.0
        %1986 = vmatmul.mubr.f32.gmra.mrb[0].mxu0 %v1544
        %v1987 = vpop.f32.mrb[0].mxu0
        %v1988 = vadd.f32 %v1763, %v1987
        %v1989 = vpop.f32.mrb[0].mxu0
        %1990 = vmatprep.mubr.f32.mxu0 0.0
        %1991 = vmatmul.mubr.f32.gmra.mrb[0].mxu0 %v1545
        %v1992 = vpop.f32.mrb[0].mxu0
        %v1993 = vadd.f32 %v1768, %v1992
        %v1994 = vpop.f32.mrb[0].mxu0
        %1995 = vmatprep.mubr.f32.mxu0 0.0
        %1996 = vmatmul.mubr.f32.gmra.mrb[0].mxu0 %v1546
        %v1997 = vpop.f32.mrb[0].mxu0
        %v1998 = vadd.f32 %v1773, %v1997
        %v1999 = vpop.f32.mrb[0].mxu0
        %2000 = vmatprep.mubr.f32.mxu0 0.0
        %2001 = vmatmul.mubr.f32.gmra.mrb[0].mxu0 %v1547
        %v2002 = vpop.f32.mrb[0].mxu0
        %v2003 = vadd.f32 %v1778, %v2002
        %v2004 = vpop.f32.mrb[0].mxu0
        %2005 = vmatprep.mubr.f32.mxu0 0.0
        %2006 = vmatmul.mubr.f32.gmra.mrb[0].mxu0 %v1548
        %v2007 = vpop.f32.mrb[0].mxu0
        %v2008 = vadd.f32 %v1783, %v2007
        %v2009 = vpop.f32.mrb[0].mxu0
        %2010 = vmatprep.mubr.f32.mxu0 0.0
        %2011 = vmatmul.mubr.f32.gmra.mrb[0].mxu0 %v1549
        %v2012 = vpop.f32.mrb[0].mxu0
        %v2013 = vadd.f32 %v1788, %v2012
        %v2014 = vpop.f32.mrb[0].mxu0
        %2015 = vmatprep.mubr.f32.mxu0 0.0
        %2016 = vmatmul.mubr.f32.gmra.mrb[0].mxu0 %v1550
        %v2017 = vpop.f32.mrb[0].mxu0
        %v2018 = vadd.f32 %v1793, %v2017
        %v2019 = vpop.f32.mrb[0].mxu0
        %2020 = vmatprep.mubr.f32.mxu0 0.0
        %2021 = vmatmul.mubr.f32.gmra.mrb[0].mxu0 %v1551
        %v2022 = vpop.f32.mrb[0].mxu0
        %v2023 = vadd.f32 %v1798, %v2022
        %v2024 = vpop.f32.mrb[0].mxu0
        %2025 = vmatprep.mubr.f32.mxu0 0.0
        %2026 = vmatmul.mubr.f32.gmra.mrb[0].mxu0 %v1552
        %v2027 = vpop.f32.mrb[0].mxu0
        %v2028 = vadd.f32 %v1803, %v2027
        %v2029 = vpop.f32.mrb[0].mxu0
        %2030 = vmatprep.mubr.f32.mxu0 0.0
        %2031 = vmatmul.mubr.f32.gmra.mrb[0].mxu0 %v1553
        %v2032 = vpop.f32.mrb[0].mxu0
        %v2033 = vadd.f32 %v1808, %v2032
        %v2034 = vpop.f32.mrb[0].mxu0
        %2035 = vmatprep.mubr.f32.mxu0 0.0
        %2036 = vmatmul.mubr.f32.gmra.mrb[0].mxu0 %v1554
        %v2037 = vpop.f32.mrb[0].mxu0
        %v2038 = vadd.f32 %v1813, %v2037
        %v2039 = vpop.f32.mrb[0].mxu0
        %2040 = vmatprep.mubr.f32.mxu0 0.0
        %2041 = vmatmul.mubr.f32.gmra.mrb[0].mxu0 %v1555
        %v2042 = vpop.f32.mrb[0].mxu0
        %v2043 = vadd.f32 %v1818, %v2042
        %v2044 = vpop.f32.mrb[0].mxu0
        %2045 = vmatprep.mubr.f32.mxu0 0.0
        %2046 = vmatmul.mubr.f32.gmra.mrb[0].mxu0 %v1556
        %v2047 = vpop.f32.mrb[0].mxu0
        %v2048 = vadd.f32 %v1823, %v2047
        %v2049 = vpop.f32.mrb[0].mxu0
        %2050 = vmatprep.mubr.f32.mxu0 0.0
        %2051 = vmatmul.mubr.f32.gmra.mrb[0].mxu0 %v1557
        %v2052 = vpop.f32.mrb[0].mxu0
        %v2053 = vadd.f32 %v1828, %v2052
        %v2054 = vpop.f32.mrb[0].mxu0
        %2055 = vdwg.mxu0
        %v2056 = vadd.f32 %v1303, %v1898
        %v2057 = vadd.f32 %v1308, %v1903
        %v2058 = vadd.f32 %v1313, %v1908
        %v2059 = vadd.f32 %v1318, %v1913
        %v2060 = vadd.f32 %v1323, %v1918
        %v2061 = vadd.f32 %v1328, %v1923
        %v2062 = vadd.f32 %v1333, %v1928
        %v2063 = vadd.f32 %v1338, %v1933
        %v2064 = vadd.f32 %v1343, %v1938
        %v2065 = vadd.f32 %v1348, %v1943
        %v2066 = vadd.f32 %v1353, %v1948
        %v2067 = vadd.f32 %v1358, %v1953
        %v2068 = vadd.f32 %v1363, %v1958
        %v2069 = vadd.f32 %v1368, %v1963
        %v2070 = vadd.f32 %v1373, %v1968
        %v2071 = vadd.f32 %v1378, %v1973
        %v2072 = vadd.f32 %v1383, %v1978
        %v2073 = vadd.f32 %v1388, %v1983
        %v2074 = vadd.f32 %v1393, %v1988
        %v2075 = vadd.f32 %v1398, %v1993
        %v2076 = vadd.f32 %v1403, %v1998
        %v2077 = vadd.f32 %v1408, %v2003
        %v2078 = vadd.f32 %v1413, %v2008
        %v2079 = vadd.f32 %v1418, %v2013
        %v2080 = vadd.f32 %v1423, %v2018
        %v2081 = vadd.f32 %v1428, %v2023
        %v2082 = vadd.f32 %v1433, %v2028
        %v2083 = vadd.f32 %v1438, %v2033
        %v2084 = vadd.f32 %v1443, %v2038
        %v2085 = vadd.f32 %v1448, %v2043
        %v2086 = vadd.f32 %v1453, %v2048
        %v2087 = vadd.f32 %v1458, %v2053
        %v2088 = vld [vmem:[%s2] sm:$0x1]
        %v2090 = vlaneseq
        %v2091 = vshrl.u32 %v2090, 7
        %v2092 = vsub.s32 0, %v2091
        %v2093 = vrot.slane %v2088, %v2092
        %v2095 = vadd.f32 %v2056, %v2093
        %v2096 = vadd.f32 %v2057, %v2093
        %v2097 = vadd.f32 %v2058, %v2093
        %v2098 = vadd.f32 %v2059, %v2093
        %v2099 = vadd.f32 %v2060, %v2093
        %v2100 = vadd.f32 %v2061, %v2093
        %v2101 = vadd.f32 %v2062, %v2093
        %v2102 = vadd.f32 %v2063, %v2093
        %v2103 = vadd.f32 %v2064, %v2093
        %v2104 = vadd.f32 %v2065, %v2093
        %v2105 = vadd.f32 %v2066, %v2093
        %v2106 = vadd.f32 %v2067, %v2093
        %v2107 = vadd.f32 %v2068, %v2093
        %v2108 = vadd.f32 %v2069, %v2093
        %v2109 = vadd.f32 %v2070, %v2093
        %v2110 = vadd.f32 %v2071, %v2093
        %v2111 = vadd.f32 %v2072, %v2093
        %v2112 = vadd.f32 %v2073, %v2093
        %v2113 = vadd.f32 %v2074, %v2093
        %v2114 = vadd.f32 %v2075, %v2093
        %v2115 = vadd.f32 %v2076, %v2093
        %v2116 = vadd.f32 %v2077, %v2093
        %v2117 = vadd.f32 %v2078, %v2093
        %v2118 = vadd.f32 %v2079, %v2093
        %v2119 = vadd.f32 %v2080, %v2093
        %v2120 = vadd.f32 %v2081, %v2093
        %v2121 = vadd.f32 %v2082, %v2093
        %v2122 = vadd.f32 %v2083, %v2093
        %v2123 = vadd.f32 %v2084, %v2093
        %v2124 = vadd.f32 %v2085, %v2093
        %v2125 = vadd.f32 %v2086, %v2093
        %v2126 = vadd.f32 %v2087, %v2093
        %v2127 = vmax.f32 %v2095, 0.0
        %v2128 = vmax.f32 %v2096, 0.0
        %v2129 = vmax.f32 %v2097, 0.0
        %v2130 = vmax.f32 %v2098, 0.0
        %v2131 = vmax.f32 %v2099, 0.0
        %v2132 = vmax.f32 %v2100, 0.0
        %v2133 = vmax.f32 %v2101, 0.0
        %v2134 = vmax.f32 %v2102, 0.0
        %v2135 = vmax.f32 %v2103, 0.0
        %v2136 = vmax.f32 %v2104, 0.0
        %v2137 = vmax.f32 %v2105, 0.0
        %v2138 = vmax.f32 %v2106, 0.0
        %v2139 = vmax.f32 %v2107, 0.0
        %v2140 = vmax.f32 %v2108, 0.0
        %v2141 = vmax.f32 %v2109, 0.0
        %v2142 = vmax.f32 %v2110, 0.0
        %v2143 = vmax.f32 %v2111, 0.0
        %v2144 = vmax.f32 %v2112, 0.0
        %v2145 = vmax.f32 %v2113, 0.0
        %v2146 = vmax.f32 %v2114, 0.0
        %v2147 = vmax.f32 %v2115, 0.0
        %v2148 = vmax.f32 %v2116, 0.0
        %v2149 = vmax.f32 %v2117, 0.0
        %v2150 = vmax.f32 %v2118, 0.0
        %v2151 = vmax.f32 %v2119, 0.0
        %v2152 = vmax.f32 %v2120, 0.0
        %v2153 = vmax.f32 %v2121, 0.0
        %v2154 = vmax.f32 %v2122, 0.0
        %v2155 = vmax.f32 %v2123, 0.0
        %v2156 = vmax.f32 %v2124, 0.0
        %v2157 = vmax.f32 %v2125, 0.0
        %v2158 = vmax.f32 %v2126, 0.0
        %2159 = vst [vmem:[#allocation2] sm:$0xff] 0.0
        %2160 = vst [vmem:[#allocation2 + $0x8] sm:$0xff] 0.0
        %2161 = vst [vmem:[#allocation2 + $0x10] sm:$0xff] 0.0
        %s2162 = scalar_lea.vmem [#allocation2], 408
        %2163 = vst [vmem:[%s2162] sm:$0xff] 0.0
        %2164 = vst [vmem:[%s2162 + $0x8] sm:$0xff] 0.0
        %2165 = vst [vmem:[%s2162 + $0x10] sm:$0xff] 0.0
        %s2166 = scalar_lea.vmem [#allocation2], 24
        %2167 = vst [vmem:[%s2166] sm:$0x1] 0.0
        %2168 = vst [vmem:[%s2166 + $0x18] sm:$0x1] 0.0
        %2169 = vst [vmem:[%s2166 + $0x30] sm:$0x1] 0.0
        %2170 = vst [vmem:[%s2166 + $0x48] sm:$0x1] 0.0
        %2171 = vst [vmem:[%s2166 + $0x60] sm:$0x1] 0.0
        %2172 = vst [vmem:[%s2166 + $0x78] sm:$0x1] 0.0
        %2173 = vst [vmem:[%s2166 + $0x90] sm:$0x1] 0.0
        %2174 = vst [vmem:[%s2166 + $0xa8] sm:$0x1] 0.0
        %2175 = vst [vmem:[%s2166 + $0xc0] sm:$0x1] 0.0
        %2176 = vst [vmem:[%s2166 + $0xd8] sm:$0x1] 0.0
        %2177 = vst [vmem:[%s2166 + $0xf0] sm:$0x1] 0.0
        %2178 = vst [vmem:[%s2166 + $0x108] sm:$0x1] 0.0
        %2179 = vst [vmem:[%s2166 + $0x120] sm:$0x1] 0.0
        %2180 = vst [vmem:[%s2166 + $0x138] sm:$0x1] 0.0
        %2181 = vst [vmem:[%s2166 + $0x150] sm:$0x1] 0.0
        %2182 = vst [vmem:[%s2166 + $0x168] sm:$0x1] 0.0
        %2183 = vst [vmem:[%s2166 + $0x11] sm:$0x1] 0.0
        %2184 = vst [vmem:[%s2166 + $0x29] sm:$0x1] 0.0
        %2185 = vst [vmem:[%s2166 + $0x41] sm:$0x1] 0.0
        %2186 = vst [vmem:[%s2166 + $0x59] sm:$0x1] 0.0
        %2187 = vst [vmem:[%s2166 + $0x71] sm:$0x1] 0.0
        %2188 = vst [vmem:[%s2166 + $0x89] sm:$0x1] 0.0
        %2189 = vst [vmem:[%s2166 + $0xa1] sm:$0x1] 0.0
        %2190 = vst [vmem:[%s2166 + $0xb9] sm:$0x1] 0.0
        %2191 = vst [vmem:[%s2166 + $0xd1] sm:$0x1] 0.0
        %2192 = vst [vmem:[%s2166 + $0xe9] sm:$0x1] 0.0
        %2193 = vst [vmem:[%s2166 + $0x101] sm:$0x1] 0.0
        %2194 = vst [vmem:[%s2166 + $0x119] sm:$0x1] 0.0
        %2195 = vst [vmem:[%s2166 + $0x131] sm:$0x1] 0.0
        %2196 = vst [vmem:[%s2166 + $0x149] sm:$0x1] 0.0
        %2197 = vst [vmem:[%s2166 + $0x161] sm:$0x1] 0.0
        %2198 = vst [vmem:[%s2166 + $0x179] sm:$0x1] 0.0
        %2199 = vst [vmem:[%s2166 + $0x1] sm:$0xff] %v2127
        %2200 = vst [vmem:[%s2166 + $0x9] sm:$0xff] %v2128
        %2201 = vst [vmem:[%s2166 + $0x19] sm:$0xff] %v2129
        %2202 = vst [vmem:[%s2166 + $0x21] sm:$0xff] %v2130
        %2203 = vst [vmem:[%s2166 + $0x31] sm:$0xff] %v2131
        %2204 = vst [vmem:[%s2166 + $0x39] sm:$0xff] %v2132
        %2205 = vst [vmem:[%s2166 + $0x49] sm:$0xff] %v2133
        %2206 = vst [vmem:[%s2166 + $0x51] sm:$0xff] %v2134
        %2207 = vst [vmem:[%s2166 + $0x61] sm:$0xff] %v2135
        %2208 = vst [vmem:[%s2166 + $0x69] sm:$0xff] %v2136
        %2209 = vst [vmem:[%s2166 + $0x79] sm:$0xff] %v2137
        %2210 = vst [vmem:[%s2166 + $0x81] sm:$0xff] %v2138
        %2211 = vst [vmem:[%s2166 + $0x91] sm:$0xff] %v2139
        %2212 = vst [vmem:[%s2166 + $0x99] sm:$0xff] %v2140
        %2213 = vst [vmem:[%s2166 + $0xa9] sm:$0xff] %v2141
        %2214 = vst [vmem:[%s2166 + $0xb1] sm:$0xff] %v2142
        %2215 = vst [vmem:[%s2166 + $0xc1] sm:$0xff] %v2143
        %2216 = vst [vmem:[%s2166 + $0xc9] sm:$0xff] %v2144
        %2217 = vst [vmem:[%s2166 + $0xd9] sm:$0xff] %v2145
        %2218 = vst [vmem:[%s2166 + $0xe1] sm:$0xff] %v2146
        %2219 = vst [vmem:[%s2166 + $0xf1] sm:$0xff] %v2147
        %2220 = vst [vmem:[%s2166 + $0xf9] sm:$0xff] %v2148
        %2221 = vst [vmem:[%s2166 + $0x109] sm:$0xff] %v2149
        %2222 = vst [vmem:[%s2166 + $0x111] sm:$0xff] %v2150
        %2223 = vst [vmem:[%s2166 + $0x121] sm:$0xff] %v2151
        %2224 = vst [vmem:[%s2166 + $0x129] sm:$0xff] %v2152
        %2225 = vst [vmem:[%s2166 + $0x139] sm:$0xff] %v2153
        %2226 = vst [vmem:[%s2166 + $0x141] sm:$0xff] %v2154
        %2227 = vst [vmem:[%s2166 + $0x151] sm:$0xff] %v2155
        %2228 = vst [vmem:[%s2166 + $0x159] sm:$0xff] %v2156
        %2229 = vst [vmem:[%s2166 + $0x169] sm:$0xff] %v2157
        %2230 = vst [vmem:[%s2166 + $0x171] sm:$0xff] %v2158
        %v2231 = vld [vmem:[#allocation2] sm:$0xff]
        %v2232 = vld [vmem:[#allocation2 + $0x8] sm:$0xff]
        %v2233 = vld [vmem:[#allocation2 + $0x18] sm:$0xff]
        %v2234 = vld [vmem:[#allocation2 + $0x20] sm:$0xff]
        %v2235 = vld [vmem:[#allocation2 + $0x30] sm:$0xff]
        %v2236 = vld [vmem:[#allocation2 + $0x38] sm:$0xff]
        %v2237 = vld [vmem:[#allocation2 + $0x48] sm:$0xff]
        %v2238 = vld [vmem:[#allocation2 + $0x50] sm:$0xff]
        %v2239 = vld [vmem:[#allocation2 + $0x60] sm:$0xff]
        %v2240 = vld [vmem:[#allocation2 + $0x68] sm:$0xff]
        %v2241 = vld [vmem:[#allocation2 + $0x78] sm:$0xff]
        %v2242 = vld [vmem:[#allocation2 + $0x80] sm:$0xff]
        %v2243 = vld [vmem:[#allocation2 + $0x90] sm:$0xff]
        %v2244 = vld [vmem:[#allocation2 + $0x98] sm:$0xff]
        %v2245 = vld [vmem:[#allocation2 + $0xa8] sm:$0xff]
        %v2246 = vld [vmem:[#allocation2 + $0xb0] sm:$0xff]
        %v2247 = vld [vmem:[#allocation2 + $0xc0] sm:$0xff]
        %v2248 = vld [vmem:[#allocation2 + $0xc8] sm:$0xff]
        %v2249 = vld [vmem:[#allocation2 + $0xd8] sm:$0xff]
        %v2250 = vld [vmem:[#allocation2 + $0xe0] sm:$0xff]
        %v2251 = vld [vmem:[#allocation2 + $0xf0] sm:$0xff]
        %v2252 = vld [vmem:[#allocation2 + $0xf8] sm:$0xff]
        %v2253 = vld [vmem:[#allocation2 + $0x108] sm:$0xff]
        %v2254 = vld [vmem:[#allocation2 + $0x110] sm:$0xff]
        %v2255 = vld [vmem:[#allocation2 + $0x120] sm:$0xff]
        %v2256 = vld [vmem:[#allocation2 + $0x128] sm:$0xff]
        %v2257 = vld [vmem:[#allocation2 + $0x138] sm:$0xff]
        %v2258 = vld [vmem:[#allocation2 + $0x140] sm:$0xff]
        %v2259 = vld [vmem:[#allocation2 + $0x150] sm:$0xff]
        %v2260 = vld [vmem:[#allocation2 + $0x158] sm:$0xff]
        %v2261 = vld [vmem:[#allocation2 + $0x168] sm:$0xff]
        %v2262 = vld [vmem:[#allocation2 + $0x170] sm:$0xff]
        %v2263 = vld [vmem:[#allocation2 + $0x1] sm:$0xff]
        %v2264 = vld [vmem:[#allocation2 + $0x9] sm:$0xff]
        %v2265 = vld [vmem:[#allocation2 + $0x19] sm:$0xff]
        %v2266 = vld [vmem:[#allocation2 + $0x21] sm:$0xff]
        %v2267 = vld [vmem:[#allocation2 + $0x31] sm:$0xff]
        %v2268 = vld [vmem:[#allocation2 + $0x39] sm:$0xff]
        %v2269 = vld [vmem:[#allocation2 + $0x49] sm:$0xff]
        %v2270 = vld [vmem:[#allocation2 + $0x51] sm:$0xff]
        %v2271 = vld [vmem:[#allocation2 + $0x61] sm:$0xff]
        %v2272 = vld [vmem:[#allocation2 + $0x69] sm:$0xff]
        %v2273 = vld [vmem:[#allocation2 + $0x79] sm:$0xff]
        %v2274 = vld [vmem:[#allocation2 + $0x81] sm:$0xff]
        %v2275 = vld [vmem:[#allocation2 + $0x91] sm:$0xff]
        %v2276 = vld [vmem:[#allocation2 + $0x99] sm:$0xff]
        %v2277 = vld [vmem:[#allocation2 + $0xa9] sm:$0xff]
        %v2278 = vld [vmem:[#allocation2 + $0xb1] sm:$0xff]
        %v2279 = vld [vmem:[#allocation2 + $0xc1] sm:$0xff]
        %v2280 = vld [vmem:[#allocation2 + $0xc9] sm:$0xff]
        %v2281 = vld [vmem:[#allocation2 + $0xd9] sm:$0xff]
        %v2282 = vld [vmem:[#allocation2 + $0xe1] sm:$0xff]
        %v2283 = vld [vmem:[#allocation2 + $0xf1] sm:$0xff]
        %v2284 = vld [vmem:[#allocation2 + $0xf9] sm:$0xff]
        %v2285 = vld [vmem:[#allocation2 + $0x109] sm:$0xff]
        %v2286 = vld [vmem:[#allocation2 + $0x111] sm:$0xff]
        %v2287 = vld [vmem:[#allocation2 + $0x121] sm:$0xff]
        %v2288 = vld [vmem:[#allocation2 + $0x129] sm:$0xff]
        %v2289 = vld [vmem:[#allocation2 + $0x139] sm:$0xff]
        %v2290 = vld [vmem:[#allocation2 + $0x141] sm:$0xff]
        %v2291 = vld [vmem:[#allocation2 + $0x151] sm:$0xff]
        %v2292 = vld [vmem:[#allocation2 + $0x159] sm:$0xff]
        %v2293 = vld [vmem:[#allocation2 + $0x169] sm:$0xff]
        %v2294 = vld [vmem:[#allocation2 + $0x171] sm:$0xff]
        %v2295 = vld [vmem:[#allocation2 + $0x2] sm:$0xff]
        %v2296 = vld [vmem:[#allocation2 + $0xa] sm:$0xff]
        %v2297 = vld [vmem:[#allocation2 + $0x1a] sm:$0xff]
        %v2298 = vld [vmem:[#allocation2 + $0x22] sm:$0xff]
        %v2299 = vld [vmem:[#allocation2 + $0x32] sm:$0xff]
        %v2300 = vld [vmem:[#allocation2 + $0x3a] sm:$0xff]
        %v2301 = vld [vmem:[#allocation2 + $0x4a] sm:$0xff]
        %v2302 = vld [vmem:[#allocation2 + $0x52] sm:$0xff]
        %v2303 = vld [vmem:[#allocation2 + $0x62] sm:$0xff]
        %v2304 = vld [vmem:[#allocation2 + $0x6a] sm:$0xff]
        %v2305 = vld [vmem:[#allocation2 + $0x7a] sm:$0xff]
        %v2306 = vld [vmem:[#allocation2 + $0x82] sm:$0xff]
        %v2307 = vld [vmem:[#allocation2 + $0x92] sm:$0xff]
        %v2308 = vld [vmem:[#allocation2 + $0x9a] sm:$0xff]
        %v2309 = vld [vmem:[#allocation2 + $0xaa] sm:$0xff]
        %v2310 = vld [vmem:[#allocation2 + $0xb2] sm:$0xff]
        %v2311 = vld [vmem:[#allocation2 + $0xc2] sm:$0xff]
        %v2312 = vld [vmem:[#allocation2 + $0xca] sm:$0xff]
        %v2313 = vld [vmem:[#allocation2 + $0xda] sm:$0xff]
        %v2314 = vld [vmem:[#allocation2 + $0xe2] sm:$0xff]
        %v2315 = vld [vmem:[#allocation2 + $0xf2] sm:$0xff]
        %v2316 = vld [vmem:[#allocation2 + $0xfa] sm:$0xff]
        %v2317 = vld [vmem:[#allocation2 + $0x10a] sm:$0xff]
        %v2318 = vld [vmem:[#allocation2 + $0x112] sm:$0xff]
        %v2319 = vld [vmem:[#allocation2 + $0x122] sm:$0xff]
        %v2320 = vld [vmem:[#allocation2 + $0x12a] sm:$0xff]
        %v2321 = vld [vmem:[#allocation2 + $0x13a] sm:$0xff]
        %v2322 = vld [vmem:[#allocation2 + $0x142] sm:$0xff]
        %v2323 = vld [vmem:[#allocation2 + $0x152] sm:$0xff]
        %v2324 = vld [vmem:[#allocation2 + $0x15a] sm:$0xff]
        %v2325 = vld [vmem:[#allocation2 + $0x16a] sm:$0xff]
        %v2326 = vld [vmem:[#allocation2 + $0x172] sm:$0xff]
        %v2327 = vld [vmem:[#allocation8] sm:$0xff]
        %v2328 = vld [vmem:[#allocation8 + $0x8] sm:$0xff]
        %v2329 = vld [vmem:[#allocation8 + $0x10] sm:$0xff]
        %v2330 = vld [vmem:[#allocation8 + $0x18] sm:$0xff]
        %v2331 = vld [vmem:[#allocation8 + $0x20] sm:$0xff]
        %v2332 = vld [vmem:[#allocation8 + $0x28] sm:$0xff]
        %v2333 = vld [vmem:[#allocation8 + $0x30] sm:$0xff]
        %v2334 = vld [vmem:[#allocation8 + $0x38] sm:$0xff]
        %v2335 = vld [vmem:[#allocation8 + $0x40] sm:$0xff]
        %v2336 = vld [vmem:[#allocation8 + $0x48] sm:$0xff]
        %v2337 = vld [vmem:[#allocation8 + $0x50] sm:$0xff]
        %v2338 = vld [vmem:[#allocation8 + $0x58] sm:$0xff]
        %v2339 = vld [vmem:[#allocation8 + $0x60] sm:$0xff]
        %v2340 = vld [vmem:[#allocation8 + $0x68] sm:$0xff]
        %v2341 = vld [vmem:[#allocation8 + $0x70] sm:$0xff]
        %v2342 = vld [vmem:[#allocation8 + $0x78] sm:$0xff]
        %v2343 = vld [vmem:[#allocation8 + $0x80] sm:$0xff]
        %v2344 = vld [vmem:[#allocation8 + $0x88] sm:$0xff]
        %v2345 = vld [vmem:[#allocation8 + $0x90] sm:$0xff]
        %v2346 = vld [vmem:[#allocation8 + $0x98] sm:$0xff]
        %v2347 = vld [vmem:[#allocation8 + $0xa0] sm:$0xff]
        %v2348 = vld [vmem:[#allocation8 + $0xa8] sm:$0xff]
        %v2349 = vld [vmem:[#allocation8 + $0xb0] sm:$0xff]
        %v2350 = vld [vmem:[#allocation8 + $0xb8] sm:$0xff]
        %v2351 = vld [vmem:[#allocation8 + $0xc0] sm:$0xff]
        %v2352 = vld [vmem:[#allocation8 + $0xc8] sm:$0xff]
        %v2353 = vld [vmem:[#allocation8 + $0xd0] sm:$0xff]
        %v2354 = vld [vmem:[#allocation8 + $0xd8] sm:$0xff]
        %v2355 = vld [vmem:[#allocation8 + $0xe0] sm:$0xff]
        %v2356 = vld [vmem:[#allocation8 + $0xe8] sm:$0xff]
        %v2357 = vld [vmem:[#allocation8 + $0xf0] sm:$0xff]
        %v2358 = vld [vmem:[#allocation8 + $0xf8] sm:$0xff]
        %v2359 = vld [vmem:[#allocation8 + $0x100] sm:$0xff]
        %v2360 = vld [vmem:[#allocation8 + $0x108] sm:$0xff]
        %v2361 = vld [vmem:[#allocation8 + $0x110] sm:$0xff]
        %v2362 = vld [vmem:[#allocation8 + $0x118] sm:$0xff]
        %v2363 = vld [vmem:[#allocation8 + $0x120] sm:$0xff]
        %v2364 = vld [vmem:[#allocation8 + $0x128] sm:$0xff]
        %v2365 = vld [vmem:[#allocation8 + $0x130] sm:$0xff]
        %v2366 = vld [vmem:[#allocation8 + $0x138] sm:$0xff]
        %v2367 = vld [vmem:[#allocation8 + $0x140] sm:$0xff]
        %v2368 = vld [vmem:[#allocation8 + $0x148] sm:$0xff]
        %v2369 = vld [vmem:[#allocation8 + $0x150] sm:$0xff]
        %v2370 = vld [vmem:[#allocation8 + $0x158] sm:$0xff]
        %v2371 = vld [vmem:[#allocation8 + $0x160] sm:$0xff]
        %v2372 = vld [vmem:[#allocation8 + $0x168] sm:$0xff]
        %v2373 = vld [vmem:[#allocation8 + $0x170] sm:$0xff]
        %v2374 = vld [vmem:[#allocation8 + $0x178] sm:$0xff]
        %v2375 = vld [vmem:[%s2166] sm:$0xff]
        %v2376 = vld [vmem:[%s2166 + $0x8] sm:$0xff]
        %v2377 = vld [vmem:[%s2166 + $0x18] sm:$0xff]
        %v2378 = vld [vmem:[%s2166 + $0x20] sm:$0xff]
        %v2379 = vld [vmem:[%s2166 + $0x30] sm:$0xff]
        %v2380 = vld [vmem:[%s2166 + $0x38] sm:$0xff]
        %v2381 = vld [vmem:[%s2166 + $0x48] sm:$0xff]
        %v2382 = vld [vmem:[%s2166 + $0x50] sm:$0xff]
        %v2383 = vld [vmem:[%s2166 + $0x60] sm:$0xff]
        %v2384 = vld [vmem:[%s2166 + $0x68] sm:$0xff]
        %v2385 = vld [vmem:[%s2166 + $0x78] sm:$0xff]
        %v2386 = vld [vmem:[%s2166 + $0x80] sm:$0xff]
        %v2387 = vld [vmem:[%s2166 + $0x90] sm:$0xff]
        %v2388 = vld [vmem:[%s2166 + $0x98] sm:$0xff]
        %v2389 = vld [vmem:[%s2166 + $0xa8] sm:$0xff]
        %v2390 = vld [vmem:[%s2166 + $0xb0] sm:$0xff]
        %v2391 = vld [vmem:[%s2166 + $0xc0] sm:$0xff]
        %v2392 = vld [vmem:[%s2166 + $0xc8] sm:$0xff]
        %v2393 = vld [vmem:[%s2166 + $0xd8] sm:$0xff]
        %v2394 = vld [vmem:[%s2166 + $0xe0] sm:$0xff]
        %v2395 = vld [vmem:[%s2166 + $0xf0] sm:$0xff]
        %v2396 = vld [vmem:[%s2166 + $0xf8] sm:$0xff]
        %v2397 = vld [vmem:[%s2166 + $0x108] sm:$0xff]
        %v2398 = vld [vmem:[%s2166 + $0x110] sm:$0xff]
        %v2399 = vld [vmem:[%s2166 + $0x120] sm:$0xff]
        %v2400 = vld [vmem:[%s2166 + $0x128] sm:$0xff]
        %v2401 = vld [vmem:[%s2166 + $0x138] sm:$0xff]
        %v2402 = vld [vmem:[%s2166 + $0x140] sm:$0xff]
        %v2403 = vld [vmem:[%s2166 + $0x150] sm:$0xff]
        %v2404 = vld [vmem:[%s2166 + $0x158] sm:$0xff]
        %v2405 = vld [vmem:[%s2166 + $0x168] sm:$0xff]
        %v2406 = vld [vmem:[%s2166 + $0x170] sm:$0xff]
        %v2407 = vld [vmem:[%s2166 + $0x1] sm:$0xff]
        %v2408 = vld [vmem:[%s2166 + $0x9] sm:$0xff]
        %v2409 = vld [vmem:[%s2166 + $0x19] sm:$0xff]
        %v2410 = vld [vmem:[%s2166 + $0x21] sm:$0xff]
        %v2411 = vld [vmem:[%s2166 + $0x31] sm:$0xff]
        %v2412 = vld [vmem:[%s2166 + $0x39] sm:$0xff]
        %v2413 = vld [vmem:[%s2166 + $0x49] sm:$0xff]
        %v2414 = vld [vmem:[%s2166 + $0x51] sm:$0xff]
        %v2415 = vld [vmem:[%s2166 + $0x61] sm:$0xff]
        %v2416 = vld [vmem:[%s2166 + $0x69] sm:$0xff]
        %v2417 = vld [vmem:[%s2166 + $0x79] sm:$0xff]
        %v2418 = vld [vmem:[%s2166 + $0x81] sm:$0xff]
        %v2419 = vld [vmem:[%s2166 + $0x91] sm:$0xff]
        %v2420 = vld [vmem:[%s2166 + $0x99] sm:$0xff]
        %v2421 = vld [vmem:[%s2166 + $0xa9] sm:$0xff]
        %v2422 = vld [vmem:[%s2166 + $0xb1] sm:$0xff]
        %v2423 = vld [vmem:[%s2166 + $0xc1] sm:$0xff]
        %v2424 = vld [vmem:[%s2166 + $0xc9] sm:$0xff]
        %v2425 = vld [vmem:[%s2166 + $0xd9] sm:$0xff]
        %v2426 = vld [vmem:[%s2166 + $0xe1] sm:$0xff]
        %v2427 = vld [vmem:[%s2166 + $0xf1] sm:$0xff]
        %v2428 = vld [vmem:[%s2166 + $0xf9] sm:$0xff]
        %v2429 = vld [vmem:[%s2166 + $0x109] sm:$0xff]
        %v2430 = vld [vmem:[%s2166 + $0x111] sm:$0xff]
        %v2431 = vld [vmem:[%s2166 + $0x121] sm:$0xff]
        %v2432 = vld [vmem:[%s2166 + $0x129] sm:$0xff]
        %v2433 = vld [vmem:[%s2166 + $0x139] sm:$0xff]
        %v2434 = vld [vmem:[%s2166 + $0x141] sm:$0xff]
        %v2435 = vld [vmem:[%s2166 + $0x151] sm:$0xff]
        %v2436 = vld [vmem:[%s2166 + $0x159] sm:$0xff]
        %v2437 = vld [vmem:[%s2166 + $0x169] sm:$0xff]
        %v2438 = vld [vmem:[%s2166 + $0x171] sm:$0xff]
        %v2439 = vld [vmem:[%s2166 + $0x2] sm:$0xff]
        %v2440 = vld [vmem:[%s2166 + $0xa] sm:$0xff]
        %v2441 = vld [vmem:[%s2166 + $0x1a] sm:$0xff]
        %v2442 = vld [vmem:[%s2166 + $0x22] sm:$0xff]
        %v2443 = vld [vmem:[%s2166 + $0x32] sm:$0xff]
        %v2444 = vld [vmem:[%s2166 + $0x3a] sm:$0xff]
        %v2445 = vld [vmem:[%s2166 + $0x4a] sm:$0xff]
        %v2446 = vld [vmem:[%s2166 + $0x52] sm:$0xff]
        %v2447 = vld [vmem:[%s2166 + $0x62] sm:$0xff]
        %v2448 = vld [vmem:[%s2166 + $0x6a] sm:$0xff]
        %v2449 = vld [vmem:[%s2166 + $0x7a] sm:$0xff]
        %v2450 = vld [vmem:[%s2166 + $0x82] sm:$0xff]
        %v2451 = vld [vmem:[%s2166 + $0x92] sm:$0xff]
        %v2452 = vld [vmem:[%s2166 + $0x9a] sm:$0xff]
        %v2453 = vld [vmem:[%s2166 + $0xaa] sm:$0xff]
        %v2454 = vld [vmem:[%s2166 + $0xb2] sm:$0xff]
        %v2455 = vld [vmem:[%s2166 + $0xc2] sm:$0xff]
        %v2456 = vld [vmem:[%s2166 + $0xca] sm:$0xff]
        %v2457 = vld [vmem:[%s2166 + $0xda] sm:$0xff]
        %v2458 = vld [vmem:[%s2166 + $0xe2] sm:$0xff]
        %v2459 = vld [vmem:[%s2166 + $0xf2] sm:$0xff]
        %v2460 = vld [vmem:[%s2166 + $0xfa] sm:$0xff]
        %v2461 = vld [vmem:[%s2166 + $0x10a] sm:$0xff]
        %v2462 = vld [vmem:[%s2166 + $0x112] sm:$0xff]
        %v2463 = vld [vmem:[%s2166 + $0x122] sm:$0xff]
        %v2464 = vld [vmem:[%s2166 + $0x12a] sm:$0xff]
        %v2465 = vld [vmem:[%s2166 + $0x13a] sm:$0xff]
        %v2466 = vld [vmem:[%s2166 + $0x142] sm:$0xff]
        %v2467 = vld [vmem:[%s2166 + $0x152] sm:$0xff]
        %v2468 = vld [vmem:[%s2166 + $0x15a] sm:$0xff]
        %v2469 = vld [vmem:[%s2166 + $0x16a] sm:$0xff]
        %v2470 = vld [vmem:[%s2166 + $0x172] sm:$0xff]
        %v2471 = vld [vmem:[#allocation8 + $0x180] sm:$0xff]
        %v2472 = vld [vmem:[#allocation8 + $0x188] sm:$0xff]
        %v2473 = vld [vmem:[#allocation8 + $0x190] sm:$0xff]
        %v2474 = vld [vmem:[#allocation8 + $0x198] sm:$0xff]
        %v2475 = vld [vmem:[#allocation8 + $0x1a0] sm:$0xff]
        %v2476 = vld [vmem:[#allocation8 + $0x1a8] sm:$0xff]
        %v2477 = vld [vmem:[#allocation8 + $0x1b0] sm:$0xff]
        %v2478 = vld [vmem:[#allocation8 + $0x1b8] sm:$0xff]
        %v2479 = vld [vmem:[#allocation8 + $0x1c0] sm:$0xff]
        %v2480 = vld [vmem:[#allocation8 + $0x1c8] sm:$0xff]
        %v2481 = vld [vmem:[#allocation8 + $0x1d0] sm:$0xff]
        %v2482 = vld [vmem:[#allocation8 + $0x1d8] sm:$0xff]
        %v2483 = vld [vmem:[#allocation8 + $0x1e0] sm:$0xff]
        %v2484 = vld [vmem:[#allocation8 + $0x1e8] sm:$0xff]
        %v2485 = vld [vmem:[#allocation8 + $0x1f0] sm:$0xff]
        %v2486 = vld [vmem:[#allocation8 + $0x1f8] sm:$0xff]
        %v2487 = vld [vmem:[#allocation8 + $0x200] sm:$0xff]
        %v2488 = vld [vmem:[#allocation8 + $0x208] sm:$0xff]
        %v2489 = vld [vmem:[#allocation8 + $0x210] sm:$0xff]
        %v2490 = vld [vmem:[#allocation8 + $0x218] sm:$0xff]
        %v2491 = vld [vmem:[#allocation8 + $0x220] sm:$0xff]
        %v2492 = vld [vmem:[#allocation8 + $0x228] sm:$0xff]
        %v2493 = vld [vmem:[#allocation8 + $0x230] sm:$0xff]
        %v2494 = vld [vmem:[#allocation8 + $0x238] sm:$0xff]
        %v2495 = vld [vmem:[#allocation8 + $0x240] sm:$0xff]
        %v2496 = vld [vmem:[#allocation8 + $0x248] sm:$0xff]
        %v2497 = vld [vmem:[#allocation8 + $0x250] sm:$0xff]
        %v2498 = vld [vmem:[#allocation8 + $0x258] sm:$0xff]
        %v2499 = vld [vmem:[#allocation8 + $0x260] sm:$0xff]
        %v2500 = vld [vmem:[#allocation8 + $0x268] sm:$0xff]
        %v2501 = vld [vmem:[#allocation8 + $0x270] sm:$0xff]
        %v2502 = vld [vmem:[#allocation8 + $0x278] sm:$0xff]
        %v2503 = vld [vmem:[#allocation8 + $0x280] sm:$0xff]
        %v2504 = vld [vmem:[#allocation8 + $0x288] sm:$0xff]
        %v2505 = vld [vmem:[#allocation8 + $0x290] sm:$0xff]
        %v2506 = vld [vmem:[#allocation8 + $0x298] sm:$0xff]
        %v2507 = vld [vmem:[#allocation8 + $0x2a0] sm:$0xff]
        %v2508 = vld [vmem:[#allocation8 + $0x2a8] sm:$0xff]
        %v2509 = vld [vmem:[#allocation8 + $0x2b0] sm:$0xff]
        %v2510 = vld [vmem:[#allocation8 + $0x2b8] sm:$0xff]
        %v2511 = vld [vmem:[#allocation8 + $0x2c0] sm:$0xff]
        %v2512 = vld [vmem:[#allocation8 + $0x2c8] sm:$0xff]
        %v2513 = vld [vmem:[#allocation8 + $0x2d0] sm:$0xff]
        %v2514 = vld [vmem:[#allocation8 + $0x2d8] sm:$0xff]
        %v2515 = vld [vmem:[#allocation8 + $0x2e0] sm:$0xff]
        %v2516 = vld [vmem:[#allocation8 + $0x2e8] sm:$0xff]
        %v2517 = vld [vmem:[#allocation8 + $0x2f0] sm:$0xff]
        %v2518 = vld [vmem:[#allocation8 + $0x2f8] sm:$0xff]
        %2519 = vmatprep.subr.mxu0 0.0
        %2520 = vmatpush1.msra.mxu0 %v2471
        %2521 = vmatprep.subr.mxu0 0.0
        %2522 = vmatpush1.msra.mxu0 %v2472
        %2523 = vmatprep.subr.mxu0 0.0
        %2524 = vmatpush1.msra.mxu0 %v2473
        %2525 = vmatprep.subr.mxu0 0.0
        %2526 = vmatpush1.msra.mxu0 %v2474
        %2527 = vmatprep.subr.mxu0 0.0
        %2528 = vmatpush1.msra.mxu0 %v2475
        %2529 = vmatprep.subr.mxu0 0.0
        %2530 = vmatpush1.msra.mxu0 %v2476
        %2531 = vmatprep.subr.mxu0 0.0
        %2532 = vmatpush1.msra.mxu0 %v2477
        %2533 = vmatprep.subr.mxu0 0.0
        %2534 = vmatpush1.msra.mxu0 %v2478
        %2535 = vmatprep.subr.mxu0 0.0
        %2536 = vmatpush1.msra.mxu0 %v2479
        %2537 = vmatprep.subr.mxu0 0.0
        %2538 = vmatpush1.msra.mxu0 %v2480
        %2539 = vmatprep.subr.mxu0 0.0
        %2540 = vmatpush1.msra.mxu0 %v2481
        %2541 = vmatprep.subr.mxu0 0.0
        %2542 = vmatpush1.msra.mxu0 %v2482
        %2543 = vmatprep.subr.mxu0 0.0
        %2544 = vmatpush1.msra.mxu0 %v2483
        %2545 = vmatprep.subr.mxu0 0.0
        %2546 = vmatpush1.msra.mxu0 %v2484
        %2547 = vmatprep.subr.mxu0 0.0
        %2548 = vmatpush1.msra.mxu0 %v2485
        %2549 = vmatprep.subr.mxu0 0.0
        %2550 = vmatpush1.msra.mxu0 %v2486
        %2551 = vmatprep.subr.mxu0 0.0
        %2552 = vmatpush1.msra.mxu0 %v2487
        %2553 = vmatprep.subr.mxu0 0.0
        %2554 = vmatpush1.msra.mxu0 %v2488
        %2555 = vmatprep.subr.mxu0 0.0
        %2556 = vmatpush1.msra.mxu0 %v2489
        %2557 = vmatprep.subr.mxu0 0.0
        %2558 = vmatpush1.msra.mxu0 %v2490
        %2559 = vmatprep.subr.mxu0 0.0
        %2560 = vmatpush1.msra.mxu0 %v2491
        %2561 = vmatprep.subr.mxu0 0.0
        %2562 = vmatpush1.msra.mxu0 %v2492
        %2563 = vmatprep.subr.mxu0 0.0
        %2564 = vmatpush1.msra.mxu0 %v2493
        %2565 = vmatprep.subr.mxu0 0.0
        %2566 = vmatpush1.msra.mxu0 %v2494
        %2567 = vmatprep.subr.mxu0 0.0
        %2568 = vmatpush1.msra.mxu0 %v2495
        %2569 = vmatprep.subr.mxu0 0.0
        %2570 = vmatpush1.msra.mxu0 %v2496
        %2571 = vmatprep.subr.mxu0 0.0
        %2572 = vmatpush1.msra.mxu0 %v2497
        %2573 = vmatprep.subr.mxu0 0.0
        %2574 = vmatpush1.msra.mxu0 %v2498
        %2575 = vmatprep.subr.mxu0 0.0
        %2576 = vmatpush1.msra.mxu0 %v2499
        %2577 = vmatprep.subr.mxu0 0.0
        %2578 = vmatpush1.msra.mxu0 %v2500
        %2579 = vmatprep.subr.mxu0 0.0
        %2580 = vmatpush1.msra.mxu0 %v2501
        %2581 = vmatprep.subr.mxu0 0.0
        %2582 = vmatpush1.msra.mxu0 %v2502
        %2583 = vmatprep.mubr.f32.mxu0 %v2407
        %2584 = vmatmul.mubr.f32.gmra.mrb[0].mxu0 %v2375
        %v2585 = vpop.f32.mrb[0].mxu0
        %v2586 = vadd.f32 0.0, %v2585
        %v2587 = vpop.f32.mrb[0].mxu0
        %2588 = vmatprep.mubr.f32.mxu0 %v2408
        %2589 = vmatmul.mubr.f32.gmra.mrb[0].mxu0 %v2376
        %v2590 = vpop.f32.mrb[0].mxu0
        %v2591 = vadd.f32 0.0, %v2590
        %v2592 = vpop.f32.mrb[0].mxu0
        %2593 = vmatprep.mubr.f32.mxu0 %v2409
        %2594 = vmatmul.mubr.f32.gmra.mrb[0].mxu0 %v2377
        %v2595 = vpop.f32.mrb[0].mxu0
        %v2596 = vadd.f32 0.0, %v2595
        %v2597 = vpop.f32.mrb[0].mxu0
        %2598 = vmatprep.mubr.f32.mxu0 %v2410
        %2599 = vmatmul.mubr.f32.gmra.mrb[0].mxu0 %v2378
        %v2600 = vpop.f32.mrb[0].mxu0
        %v2601 = vadd.f32 0.0, %v2600
        %v2602 = vpop.f32.mrb[0].mxu0
        %2603 = vmatprep.mubr.f32.mxu0 %v2411
        %2604 = vmatmul.mubr.f32.gmra.mrb[0].mxu0 %v2379
        %v2605 = vpop.f32.mrb[0].mxu0
        %v2606 = vadd.f32 0.0, %v2605
        %v2607 = vpop.f32.mrb[0].mxu0
        %2608 = vmatprep.mubr.f32.mxu0 %v2412
        %2609 = vmatmul.mubr.f32.gmra.mrb[0].mxu0 %v2380
        %v2610 = vpop.f32.mrb[0].mxu0
        %v2611 = vadd.f32 0.0, %v2610
        %v2612 = vpop.f32.mrb[0].mxu0
        %2613 = vmatprep.mubr.f32.mxu0 %v2413
        %2614 = vmatmul.mubr.f32.gmra.mrb[0].mxu0 %v2381
        %v2615 = vpop.f32.mrb[0].mxu0
        %v2616 = vadd.f32 0.0, %v2615
        %v2617 = vpop.f32.mrb[0].mxu0
        %2618 = vmatprep.mubr.f32.mxu0 %v2414
        %2619 = vmatmul.mubr.f32.gmra.mrb[0].mxu0 %v2382
        %v2620 = vpop.f32.mrb[0].mxu0
        %v2621 = vadd.f32 0.0, %v2620
        %v2622 = vpop.f32.mrb[0].mxu0
        %2623 = vmatprep.mubr.f32.mxu0 %v2415
        %2624 = vmatmul.mubr.f32.gmra.mrb[0].mxu0 %v2383
        %v2625 = vpop.f32.mrb[0].mxu0
        %v2626 = vadd.f32 0.0, %v2625
        %v2627 = vpop.f32.mrb[0].mxu0
        %2628 = vmatprep.mubr.f32.mxu0 %v2416
        %2629 = vmatmul.mubr.f32.gmra.mrb[0].mxu0 %v2384
        %v2630 = vpop.f32.mrb[0].mxu0
        %v2631 = vadd.f32 0.0, %v2630
        %v2632 = vpop.f32.mrb[0].mxu0
        %2633 = vmatprep.mubr.f32.mxu0 %v2417
        %2634 = vmatmul.mubr.f32.gmra.mrb[0].mxu0 %v2385
        %v2635 = vpop.f32.mrb[0].mxu0
        %v2636 = vadd.f32 0.0, %v2635
        %v2637 = vpop.f32.mrb[0].mxu0
        %2638 = vmatprep.mubr.f32.mxu0 %v2418
        %2639 = vmatmul.mubr.f32.gmra.mrb[0].mxu0 %v2386
        %v2640 = vpop.f32.mrb[0].mxu0
        %v2641 = vadd.f32 0.0, %v2640
        %v2642 = vpop.f32.mrb[0].mxu0
        %2643 = vmatprep.mubr.f32.mxu0 %v2419
        %2644 = vmatmul.mubr.f32.gmra.mrb[0].mxu0 %v2387
        %v2645 = vpop.f32.mrb[0].mxu0
        %v2646 = vadd.f32 0.0, %v2645
        %v2647 = vpop.f32.mrb[0].mxu0
        %2648 = vmatprep.mubr.f32.mxu0 %v2420
        %2649 = vmatmul.mubr.f32.gmra.mrb[0].mxu0 %v2388
        %v2650 = vpop.f32.mrb[0].mxu0
        %v2651 = vadd.f32 0.0, %v2650
        %v2652 = vpop.f32.mrb[0].mxu0
        %2653 = vmatprep.mubr.f32.mxu0 %v2421
        %2654 = vmatmul.mubr.f32.gmra.mrb[0].mxu0 %v2389
        %v2655 = vpop.f32.mrb[0].mxu0
        %v2656 = vadd.f32 0.0, %v2655
        %v2657 = vpop.f32.mrb[0].mxu0
        %2658 = vmatprep.mubr.f32.mxu0 %v2422
        %2659 = vmatmul.mubr.f32.gmra.mrb[0].mxu0 %v2390
        %v2660 = vpop.f32.mrb[0].mxu0
        %v2661 = vadd.f32 0.0, %v2660
        %v2662 = vpop.f32.mrb[0].mxu0
        %2663 = vmatprep.mubr.f32.mxu0 %v2423
        %2664 = vmatmul.mubr.f32.gmra.mrb[0].mxu0 %v2391
        %v2665 = vpop.f32.mrb[0].mxu0
        %v2666 = vadd.f32 0.0, %v2665
        %v2667 = vpop.f32.mrb[0].mxu0
        %2668 = vmatprep.mubr.f32.mxu0 %v2424
        %2669 = vmatmul.mubr.f32.gmra.mrb[0].mxu0 %v2392
        %v2670 = vpop.f32.mrb[0].mxu0
        %v2671 = vadd.f32 0.0, %v2670
        %v2672 = vpop.f32.mrb[0].mxu0
        %2673 = vmatprep.mubr.f32.mxu0 %v2425
        %2674 = vmatmul.mubr.f32.gmra.mrb[0].mxu0 %v2393
        %v2675 = vpop.f32.mrb[0].mxu0
        %v2676 = vadd.f32 0.0, %v2675
        %v2677 = vpop.f32.mrb[0].mxu0
        %2678 = vmatprep.mubr.f32.mxu0 %v2426
        %2679 = vmatmul.mubr.f32.gmra.mrb[0].mxu0 %v2394
        %v2680 = vpop.f32.mrb[0].mxu0
        %v2681 = vadd.f32 0.0, %v2680
        %v2682 = vpop.f32.mrb[0].mxu0
        %2683 = vmatprep.mubr.f32.mxu0 %v2427
        %2684 = vmatmul.mubr.f32.gmra.mrb[0].mxu0 %v2395
        %v2685 = vpop.f32.mrb[0].mxu0
        %v2686 = vadd.f32 0.0, %v2685
        %v2687 = vpop.f32.mrb[0].mxu0
        %2688 = vmatprep.mubr.f32.mxu0 %v2428
        %2689 = vmatmul.mubr.f32.gmra.mrb[0].mxu0 %v2396
        %v2690 = vpop.f32.mrb[0].mxu0
        %v2691 = vadd.f32 0.0, %v2690
        %v2692 = vpop.f32.mrb[0].mxu0
        %2693 = vmatprep.mubr.f32.mxu0 %v2429
        %2694 = vmatmul.mubr.f32.gmra.mrb[0].mxu0 %v2397
        %v2695 = vpop.f32.mrb[0].mxu0
        %v2696 = vadd.f32 0.0, %v2695
        %v2697 = vpop.f32.mrb[0].mxu0
        %2698 = vmatprep.mubr.f32.mxu0 %v2430
        %2699 = vmatmul.mubr.f32.gmra.mrb[0].mxu0 %v2398
        %v2700 = vpop.f32.mrb[0].mxu0
        %v2701 = vadd.f32 0.0, %v2700
        %v2702 = vpop.f32.mrb[0].mxu0
        %2703 = vmatprep.mubr.f32.mxu0 %v2431
        %2704 = vmatmul.mubr.f32.gmra.mrb[0].mxu0 %v2399
        %v2705 = vpop.f32.mrb[0].mxu0
        %v2706 = vadd.f32 0.0, %v2705
        %v2707 = vpop.f32.mrb[0].mxu0
        %2708 = vmatprep.mubr.f32.mxu0 %v2432
        %2709 = vmatmul.mubr.f32.gmra.mrb[0].mxu0 %v2400
        %v2710 = vpop.f32.mrb[0].mxu0
        %v2711 = vadd.f32 0.0, %v2710
        %v2712 = vpop.f32.mrb[0].mxu0
        %2713 = vmatprep.mubr.f32.mxu0 %v2433
        %2714 = vmatmul.mubr.f32.gmra.mrb[0].mxu0 %v2401
        %v2715 = vpop.f32.mrb[0].mxu0
        %v2716 = vadd.f32 0.0, %v2715
        %v2717 = vpop.f32.mrb[0].mxu0
        %2718 = vmatprep.mubr.f32.mxu0 %v2434
        %2719 = vmatmul.mubr.f32.gmra.mrb[0].mxu0 %v2402
        %v2720 = vpop.f32.mrb[0].mxu0
        %v2721 = vadd.f32 0.0, %v2720
        %v2722 = vpop.f32.mrb[0].mxu0
        %2723 = vmatprep.mubr.f32.mxu0 %v2435
        %2724 = vmatmul.mubr.f32.gmra.mrb[0].mxu0 %v2403
        %v2725 = vpop.f32.mrb[0].mxu0
        %v2726 = vadd.f32 0.0, %v2725
        %v2727 = vpop.f32.mrb[0].mxu0
        %2728 = vmatprep.mubr.f32.mxu0 %v2436
        %2729 = vmatmul.mubr.f32.gmra.mrb[0].mxu0 %v2404
        %v2730 = vpop.f32.mrb[0].mxu0
        %v2731 = vadd.f32 0.0, %v2730
        %v2732 = vpop.f32.mrb[0].mxu0
        %2733 = vmatprep.mubr.f32.mxu0 %v2437
        %2734 = vmatmul.mubr.f32.gmra.mrb[0].mxu0 %v2405
        %v2735 = vpop.f32.mrb[0].mxu0
        %v2736 = vadd.f32 0.0, %v2735
        %v2737 = vpop.f32.mrb[0].mxu0
        %2738 = vmatprep.mubr.f32.mxu0 %v2438
        %2739 = vmatmul.mubr.f32.gmra.mrb[0].mxu0 %v2406
        %v2740 = vpop.f32.mrb[0].mxu0
        %v2741 = vadd.f32 0.0, %v2740
        %v2742 = vpop.f32.mrb[0].mxu0
        %2743 = vdwg.mxu0
        %2744 = vmatprep.subr.mxu0 0.0
        %2745 = vmatpush1.msra.mxu0 %v2503
        %2746 = vmatprep.subr.mxu0 0.0
        %2747 = vmatpush1.msra.mxu0 %v2504
        %2748 = vmatprep.subr.mxu0 0.0
        %2749 = vmatpush1.msra.mxu0 %v2505
        %2750 = vmatprep.subr.mxu0 0.0
        %2751 = vmatpush1.msra.mxu0 %v2506
        %2752 = vmatprep.subr.mxu0 0.0
        %2753 = vmatpush1.msra.mxu0 %v2507
        %2754 = vmatprep.subr.mxu0 0.0
        %2755 = vmatpush1.msra.mxu0 %v2508
        %2756 = vmatprep.subr.mxu0 0.0
        %2757 = vmatpush1.msra.mxu0 %v2509
        %2758 = vmatprep.subr.mxu0 0.0
        %2759 = vmatpush1.msra.mxu0 %v2510
        %2760 = vmatprep.subr.mxu0 0.0
        %2761 = vmatpush1.msra.mxu0 %v2511
        %2762 = vmatprep.subr.mxu0 0.0
        %2763 = vmatpush1.msra.mxu0 %v2512
        %2764 = vmatprep.subr.mxu0 0.0
        %2765 = vmatpush1.msra.mxu0 %v2513
        %2766 = vmatprep.subr.mxu0 0.0
        %2767 = vmatpush1.msra.mxu0 %v2514
        %2768 = vmatprep.subr.mxu0 0.0
        %2769 = vmatpush1.msra.mxu0 %v2515
        %2770 = vmatprep.subr.mxu0 0.0
        %2771 = vmatpush1.msra.mxu0 %v2516
        %2772 = vmatprep.subr.mxu0 0.0
        %2773 = vmatpush1.msra.mxu0 %v2517
        %2774 = vmatprep.subr.mxu0 0.0
        %2775 = vmatpush1.msra.mxu0 %v2518
        %2776 = vmatprep.subr.mxu0 0.0
        %2777 = vmatpush1.msra.mxu0 0.0
        %2778 = vmatprep.subr.mxu0 0.0
        %2779 = vmatpush1.msra.mxu0 0.0
        %2780 = vmatprep.subr.mxu0 0.0
        %2781 = vmatpush1.msra.mxu0 0.0
        %2782 = vmatprep.subr.mxu0 0.0
        %2783 = vmatpush1.msra.mxu0 0.0
        %2784 = vmatprep.subr.mxu0 0.0
        %2785 = vmatpush1.msra.mxu0 0.0
        %2786 = vmatprep.subr.mxu0 0.0
        %2787 = vmatpush1.msra.mxu0 0.0
        %2788 = vmatprep.subr.mxu0 0.0
        %2789 = vmatpush1.msra.mxu0 0.0
        %2790 = vmatprep.subr.mxu0 0.0
        %2791 = vmatpush1.msra.mxu0 0.0
        %2792 = vmatprep.subr.mxu0 0.0
        %2793 = vmatpush1.msra.mxu0 0.0
        %2794 = vmatprep.subr.mxu0 0.0
        %2795 = vmatpush1.msra.mxu0 0.0
        %2796 = vmatprep.subr.mxu0 0.0
        %2797 = vmatpush1.msra.mxu0 0.0
        %2798 = vmatprep.subr.mxu0 0.0
        %2799 = vmatpush1.msra.mxu0 0.0
        %2800 = vmatprep.subr.mxu0 0.0
        %2801 = vmatpush1.msra.mxu0 0.0
        %2802 = vmatprep.subr.mxu0 0.0
        %2803 = vmatpush1.msra.mxu0 0.0
        %2804 = vmatprep.subr.mxu0 0.0
        %2805 = vmatpush1.msra.mxu0 0.0
        %2806 = vmatprep.subr.mxu0 0.0
        %2807 = vmatpush1.msra.mxu0 0.0
        %2808 = vmatprep.mubr.f32.mxu0 0.0
        %2809 = vmatmul.mubr.f32.gmra.mrb[0].mxu0 %v2439
        %v2810 = vpop.f32.mrb[0].mxu0
        %v2811 = vadd.f32 %v2586, %v2810
        %v2812 = vpop.f32.mrb[0].mxu0
        %2813 = vmatprep.mubr.f32.mxu0 0.0
        %2814 = vmatmul.mubr.f32.gmra.mrb[0].mxu0 %v2440
        %v2815 = vpop.f32.mrb[0].mxu0
        %v2816 = vadd.f32 %v2591, %v2815
        %v2817 = vpop.f32.mrb[0].mxu0
        %2818 = vmatprep.mubr.f32.mxu0 0.0
        %2819 = vmatmul.mubr.f32.gmra.mrb[0].mxu0 %v2441
        %v2820 = vpop.f32.mrb[0].mxu0
        %v2821 = vadd.f32 %v2596, %v2820
        %v2822 = vpop.f32.mrb[0].mxu0
        %2823 = vmatprep.mubr.f32.mxu0 0.0
        %2824 = vmatmul.mubr.f32.gmra.mrb[0].mxu0 %v2442
        %v2825 = vpop.f32.mrb[0].mxu0
        %v2826 = vadd.f32 %v2601, %v2825
        %v2827 = vpop.f32.mrb[0].mxu0
        %2828 = vmatprep.mubr.f32.mxu0 0.0
        %2829 = vmatmul.mubr.f32.gmra.mrb[0].mxu0 %v2443
        %v2830 = vpop.f32.mrb[0].mxu0
        %v2831 = vadd.f32 %v2606, %v2830
        %v2832 = vpop.f32.mrb[0].mxu0
        %2833 = vmatprep.mubr.f32.mxu0 0.0
        %2834 = vmatmul.mubr.f32.gmra.mrb[0].mxu0 %v2444
        %v2835 = vpop.f32.mrb[0].mxu0
        %v2836 = vadd.f32 %v2611, %v2835
        %v2837 = vpop.f32.mrb[0].mxu0
        %2838 = vmatprep.mubr.f32.mxu0 0.0
        %2839 = vmatmul.mubr.f32.gmra.mrb[0].mxu0 %v2445
        %v2840 = vpop.f32.mrb[0].mxu0
        %v2841 = vadd.f32 %v2616, %v2840
        %v2842 = vpop.f32.mrb[0].mxu0
        %2843 = vmatprep.mubr.f32.mxu0 0.0
        %2844 = vmatmul.mubr.f32.gmra.mrb[0].mxu0 %v2446
        %v2845 = vpop.f32.mrb[0].mxu0
        %v2846 = vadd.f32 %v2621, %v2845
        %v2847 = vpop.f32.mrb[0].mxu0
        %2848 = vmatprep.mubr.f32.mxu0 0.0
        %2849 = vmatmul.mubr.f32.gmra.mrb[0].mxu0 %v2447
        %v2850 = vpop.f32.mrb[0].mxu0
        %v2851 = vadd.f32 %v2626, %v2850
        %v2852 = vpop.f32.mrb[0].mxu0
        %2853 = vmatprep.mubr.f32.mxu0 0.0
        %2854 = vmatmul.mubr.f32.gmra.mrb[0].mxu0 %v2448
        %v2855 = vpop.f32.mrb[0].mxu0
        %v2856 = vadd.f32 %v2631, %v2855
        %v2857 = vpop.f32.mrb[0].mxu0
        %2858 = vmatprep.mubr.f32.mxu0 0.0
        %2859 = vmatmul.mubr.f32.gmra.mrb[0].mxu0 %v2449
        %v2860 = vpop.f32.mrb[0].mxu0
        %v2861 = vadd.f32 %v2636, %v2860
        %v2862 = vpop.f32.mrb[0].mxu0
        %2863 = vmatprep.mubr.f32.mxu0 0.0
        %2864 = vmatmul.mubr.f32.gmra.mrb[0].mxu0 %v2450
        %v2865 = vpop.f32.mrb[0].mxu0
        %v2866 = vadd.f32 %v2641, %v2865
        %v2867 = vpop.f32.mrb[0].mxu0
        %2868 = vmatprep.mubr.f32.mxu0 0.0
        %2869 = vmatmul.mubr.f32.gmra.mrb[0].mxu0 %v2451
        %v2870 = vpop.f32.mrb[0].mxu0
        %v2871 = vadd.f32 %v2646, %v2870
        %v2872 = vpop.f32.mrb[0].mxu0
        %2873 = vmatprep.mubr.f32.mxu0 0.0
        %2874 = vmatmul.mubr.f32.gmra.mrb[0].mxu0 %v2452
        %v2875 = vpop.f32.mrb[0].mxu0
        %v2876 = vadd.f32 %v2651, %v2875
        %v2877 = vpop.f32.mrb[0].mxu0
        %2878 = vmatprep.mubr.f32.mxu0 0.0
        %2879 = vmatmul.mubr.f32.gmra.mrb[0].mxu0 %v2453
        %v2880 = vpop.f32.mrb[0].mxu0
        %v2881 = vadd.f32 %v2656, %v2880
        %v2882 = vpop.f32.mrb[0].mxu0
        %2883 = vmatprep.mubr.f32.mxu0 0.0
        %2884 = vmatmul.mubr.f32.gmra.mrb[0].mxu0 %v2454
        %v2885 = vpop.f32.mrb[0].mxu0
        %v2886 = vadd.f32 %v2661, %v2885
        %v2887 = vpop.f32.mrb[0].mxu0
        %2888 = vmatprep.mubr.f32.mxu0 0.0
        %2889 = vmatmul.mubr.f32.gmra.mrb[0].mxu0 %v2455
        %v2890 = vpop.f32.mrb[0].mxu0
        %v2891 = vadd.f32 %v2666, %v2890
        %v2892 = vpop.f32.mrb[0].mxu0
        %2893 = vmatprep.mubr.f32.mxu0 0.0
        %2894 = vmatmul.mubr.f32.gmra.mrb[0].mxu0 %v2456
        %v2895 = vpop.f32.mrb[0].mxu0
        %v2896 = vadd.f32 %v2671, %v2895
        %v2897 = vpop.f32.mrb[0].mxu0
        %2898 = vmatprep.mubr.f32.mxu0 0.0
        %2899 = vmatmul.mubr.f32.gmra.mrb[0].mxu0 %v2457
        %v2900 = vpop.f32.mrb[0].mxu0
        %v2901 = vadd.f32 %v2676, %v2900
        %v2902 = vpop.f32.mrb[0].mxu0
        %2903 = vmatprep.mubr.f32.mxu0 0.0
        %2904 = vmatmul.mubr.f32.gmra.mrb[0].mxu0 %v2458
        %v2905 = vpop.f32.mrb[0].mxu0
        %v2906 = vadd.f32 %v2681, %v2905
        %v2907 = vpop.f32.mrb[0].mxu0
        %2908 = vmatprep.mubr.f32.mxu0 0.0
        %2909 = vmatmul.mubr.f32.gmra.mrb[0].mxu0 %v2459
        %v2910 = vpop.f32.mrb[0].mxu0
        %v2911 = vadd.f32 %v2686, %v2910
        %v2912 = vpop.f32.mrb[0].mxu0
        %2913 = vmatprep.mubr.f32.mxu0 0.0
        %2914 = vmatmul.mubr.f32.gmra.mrb[0].mxu0 %v2460
        %v2915 = vpop.f32.mrb[0].mxu0
        %v2916 = vadd.f32 %v2691, %v2915
        %v2917 = vpop.f32.mrb[0].mxu0
        %2918 = vmatprep.mubr.f32.mxu0 0.0
        %2919 = vmatmul.mubr.f32.gmra.mrb[0].mxu0 %v2461
        %v2920 = vpop.f32.mrb[0].mxu0
        %v2921 = vadd.f32 %v2696, %v2920
        %v2922 = vpop.f32.mrb[0].mxu0
        %2923 = vmatprep.mubr.f32.mxu0 0.0
        %2924 = vmatmul.mubr.f32.gmra.mrb[0].mxu0 %v2462
        %v2925 = vpop.f32.mrb[0].mxu0
        %v2926 = vadd.f32 %v2701, %v2925
        %v2927 = vpop.f32.mrb[0].mxu0
        %2928 = vmatprep.mubr.f32.mxu0 0.0
        %2929 = vmatmul.mubr.f32.gmra.mrb[0].mxu0 %v2463
        %v2930 = vpop.f32.mrb[0].mxu0
        %v2931 = vadd.f32 %v2706, %v2930
        %v2932 = vpop.f32.mrb[0].mxu0
        %2933 = vmatprep.mubr.f32.mxu0 0.0
        %2934 = vmatmul.mubr.f32.gmra.mrb[0].mxu0 %v2464
        %v2935 = vpop.f32.mrb[0].mxu0
        %v2936 = vadd.f32 %v2711, %v2935
        %v2937 = vpop.f32.mrb[0].mxu0
        %2938 = vmatprep.mubr.f32.mxu0 0.0
        %2939 = vmatmul.mubr.f32.gmra.mrb[0].mxu0 %v2465
        %v2940 = vpop.f32.mrb[0].mxu0
        %v2941 = vadd.f32 %v2716, %v2940
        %v2942 = vpop.f32.mrb[0].mxu0
        %2943 = vmatprep.mubr.f32.mxu0 0.0
        %2944 = vmatmul.mubr.f32.gmra.mrb[0].mxu0 %v2466
        %v2945 = vpop.f32.mrb[0].mxu0
        %v2946 = vadd.f32 %v2721, %v2945
        %v2947 = vpop.f32.mrb[0].mxu0
        %2948 = vmatprep.mubr.f32.mxu0 0.0
        %2949 = vmatmul.mubr.f32.gmra.mrb[0].mxu0 %v2467
        %v2950 = vpop.f32.mrb[0].mxu0
        %v2951 = vadd.f32 %v2726, %v2950
        %v2952 = vpop.f32.mrb[0].mxu0
        %2953 = vmatprep.mubr.f32.mxu0 0.0
        %2954 = vmatmul.mubr.f32.gmra.mrb[0].mxu0 %v2468
        %v2955 = vpop.f32.mrb[0].mxu0
        %v2956 = vadd.f32 %v2731, %v2955
        %v2957 = vpop.f32.mrb[0].mxu0
        %2958 = vmatprep.mubr.f32.mxu0 0.0
        %2959 = vmatmul.mubr.f32.gmra.mrb[0].mxu0 %v2469
        %v2960 = vpop.f32.mrb[0].mxu0
        %v2961 = vadd.f32 %v2736, %v2960
        %v2962 = vpop.f32.mrb[0].mxu0
        %2963 = vmatprep.mubr.f32.mxu0 0.0
        %2964 = vmatmul.mubr.f32.gmra.mrb[0].mxu0 %v2470
        %v2965 = vpop.f32.mrb[0].mxu0
        %v2966 = vadd.f32 %v2741, %v2965
        %v2967 = vpop.f32.mrb[0].mxu0
        %2968 = vdwg.mxu0
        %2969 = vmatprep.subr.mxu0 0.0
        %2970 = vmatpush1.msra.mxu0 %v2327
        %2971 = vmatprep.subr.mxu0 0.0
        %2972 = vmatpush1.msra.mxu0 %v2328
        %2973 = vmatprep.subr.mxu0 0.0
        %2974 = vmatpush1.msra.mxu0 %v2329
        %2975 = vmatprep.subr.mxu0 0.0
        %2976 = vmatpush1.msra.mxu0 %v2330
        %2977 = vmatprep.subr.mxu0 0.0
        %2978 = vmatpush1.msra.mxu0 %v2331
        %2979 = vmatprep.subr.mxu0 0.0
        %2980 = vmatpush1.msra.mxu0 %v2332
        %2981 = vmatprep.subr.mxu0 0.0
        %2982 = vmatpush1.msra.mxu0 %v2333
        %2983 = vmatprep.subr.mxu0 0.0
        %2984 = vmatpush1.msra.mxu0 %v2334
        %2985 = vmatprep.subr.mxu0 0.0
        %2986 = vmatpush1.msra.mxu0 %v2335
        %2987 = vmatprep.subr.mxu0 0.0
        %2988 = vmatpush1.msra.mxu0 %v2336
        %2989 = vmatprep.subr.mxu0 0.0
        %2990 = vmatpush1.msra.mxu0 %v2337
        %2991 = vmatprep.subr.mxu0 0.0
        %2992 = vmatpush1.msra.mxu0 %v2338
        %2993 = vmatprep.subr.mxu0 0.0
        %2994 = vmatpush1.msra.mxu0 %v2339
        %2995 = vmatprep.subr.mxu0 0.0
        %2996 = vmatpush1.msra.mxu0 %v2340
        %2997 = vmatprep.subr.mxu0 0.0
        %2998 = vmatpush1.msra.mxu0 %v2341
        %2999 = vmatprep.subr.mxu0 0.0
        %3000 = vmatpush1.msra.mxu0 %v2342
        %3001 = vmatprep.subr.mxu0 0.0
        %3002 = vmatpush1.msra.mxu0 %v2343
        %3003 = vmatprep.subr.mxu0 0.0
        %3004 = vmatpush1.msra.mxu0 %v2344
        %3005 = vmatprep.subr.mxu0 0.0
        %3006 = vmatpush1.msra.mxu0 %v2345
        %3007 = vmatprep.subr.mxu0 0.0
        %3008 = vmatpush1.msra.mxu0 %v2346
        %3009 = vmatprep.subr.mxu0 0.0
        %3010 = vmatpush1.msra.mxu0 %v2347
        %3011 = vmatprep.subr.mxu0 0.0
        %3012 = vmatpush1.msra.mxu0 %v2348
        %3013 = vmatprep.subr.mxu0 0.0
        %3014 = vmatpush1.msra.mxu0 %v2349
        %3015 = vmatprep.subr.mxu0 0.0
        %3016 = vmatpush1.msra.mxu0 %v2350
        %3017 = vmatprep.subr.mxu0 0.0
        %3018 = vmatpush1.msra.mxu0 %v2351
        %3019 = vmatprep.subr.mxu0 0.0
        %3020 = vmatpush1.msra.mxu0 %v2352
        %3021 = vmatprep.subr.mxu0 0.0
        %3022 = vmatpush1.msra.mxu0 %v2353
        %3023 = vmatprep.subr.mxu0 0.0
        %3024 = vmatpush1.msra.mxu0 %v2354
        %3025 = vmatprep.subr.mxu0 0.0
        %3026 = vmatpush1.msra.mxu0 %v2355
        %3027 = vmatprep.subr.mxu0 0.0
        %3028 = vmatpush1.msra.mxu0 %v2356
        %3029 = vmatprep.subr.mxu0 0.0
        %3030 = vmatpush1.msra.mxu0 %v2357
        %3031 = vmatprep.subr.mxu0 0.0
        %3032 = vmatpush1.msra.mxu0 %v2358
        %3033 = vmatprep.mubr.f32.mxu0 %v2263
        %3034 = vmatmul.mubr.f32.gmra.mrb[0].mxu0 %v2231
        %v3035 = vpop.f32.mrb[0].mxu0
        %v3036 = vadd.f32 %v2811, %v3035
        %v3037 = vpop.f32.mrb[0].mxu0
        %3038 = vmatprep.mubr.f32.mxu0 %v2264
        %3039 = vmatmul.mubr.f32.gmra.mrb[0].mxu0 %v2232
        %v3040 = vpop.f32.mrb[0].mxu0
        %v3041 = vadd.f32 %v2816, %v3040
        %v3042 = vpop.f32.mrb[0].mxu0
        %3043 = vmatprep.mubr.f32.mxu0 %v2265
        %3044 = vmatmul.mubr.f32.gmra.mrb[0].mxu0 %v2233
        %v3045 = vpop.f32.mrb[0].mxu0
        %v3046 = vadd.f32 %v2821, %v3045
        %v3047 = vpop.f32.mrb[0].mxu0
        %3048 = vmatprep.mubr.f32.mxu0 %v2266
        %3049 = vmatmul.mubr.f32.gmra.mrb[0].mxu0 %v2234
        %v3050 = vpop.f32.mrb[0].mxu0
        %v3051 = vadd.f32 %v2826, %v3050
        %v3052 = vpop.f32.mrb[0].mxu0
        %3053 = vmatprep.mubr.f32.mxu0 %v2267
        %3054 = vmatmul.mubr.f32.gmra.mrb[0].mxu0 %v2235
        %v3055 = vpop.f32.mrb[0].mxu0
        %v3056 = vadd.f32 %v2831, %v3055
        %v3057 = vpop.f32.mrb[0].mxu0
        %3058 = vmatprep.mubr.f32.mxu0 %v2268
        %3059 = vmatmul.mubr.f32.gmra.mrb[0].mxu0 %v2236
        %v3060 = vpop.f32.mrb[0].mxu0
        %v3061 = vadd.f32 %v2836, %v3060
        %v3062 = vpop.f32.mrb[0].mxu0
        %3063 = vmatprep.mubr.f32.mxu0 %v2269
        %3064 = vmatmul.mubr.f32.gmra.mrb[0].mxu0 %v2237
        %v3065 = vpop.f32.mrb[0].mxu0
        %v3066 = vadd.f32 %v2841, %v3065
        %v3067 = vpop.f32.mrb[0].mxu0
        %3068 = vmatprep.mubr.f32.mxu0 %v2270
        %3069 = vmatmul.mubr.f32.gmra.mrb[0].mxu0 %v2238
        %v3070 = vpop.f32.mrb[0].mxu0
        %v3071 = vadd.f32 %v2846, %v3070
        %v3072 = vpop.f32.mrb[0].mxu0
        %3073 = vmatprep.mubr.f32.mxu0 %v2271
        %3074 = vmatmul.mubr.f32.gmra.mrb[0].mxu0 %v2239
        %v3075 = vpop.f32.mrb[0].mxu0
        %v3076 = vadd.f32 %v2851, %v3075
        %v3077 = vpop.f32.mrb[0].mxu0
        %3078 = vmatprep.mubr.f32.mxu0 %v2272
        %3079 = vmatmul.mubr.f32.gmra.mrb[0].mxu0 %v2240
        %v3080 = vpop.f32.mrb[0].mxu0
        %v3081 = vadd.f32 %v2856, %v3080
        %v3082 = vpop.f32.mrb[0].mxu0
        %3083 = vmatprep.mubr.f32.mxu0 %v2273
        %3084 = vmatmul.mubr.f32.gmra.mrb[0].mxu0 %v2241
        %v3085 = vpop.f32.mrb[0].mxu0
        %v3086 = vadd.f32 %v2861, %v3085
        %v3087 = vpop.f32.mrb[0].mxu0
        %3088 = vmatprep.mubr.f32.mxu0 %v2274
        %3089 = vmatmul.mubr.f32.gmra.mrb[0].mxu0 %v2242
        %v3090 = vpop.f32.mrb[0].mxu0
        %v3091 = vadd.f32 %v2866, %v3090
        %v3092 = vpop.f32.mrb[0].mxu0
        %3093 = vmatprep.mubr.f32.mxu0 %v2275
        %3094 = vmatmul.mubr.f32.gmra.mrb[0].mxu0 %v2243
        %v3095 = vpop.f32.mrb[0].mxu0
        %v3096 = vadd.f32 %v2871, %v3095
        %v3097 = vpop.f32.mrb[0].mxu0
        %3098 = vmatprep.mubr.f32.mxu0 %v2276
        %3099 = vmatmul.mubr.f32.gmra.mrb[0].mxu0 %v2244
        %v3100 = vpop.f32.mrb[0].mxu0
        %v3101 = vadd.f32 %v2876, %v3100
        %v3102 = vpop.f32.mrb[0].mxu0
        %3103 = vmatprep.mubr.f32.mxu0 %v2277
        %3104 = vmatmul.mubr.f32.gmra.mrb[0].mxu0 %v2245
        %v3105 = vpop.f32.mrb[0].mxu0
        %v3106 = vadd.f32 %v2881, %v3105
        %v3107 = vpop.f32.mrb[0].mxu0
        %3108 = vmatprep.mubr.f32.mxu0 %v2278
        %3109 = vmatmul.mubr.f32.gmra.mrb[0].mxu0 %v2246
        %v3110 = vpop.f32.mrb[0].mxu0
        %v3111 = vadd.f32 %v2886, %v3110
        %v3112 = vpop.f32.mrb[0].mxu0
        %3113 = vmatprep.mubr.f32.mxu0 %v2279
        %3114 = vmatmul.mubr.f32.gmra.mrb[0].mxu0 %v2247
        %v3115 = vpop.f32.mrb[0].mxu0
        %v3116 = vadd.f32 %v2891, %v3115
        %v3117 = vpop.f32.mrb[0].mxu0
        %3118 = vmatprep.mubr.f32.mxu0 %v2280
        %3119 = vmatmul.mubr.f32.gmra.mrb[0].mxu0 %v2248
        %v3120 = vpop.f32.mrb[0].mxu0
        %v3121 = vadd.f32 %v2896, %v3120
        %v3122 = vpop.f32.mrb[0].mxu0
        %3123 = vmatprep.mubr.f32.mxu0 %v2281
        %3124 = vmatmul.mubr.f32.gmra.mrb[0].mxu0 %v2249
        %v3125 = vpop.f32.mrb[0].mxu0
        %v3126 = vadd.f32 %v2901, %v3125
        %v3127 = vpop.f32.mrb[0].mxu0
        %3128 = vmatprep.mubr.f32.mxu0 %v2282
        %3129 = vmatmul.mubr.f32.gmra.mrb[0].mxu0 %v2250
        %v3130 = vpop.f32.mrb[0].mxu0
        %v3131 = vadd.f32 %v2906, %v3130
        %v3132 = vpop.f32.mrb[0].mxu0
        %3133 = vmatprep.mubr.f32.mxu0 %v2283
        %3134 = vmatmul.mubr.f32.gmra.mrb[0].mxu0 %v2251
        %v3135 = vpop.f32.mrb[0].mxu0
        %v3136 = vadd.f32 %v2911, %v3135
        %v3137 = vpop.f32.mrb[0].mxu0
        %3138 = vmatprep.mubr.f32.mxu0 %v2284
        %3139 = vmatmul.mubr.f32.gmra.mrb[0].mxu0 %v2252
        %v3140 = vpop.f32.mrb[0].mxu0
        %v3141 = vadd.f32 %v2916, %v3140
        %v3142 = vpop.f32.mrb[0].mxu0
        %3143 = vmatprep.mubr.f32.mxu0 %v2285
        %3144 = vmatmul.mubr.f32.gmra.mrb[0].mxu0 %v2253
        %v3145 = vpop.f32.mrb[0].mxu0
        %v3146 = vadd.f32 %v2921, %v3145
        %v3147 = vpop.f32.mrb[0].mxu0
        %3148 = vmatprep.mubr.f32.mxu0 %v2286
        %3149 = vmatmul.mubr.f32.gmra.mrb[0].mxu0 %v2254
        %v3150 = vpop.f32.mrb[0].mxu0
        %v3151 = vadd.f32 %v2926, %v3150
        %v3152 = vpop.f32.mrb[0].mxu0
        %3153 = vmatprep.mubr.f32.mxu0 %v2287
        %3154 = vmatmul.mubr.f32.gmra.mrb[0].mxu0 %v2255
        %v3155 = vpop.f32.mrb[0].mxu0
        %v3156 = vadd.f32 %v2931, %v3155
        %v3157 = vpop.f32.mrb[0].mxu0
        %3158 = vmatprep.mubr.f32.mxu0 %v2288
        %3159 = vmatmul.mubr.f32.gmra.mrb[0].mxu0 %v2256
        %v3160 = vpop.f32.mrb[0].mxu0
        %v3161 = vadd.f32 %v2936, %v3160
        %v3162 = vpop.f32.mrb[0].mxu0
        %3163 = vmatprep.mubr.f32.mxu0 %v2289
        %3164 = vmatmul.mubr.f32.gmra.mrb[0].mxu0 %v2257
        %v3165 = vpop.f32.mrb[0].mxu0
        %v3166 = vadd.f32 %v2941, %v3165
        %v3167 = vpop.f32.mrb[0].mxu0
        %3168 = vmatprep.mubr.f32.mxu0 %v2290
        %3169 = vmatmul.mubr.f32.gmra.mrb[0].mxu0 %v2258
        %v3170 = vpop.f32.mrb[0].mxu0
        %v3171 = vadd.f32 %v2946, %v3170
        %v3172 = vpop.f32.mrb[0].mxu0
        %3173 = vmatprep.mubr.f32.mxu0 %v2291
        %3174 = vmatmul.mubr.f32.gmra.mrb[0].mxu0 %v2259
        %v3175 = vpop.f32.mrb[0].mxu0
        %v3176 = vadd.f32 %v2951, %v3175
        %v3177 = vpop.f32.mrb[0].mxu0
        %3178 = vmatprep.mubr.f32.mxu0 %v2292
        %3179 = vmatmul.mubr.f32.gmra.mrb[0].mxu0 %v2260
        %v3180 = vpop.f32.mrb[0].mxu0
        %v3181 = vadd.f32 %v2956, %v3180
        %v3182 = vpop.f32.mrb[0].mxu0
        %3183 = vmatprep.mubr.f32.mxu0 %v2293
        %3184 = vmatmul.mubr.f32.gmra.mrb[0].mxu0 %v2261
        %v3185 = vpop.f32.mrb[0].mxu0
        %v3186 = vadd.f32 %v2961, %v3185
        %v3187 = vpop.f32.mrb[0].mxu0
        %3188 = vmatprep.mubr.f32.mxu0 %v2294
        %3189 = vmatmul.mubr.f32.gmra.mrb[0].mxu0 %v2262
        %v3190 = vpop.f32.mrb[0].mxu0
        %v3191 = vadd.f32 %v2966, %v3190
        %v3192 = vpop.f32.mrb[0].mxu0
        %3193 = vdwg.mxu0
        %3194 = vmatprep.subr.mxu0 0.0
        %3195 = vmatpush1.msra.mxu0 %v2359
        %3196 = vmatprep.subr.mxu0 0.0
        %3197 = vmatpush1.msra.mxu0 %v2360
        %3198 = vmatprep.subr.mxu0 0.0
        %3199 = vmatpush1.msra.mxu0 %v2361
        %3200 = vmatprep.subr.mxu0 0.0
        %3201 = vmatpush1.msra.mxu0 %v2362
        %3202 = vmatprep.subr.mxu0 0.0
        %3203 = vmatpush1.msra.mxu0 %v2363
        %3204 = vmatprep.subr.mxu0 0.0
        %3205 = vmatpush1.msra.mxu0 %v2364
        %3206 = vmatprep.subr.mxu0 0.0
        %3207 = vmatpush1.msra.mxu0 %v2365
        %3208 = vmatprep.subr.mxu0 0.0
        %3209 = vmatpush1.msra.mxu0 %v2366
        %3210 = vmatprep.subr.mxu0 0.0
        %3211 = vmatpush1.msra.mxu0 %v2367
        %3212 = vmatprep.subr.mxu0 0.0
        %3213 = vmatpush1.msra.mxu0 %v2368
        %3214 = vmatprep.subr.mxu0 0.0
        %3215 = vmatpush1.msra.mxu0 %v2369
        %3216 = vmatprep.subr.mxu0 0.0
        %3217 = vmatpush1.msra.mxu0 %v2370
        %3218 = vmatprep.subr.mxu0 0.0
        %3219 = vmatpush1.msra.mxu0 %v2371
        %3220 = vmatprep.subr.mxu0 0.0
        %3221 = vmatpush1.msra.mxu0 %v2372
        %3222 = vmatprep.subr.mxu0 0.0
        %3223 = vmatpush1.msra.mxu0 %v2373
        %3224 = vmatprep.subr.mxu0 0.0
        %3225 = vmatpush1.msra.mxu0 %v2374
        %3226 = vmatprep.subr.mxu0 0.0
        %3227 = vmatpush1.msra.mxu0 0.0
        %3228 = vmatprep.subr.mxu0 0.0
        %3229 = vmatpush1.msra.mxu0 0.0
        %3230 = vmatprep.subr.mxu0 0.0
        %3231 = vmatpush1.msra.mxu0 0.0
        %3232 = vmatprep.subr.mxu0 0.0
        %3233 = vmatpush1.msra.mxu0 0.0
        %3234 = vmatprep.subr.mxu0 0.0
        %3235 = vmatpush1.msra.mxu0 0.0
        %3236 = vmatprep.subr.mxu0 0.0
        %3237 = vmatpush1.msra.mxu0 0.0
        %3238 = vmatprep.subr.mxu0 0.0
        %3239 = vmatpush1.msra.mxu0 0.0
        %3240 = vmatprep.subr.mxu0 0.0
        %3241 = vmatpush1.msra.mxu0 0.0
        %3242 = vmatprep.subr.mxu0 0.0
        %3243 = vmatpush1.msra.mxu0 0.0
        %3244 = vmatprep.subr.mxu0 0.0
        %3245 = vmatpush1.msra.mxu0 0.0
        %3246 = vmatprep.subr.mxu0 0.0
        %3247 = vmatpush1.msra.mxu0 0.0
        %3248 = vmatprep.subr.mxu0 0.0
        %3249 = vmatpush1.msra.mxu0 0.0
        %3250 = vmatprep.subr.mxu0 0.0
        %3251 = vmatpush1.msra.mxu0 0.0
        %3252 = vmatprep.subr.mxu0 0.0
        %3253 = vmatpush1.msra.mxu0 0.0
        %3254 = vmatprep.subr.mxu0 0.0
        %3255 = vmatpush1.msra.mxu0 0.0
        %3256 = vmatprep.subr.mxu0 0.0
        %3257 = vmatpush1.msra.mxu0 0.0
        %3258 = vmatprep.mubr.f32.mxu0 0.0
        %3259 = vmatmul.mubr.f32.gmra.mrb[0].mxu0 %v2295
        %v3260 = vpop.f32.mrb[0].mxu0
        %v3261 = vadd.f32 %v3036, %v3260
        %v3262 = vpop.f32.mrb[0].mxu0
        %3263 = vmatprep.mubr.f32.mxu0 0.0
        %3264 = vmatmul.mubr.f32.gmra.mrb[0].mxu0 %v2296
        %v3265 = vpop.f32.mrb[0].mxu0
        %v3266 = vadd.f32 %v3041, %v3265
        %v3267 = vpop.f32.mrb[0].mxu0
        %3268 = vmatprep.mubr.f32.mxu0 0.0
        %3269 = vmatmul.mubr.f32.gmra.mrb[0].mxu0 %v2297
        %v3270 = vpop.f32.mrb[0].mxu0
        %v3271 = vadd.f32 %v3046, %v3270
        %v3272 = vpop.f32.mrb[0].mxu0
        %3273 = vmatprep.mubr.f32.mxu0 0.0
        %3274 = vmatmul.mubr.f32.gmra.mrb[0].mxu0 %v2298
        %v3275 = vpop.f32.mrb[0].mxu0
        %v3276 = vadd.f32 %v3051, %v3275
        %v3277 = vpop.f32.mrb[0].mxu0
        %3278 = vmatprep.mubr.f32.mxu0 0.0
        %3279 = vmatmul.mubr.f32.gmra.mrb[0].mxu0 %v2299
        %v3280 = vpop.f32.mrb[0].mxu0
        %v3281 = vadd.f32 %v3056, %v3280
        %v3282 = vpop.f32.mrb[0].mxu0
        %3283 = vmatprep.mubr.f32.mxu0 0.0
        %3284 = vmatmul.mubr.f32.gmra.mrb[0].mxu0 %v2300
        %v3285 = vpop.f32.mrb[0].mxu0
        %v3286 = vadd.f32 %v3061, %v3285
        %v3287 = vpop.f32.mrb[0].mxu0
        %3288 = vmatprep.mubr.f32.mxu0 0.0
        %3289 = vmatmul.mubr.f32.gmra.mrb[0].mxu0 %v2301
        %v3290 = vpop.f32.mrb[0].mxu0
        %v3291 = vadd.f32 %v3066, %v3290
        %v3292 = vpop.f32.mrb[0].mxu0
        %3293 = vmatprep.mubr.f32.mxu0 0.0
        %3294 = vmatmul.mubr.f32.gmra.mrb[0].mxu0 %v2302
        %v3295 = vpop.f32.mrb[0].mxu0
        %v3296 = vadd.f32 %v3071, %v3295
        %v3297 = vpop.f32.mrb[0].mxu0
        %3298 = vmatprep.mubr.f32.mxu0 0.0
        %3299 = vmatmul.mubr.f32.gmra.mrb[0].mxu0 %v2303
        %v3300 = vpop.f32.mrb[0].mxu0
        %v3301 = vadd.f32 %v3076, %v3300
        %v3302 = vpop.f32.mrb[0].mxu0
        %3303 = vmatprep.mubr.f32.mxu0 0.0
        %3304 = vmatmul.mubr.f32.gmra.mrb[0].mxu0 %v2304
        %v3305 = vpop.f32.mrb[0].mxu0
        %v3306 = vadd.f32 %v3081, %v3305
        %v3307 = vpop.f32.mrb[0].mxu0
        %3308 = vmatprep.mubr.f32.mxu0 0.0
        %3309 = vmatmul.mubr.f32.gmra.mrb[0].mxu0 %v2305
        %v3310 = vpop.f32.mrb[0].mxu0
        %v3311 = vadd.f32 %v3086, %v3310
        %v3312 = vpop.f32.mrb[0].mxu0
        %3313 = vmatprep.mubr.f32.mxu0 0.0
        %3314 = vmatmul.mubr.f32.gmra.mrb[0].mxu0 %v2306
        %v3315 = vpop.f32.mrb[0].mxu0
        %v3316 = vadd.f32 %v3091, %v3315
        %v3317 = vpop.f32.mrb[0].mxu0
        %3318 = vmatprep.mubr.f32.mxu0 0.0
        %3319 = vmatmul.mubr.f32.gmra.mrb[0].mxu0 %v2307
        %v3320 = vpop.f32.mrb[0].mxu0
        %v3321 = vadd.f32 %v3096, %v3320
        %v3322 = vpop.f32.mrb[0].mxu0
        %3323 = vmatprep.mubr.f32.mxu0 0.0
        %3324 = vmatmul.mubr.f32.gmra.mrb[0].mxu0 %v2308
        %v3325 = vpop.f32.mrb[0].mxu0
        %v3326 = vadd.f32 %v3101, %v3325
        %v3327 = vpop.f32.mrb[0].mxu0
        %3328 = vmatprep.mubr.f32.mxu0 0.0
        %3329 = vmatmul.mubr.f32.gmra.mrb[0].mxu0 %v2309
        %v3330 = vpop.f32.mrb[0].mxu0
        %v3331 = vadd.f32 %v3106, %v3330
        %v3332 = vpop.f32.mrb[0].mxu0
        %3333 = vmatprep.mubr.f32.mxu0 0.0
        %3334 = vmatmul.mubr.f32.gmra.mrb[0].mxu0 %v2310
        %v3335 = vpop.f32.mrb[0].mxu0
        %v3336 = vadd.f32 %v3111, %v3335
        %v3337 = vpop.f32.mrb[0].mxu0
        %3338 = vmatprep.mubr.f32.mxu0 0.0
        %3339 = vmatmul.mubr.f32.gmra.mrb[0].mxu0 %v2311
        %v3340 = vpop.f32.mrb[0].mxu0
        %v3341 = vadd.f32 %v3116, %v3340
        %v3342 = vpop.f32.mrb[0].mxu0
        %3343 = vmatprep.mubr.f32.mxu0 0.0
        %3344 = vmatmul.mubr.f32.gmra.mrb[0].mxu0 %v2312
        %v3345 = vpop.f32.mrb[0].mxu0
        %v3346 = vadd.f32 %v3121, %v3345
        %v3347 = vpop.f32.mrb[0].mxu0
        %3348 = vmatprep.mubr.f32.mxu0 0.0
        %3349 = vmatmul.mubr.f32.gmra.mrb[0].mxu0 %v2313
        %v3350 = vpop.f32.mrb[0].mxu0
        %v3351 = vadd.f32 %v3126, %v3350
        %v3352 = vpop.f32.mrb[0].mxu0
        %3353 = vmatprep.mubr.f32.mxu0 0.0
        %3354 = vmatmul.mubr.f32.gmra.mrb[0].mxu0 %v2314
        %v3355 = vpop.f32.mrb[0].mxu0
        %v3356 = vadd.f32 %v3131, %v3355
        %v3357 = vpop.f32.mrb[0].mxu0
        %3358 = vmatprep.mubr.f32.mxu0 0.0
        %3359 = vmatmul.mubr.f32.gmra.mrb[0].mxu0 %v2315
        %v3360 = vpop.f32.mrb[0].mxu0
        %v3361 = vadd.f32 %v3136, %v3360
        %v3362 = vpop.f32.mrb[0].mxu0
        %3363 = vmatprep.mubr.f32.mxu0 0.0
        %3364 = vmatmul.mubr.f32.gmra.mrb[0].mxu0 %v2316
        %v3365 = vpop.f32.mrb[0].mxu0
        %v3366 = vadd.f32 %v3141, %v3365
        %v3367 = vpop.f32.mrb[0].mxu0
        %3368 = vmatprep.mubr.f32.mxu0 0.0
        %3369 = vmatmul.mubr.f32.gmra.mrb[0].mxu0 %v2317
        %v3370 = vpop.f32.mrb[0].mxu0
        %v3371 = vadd.f32 %v3146, %v3370
        %v3372 = vpop.f32.mrb[0].mxu0
        %3373 = vmatprep.mubr.f32.mxu0 0.0
        %3374 = vmatmul.mubr.f32.gmra.mrb[0].mxu0 %v2318
        %v3375 = vpop.f32.mrb[0].mxu0
        %v3376 = vadd.f32 %v3151, %v3375
        %v3377 = vpop.f32.mrb[0].mxu0
        %3378 = vmatprep.mubr.f32.mxu0 0.0
        %3379 = vmatmul.mubr.f32.gmra.mrb[0].mxu0 %v2319
        %v3380 = vpop.f32.mrb[0].mxu0
        %v3381 = vadd.f32 %v3156, %v3380
        %v3382 = vpop.f32.mrb[0].mxu0
        %3383 = vmatprep.mubr.f32.mxu0 0.0
        %3384 = vmatmul.mubr.f32.gmra.mrb[0].mxu0 %v2320
        %v3385 = vpop.f32.mrb[0].mxu0
        %v3386 = vadd.f32 %v3161, %v3385
        %v3387 = vpop.f32.mrb[0].mxu0
        %3388 = vmatprep.mubr.f32.mxu0 0.0
        %3389 = vmatmul.mubr.f32.gmra.mrb[0].mxu0 %v2321
        %v3390 = vpop.f32.mrb[0].mxu0
        %v3391 = vadd.f32 %v3166, %v3390
        %v3392 = vpop.f32.mrb[0].mxu0
        %3393 = vmatprep.mubr.f32.mxu0 0.0
        %3394 = vmatmul.mubr.f32.gmra.mrb[0].mxu0 %v2322
        %v3395 = vpop.f32.mrb[0].mxu0
        %v3396 = vadd.f32 %v3171, %v3395
        %v3397 = vpop.f32.mrb[0].mxu0
        %3398 = vmatprep.mubr.f32.mxu0 0.0
        %3399 = vmatmul.mubr.f32.gmra.mrb[0].mxu0 %v2323
        %v3400 = vpop.f32.mrb[0].mxu0
        %v3401 = vadd.f32 %v3176, %v3400
        %v3402 = vpop.f32.mrb[0].mxu0
        %3403 = vmatprep.mubr.f32.mxu0 0.0
        %3404 = vmatmul.mubr.f32.gmra.mrb[0].mxu0 %v2324
        %v3405 = vpop.f32.mrb[0].mxu0
        %v3406 = vadd.f32 %v3181, %v3405
        %v3407 = vpop.f32.mrb[0].mxu0
        %3408 = vmatprep.mubr.f32.mxu0 0.0
        %3409 = vmatmul.mubr.f32.gmra.mrb[0].mxu0 %v2325
        %v3410 = vpop.f32.mrb[0].mxu0
        %v3411 = vadd.f32 %v3186, %v3410
        %v3412 = vpop.f32.mrb[0].mxu0
        %3413 = vmatprep.mubr.f32.mxu0 0.0
        %3414 = vmatmul.mubr.f32.gmra.mrb[0].mxu0 %v2326
        %v3415 = vpop.f32.mrb[0].mxu0
        %v3416 = vadd.f32 %v3191, %v3415
        %v3417 = vpop.f32.mrb[0].mxu0
        %3418 = vdwg.mxu0
        %s3419 = scalar_lea.vmem [#allocation2], 48
        %v3420 = vld [vmem:[%s3419] sm:$0xff]
        %v3421 = vld [vmem:[%s3419 + $0x8] sm:$0xff]
        %v3422 = vld [vmem:[%s3419 + $0x18] sm:$0xff]
        %v3423 = vld [vmem:[%s3419 + $0x20] sm:$0xff]
        %v3424 = vld [vmem:[%s3419 + $0x30] sm:$0xff]
        %v3425 = vld [vmem:[%s3419 + $0x38] sm:$0xff]
        %v3426 = vld [vmem:[%s3419 + $0x48] sm:$0xff]
        %v3427 = vld [vmem:[%s3419 + $0x50] sm:$0xff]
        %v3428 = vld [vmem:[%s3419 + $0x60] sm:$0xff]
        %v3429 = vld [vmem:[%s3419 + $0x68] sm:$0xff]
        %v3430 = vld [vmem:[%s3419 + $0x78] sm:$0xff]
        %v3431 = vld [vmem:[%s3419 + $0x80] sm:$0xff]
        %v3432 = vld [vmem:[%s3419 + $0x90] sm:$0xff]
        %v3433 = vld [vmem:[%s3419 + $0x98] sm:$0xff]
        %v3434 = vld [vmem:[%s3419 + $0xa8] sm:$0xff]
        %v3435 = vld [vmem:[%s3419 + $0xb0] sm:$0xff]
        %v3436 = vld [vmem:[%s3419 + $0xc0] sm:$0xff]
        %v3437 = vld [vmem:[%s3419 + $0xc8] sm:$0xff]
        %v3438 = vld [vmem:[%s3419 + $0xd8] sm:$0xff]
        %v3439 = vld [vmem:[%s3419 + $0xe0] sm:$0xff]
        %v3440 = vld [vmem:[%s3419 + $0xf0] sm:$0xff]
        %v3441 = vld [vmem:[%s3419 + $0xf8] sm:$0xff]
        %v3442 = vld [vmem:[%s3419 + $0x108] sm:$0xff]
        %v3443 = vld [vmem:[%s3419 + $0x110] sm:$0xff]
        %v3444 = vld [vmem:[%s3419 + $0x120] sm:$0xff]
        %v3445 = vld [vmem:[%s3419 + $0x128] sm:$0xff]
        %v3446 = vld [vmem:[%s3419 + $0x138] sm:$0xff]
        %v3447 = vld [vmem:[%s3419 + $0x140] sm:$0xff]
        %v3448 = vld [vmem:[%s3419 + $0x150] sm:$0xff]
        %v3449 = vld [vmem:[%s3419 + $0x158] sm:$0xff]
        %v3450 = vld [vmem:[%s3419 + $0x168] sm:$0xff]
        %v3451 = vld [vmem:[%s3419 + $0x170] sm:$0xff]
        %v3452 = vld [vmem:[%s3419 + $0x1] sm:$0xff]
        %v3453 = vld [vmem:[%s3419 + $0x9] sm:$0xff]
        %v3454 = vld [vmem:[%s3419 + $0x19] sm:$0xff]
        %v3455 = vld [vmem:[%s3419 + $0x21] sm:$0xff]
        %v3456 = vld [vmem:[%s3419 + $0x31] sm:$0xff]
        %v3457 = vld [vmem:[%s3419 + $0x39] sm:$0xff]
        %v3458 = vld [vmem:[%s3419 + $0x49] sm:$0xff]
        %v3459 = vld [vmem:[%s3419 + $0x51] sm:$0xff]
        %v3460 = vld [vmem:[%s3419 + $0x61] sm:$0xff]
        %v3461 = vld [vmem:[%s3419 + $0x69] sm:$0xff]
        %v3462 = vld [vmem:[%s3419 + $0x79] sm:$0xff]
        %v3463 = vld [vmem:[%s3419 + $0x81] sm:$0xff]
        %v3464 = vld [vmem:[%s3419 + $0x91] sm:$0xff]
        %v3465 = vld [vmem:[%s3419 + $0x99] sm:$0xff]
        %v3466 = vld [vmem:[%s3419 + $0xa9] sm:$0xff]
        %v3467 = vld [vmem:[%s3419 + $0xb1] sm:$0xff]
        %v3468 = vld [vmem:[%s3419 + $0xc1] sm:$0xff]
        %v3469 = vld [vmem:[%s3419 + $0xc9] sm:$0xff]
        %v3470 = vld [vmem:[%s3419 + $0xd9] sm:$0xff]
        %v3471 = vld [vmem:[%s3419 + $0xe1] sm:$0xff]
        %v3472 = vld [vmem:[%s3419 + $0xf1] sm:$0xff]
        %v3473 = vld [vmem:[%s3419 + $0xf9] sm:$0xff]
        %v3474 = vld [vmem:[%s3419 + $0x109] sm:$0xff]
        %v3475 = vld [vmem:[%s3419 + $0x111] sm:$0xff]
        %v3476 = vld [vmem:[%s3419 + $0x121] sm:$0xff]
        %v3477 = vld [vmem:[%s3419 + $0x129] sm:$0xff]
        %v3478 = vld [vmem:[%s3419 + $0x139] sm:$0xff]
        %v3479 = vld [vmem:[%s3419 + $0x141] sm:$0xff]
        %v3480 = vld [vmem:[%s3419 + $0x151] sm:$0xff]
        %v3481 = vld [vmem:[%s3419 + $0x159] sm:$0xff]
        %v3482 = vld [vmem:[%s3419 + $0x169] sm:$0xff]
        %v3483 = vld [vmem:[%s3419 + $0x171] sm:$0xff]
        %v3484 = vld [vmem:[%s3419 + $0x2] sm:$0xff]
        %v3485 = vld [vmem:[%s3419 + $0xa] sm:$0xff]
        %v3486 = vld [vmem:[%s3419 + $0x1a] sm:$0xff]
        %v3487 = vld [vmem:[%s3419 + $0x22] sm:$0xff]
        %v3488 = vld [vmem:[%s3419 + $0x32] sm:$0xff]
        %v3489 = vld [vmem:[%s3419 + $0x3a] sm:$0xff]
        %v3490 = vld [vmem:[%s3419 + $0x4a] sm:$0xff]
        %v3491 = vld [vmem:[%s3419 + $0x52] sm:$0xff]
        %v3492 = vld [vmem:[%s3419 + $0x62] sm:$0xff]
        %v3493 = vld [vmem:[%s3419 + $0x6a] sm:$0xff]
        %v3494 = vld [vmem:[%s3419 + $0x7a] sm:$0xff]
        %v3495 = vld [vmem:[%s3419 + $0x82] sm:$0xff]
        %v3496 = vld [vmem:[%s3419 + $0x92] sm:$0xff]
        %v3497 = vld [vmem:[%s3419 + $0x9a] sm:$0xff]
        %v3498 = vld [vmem:[%s3419 + $0xaa] sm:$0xff]
        %v3499 = vld [vmem:[%s3419 + $0xb2] sm:$0xff]
        %v3500 = vld [vmem:[%s3419 + $0xc2] sm:$0xff]
        %v3501 = vld [vmem:[%s3419 + $0xca] sm:$0xff]
        %v3502 = vld [vmem:[%s3419 + $0xda] sm:$0xff]
        %v3503 = vld [vmem:[%s3419 + $0xe2] sm:$0xff]
        %v3504 = vld [vmem:[%s3419 + $0xf2] sm:$0xff]
        %v3505 = vld [vmem:[%s3419 + $0xfa] sm:$0xff]
        %v3506 = vld [vmem:[%s3419 + $0x10a] sm:$0xff]
        %v3507 = vld [vmem:[%s3419 + $0x112] sm:$0xff]
        %v3508 = vld [vmem:[%s3419 + $0x122] sm:$0xff]
        %v3509 = vld [vmem:[%s3419 + $0x12a] sm:$0xff]
        %v3510 = vld [vmem:[%s3419 + $0x13a] sm:$0xff]
        %v3511 = vld [vmem:[%s3419 + $0x142] sm:$0xff]
        %v3512 = vld [vmem:[%s3419 + $0x152] sm:$0xff]
        %v3513 = vld [vmem:[%s3419 + $0x15a] sm:$0xff]
        %v3514 = vld [vmem:[%s3419 + $0x16a] sm:$0xff]
        %v3515 = vld [vmem:[%s3419 + $0x172] sm:$0xff]
        %v3516 = vld [vmem:[#allocation8 + $0x300] sm:$0xff]
        %v3517 = vld [vmem:[#allocation8 + $0x308] sm:$0xff]
        %v3518 = vld [vmem:[#allocation8 + $0x310] sm:$0xff]
        %v3519 = vld [vmem:[#allocation8 + $0x318] sm:$0xff]
        %v3520 = vld [vmem:[#allocation8 + $0x320] sm:$0xff]
        %v3521 = vld [vmem:[#allocation8 + $0x328] sm:$0xff]
        %v3522 = vld [vmem:[#allocation8 + $0x330] sm:$0xff]
        %v3523 = vld [vmem:[#allocation8 + $0x338] sm:$0xff]
        %v3524 = vld [vmem:[#allocation8 + $0x340] sm:$0xff]
        %v3525 = vld [vmem:[#allocation8 + $0x348] sm:$0xff]
        %v3526 = vld [vmem:[#allocation8 + $0x350] sm:$0xff]
        %v3527 = vld [vmem:[#allocation8 + $0x358] sm:$0xff]
        %v3528 = vld [vmem:[#allocation8 + $0x360] sm:$0xff]
        %v3529 = vld [vmem:[#allocation8 + $0x368] sm:$0xff]
        %v3530 = vld [vmem:[#allocation8 + $0x370] sm:$0xff]
        %v3531 = vld [vmem:[#allocation8 + $0x378] sm:$0xff]
        %v3532 = vld [vmem:[#allocation8 + $0x380] sm:$0xff]
        %v3533 = vld [vmem:[#allocation8 + $0x388] sm:$0xff]
        %v3534 = vld [vmem:[#allocation8 + $0x390] sm:$0xff]
        %v3535 = vld [vmem:[#allocation8 + $0x398] sm:$0xff]
        %v3536 = vld [vmem:[#allocation8 + $0x3a0] sm:$0xff]
        %v3537 = vld [vmem:[#allocation8 + $0x3a8] sm:$0xff]
        %v3538 = vld [vmem:[#allocation8 + $0x3b0] sm:$0xff]
        %v3539 = vld [vmem:[#allocation8 + $0x3b8] sm:$0xff]
        %v3540 = vld [vmem:[#allocation8 + $0x3c0] sm:$0xff]
        %v3541 = vld [vmem:[#allocation8 + $0x3c8] sm:$0xff]
        %v3542 = vld [vmem:[#allocation8 + $0x3d0] sm:$0xff]
        %v3543 = vld [vmem:[#allocation8 + $0x3d8] sm:$0xff]
        %v3544 = vld [vmem:[#allocation8 + $0x3e0] sm:$0xff]
        %v3545 = vld [vmem:[#allocation8 + $0x3e8] sm:$0xff]
        %v3546 = vld [vmem:[#allocation8 + $0x3f0] sm:$0xff]
        %v3547 = vld [vmem:[#allocation8 + $0x3f8] sm:$0xff]
        %v3548 = vld [vmem:[#allocation8 + $0x400] sm:$0xff]
        %v3549 = vld [vmem:[#allocation8 + $0x408] sm:$0xff]
        %v3550 = vld [vmem:[#allocation8 + $0x410] sm:$0xff]
        %v3551 = vld [vmem:[#allocation8 + $0x418] sm:$0xff]
        %v3552 = vld [vmem:[#allocation8 + $0x420] sm:$0xff]
        %v3553 = vld [vmem:[#allocation8 + $0x428] sm:$0xff]
        %v3554 = vld [vmem:[#allocation8 + $0x430] sm:$0xff]
        %v3555 = vld [vmem:[#allocation8 + $0x438] sm:$0xff]
        %v3556 = vld [vmem:[#allocation8 + $0x440] sm:$0xff]
        %v3557 = vld [vmem:[#allocation8 + $0x448] sm:$0xff]
        %v3558 = vld [vmem:[#allocation8 + $0x450] sm:$0xff]
        %v3559 = vld [vmem:[#allocation8 + $0x458] sm:$0xff]
        %v3560 = vld [vmem:[#allocation8 + $0x460] sm:$0xff]
        %v3561 = vld [vmem:[#allocation8 + $0x468] sm:$0xff]
        %v3562 = vld [vmem:[#allocation8 + $0x470] sm:$0xff]
        %v3563 = vld [vmem:[#allocation8 + $0x478] sm:$0xff]
        %3564 = vmatprep.subr.mxu0 0.0
        %3565 = vmatpush1.msra.mxu0 %v3516
        %3566 = vmatprep.subr.mxu0 0.0
        %3567 = vmatpush1.msra.mxu0 %v3517
        %3568 = vmatprep.subr.mxu0 0.0
        %3569 = vmatpush1.msra.mxu0 %v3518
        %3570 = vmatprep.subr.mxu0 0.0
        %3571 = vmatpush1.msra.mxu0 %v3519
        %3572 = vmatprep.subr.mxu0 0.0
        %3573 = vmatpush1.msra.mxu0 %v3520
        %3574 = vmatprep.subr.mxu0 0.0
        %3575 = vmatpush1.msra.mxu0 %v3521
        %3576 = vmatprep.subr.mxu0 0.0
        %3577 = vmatpush1.msra.mxu0 %v3522
        %3578 = vmatprep.subr.mxu0 0.0
        %3579 = vmatpush1.msra.mxu0 %v3523
        %3580 = vmatprep.subr.mxu0 0.0
        %3581 = vmatpush1.msra.mxu0 %v3524
        %3582 = vmatprep.subr.mxu0 0.0
        %3583 = vmatpush1.msra.mxu0 %v3525
        %3584 = vmatprep.subr.mxu0 0.0
        %3585 = vmatpush1.msra.mxu0 %v3526
        %3586 = vmatprep.subr.mxu0 0.0
        %3587 = vmatpush1.msra.mxu0 %v3527
        %3588 = vmatprep.subr.mxu0 0.0
        %3589 = vmatpush1.msra.mxu0 %v3528
        %3590 = vmatprep.subr.mxu0 0.0
        %3591 = vmatpush1.msra.mxu0 %v3529
        %3592 = vmatprep.subr.mxu0 0.0
        %3593 = vmatpush1.msra.mxu0 %v3530
        %3594 = vmatprep.subr.mxu0 0.0
        %3595 = vmatpush1.msra.mxu0 %v3531
        %3596 = vmatprep.subr.mxu0 0.0
        %3597 = vmatpush1.msra.mxu0 %v3532
        %3598 = vmatprep.subr.mxu0 0.0
        %3599 = vmatpush1.msra.mxu0 %v3533
        %3600 = vmatprep.subr.mxu0 0.0
        %3601 = vmatpush1.msra.mxu0 %v3534
        %3602 = vmatprep.subr.mxu0 0.0
        %3603 = vmatpush1.msra.mxu0 %v3535
        %3604 = vmatprep.subr.mxu0 0.0
        %3605 = vmatpush1.msra.mxu0 %v3536
        %3606 = vmatprep.subr.mxu0 0.0
        %3607 = vmatpush1.msra.mxu0 %v3537
        %3608 = vmatprep.subr.mxu0 0.0
        %3609 = vmatpush1.msra.mxu0 %v3538
        %3610 = vmatprep.subr.mxu0 0.0
        %3611 = vmatpush1.msra.mxu0 %v3539
        %3612 = vmatprep.subr.mxu0 0.0
        %3613 = vmatpush1.msra.mxu0 %v3540
        %3614 = vmatprep.subr.mxu0 0.0
        %3615 = vmatpush1.msra.mxu0 %v3541
        %3616 = vmatprep.subr.mxu0 0.0
        %3617 = vmatpush1.msra.mxu0 %v3542
        %3618 = vmatprep.subr.mxu0 0.0
        %3619 = vmatpush1.msra.mxu0 %v3543
        %3620 = vmatprep.subr.mxu0 0.0
        %3621 = vmatpush1.msra.mxu0 %v3544
        %3622 = vmatprep.subr.mxu0 0.0
        %3623 = vmatpush1.msra.mxu0 %v3545
        %3624 = vmatprep.subr.mxu0 0.0
        %3625 = vmatpush1.msra.mxu0 %v3546
        %3626 = vmatprep.subr.mxu0 0.0
        %3627 = vmatpush1.msra.mxu0 %v3547
        %3628 = vmatprep.mubr.f32.mxu0 %v3452
        %3629 = vmatmul.mubr.f32.gmra.mrb[0].mxu0 %v3420
        %v3630 = vpop.f32.mrb[0].mxu0
        %v3631 = vadd.f32 0.0, %v3630
        %v3632 = vpop.f32.mrb[0].mxu0
        %3633 = vmatprep.mubr.f32.mxu0 %v3453
        %3634 = vmatmul.mubr.f32.gmra.mrb[0].mxu0 %v3421
        %v3635 = vpop.f32.mrb[0].mxu0
        %v3636 = vadd.f32 0.0, %v3635
        %v3637 = vpop.f32.mrb[0].mxu0
        %3638 = vmatprep.mubr.f32.mxu0 %v3454
        %3639 = vmatmul.mubr.f32.gmra.mrb[0].mxu0 %v3422
        %v3640 = vpop.f32.mrb[0].mxu0
        %v3641 = vadd.f32 0.0, %v3640
        %v3642 = vpop.f32.mrb[0].mxu0
        %3643 = vmatprep.mubr.f32.mxu0 %v3455
        %3644 = vmatmul.mubr.f32.gmra.mrb[0].mxu0 %v3423
        %v3645 = vpop.f32.mrb[0].mxu0
        %v3646 = vadd.f32 0.0, %v3645
        %v3647 = vpop.f32.mrb[0].mxu0
        %3648 = vmatprep.mubr.f32.mxu0 %v3456
        %3649 = vmatmul.mubr.f32.gmra.mrb[0].mxu0 %v3424
        %v3650 = vpop.f32.mrb[0].mxu0
        %v3651 = vadd.f32 0.0, %v3650
        %v3652 = vpop.f32.mrb[0].mxu0
        %3653 = vmatprep.mubr.f32.mxu0 %v3457
        %3654 = vmatmul.mubr.f32.gmra.mrb[0].mxu0 %v3425
        %v3655 = vpop.f32.mrb[0].mxu0
        %v3656 = vadd.f32 0.0, %v3655
        %v3657 = vpop.f32.mrb[0].mxu0
        %3658 = vmatprep.mubr.f32.mxu0 %v3458
        %3659 = vmatmul.mubr.f32.gmra.mrb[0].mxu0 %v3426
        %v3660 = vpop.f32.mrb[0].mxu0
        %v3661 = vadd.f32 0.0, %v3660
        %v3662 = vpop.f32.mrb[0].mxu0
        %3663 = vmatprep.mubr.f32.mxu0 %v3459
        %3664 = vmatmul.mubr.f32.gmra.mrb[0].mxu0 %v3427
        %v3665 = vpop.f32.mrb[0].mxu0
        %v3666 = vadd.f32 0.0, %v3665
        %v3667 = vpop.f32.mrb[0].mxu0
        %3668 = vmatprep.mubr.f32.mxu0 %v3460
        %3669 = vmatmul.mubr.f32.gmra.mrb[0].mxu0 %v3428
        %v3670 = vpop.f32.mrb[0].mxu0
        %v3671 = vadd.f32 0.0, %v3670
        %v3672 = vpop.f32.mrb[0].mxu0
        %3673 = vmatprep.mubr.f32.mxu0 %v3461
        %3674 = vmatmul.mubr.f32.gmra.mrb[0].mxu0 %v3429
        %v3675 = vpop.f32.mrb[0].mxu0
        %v3676 = vadd.f32 0.0, %v3675
        %v3677 = vpop.f32.mrb[0].mxu0
        %3678 = vmatprep.mubr.f32.mxu0 %v3462
        %3679 = vmatmul.mubr.f32.gmra.mrb[0].mxu0 %v3430
        %v3680 = vpop.f32.mrb[0].mxu0
        %v3681 = vadd.f32 0.0, %v3680
        %v3682 = vpop.f32.mrb[0].mxu0
        %3683 = vmatprep.mubr.f32.mxu0 %v3463
        %3684 = vmatmul.mubr.f32.gmra.mrb[0].mxu0 %v3431
        %v3685 = vpop.f32.mrb[0].mxu0
        %v3686 = vadd.f32 0.0, %v3685
        %v3687 = vpop.f32.mrb[0].mxu0
        %3688 = vmatprep.mubr.f32.mxu0 %v3464
        %3689 = vmatmul.mubr.f32.gmra.mrb[0].mxu0 %v3432
        %v3690 = vpop.f32.mrb[0].mxu0
        %v3691 = vadd.f32 0.0, %v3690
        %v3692 = vpop.f32.mrb[0].mxu0
        %3693 = vmatprep.mubr.f32.mxu0 %v3465
        %3694 = vmatmul.mubr.f32.gmra.mrb[0].mxu0 %v3433
        %v3695 = vpop.f32.mrb[0].mxu0
        %v3696 = vadd.f32 0.0, %v3695
        %v3697 = vpop.f32.mrb[0].mxu0
        %3698 = vmatprep.mubr.f32.mxu0 %v3466
        %3699 = vmatmul.mubr.f32.gmra.mrb[0].mxu0 %v3434
        %v3700 = vpop.f32.mrb[0].mxu0
        %v3701 = vadd.f32 0.0, %v3700
        %v3702 = vpop.f32.mrb[0].mxu0
        %3703 = vmatprep.mubr.f32.mxu0 %v3467
        %3704 = vmatmul.mubr.f32.gmra.mrb[0].mxu0 %v3435
        %v3705 = vpop.f32.mrb[0].mxu0
        %v3706 = vadd.f32 0.0, %v3705
        %v3707 = vpop.f32.mrb[0].mxu0
        %3708 = vmatprep.mubr.f32.mxu0 %v3468
        %3709 = vmatmul.mubr.f32.gmra.mrb[0].mxu0 %v3436
        %v3710 = vpop.f32.mrb[0].mxu0
        %v3711 = vadd.f32 0.0, %v3710
        %v3712 = vpop.f32.mrb[0].mxu0
        %3713 = vmatprep.mubr.f32.mxu0 %v3469
        %3714 = vmatmul.mubr.f32.gmra.mrb[0].mxu0 %v3437
        %v3715 = vpop.f32.mrb[0].mxu0
        %v3716 = vadd.f32 0.0, %v3715
        %v3717 = vpop.f32.mrb[0].mxu0
        %3718 = vmatprep.mubr.f32.mxu0 %v3470
        %3719 = vmatmul.mubr.f32.gmra.mrb[0].mxu0 %v3438
        %v3720 = vpop.f32.mrb[0].mxu0
        %v3721 = vadd.f32 0.0, %v3720
        %v3722 = vpop.f32.mrb[0].mxu0
        %3723 = vmatprep.mubr.f32.mxu0 %v3471
        %3724 = vmatmul.mubr.f32.gmra.mrb[0].mxu0 %v3439
        %v3725 = vpop.f32.mrb[0].mxu0
        %v3726 = vadd.f32 0.0, %v3725
        %v3727 = vpop.f32.mrb[0].mxu0
        %3728 = vmatprep.mubr.f32.mxu0 %v3472
        %3729 = vmatmul.mubr.f32.gmra.mrb[0].mxu0 %v3440
        %v3730 = vpop.f32.mrb[0].mxu0
        %v3731 = vadd.f32 0.0, %v3730
        %v3732 = vpop.f32.mrb[0].mxu0
        %3733 = vmatprep.mubr.f32.mxu0 %v3473
        %3734 = vmatmul.mubr.f32.gmra.mrb[0].mxu0 %v3441
        %v3735 = vpop.f32.mrb[0].mxu0
        %v3736 = vadd.f32 0.0, %v3735
        %v3737 = vpop.f32.mrb[0].mxu0
        %3738 = vmatprep.mubr.f32.mxu0 %v3474
        %3739 = vmatmul.mubr.f32.gmra.mrb[0].mxu0 %v3442
        %v3740 = vpop.f32.mrb[0].mxu0
        %v3741 = vadd.f32 0.0, %v3740
        %v3742 = vpop.f32.mrb[0].mxu0
        %3743 = vmatprep.mubr.f32.mxu0 %v3475
        %3744 = vmatmul.mubr.f32.gmra.mrb[0].mxu0 %v3443
        %v3745 = vpop.f32.mrb[0].mxu0
        %v3746 = vadd.f32 0.0, %v3745
        %v3747 = vpop.f32.mrb[0].mxu0
        %3748 = vmatprep.mubr.f32.mxu0 %v3476
        %3749 = vmatmul.mubr.f32.gmra.mrb[0].mxu0 %v3444
        %v3750 = vpop.f32.mrb[0].mxu0
        %v3751 = vadd.f32 0.0, %v3750
        %v3752 = vpop.f32.mrb[0].mxu0
        %3753 = vmatprep.mubr.f32.mxu0 %v3477
        %3754 = vmatmul.mubr.f32.gmra.mrb[0].mxu0 %v3445
        %v3755 = vpop.f32.mrb[0].mxu0
        %v3756 = vadd.f32 0.0, %v3755
        %v3757 = vpop.f32.mrb[0].mxu0
        %3758 = vmatprep.mubr.f32.mxu0 %v3478
        %3759 = vmatmul.mubr.f32.gmra.mrb[0].mxu0 %v3446
        %v3760 = vpop.f32.mrb[0].mxu0
        %v3761 = vadd.f32 0.0, %v3760
        %v3762 = vpop.f32.mrb[0].mxu0
        %3763 = vmatprep.mubr.f32.mxu0 %v3479
        %3764 = vmatmul.mubr.f32.gmra.mrb[0].mxu0 %v3447
        %v3765 = vpop.f32.mrb[0].mxu0
        %v3766 = vadd.f32 0.0, %v3765
        %v3767 = vpop.f32.mrb[0].mxu0
        %3768 = vmatprep.mubr.f32.mxu0 %v3480
        %3769 = vmatmul.mubr.f32.gmra.mrb[0].mxu0 %v3448
        %v3770 = vpop.f32.mrb[0].mxu0
        %v3771 = vadd.f32 0.0, %v3770
        %v3772 = vpop.f32.mrb[0].mxu0
        %3773 = vmatprep.mubr.f32.mxu0 %v3481
        %3774 = vmatmul.mubr.f32.gmra.mrb[0].mxu0 %v3449
        %v3775 = vpop.f32.mrb[0].mxu0
        %v3776 = vadd.f32 0.0, %v3775
        %v3777 = vpop.f32.mrb[0].mxu0
        %3778 = vmatprep.mubr.f32.mxu0 %v3482
        %3779 = vmatmul.mubr.f32.gmra.mrb[0].mxu0 %v3450
        %v3780 = vpop.f32.mrb[0].mxu0
        %v3781 = vadd.f32 0.0, %v3780
        %v3782 = vpop.f32.mrb[0].mxu0
        %3783 = vmatprep.mubr.f32.mxu0 %v3483
        %3784 = vmatmul.mubr.f32.gmra.mrb[0].mxu0 %v3451
        %v3785 = vpop.f32.mrb[0].mxu0
        %v3786 = vadd.f32 0.0, %v3785
        %v3787 = vpop.f32.mrb[0].mxu0
        %3788 = vdwg.mxu0
        %3789 = vmatprep.subr.mxu0 0.0
        %3790 = vmatpush1.msra.mxu0 %v3548
        %3791 = vmatprep.subr.mxu0 0.0
        %3792 = vmatpush1.msra.mxu0 %v3549
        %3793 = vmatprep.subr.mxu0 0.0
        %3794 = vmatpush1.msra.mxu0 %v3550
        %3795 = vmatprep.subr.mxu0 0.0
        %3796 = vmatpush1.msra.mxu0 %v3551
        %3797 = vmatprep.subr.mxu0 0.0
        %3798 = vmatpush1.msra.mxu0 %v3552
        %3799 = vmatprep.subr.mxu0 0.0
        %3800 = vmatpush1.msra.mxu0 %v3553
        %3801 = vmatprep.subr.mxu0 0.0
        %3802 = vmatpush1.msra.mxu0 %v3554
        %3803 = vmatprep.subr.mxu0 0.0
        %3804 = vmatpush1.msra.mxu0 %v3555
        %3805 = vmatprep.subr.mxu0 0.0
        %3806 = vmatpush1.msra.mxu0 %v3556
        %3807 = vmatprep.subr.mxu0 0.0
        %3808 = vmatpush1.msra.mxu0 %v3557
        %3809 = vmatprep.subr.mxu0 0.0
        %3810 = vmatpush1.msra.mxu0 %v3558
        %3811 = vmatprep.subr.mxu0 0.0
        %3812 = vmatpush1.msra.mxu0 %v3559
        %3813 = vmatprep.subr.mxu0 0.0
        %3814 = vmatpush1.msra.mxu0 %v3560
        %3815 = vmatprep.subr.mxu0 0.0
        %3816 = vmatpush1.msra.mxu0 %v3561
        %3817 = vmatprep.subr.mxu0 0.0
        %3818 = vmatpush1.msra.mxu0 %v3562
        %3819 = vmatprep.subr.mxu0 0.0
        %3820 = vmatpush1.msra.mxu0 %v3563
        %3821 = vmatprep.subr.mxu0 0.0
        %3822 = vmatpush1.msra.mxu0 0.0
        %3823 = vmatprep.subr.mxu0 0.0
        %3824 = vmatpush1.msra.mxu0 0.0
        %3825 = vmatprep.subr.mxu0 0.0
        %3826 = vmatpush1.msra.mxu0 0.0
        %3827 = vmatprep.subr.mxu0 0.0
        %3828 = vmatpush1.msra.mxu0 0.0
        %3829 = vmatprep.subr.mxu0 0.0
        %3830 = vmatpush1.msra.mxu0 0.0
        %3831 = vmatprep.subr.mxu0 0.0
        %3832 = vmatpush1.msra.mxu0 0.0
        %3833 = vmatprep.subr.mxu0 0.0
        %3834 = vmatpush1.msra.mxu0 0.0
        %3835 = vmatprep.subr.mxu0 0.0
        %3836 = vmatpush1.msra.mxu0 0.0
        %3837 = vmatprep.subr.mxu0 0.0
        %3838 = vmatpush1.msra.mxu0 0.0
        %3839 = vmatprep.subr.mxu0 0.0
        %3840 = vmatpush1.msra.mxu0 0.0
        %3841 = vmatprep.subr.mxu0 0.0
        %3842 = vmatpush1.msra.mxu0 0.0
        %3843 = vmatprep.subr.mxu0 0.0
        %3844 = vmatpush1.msra.mxu0 0.0
        %3845 = vmatprep.subr.mxu0 0.0
        %3846 = vmatpush1.msra.mxu0 0.0
        %3847 = vmatprep.subr.mxu0 0.0
        %3848 = vmatpush1.msra.mxu0 0.0
        %3849 = vmatprep.subr.mxu0 0.0
        %3850 = vmatpush1.msra.mxu0 0.0
        %3851 = vmatprep.subr.mxu0 0.0
        %3852 = vmatpush1.msra.mxu0 0.0
        %3853 = vmatprep.mubr.f32.mxu0 0.0
        %3854 = vmatmul.mubr.f32.gmra.mrb[0].mxu0 %v3484
        %v3855 = vpop.f32.mrb[0].mxu0
        %v3856 = vadd.f32 %v3631, %v3855
        %v3857 = vpop.f32.mrb[0].mxu0
        %3858 = vmatprep.mubr.f32.mxu0 0.0
        %3859 = vmatmul.mubr.f32.gmra.mrb[0].mxu0 %v3485
        %v3860 = vpop.f32.mrb[0].mxu0
        %v3861 = vadd.f32 %v3636, %v3860
        %v3862 = vpop.f32.mrb[0].mxu0
        %3863 = vmatprep.mubr.f32.mxu0 0.0
        %3864 = vmatmul.mubr.f32.gmra.mrb[0].mxu0 %v3486
        %v3865 = vpop.f32.mrb[0].mxu0
        %v3866 = vadd.f32 %v3641, %v3865
        %v3867 = vpop.f32.mrb[0].mxu0
        %3868 = vmatprep.mubr.f32.mxu0 0.0
        %3869 = vmatmul.mubr.f32.gmra.mrb[0].mxu0 %v3487
        %v3870 = vpop.f32.mrb[0].mxu0
        %v3871 = vadd.f32 %v3646, %v3870
        %v3872 = vpop.f32.mrb[0].mxu0
        %3873 = vmatprep.mubr.f32.mxu0 0.0
        %3874 = vmatmul.mubr.f32.gmra.mrb[0].mxu0 %v3488
        %v3875 = vpop.f32.mrb[0].mxu0
        %v3876 = vadd.f32 %v3651, %v3875
        %v3877 = vpop.f32.mrb[0].mxu0
        %3878 = vmatprep.mubr.f32.mxu0 0.0
        %3879 = vmatmul.mubr.f32.gmra.mrb[0].mxu0 %v3489
        %v3880 = vpop.f32.mrb[0].mxu0
        %v3881 = vadd.f32 %v3656, %v3880
        %v3882 = vpop.f32.mrb[0].mxu0
        %3883 = vmatprep.mubr.f32.mxu0 0.0
        %3884 = vmatmul.mubr.f32.gmra.mrb[0].mxu0 %v3490
        %v3885 = vpop.f32.mrb[0].mxu0
        %v3886 = vadd.f32 %v3661, %v3885
        %v3887 = vpop.f32.mrb[0].mxu0
        %3888 = vmatprep.mubr.f32.mxu0 0.0
        %3889 = vmatmul.mubr.f32.gmra.mrb[0].mxu0 %v3491
        %v3890 = vpop.f32.mrb[0].mxu0
        %v3891 = vadd.f32 %v3666, %v3890
        %v3892 = vpop.f32.mrb[0].mxu0
        %3893 = vmatprep.mubr.f32.mxu0 0.0
        %3894 = vmatmul.mubr.f32.gmra.mrb[0].mxu0 %v3492
        %v3895 = vpop.f32.mrb[0].mxu0
        %v3896 = vadd.f32 %v3671, %v3895
        %v3897 = vpop.f32.mrb[0].mxu0
        %3898 = vmatprep.mubr.f32.mxu0 0.0
        %3899 = vmatmul.mubr.f32.gmra.mrb[0].mxu0 %v3493
        %v3900 = vpop.f32.mrb[0].mxu0
        %v3901 = vadd.f32 %v3676, %v3900
        %v3902 = vpop.f32.mrb[0].mxu0
        %3903 = vmatprep.mubr.f32.mxu0 0.0
        %3904 = vmatmul.mubr.f32.gmra.mrb[0].mxu0 %v3494
        %v3905 = vpop.f32.mrb[0].mxu0
        %v3906 = vadd.f32 %v3681, %v3905
        %v3907 = vpop.f32.mrb[0].mxu0
        %3908 = vmatprep.mubr.f32.mxu0 0.0
        %3909 = vmatmul.mubr.f32.gmra.mrb[0].mxu0 %v3495
        %v3910 = vpop.f32.mrb[0].mxu0
        %v3911 = vadd.f32 %v3686, %v3910
        %v3912 = vpop.f32.mrb[0].mxu0
        %3913 = vmatprep.mubr.f32.mxu0 0.0
        %3914 = vmatmul.mubr.f32.gmra.mrb[0].mxu0 %v3496
        %v3915 = vpop.f32.mrb[0].mxu0
        %v3916 = vadd.f32 %v3691, %v3915
        %v3917 = vpop.f32.mrb[0].mxu0
        %3918 = vmatprep.mubr.f32.mxu0 0.0
        %3919 = vmatmul.mubr.f32.gmra.mrb[0].mxu0 %v3497
        %v3920 = vpop.f32.mrb[0].mxu0
        %v3921 = vadd.f32 %v3696, %v3920
        %v3922 = vpop.f32.mrb[0].mxu0
        %3923 = vmatprep.mubr.f32.mxu0 0.0
        %3924 = vmatmul.mubr.f32.gmra.mrb[0].mxu0 %v3498
        %v3925 = vpop.f32.mrb[0].mxu0
        %v3926 = vadd.f32 %v3701, %v3925
        %v3927 = vpop.f32.mrb[0].mxu0
        %3928 = vmatprep.mubr.f32.mxu0 0.0
        %3929 = vmatmul.mubr.f32.gmra.mrb[0].mxu0 %v3499
        %v3930 = vpop.f32.mrb[0].mxu0
        %v3931 = vadd.f32 %v3706, %v3930
        %v3932 = vpop.f32.mrb[0].mxu0
        %3933 = vmatprep.mubr.f32.mxu0 0.0
        %3934 = vmatmul.mubr.f32.gmra.mrb[0].mxu0 %v3500
        %v3935 = vpop.f32.mrb[0].mxu0
        %v3936 = vadd.f32 %v3711, %v3935
        %v3937 = vpop.f32.mrb[0].mxu0
        %3938 = vmatprep.mubr.f32.mxu0 0.0
        %3939 = vmatmul.mubr.f32.gmra.mrb[0].mxu0 %v3501
        %v3940 = vpop.f32.mrb[0].mxu0
        %v3941 = vadd.f32 %v3716, %v3940
        %v3942 = vpop.f32.mrb[0].mxu0
        %3943 = vmatprep.mubr.f32.mxu0 0.0
        %3944 = vmatmul.mubr.f32.gmra.mrb[0].mxu0 %v3502
        %v3945 = vpop.f32.mrb[0].mxu0
        %v3946 = vadd.f32 %v3721, %v3945
        %v3947 = vpop.f32.mrb[0].mxu0
        %3948 = vmatprep.mubr.f32.mxu0 0.0
        %3949 = vmatmul.mubr.f32.gmra.mrb[0].mxu0 %v3503
        %v3950 = vpop.f32.mrb[0].mxu0
        %v3951 = vadd.f32 %v3726, %v3950
        %v3952 = vpop.f32.mrb[0].mxu0
        %3953 = vmatprep.mubr.f32.mxu0 0.0
        %3954 = vmatmul.mubr.f32.gmra.mrb[0].mxu0 %v3504
        %v3955 = vpop.f32.mrb[0].mxu0
        %v3956 = vadd.f32 %v3731, %v3955
        %v3957 = vpop.f32.mrb[0].mxu0
        %3958 = vmatprep.mubr.f32.mxu0 0.0
        %3959 = vmatmul.mubr.f32.gmra.mrb[0].mxu0 %v3505
        %v3960 = vpop.f32.mrb[0].mxu0
        %v3961 = vadd.f32 %v3736, %v3960
        %v3962 = vpop.f32.mrb[0].mxu0
        %3963 = vmatprep.mubr.f32.mxu0 0.0
        %3964 = vmatmul.mubr.f32.gmra.mrb[0].mxu0 %v3506
        %v3965 = vpop.f32.mrb[0].mxu0
        %v3966 = vadd.f32 %v3741, %v3965
        %v3967 = vpop.f32.mrb[0].mxu0
        %3968 = vmatprep.mubr.f32.mxu0 0.0
        %3969 = vmatmul.mubr.f32.gmra.mrb[0].mxu0 %v3507
        %v3970 = vpop.f32.mrb[0].mxu0
        %v3971 = vadd.f32 %v3746, %v3970
        %v3972 = vpop.f32.mrb[0].mxu0
        %3973 = vmatprep.mubr.f32.mxu0 0.0
        %3974 = vmatmul.mubr.f32.gmra.mrb[0].mxu0 %v3508
        %v3975 = vpop.f32.mrb[0].mxu0
        %v3976 = vadd.f32 %v3751, %v3975
        %v3977 = vpop.f32.mrb[0].mxu0
        %3978 = vmatprep.mubr.f32.mxu0 0.0
        %3979 = vmatmul.mubr.f32.gmra.mrb[0].mxu0 %v3509
        %v3980 = vpop.f32.mrb[0].mxu0
        %v3981 = vadd.f32 %v3756, %v3980
        %v3982 = vpop.f32.mrb[0].mxu0
        %3983 = vmatprep.mubr.f32.mxu0 0.0
        %3984 = vmatmul.mubr.f32.gmra.mrb[0].mxu0 %v3510
        %v3985 = vpop.f32.mrb[0].mxu0
        %v3986 = vadd.f32 %v3761, %v3985
        %v3987 = vpop.f32.mrb[0].mxu0
        %3988 = vmatprep.mubr.f32.mxu0 0.0
        %3989 = vmatmul.mubr.f32.gmra.mrb[0].mxu0 %v3511
        %v3990 = vpop.f32.mrb[0].mxu0
        %v3991 = vadd.f32 %v3766, %v3990
        %v3992 = vpop.f32.mrb[0].mxu0
        %3993 = vmatprep.mubr.f32.mxu0 0.0
        %3994 = vmatmul.mubr.f32.gmra.mrb[0].mxu0 %v3512
        %v3995 = vpop.f32.mrb[0].mxu0
        %v3996 = vadd.f32 %v3771, %v3995
        %v3997 = vpop.f32.mrb[0].mxu0
        %3998 = vmatprep.mubr.f32.mxu0 0.0
        %3999 = vmatmul.mubr.f32.gmra.mrb[0].mxu0 %v3513
        %v4000 = vpop.f32.mrb[0].mxu0
        %v4001 = vadd.f32 %v3776, %v4000
        %v4002 = vpop.f32.mrb[0].mxu0
        %4003 = vmatprep.mubr.f32.mxu0 0.0
        %4004 = vmatmul.mubr.f32.gmra.mrb[0].mxu0 %v3514
        %v4005 = vpop.f32.mrb[0].mxu0
        %v4006 = vadd.f32 %v3781, %v4005
        %v4007 = vpop.f32.mrb[0].mxu0
        %4008 = vmatprep.mubr.f32.mxu0 0.0
        %4009 = vmatmul.mubr.f32.gmra.mrb[0].mxu0 %v3515
        %v4010 = vpop.f32.mrb[0].mxu0
        %v4011 = vadd.f32 %v3786, %v4010
        %v4012 = vpop.f32.mrb[0].mxu0
        %4013 = vdwg.mxu0
        %v4014 = vadd.f32 %v3261, %v3856
        %v4015 = vadd.f32 %v3266, %v3861
        %v4016 = vadd.f32 %v3271, %v3866
        %v4017 = vadd.f32 %v3276, %v3871
        %v4018 = vadd.f32 %v3281, %v3876
        %v4019 = vadd.f32 %v3286, %v3881
        %v4020 = vadd.f32 %v3291, %v3886
        %v4021 = vadd.f32 %v3296, %v3891
        %v4022 = vadd.f32 %v3301, %v3896
        %v4023 = vadd.f32 %v3306, %v3901
        %v4024 = vadd.f32 %v3311, %v3906
        %v4025 = vadd.f32 %v3316, %v3911
        %v4026 = vadd.f32 %v3321, %v3916
        %v4027 = vadd.f32 %v3326, %v3921
        %v4028 = vadd.f32 %v3331, %v3926
        %v4029 = vadd.f32 %v3336, %v3931
        %v4030 = vadd.f32 %v3341, %v3936
        %v4031 = vadd.f32 %v3346, %v3941
        %v4032 = vadd.f32 %v3351, %v3946
        %v4033 = vadd.f32 %v3356, %v3951
        %v4034 = vadd.f32 %v3361, %v3956
        %v4035 = vadd.f32 %v3366, %v3961
        %v4036 = vadd.f32 %v3371, %v3966
        %v4037 = vadd.f32 %v3376, %v3971
        %v4038 = vadd.f32 %v3381, %v3976
        %v4039 = vadd.f32 %v3386, %v3981
        %v4040 = vadd.f32 %v3391, %v3986
        %v4041 = vadd.f32 %v3396, %v3991
        %v4042 = vadd.f32 %v3401, %v3996
        %v4043 = vadd.f32 %v3406, %v4001
        %v4044 = vadd.f32 %v3411, %v4006
        %v4045 = vadd.f32 %v3416, %v4011
        %v4046 = vld [vmem:[%s4] sm:$0x1]
        %v4048 = vlaneseq
        %v4049 = vshrl.u32 %v4048, 7
        %v4050 = vsub.s32 0, %v4049
        %v4051 = vrot.slane %v4046, %v4050
        %v4053 = vadd.f32 %v4014, %v4051
        %v4054 = vadd.f32 %v4015, %v4051
        %v4055 = vadd.f32 %v4016, %v4051
        %v4056 = vadd.f32 %v4017, %v4051
        %v4057 = vadd.f32 %v4018, %v4051
        %v4058 = vadd.f32 %v4019, %v4051
        %v4059 = vadd.f32 %v4020, %v4051
        %v4060 = vadd.f32 %v4021, %v4051
        %v4061 = vadd.f32 %v4022, %v4051
        %v4062 = vadd.f32 %v4023, %v4051
        %v4063 = vadd.f32 %v4024, %v4051
        %v4064 = vadd.f32 %v4025, %v4051
        %v4065 = vadd.f32 %v4026, %v4051
        %v4066 = vadd.f32 %v4027, %v4051
        %v4067 = vadd.f32 %v4028, %v4051
        %v4068 = vadd.f32 %v4029, %v4051
        %v4069 = vadd.f32 %v4030, %v4051
        %v4070 = vadd.f32 %v4031, %v4051
        %v4071 = vadd.f32 %v4032, %v4051
        %v4072 = vadd.f32 %v4033, %v4051
        %v4073 = vadd.f32 %v4034, %v4051
        %v4074 = vadd.f32 %v4035, %v4051
        %v4075 = vadd.f32 %v4036, %v4051
        %v4076 = vadd.f32 %v4037, %v4051
        %v4077 = vadd.f32 %v4038, %v4051
        %v4078 = vadd.f32 %v4039, %v4051
        %v4079 = vadd.f32 %v4040, %v4051
        %v4080 = vadd.f32 %v4041, %v4051
        %v4081 = vadd.f32 %v4042, %v4051
        %v4082 = vadd.f32 %v4043, %v4051
        %v4083 = vadd.f32 %v4044, %v4051
        %v4084 = vadd.f32 %v4045, %v4051
        %v4085 = vld [vmem:[%s416 + $0x1] sm:$0xff]
        %v4086 = vld [vmem:[%s416 + $0x9] sm:$0xff]
        %v4087 = vld [vmem:[%s416 + $0x19] sm:$0xff]
        %v4088 = vld [vmem:[%s416 + $0x21] sm:$0xff]
        %v4089 = vld [vmem:[%s416 + $0x31] sm:$0xff]
        %v4090 = vld [vmem:[%s416 + $0x39] sm:$0xff]
        %v4091 = vld [vmem:[%s416 + $0x49] sm:$0xff]
        %v4092 = vld [vmem:[%s416 + $0x51] sm:$0xff]
        %v4093 = vld [vmem:[%s416 + $0x61] sm:$0xff]
        %v4094 = vld [vmem:[%s416 + $0x69] sm:$0xff]
        %v4095 = vld [vmem:[%s416 + $0x79] sm:$0xff]
        %v4096 = vld [vmem:[%s416 + $0x81] sm:$0xff]
        %v4097 = vld [vmem:[%s416 + $0x91] sm:$0xff]
        %v4098 = vld [vmem:[%s416 + $0x99] sm:$0xff]
        %v4099 = vld [vmem:[%s416 + $0xa9] sm:$0xff]
        %v4100 = vld [vmem:[%s416 + $0xb1] sm:$0xff]
        %v4101 = vld [vmem:[%s416 + $0xc1] sm:$0xff]
        %v4102 = vld [vmem:[%s416 + $0xc9] sm:$0xff]
        %v4103 = vld [vmem:[%s416 + $0xd9] sm:$0xff]
        %v4104 = vld [vmem:[%s416 + $0xe1] sm:$0xff]
        %v4105 = vld [vmem:[%s416 + $0xf1] sm:$0xff]
        %v4106 = vld [vmem:[%s416 + $0xf9] sm:$0xff]
        %v4107 = vld [vmem:[%s416 + $0x109] sm:$0xff]
        %v4108 = vld [vmem:[%s416 + $0x111] sm:$0xff]
        %v4109 = vld [vmem:[%s416 + $0x121] sm:$0xff]
        %v4110 = vld [vmem:[%s416 + $0x129] sm:$0xff]
        %v4111 = vld [vmem:[%s416 + $0x139] sm:$0xff]
        %v4112 = vld [vmem:[%s416 + $0x141] sm:$0xff]
        %v4113 = vld [vmem:[%s416 + $0x151] sm:$0xff]
        %v4114 = vld [vmem:[%s416 + $0x159] sm:$0xff]
        %v4115 = vld [vmem:[%s416 + $0x169] sm:$0xff]
        %v4116 = vld [vmem:[%s416 + $0x171] sm:$0xff]
        %v4117 = vadd.f32 %v4053, %v4085
        %v4118 = vadd.f32 %v4054, %v4086
        %v4119 = vadd.f32 %v4055, %v4087
        %v4120 = vadd.f32 %v4056, %v4088
        %v4121 = vadd.f32 %v4057, %v4089
        %v4122 = vadd.f32 %v4058, %v4090
        %v4123 = vadd.f32 %v4059, %v4091
        %v4124 = vadd.f32 %v4060, %v4092
        %v4125 = vadd.f32 %v4061, %v4093
        %v4126 = vadd.f32 %v4062, %v4094
        %v4127 = vadd.f32 %v4063, %v4095
        %v4128 = vadd.f32 %v4064, %v4096
        %v4129 = vadd.f32 %v4065, %v4097
        %v4130 = vadd.f32 %v4066, %v4098
        %v4131 = vadd.f32 %v4067, %v4099
        %v4132 = vadd.f32 %v4068, %v4100
        %v4133 = vadd.f32 %v4069, %v4101
        %v4134 = vadd.f32 %v4070, %v4102
        %v4135 = vadd.f32 %v4071, %v4103
        %v4136 = vadd.f32 %v4072, %v4104
        %v4137 = vadd.f32 %v4073, %v4105
        %v4138 = vadd.f32 %v4074, %v4106
        %v4139 = vadd.f32 %v4075, %v4107
        %v4140 = vadd.f32 %v4076, %v4108
        %v4141 = vadd.f32 %v4077, %v4109
        %v4142 = vadd.f32 %v4078, %v4110
        %v4143 = vadd.f32 %v4079, %v4111
        %v4144 = vadd.f32 %v4080, %v4112
        %v4145 = vadd.f32 %v4081, %v4113
        %v4146 = vadd.f32 %v4082, %v4114
        %v4147 = vadd.f32 %v4083, %v4115
        %v4148 = vadd.f32 %v4084, %v4116
        %v4149 = vmax.f32 %v4117, 0.0
        %v4150 = vmax.f32 %v4118, 0.0
        %v4151 = vmax.f32 %v4119, 0.0
        %v4152 = vmax.f32 %v4120, 0.0
        %v4153 = vmax.f32 %v4121, 0.0
        %v4154 = vmax.f32 %v4122, 0.0
        %v4155 = vmax.f32 %v4123, 0.0
        %v4156 = vmax.f32 %v4124, 0.0
        %v4157 = vmax.f32 %v4125, 0.0
        %v4158 = vmax.f32 %v4126, 0.0
        %v4159 = vmax.f32 %v4127, 0.0
        %v4160 = vmax.f32 %v4128, 0.0
        %v4161 = vmax.f32 %v4129, 0.0
        %v4162 = vmax.f32 %v4130, 0.0
        %v4163 = vmax.f32 %v4131, 0.0
        %v4164 = vmax.f32 %v4132, 0.0
        %v4165 = vmax.f32 %v4133, 0.0
        %v4166 = vmax.f32 %v4134, 0.0
        %v4167 = vmax.f32 %v4135, 0.0
        %v4168 = vmax.f32 %v4136, 0.0
        %v4169 = vmax.f32 %v4137, 0.0
        %v4170 = vmax.f32 %v4138, 0.0
        %v4171 = vmax.f32 %v4139, 0.0
        %v4172 = vmax.f32 %v4140, 0.0
        %v4173 = vmax.f32 %v4141, 0.0
        %v4174 = vmax.f32 %v4142, 0.0
        %v4175 = vmax.f32 %v4143, 0.0
        %v4176 = vmax.f32 %v4144, 0.0
        %v4177 = vmax.f32 %v4145, 0.0
        %v4178 = vmax.f32 %v4146, 0.0
        %v4179 = vmax.f32 %v4147, 0.0
        %v4180 = vmax.f32 %v4148, 0.0
        %4181 = vst [vmem:[%s271] sm:$0xff] %v4149
        %4182 = vst [vmem:[%s271 + $0x8] sm:$0xff] %v4150
        %4183 = vst [vmem:[%s271 + $0x10] sm:$0xff] %v4151
        %4184 = vst [vmem:[%s271 + $0x18] sm:$0xff] %v4152
        %4185 = vst [vmem:[%s271 + $0x20] sm:$0xff] %v4153
        %4186 = vst [vmem:[%s271 + $0x28] sm:$0xff] %v4154
        %4187 = vst [vmem:[%s271 + $0x30] sm:$0xff] %v4155
        %4188 = vst [vmem:[%s271 + $0x38] sm:$0xff] %v4156
        %4189 = vst [vmem:[%s271 + $0x40] sm:$0xff] %v4157
        %4190 = vst [vmem:[%s271 + $0x48] sm:$0xff] %v4158
        %4191 = vst [vmem:[%s271 + $0x50] sm:$0xff] %v4159
        %4192 = vst [vmem:[%s271 + $0x58] sm:$0xff] %v4160
        %4193 = vst [vmem:[%s271 + $0x60] sm:$0xff] %v4161
        %4194 = vst [vmem:[%s271 + $0x68] sm:$0xff] %v4162
        %4195 = vst [vmem:[%s271 + $0x70] sm:$0xff] %v4163
        %4196 = vst [vmem:[%s271 + $0x78] sm:$0xff] %v4164
        %4197 = vst [vmem:[%s271 + $0x80] sm:$0xff] %v4165
        %4198 = vst [vmem:[%s271 + $0x88] sm:$0xff] %v4166
        %4199 = vst [vmem:[%s271 + $0x90] sm:$0xff] %v4167
        %4200 = vst [vmem:[%s271 + $0x98] sm:$0xff] %v4168
        %4201 = vst [vmem:[%s271 + $0xa0] sm:$0xff] %v4169
        %4202 = vst [vmem:[%s271 + $0xa8] sm:$0xff] %v4170
        %4203 = vst [vmem:[%s271 + $0xb0] sm:$0xff] %v4171
        %4204 = vst [vmem:[%s271 + $0xb8] sm:$0xff] %v4172
        %4205 = vst [vmem:[%s271 + $0xc0] sm:$0xff] %v4173
        %4206 = vst [vmem:[%s271 + $0xc8] sm:$0xff] %v4174
        %4207 = vst [vmem:[%s271 + $0xd0] sm:$0xff] %v4175
        %4208 = vst [vmem:[%s271 + $0xd8] sm:$0xff] %v4176
        %4209 = vst [vmem:[%s271 + $0xe0] sm:$0xff] %v4177
        %4210 = vst [vmem:[%s271 + $0xe8] sm:$0xff] %v4178
        %4211 = vst [vmem:[%s271 + $0xf0] sm:$0xff] %v4179
        %4212 = vst [vmem:[%s271 + $0xf8] sm:$0xff] %v4180
        %s4213 = sand.u32 %s141, 1
        %s4214 = scalar_lea.sflag [#allocation5], %s4213
        %s4215 = sand.u32 %s141, 1
        %s4216 = smul.addr %s4215, 256
        %s4217 = scalar_lea.vmem [#allocation9], %s4216
        // Predicated region
        $region53: #{tpu_custom_call.1} parent=39 // pred_check
          %p4218 = pneg %p151
        $region54: #{tpu_custom_call.1} parent=39 // pred_check_branch
          %4220 = sbr.rel (%p4218) target = $region56
        $region55: #{tpu_custom_call.1} parent=39 // pred_region
          %s4222 = ssub.s32 4096, 4096
          %4223 = vsyncadd %s4214, %s4222
          %s4224 = smul.addr %s23, 32
          %s4225 = smul.addr %s4224, 128
          %s4226 = scalar_lea.hbm %s5, %s4225
          %s4227 = sshll.u32 %s4217, 4
          %s4228 = int_to_ptr.vmem [resolvable:$true] %s4227
          %4233 = dma.vmem_to_hbm [thread:$0]  %s4228, 4096, %s4226, %s4214, 128, 128, 8
        $region56: #{tpu_custom_call.1} parent=39 // pred_fallthru
          _
      $region40: #{tpu_custom_call.1} parent=5 // pred_fallthru
        _
      %p4234 = scmp.le.s32.totalorder 2, %s18
      // Predicated region
      $region57: #{tpu_custom_call.1} parent=5 // pred_check
        %p4235 = pneg %p4234
      $region58: #{tpu_custom_call.1} parent=5 // pred_check_branch
        %4237 = sbr.rel (%p4235) target = $region60
      $region59: #{tpu_custom_call.1} parent=5 // pred_region
        %s4238 = ssub.s32 %s18, 2
        // Predicated region
        $region61: #{tpu_custom_call.1} parent=59 // pred_check
          %p4239 = pneg %p157
        $region62: #{tpu_custom_call.1} parent=59 // pred_check_branch
          %4241 = sbr.rel (%p4239) target = $region64
        $region63: #{tpu_custom_call.1} parent=59 // pred_region
          %s4242 = sand.u32 %s142, 1
          %s4243 = scalar_lea.sflag [#allocation5], %s4242
          %s4244 = sand.u32 %s142, 1
          %s4245 = smul.addr %s4244, 256
          %s4246 = scalar_lea.vmem [#allocation9], %s4245
          %4247 = dma.done %s4243, 4096
        $region64: #{tpu_custom_call.1} parent=59 // pred_fallthru
          _
      $region60: #{tpu_custom_call.1} parent=5 // pred_fallthru
        _
    $region6: #{tpu_custom_call.1} parent=1 // loop_footer
      %s22 = sadd.s32 1, %s18
    $region7: #{tpu_custom_call.1} parent=1 // loop_footer_branch
      %17 = sbr.rel target = $region3
    $region8: #{tpu_custom_call.1} parent=1 // loop_exit
      _
    %4248 = vsyncpa [#allocation4], 1
    %s4249 = scalar_lea.sflag [#allocation4], 1
    %4250 = vsyncpa %s4249, 1
    %4251 = vsyncpa [#allocation7], 1
    %4252 = vsyncpa [#allocation5], 1
    %s4253 = scalar_lea.sflag [#allocation5], 1
    %4254 = vsyncpa %s4253, 1

</llo_original>
